<compile_context>
chip_gen: v5e
topology: v5e:2x2
jax: 0.10.0
libtpu: 0.0.40
codegen_flags: <defaults>
</compile_context>

<pallas_src>
import functools
import math

import numpy as np

import jax
import jax.numpy as jnp
from jax.experimental import pallas as pl
from jax.experimental.pallas import tpu as pltpu

# -----------------------------------------------------------------------------
# Config (small shapes, consistent with the module's forward)
# -----------------------------------------------------------------------------
ATTN_LEN = 5
NTOKEN = 2
DMODEL = 32
NHEAD = 2
D_HID = 64
NLAYERS = 3
HEAD_DIM = DMODEL // NHEAD
N_TEMPO = 300  # out_linear_t output size (fixed at 300 in the reference module)


# -----------------------------------------------------------------------------
# Conv front-end: fused conv(matmul) + bias + MaxPool2d((1,3),(1,3)) + ReLU
# -----------------------------------------------------------------------------
def _conv_pool_relu_kernel(pa_ref, pb_ref, pc_ref, w_ref, b_ref, o_ref):
    w = w_ref[...]
    ya = jnp.dot(pa_ref[...], w, preferred_element_type=jnp.float32)
    yb = jnp.dot(pb_ref[...], w, preferred_element_type=jnp.float32)
    yc = jnp.dot(pc_ref[...], w, preferred_element_type=jnp.float32)
    # max(conv + bias) == max(conv) + bias ; relu after pool (monotone)
    y = jnp.maximum(jnp.maximum(ya, yb), yc) + b_ref[...]
    o_ref[...] = jnp.maximum(y, 0.0).astype(o_ref.dtype)


def conv_pool_relu_pallas(x, w, b, pad):
    """Conv2d(stride 1, torch (Cout,Cin,KH,KW) weights) + MaxPool2d((1,3)) + ReLU.
    x: NHWC (B, H, W, Cin). Returns (B, OH, OW//3, Cout)."""
    Cout, Cin, KH, KW = w.shape
    ph, pw = pad
    B, H, W, C = x.shape
    assert C == Cin
    xp = jnp.pad(x, ((0, 0), (ph, ph), (pw, pw), (0, 0)))
    OH = H + 2 * ph - KH + 1
    OW = W + 2 * pw - KW + 1
    OW3 = OW // 3

    # im2col (XLA glue); consumed immediately by the fused kernel below.
    cols = []
    for i in range(KH):
        for j in range(KW):
            cols.append(xp[:, i:i + OH, j:j + OW, :])
    patches = jnp.stack(cols, axis=3)                 # (B, OH, OW, KH*KW, Cin)
    patches = patches.transpose(0, 1, 2, 4, 3)        # (B, OH, OW, Cin, KH*KW)
    K = Cin * KH * KW
    patches = patches.reshape(B, OH, OW, K)
    # three pooling phases (columns 3k, 3k+1, 3k+2)
    pa = patches[:, :, 0:OW3 * 3:3, :].reshape(B, OH * OW3, K)
    pb = patches[:, :, 1:OW3 * 3:3, :].reshape(B, OH * OW3, K)
    pc = patches[:, :, 2:OW3 * 3:3, :].reshape(B, OH * OW3, K)

    wmat = w.reshape(Cout, K).T                       # (K, Cout), matches torch flattening
    bias = b.reshape(1, Cout)
    M = OH * OW3

    out = pl.pallas_call(
        _conv_pool_relu_kernel,
        out_shape=jax.ShapeDtypeStruct((B, M, Cout), jnp.float32),
        grid=(B,),
        in_specs=[
            pl.BlockSpec((None, M, K), lambda i: (i, 0, 0)),
            pl.BlockSpec((None, M, K), lambda i: (i, 0, 0)),
            pl.BlockSpec((None, M, K), lambda i: (i, 0, 0)),
            pl.BlockSpec((K, Cout), lambda i: (0, 0)),
            pl.BlockSpec((1, Cout), lambda i: (0, 0)),
        ],
        out_specs=pl.BlockSpec((None, M, Cout), lambda i: (i, 0, 0)),
        compiler_params=pltpu.CompilerParams(dimension_semantics=("parallel",)),
    )(pa, pb, pc, wmat, bias)
    return out.reshape(B, OH, OW3, Cout)


# -----------------------------------------------------------------------------
# Fused transformer stack + output heads (one pallas_call, grid over batch)
# -----------------------------------------------------------------------------
def _stack_kernel(h_ref, wqkv_ref, bqkv_ref, er_ref,
                  ln1g_ref, ln1b_ref, ln2g_ref, ln2b_ref,
                  w1_ref, b1_ref, w2_ref, b2_ref,
                  outw_ref, outb_ref, outtw_ref, outtb_ref,
                  sel_ref, mask_ref,
                  beat_ref, tempo_ref):
    scale = 1.0 / math.sqrt(HEAD_DIM)

    def layer_norm(v, g, b, eps=1e-5):
        mu = jnp.mean(v, axis=-1, keepdims=True)
        var = jnp.mean((v - mu) ** 2, axis=-1, keepdims=True)
        return (v - mu) * jax.lax.rsqrt(var + eps) * g + b

    x = h_ref[...].astype(jnp.float32)                # (T, D), VMEM resident
    skip_sum = jnp.zeros_like(x)

    for layer in range(NLAYERS):
        # --- pre-LN + fused QKV projection (one MXU pass, N = 3*D) ---
        h1 = layer_norm(x, ln1g_ref[layer], ln1b_ref[layer])
        qkv = jnp.dot(h1, wqkv_ref[layer],
                      preferred_element_type=jnp.float32) + bqkv_ref[layer]   # (T, 3D)

        sels = [sel_ref[layer * ATTN_LEN + l] for l in range(ATTN_LEN)]        # (T, T) each
        msk = mask_ref[layer]                                                  # (T, T)

        head_outs = []
        for hd_i in range(NHEAD):
            lo = hd_i * HEAD_DIM
            q = qkv[:, lo:lo + HEAD_DIM]
            k = qkv[:, DMODEL + lo:DMODEL + lo + HEAD_DIM]
            v = qkv[:, 2 * DMODEL + lo:2 * DMODEL + lo + HEAD_DIM]

            # dense content scores on the MXU: q @ k^T  -> (T, T)
            qk = jax.lax.dot_general(q, k, (((1,), (1,)), ((), ())),
                                     preferred_element_type=jnp.float32)
            # relative-position scores: q @ Er^T -> (T, L), scattered onto the band
            qe = jnp.dot(q, er_ref[layer * NHEAD + hd_i],
                         preferred_element_type=jnp.float32)                   # (T, L)
            rel = qe[:, 0:1] * sels[0]
            for l in range(1, ATTN_LEN):
                rel = rel + qe[:, l:l + 1] * sels[l]

            s = (qk + rel) * scale + msk
            s = s - jnp.max(s, axis=-1, keepdims=True)
            p = jnp.exp(s)
            p = p * pl.reciprocal(jnp.sum(p, axis=-1, keepdims=True), approx=True)
            head_outs.append(jnp.dot(p, v, preferred_element_type=jnp.float32))

        attn = jnp.concatenate(head_outs, axis=-1)     # (T, D)
        skip_sum = skip_sum + attn                     # dropout1 = identity (eval)
        x = x + attn

        # --- feed-forward ---
        h2 = layer_norm(x, ln2g_ref[layer], ln2b_ref[layer])
        ff = jnp.maximum(jnp.dot(h2, w1_ref[layer],
                                 preferred_element_type=jnp.float32) + b1_ref[layer], 0.0)
        ff = jnp.dot(ff, w2_ref[layer],
                     preferred_element_type=jnp.float32) + b2_ref[layer]
        x = x + ff                                     # dropouts = identity (eval)

    # --- beat head: relu -> out_linear ---
    beat = jnp.dot(jnp.maximum(x, 0.0), outw_ref[...],
                   preferred_element_type=jnp.float32) + outb_ref[...]
    beat_ref[...] = beat.astype(beat_ref.dtype)

    # --- tempo head: sum(skips) -> relu -> (dropout_t identity) -> mean_T -> linear ---
    t = jnp.mean(jnp.maximum(skip_sum, 0.0), axis=0, keepdims=True)            # (1, D)
    tempo = jnp.dot(t, outtw_ref[...],
                    preferred_element_type=jnp.float32) + outtb_ref[...]
    tempo_ref[...] = tempo.astype(tempo_ref.dtype)


def _dilation_tables(T):
    """Compile-time constants: slot-selection one-hots and additive band masks."""
    sel = np.zeros((NLAYERS * ATTN_LEN, T, T), np.float32)
    mask = np.full((NLAYERS, T, T), -1e9, np.float32)
    center = (ATTN_LEN - 1) // 2
    for layer in range(NLAYERS):
        dil = 2 ** layer
        for l in range(ATTN_LEN):
            off = dil * (l - center)
            for i in range(T):
                j = i + off
                if 0 <= j < T:
                    sel[layer * ATTN_LEN + l, i, j] = 1.0
                    mask[layer, i, j] = 0.0
    return jnp.asarray(sel), jnp.asarray(mask)


def transformer_stack_pallas(h, pk):
    """h: (B, T, D) -> (beat (B,T,NTOKEN), tempo (B, N_TEMPO)), one fused kernel."""
    B, T, D = h.shape
    sel, mask = _dilation_tables(T)

    def _bcast(arr):
        shape = tuple(arr.shape)
        n = len(shape)
        return pl.BlockSpec(shape, lambda b, _n=n: (0,) * _n)

    in_arrays = [
        pk["wqkv"], pk["bqkv"], pk["er_t"],
        pk["ln1_g"], pk["ln1_b"], pk["ln2_g"], pk["ln2_b"],
        pk["w1"], pk["b1"], pk["w2"], pk["b2"],
        pk["out_w"], pk["out_b"], pk["out_t_w"], pk["out_t_b"],
        sel, mask,
    ]
    in_specs = [pl.BlockSpec((None, T, D), lambda b: (b, 0, 0))]
    in_specs += [_bcast(a) for a in in_arrays]

    beat, tempo = pl.pallas_call(
        _stack_kernel,
        out_shape=(
            jax.ShapeDtypeStruct((B, T, NTOKEN), jnp.float32),
            jax.ShapeDtypeStruct((B, 1, N_TEMPO), jnp.float32),
        ),
        grid=(B,),
        in_specs=in_specs,
        out_specs=(
            pl.BlockSpec((None, T, NTOKEN), lambda b: (b, 0, 0)),
            pl.BlockSpec((None, 1, N_TEMPO), lambda b: (b, 0, 0)),
        ),
        compiler_params=pltpu.CompilerParams(dimension_semantics=("parallel",)),
    )(h, *in_arrays)
    return beat, tempo.reshape(B, N_TEMPO)


# -----------------------------------------------------------------------------
# Full forward
# -----------------------------------------------------------------------------
def model_forward(x, pk):
    """x: (B, T, F) spectrogram -> (beat_logits (B,T,ntoken), tempo_logits (B,300))."""
    h = x[..., None]                                                # NHWC, C=1 (unsqueeze(1))
    h = conv_pool_relu_pallas(h, pk["conv1_w"], pk["conv1_b"], pad=(2, 0))
    h = conv_pool_relu_pallas(h, pk["conv2_w"], pk["conv2_b"], pad=(0, 0))
    h = conv_pool_relu_pallas(h, pk["conv3_w"], pk["conv3_b"], pad=(1, 0))
    h = h[:, :, 0, :]                                               # == transpose(1,3).squeeze(1)
    return transformer_stack_pallas(h, pk)


# -----------------------------------------------------------------------------
# Parameters (deterministic synthetic) and packing into fused kernel layout
# -----------------------------------------------------------------------------
def init_params(key):
    def dense(k, fan_in, shape):
        return jax.random.normal(k, shape, jnp.float32) / math.sqrt(fan_in)

    keys = iter(jax.random.split(key, 256))
    p = {
        "conv1_w": dense(next(keys), 1 * 5 * 3, (32, 1, 5, 3)),
        "conv1_b": jnp.zeros((32,), jnp.float32),
        "conv2_w": dense(next(keys), 32 * 1 * 12, (64, 32, 1, 12)),
        "conv2_b": jnp.zeros((64,), jnp.float32),
        "conv3_w": dense(next(keys), 64 * 3 * 6, (DMODEL, 64, 3, 6)),
        "conv3_b": jnp.zeros((DMODEL,), jnp.float32),
    }
    layers = []
    for _ in range(NLAYERS):
        lp = {
            "wq": dense(next(keys), DMODEL, (DMODEL, DMODEL)),
            "bq": jnp.zeros((DMODEL,), jnp.float32),
            "wk": dense(next(keys), DMODEL, (DMODEL, DMODEL)),
            "bk": jnp.zeros((DMODEL,), jnp.float32),
            "wv": dense(next(keys), DMODEL, (DMODEL, DMODEL)),
            "bv": jnp.zeros((DMODEL,), jnp.float32),
            "er": dense(next(keys), HEAD_DIM, (NHEAD, ATTN_LEN, HEAD_DIM)),
            "ln1_g": jnp.ones((DMODEL,), jnp.float32),
            "ln1_b": jnp.zeros((DMODEL,), jnp.float32),
            "ln2_g": jnp.ones((DMODEL,), jnp.float32),
            "ln2_b": jnp.zeros((DMODEL,), jnp.float32),
            "w1": dense(next(keys), DMODEL, (DMODEL, D_HID)),
            "b1": jnp.zeros((D_HID,), jnp.float32),
            "w2": dense(next(keys), D_HID, (D_HID, DMODEL)),
            "b2": jnp.zeros((DMODEL,), jnp.float32),
        }
        layers.append(lp)
    p["layers"] = layers
    p["out_w"] = dense(next(keys), DMODEL, (DMODEL, NTOKEN))
    p["out_b"] = jnp.zeros((NTOKEN,), jnp.float32)
    p["out_t_w"] = dense(next(keys), DMODEL, (DMODEL, N_TEMPO))
    p["out_t_b"] = jnp.zeros((N_TEMPO,), jnp.float32)
    return p


def pack_params(p):
    """Stack per-layer params and fuse QKV weights so the whole stack is one kernel."""
    layers = p["layers"]

    def stack(name):
        return jnp.stack([lp[name] for lp in layers], axis=0)

    wqkv = jnp.stack(
        [jnp.concatenate([lp["wq"], lp["wk"], lp["wv"]], axis=1) for lp in layers], axis=0)
    bqkv = jnp.stack(
        [jnp.concatenate([lp["bq"], lp["bk"], lp["bv"]], axis=0) for lp in layers],
        axis=0)[:, None, :]
    er_t = jnp.stack([jnp.transpose(lp["er"], (0, 2, 1)) for lp in layers], axis=0)
    er_t = er_t.reshape(NLAYERS * NHEAD, HEAD_DIM, ATTN_LEN)

    return {
        "conv1_w": p["conv1_w"], "conv1_b": p["conv1_b"],
        "conv2_w": p["conv2_w"], "conv2_b": p["conv2_b"],
        "conv3_w": p["conv3_w"], "conv3_b": p["conv3_b"],
        "wqkv": wqkv, "bqkv": bqkv, "er_t": er_t,
        "ln1_g": stack("ln1_g")[:, None, :], "ln1_b": stack("ln1_b")[:, None, :],
        "ln2_g": stack("ln2_g")[:, None, :], "ln2_b": stack("ln2_b")[:, None, :],
        "w1": stack("w1"), "b1": stack("b1")[:, None, :],
        "w2": stack("w2"), "b2": stack("b2")[:, None, :],
        "out_w": p["out_w"], "out_b": p["out_b"].reshape(1, NTOKEN),
        "out_t_w": p["out_t_w"], "out_t_b": p["out_t_b"].reshape(1, N_TEMPO),
    }


if __name__ == "__main__":
    key = jax.random.PRNGKey(0)
    pkey, xkey = jax.random.split(key)
    params = init_params(pkey)
    packed = pack_params(params)    # one-time fusion/packing outside jit

    # Input (batch, time, freq). Freq must be >= 107 so the conv/pool stack reduces
    # the freq axis to exactly 1 (as required by transpose(1,3).squeeze(1)); 128 is
    # the natural mel-bin count of the reference model.
    B, T, F = 2, 16, 128
    x = jax.random.normal(xkey, (B, T, F), jnp.float32)

    fwd = jax.jit(model_forward)
    beat, tempo = fwd(x, packed)
    jax.block_until_ready((beat, tempo))
    assert beat.shape == (B, T, NTOKEN)
    assert tempo.shape == (B, N_TEMPO)
    print("KERNEL_OK")
</pallas_src>

<mosaic_0001>
module attributes {stable_mosaic.version = 11 : i64} {
  func.func @_conv_pool_relu_kernel(%arg0: i32, %arg1: memref<1x672x15xf32, #tpu.memory_space<vmem>>, %arg2: memref<1x672x15xf32, #tpu.memory_space<vmem>>, %arg3: memref<1x672x15xf32, #tpu.memory_space<vmem>>, %arg4: memref<15x32xf32, #tpu.memory_space<vmem>>, %arg5: memref<1x32xf32, #tpu.memory_space<vmem>>, %arg6: memref<1x672x32xf32, #tpu.memory_space<vmem>>) attributes {dimension_semantics = [#tpu.dimension_semantics<parallel>], iteration_bounds = array<i64: 2>, scalar_prefetch = 0 : i64, scratch_operands = 0 : i64, tpu.core_type = #tpu.core_type<tc>, window_params = [{transform_indices = @transform_0, window_bounds = array<i64: 1, 672, 15>}, {transform_indices = @transform_1, window_bounds = array<i64: 1, 672, 15>}, {transform_indices = @transform_2, window_bounds = array<i64: 1, 672, 15>}, {pipeline_mode = #tpu.pipeline_mode<synchronous>, transform_indices = @transform_3, window_bounds = array<i64: 15, 32>}, {pipeline_mode = #tpu.pipeline_mode<synchronous>, transform_indices = @transform_4, window_bounds = array<i64: 1, 32>}, {transform_indices = @transform_5, window_bounds = array<i64: 1, 672, 32>}]} {
    %c0 = arith.constant 0 : index
    %c0_0 = arith.constant 0 : index
    %0 = vector.load %arg4[%c0, %c0_0] : memref<15x32xf32, #tpu.memory_space<vmem>>, vector<15x32xf32>
    %c0_1 = arith.constant 0 : index
    %c0_2 = arith.constant 0 : index
    %c0_3 = arith.constant 0 : index
    %1 = vector.load %arg1[%c0_1, %c0_2, %c0_3] : memref<1x672x15xf32, #tpu.memory_space<vmem>>, vector<1x672x15xf32>
    %2 = vector.shape_cast %1 : vector<1x672x15xf32> to vector<672x15xf32>
    %cst = arith.constant dense<0.000000e+00> : vector<672x32xf32>
    %3 = tpu.matmul %2, %0, %cst {dimension_numbers = #tpu.dot_dimension_numbers<[1], [0], [0], [1], [0, 0, 1, 1], [], []>} : vector<672x15xf32>, vector<15x32xf32>, vector<672x32xf32> -> vector<672x32xf32>
    %c0_4 = arith.constant 0 : index
    %c0_5 = arith.constant 0 : index
    %c0_6 = arith.constant 0 : index
    %4 = vector.load %arg2[%c0_4, %c0_5, %c0_6] : memref<1x672x15xf32, #tpu.memory_space<vmem>>, vector<1x672x15xf32>
    %5 = vector.shape_cast %4 : vector<1x672x15xf32> to vector<672x15xf32>
    %cst_7 = arith.constant dense<0.000000e+00> : vector<672x32xf32>
    %6 = tpu.matmul %5, %0, %cst_7 {dimension_numbers = #tpu.dot_dimension_numbers<[1], [0], [0], [1], [0, 0, 1, 1], [], []>} : vector<672x15xf32>, vector<15x32xf32>, vector<672x32xf32> -> vector<672x32xf32>
    %c0_8 = arith.constant 0 : index
    %c0_9 = arith.constant 0 : index
    %c0_10 = arith.constant 0 : index
    %7 = vector.load %arg3[%c0_8, %c0_9, %c0_10] : memref<1x672x15xf32, #tpu.memory_space<vmem>>, vector<1x672x15xf32>
    %8 = vector.shape_cast %7 : vector<1x672x15xf32> to vector<672x15xf32>
    %cst_11 = arith.constant dense<0.000000e+00> : vector<672x32xf32>
    %9 = tpu.matmul %8, %0, %cst_11 {dimension_numbers = #tpu.dot_dimension_numbers<[1], [0], [0], [1], [0, 0, 1, 1], [], []>} : vector<672x15xf32>, vector<15x32xf32>, vector<672x32xf32> -> vector<672x32xf32>
    %10 = arith.maximumf %3, %6 : vector<672x32xf32>
    %11 = arith.maximumf %10, %9 : vector<672x32xf32>
    %c0_12 = arith.constant 0 : index
    %c0_13 = arith.constant 0 : index
    %12 = vector.load %arg5[%c0_12, %c0_13] : memref<1x32xf32, #tpu.memory_space<vmem>>, vector<1x32xf32>
    %13 = vector.broadcast %12 : vector<1x32xf32> to vector<672x32xf32>
    %14 = arith.addf %11, %13 : vector<672x32xf32>
    %cst_14 = arith.constant 0.000000e+00 : f32
    %15 = vector.broadcast %cst_14 : f32 to vector<672x32xf32>
    %16 = arith.maximumf %14, %15 : vector<672x32xf32>
    %c0_15 = arith.constant 0 : index
    %c0_16 = arith.constant 0 : index
    %c0_17 = arith.constant 0 : index
    %17 = vector.load %arg6[%c0_15, %c0_16, %c0_17] : memref<1x672x32xf32, #tpu.memory_space<vmem>>, vector<1x672x32xf32>
    %18 = vector.shape_cast %17 : vector<1x672x32xf32> to vector<672x32xf32>
    %19 = vector.shape_cast %16 : vector<672x32xf32> to vector<1x672x32xf32>
    tpu.vector_store %arg6[%c0_15, %c0_16, %c0_17], %19 {strides = array<i32>} : memref<1x672x32xf32, #tpu.memory_space<vmem>>, vector<1x672x32xf32>,
    return
  }
  func.func @transform_0(%arg0: i32) -> (i32, i32, i32) {
    %c0_i32 = arith.constant 0 : i32
    %c0_i32_0 = arith.constant 0 : i32
    %c0_i32_1 = arith.constant 0 : i32
    return %arg0, %c0_i32, %c0_i32_0 : i32, i32, i32
  }
  func.func @transform_1(%arg0: i32) -> (i32, i32, i32) {
    %c0_i32 = arith.constant 0 : i32
    %c0_i32_0 = arith.constant 0 : i32
    %c0_i32_1 = arith.constant 0 : i32
    return %arg0, %c0_i32, %c0_i32_0 : i32, i32, i32
  }
  func.func @transform_2(%arg0: i32) -> (i32, i32, i32) {
    %c0_i32 = arith.constant 0 : i32
    %c0_i32_0 = arith.constant 0 : i32
    %c0_i32_1 = arith.constant 0 : i32
    return %arg0, %c0_i32, %c0_i32_0 : i32, i32, i32
  }
  func.func @transform_3(%arg0: i32) -> (i32, i32) {
    %c0_i32 = arith.constant 0 : i32
    %c0_i32_0 = arith.constant 0 : i32
    %c0_i32_1 = arith.constant 0 : i32
    return %c0_i32, %c0_i32_0 : i32, i32
  }
  func.func @transform_4(%arg0: i32) -> (i32, i32) {
    %c0_i32 = arith.constant 0 : i32
    %c0_i32_0 = arith.constant 0 : i32
    %c0_i32_1 = arith.constant 0 : i32
    return %c0_i32, %c0_i32_0 : i32, i32
  }
  func.func @transform_5(%arg0: i32) -> (i32, i32, i32) {
    %c0_i32 = arith.constant 0 : i32
    %c0_i32_0 = arith.constant 0 : i32
    %c0_i32_1 = arith.constant 0 : i32
    return %arg0, %c0_i32, %c0_i32_0 : i32, i32, i32
  }
}

module attributes {stable_mosaic.version = 11 : i64} {
  func.func @_conv_pool_relu_kernel(%arg0: i32, %arg1: memref<1x160x384xf32, #tpu.memory_space<vmem>>, %arg2: memref<1x160x384xf32, #tpu.memory_space<vmem>>, %arg3: memref<1x160x384xf32, #tpu.memory_space<vmem>>, %arg4: memref<384x64xf32, #tpu.memory_space<vmem>>, %arg5: memref<1x64xf32, #tpu.memory_space<vmem>>, %arg6: memref<1x160x64xf32, #tpu.memory_space<vmem>>) attributes {dimension_semantics = [#tpu.dimension_semantics<parallel>], iteration_bounds = array<i64: 2>, scalar_prefetch = 0 : i64, scratch_operands = 0 : i64, tpu.core_type = #tpu.core_type<tc>, window_params = [{transform_indices = @transform_0, window_bounds = array<i64: 1, 160, 384>}, {transform_indices = @transform_1, window_bounds = array<i64: 1, 160, 384>}, {transform_indices = @transform_2, window_bounds = array<i64: 1, 160, 384>}, {pipeline_mode = #tpu.pipeline_mode<synchronous>, transform_indices = @transform_3, window_bounds = array<i64: 384, 64>}, {pipeline_mode = #tpu.pipeline_mode<synchronous>, transform_indices = @transform_4, window_bounds = array<i64: 1, 64>}, {transform_indices = @transform_5, window_bounds = array<i64: 1, 160, 64>}]} {
    %c0 = arith.constant 0 : index
    %c0_0 = arith.constant 0 : index
    %0 = vector.load %arg4[%c0, %c0_0] : memref<384x64xf32, #tpu.memory_space<vmem>>, vector<384x64xf32>
    %c0_1 = arith.constant 0 : index
    %c0_2 = arith.constant 0 : index
    %c0_3 = arith.constant 0 : index
    %1 = vector.load %arg1[%c0_1, %c0_2, %c0_3] : memref<1x160x384xf32, #tpu.memory_space<vmem>>, vector<1x160x384xf32>
    %2 = vector.shape_cast %1 : vector<1x160x384xf32> to vector<160x384xf32>
    %cst = arith.constant dense<0.000000e+00> : vector<160x64xf32>
    %3 = tpu.matmul %2, %0, %cst {dimension_numbers = #tpu.dot_dimension_numbers<[1], [0], [0], [1], [0, 0, 1, 1], [], []>} : vector<160x384xf32>, vector<384x64xf32>, vector<160x64xf32> -> vector<160x64xf32>
    %c0_4 = arith.constant 0 : index
    %c0_5 = arith.constant 0 : index
    %c0_6 = arith.constant 0 : index
    %4 = vector.load %arg2[%c0_4, %c0_5, %c0_6] : memref<1x160x384xf32, #tpu.memory_space<vmem>>, vector<1x160x384xf32>
    %5 = vector.shape_cast %4 : vector<1x160x384xf32> to vector<160x384xf32>
    %cst_7 = arith.constant dense<0.000000e+00> : vector<160x64xf32>
    %6 = tpu.matmul %5, %0, %cst_7 {dimension_numbers = #tpu.dot_dimension_numbers<[1], [0], [0], [1], [0, 0, 1, 1], [], []>} : vector<160x384xf32>, vector<384x64xf32>, vector<160x64xf32> -> vector<160x64xf32>
    %c0_8 = arith.constant 0 : index
    %c0_9 = arith.constant 0 : index
    %c0_10 = arith.constant 0 : index
    %7 = vector.load %arg3[%c0_8, %c0_9, %c0_10] : memref<1x160x384xf32, #tpu.memory_space<vmem>>, vector<1x160x384xf32>
    %8 = vector.shape_cast %7 : vector<1x160x384xf32> to vector<160x384xf32>
    %cst_11 = arith.constant dense<0.000000e+00> : vector<160x64xf32>
    %9 = tpu.matmul %8, %0, %cst_11 {dimension_numbers = #tpu.dot_dimension_numbers<[1], [0], [0], [1], [0, 0, 1, 1], [], []>} : vector<160x384xf32>, vector<384x64xf32>, vector<160x64xf32> -> vector<160x64xf32>
    %10 = arith.maximumf %3, %6 : vector<160x64xf32>
    %11 = arith.maximumf %10, %9 : vector<160x64xf32>
    %c0_12 = arith.constant 0 : index
    %c0_13 = arith.constant 0 : index
    %12 = vector.load %arg5[%c0_12, %c0_13] : memref<1x64xf32, #tpu.memory_space<vmem>>, vector<1x64xf32>
    %13 = vector.broadcast %12 : vector<1x64xf32> to vector<160x64xf32>
    %14 = arith.addf %11, %13 : vector<160x64xf32>
    %cst_14 = arith.constant 0.000000e+00 : f32
    %15 = vector.broadcast %cst_14 : f32 to vector<160x64xf32>
    %16 = arith.maximumf %14, %15 : vector<160x64xf32>
    %c0_15 = arith.constant 0 : index
    %c0_16 = arith.constant 0 : index
    %c0_17 = arith.constant 0 : index
    %17 = vector.load %arg6[%c0_15, %c0_16, %c0_17] : memref<1x160x64xf32, #tpu.memory_space<vmem>>, vector<1x160x64xf32>
    %18 = vector.shape_cast %17 : vector<1x160x64xf32> to vector<160x64xf32>
    %19 = vector.shape_cast %16 : vector<160x64xf32> to vector<1x160x64xf32>
    tpu.vector_store %arg6[%c0_15, %c0_16, %c0_17], %19 {strides = array<i32>} : memref<1x160x64xf32, #tpu.memory_space<vmem>>, vector<1x160x64xf32>,
    return
  }
  func.func @transform_0(%arg0: i32) -> (i32, i32, i32) {
    %c0_i32 = arith.constant 0 : i32
    %c0_i32_0 = arith.constant 0 : i32
    %c0_i32_1 = arith.constant 0 : i32
    return %arg0, %c0_i32, %c0_i32_0 : i32, i32, i32
  }
  func.func @transform_1(%arg0: i32) -> (i32, i32, i32) {
    %c0_i32 = arith.constant 0 : i32
    %c0_i32_0 = arith.constant 0 : i32
    %c0_i32_1 = arith.constant 0 : i32
    return %arg0, %c0_i32, %c0_i32_0 : i32, i32, i32
  }
  func.func @transform_2(%arg0: i32) -> (i32, i32, i32) {
    %c0_i32 = arith.constant 0 : i32
    %c0_i32_0 = arith.constant 0 : i32
    %c0_i32_1 = arith.constant 0 : i32
    return %arg0, %c0_i32, %c0_i32_0 : i32, i32, i32
  }
  func.func @transform_3(%arg0: i32) -> (i32, i32) {
    %c0_i32 = arith.constant 0 : i32
    %c0_i32_0 = arith.constant 0 : i32
    %c0_i32_1 = arith.constant 0 : i32
    return %c0_i32, %c0_i32_0 : i32, i32
  }
  func.func @transform_4(%arg0: i32) -> (i32, i32) {
    %c0_i32 = arith.constant 0 : i32
    %c0_i32_0 = arith.constant 0 : i32
    %c0_i32_1 = arith.constant 0 : i32
    return %c0_i32, %c0_i32_0 : i32, i32
  }
  func.func @transform_5(%arg0: i32) -> (i32, i32, i32) {
    %c0_i32 = arith.constant 0 : i32
    %c0_i32_0 = arith.constant 0 : i32
    %c0_i32_1 = arith.constant 0 : i32
    return %arg0, %c0_i32, %c0_i32_0 : i32, i32, i32
  }
}

module attributes {stable_mosaic.version = 11 : i64} {
  func.func @_conv_pool_relu_kernel(%arg0: i32, %arg1: memref<1x16x1152xf32, #tpu.memory_space<vmem>>, %arg2: memref<1x16x1152xf32, #tpu.memory_space<vmem>>, %arg3: memref<1x16x1152xf32, #tpu.memory_space<vmem>>, %arg4: memref<1152x32xf32, #tpu.memory_space<vmem>>, %arg5: memref<1x32xf32, #tpu.memory_space<vmem>>, %arg6: memref<1x16x32xf32, #tpu.memory_space<vmem>>) attributes {dimension_semantics = [#tpu.dimension_semantics<parallel>], iteration_bounds = array<i64: 2>, scalar_prefetch = 0 : i64, scratch_operands = 0 : i64, tpu.core_type = #tpu.core_type<tc>, window_params = [{transform_indices = @transform_0, window_bounds = array<i64: 1, 16, 1152>}, {transform_indices = @transform_1, window_bounds = array<i64: 1, 16, 1152>}, {transform_indices = @transform_2, window_bounds = array<i64: 1, 16, 1152>}, {pipeline_mode = #tpu.pipeline_mode<synchronous>, transform_indices = @transform_3, window_bounds = array<i64: 1152, 32>}, {pipeline_mode = #tpu.pipeline_mode<synchronous>, transform_indices = @transform_4, window_bounds = array<i64: 1, 32>}, {transform_indices = @transform_5, window_bounds = array<i64: 1, 16, 32>}]} {
    %c0 = arith.constant 0 : index
    %c0_0 = arith.constant 0 : index
    %0 = vector.load %arg4[%c0, %c0_0] : memref<1152x32xf32, #tpu.memory_space<vmem>>, vector<1152x32xf32>
    %c0_1 = arith.constant 0 : index
    %c0_2 = arith.constant 0 : index
    %c0_3 = arith.constant 0 : index
    %1 = vector.load %arg1[%c0_1, %c0_2, %c0_3] : memref<1x16x1152xf32, #tpu.memory_space<vmem>>, vector<1x16x1152xf32>
    %2 = vector.shape_cast %1 : vector<1x16x1152xf32> to vector<16x1152xf32>
    %cst = arith.constant dense<0.000000e+00> : vector<16x32xf32>
    %3 = tpu.matmul %2, %0, %cst {dimension_numbers = #tpu.dot_dimension_numbers<[1], [0], [0], [1], [0, 0, 1, 1], [], []>} : vector<16x1152xf32>, vector<1152x32xf32>, vector<16x32xf32> -> vector<16x32xf32>
    %c0_4 = arith.constant 0 : index
    %c0_5 = arith.constant 0 : index
    %c0_6 = arith.constant 0 : index
    %4 = vector.load %arg2[%c0_4, %c0_5, %c0_6] : memref<1x16x1152xf32, #tpu.memory_space<vmem>>, vector<1x16x1152xf32>
    %5 = vector.shape_cast %4 : vector<1x16x1152xf32> to vector<16x1152xf32>
    %cst_7 = arith.constant dense<0.000000e+00> : vector<16x32xf32>
    %6 = tpu.matmul %5, %0, %cst_7 {dimension_numbers = #tpu.dot_dimension_numbers<[1], [0], [0], [1], [0, 0, 1, 1], [], []>} : vector<16x1152xf32>, vector<1152x32xf32>, vector<16x32xf32> -> vector<16x32xf32>
    %c0_8 = arith.constant 0 : index
    %c0_9 = arith.constant 0 : index
    %c0_10 = arith.constant 0 : index
    %7 = vector.load %arg3[%c0_8, %c0_9, %c0_10] : memref<1x16x1152xf32, #tpu.memory_space<vmem>>, vector<1x16x1152xf32>
    %8 = vector.shape_cast %7 : vector<1x16x1152xf32> to vector<16x1152xf32>
    %cst_11 = arith.constant dense<0.000000e+00> : vector<16x32xf32>
    %9 = tpu.matmul %8, %0, %cst_11 {dimension_numbers = #tpu.dot_dimension_numbers<[1], [0], [0], [1], [0, 0, 1, 1], [], []>} : vector<16x1152xf32>, vector<1152x32xf32>, vector<16x32xf32> -> vector<16x32xf32>
    %10 = arith.maximumf %3, %6 : vector<16x32xf32>
    %11 = arith.maximumf %10, %9 : vector<16x32xf32>
    %c0_12 = arith.constant 0 : index
    %c0_13 = arith.constant 0 : index
    %12 = vector.load %arg5[%c0_12, %c0_13] : memref<1x32xf32, #tpu.memory_space<vmem>>, vector<1x32xf32>
    %13 = vector.broadcast %12 : vector<1x32xf32> to vector<16x32xf32>
    %14 = arith.addf %11, %13 : vector<16x32xf32>
    %cst_14 = arith.constant 0.000000e+00 : f32
    %15 = vector.broadcast %cst_14 : f32 to vector<16x32xf32>
    %16 = arith.maximumf %14, %15 : vector<16x32xf32>
    %c0_15 = arith.constant 0 : index
    %c0_16 = arith.constant 0 : index
    %c0_17 = arith.constant 0 : index
    %17 = vector.load %arg6[%c0_15, %c0_16, %c0_17] : memref<1x16x32xf32, #tpu.memory_space<vmem>>, vector<1x16x32xf32>
    %18 = vector.shape_cast %17 : vector<1x16x32xf32> to vector<16x32xf32>
    %19 = vector.shape_cast %16 : vector<16x32xf32> to vector<1x16x32xf32>
    tpu.vector_store %arg6[%c0_15, %c0_16, %c0_17], %19 {strides = array<i32>} : memref<1x16x32xf32, #tpu.memory_space<vmem>>, vector<1x16x32xf32>,
    return
  }
  func.func @transform_0(%arg0: i32) -> (i32, i32, i32) {
    %c0_i32 = arith.constant 0 : i32
    %c0_i32_0 = arith.constant 0 : i32
    %c0_i32_1 = arith.constant 0 : i32
    return %arg0, %c0_i32, %c0_i32_0 : i32, i32, i32
  }
  func.func @transform_1(%arg0: i32) -> (i32, i32, i32) {
    %c0_i32 = arith.constant 0 : i32
    %c0_i32_0 = arith.constant 0 : i32
    %c0_i32_1 = arith.constant 0 : i32
    return %arg0, %c0_i32, %c0_i32_0 : i32, i32, i32
  }
  func.func @transform_2(%arg0: i32) -> (i32, i32, i32) {
    %c0_i32 = arith.constant 0 : i32
    %c0_i32_0 = arith.constant 0 : i32
    %c0_i32_1 = arith.constant 0 : i32
    return %arg0, %c0_i32, %c0_i32_0 : i32, i32, i32
  }
  func.func @transform_3(%arg0: i32) -> (i32, i32) {
    %c0_i32 = arith.constant 0 : i32
    %c0_i32_0 = arith.constant 0 : i32
    %c0_i32_1 = arith.constant 0 : i32
    return %c0_i32, %c0_i32_0 : i32, i32
  }
  func.func @transform_4(%arg0: i32) -> (i32, i32) {
    %c0_i32 = arith.constant 0 : i32
    %c0_i32_0 = arith.constant 0 : i32
    %c0_i32_1 = arith.constant 0 : i32
    return %c0_i32, %c0_i32_0 : i32, i32
  }
  func.func @transform_5(%arg0: i32) -> (i32, i32, i32) {
    %c0_i32 = arith.constant 0 : i32
    %c0_i32_0 = arith.constant 0 : i32
    %c0_i32_1 = arith.constant 0 : i32
    return %arg0, %c0_i32, %c0_i32_0 : i32, i32, i32
  }
}

module attributes {stable_mosaic.version = 11 : i64} {
  func.func @_stack_kernel(%arg0: i32, %arg1: memref<1x16x32xf32, #tpu.memory_space<vmem>>, %arg2: memref<3x32x96xf32, #tpu.memory_space<vmem>>, %arg3: memref<3x1x96xf32, #tpu.memory_space<vmem>>, %arg4: memref<6x16x5xf32, #tpu.memory_space<vmem>>, %arg5: memref<3x1x32xf32, #tpu.memory_space<vmem>>, %arg6: memref<3x1x32xf32, #tpu.memory_space<vmem>>, %arg7: memref<3x1x32xf32, #tpu.memory_space<vmem>>, %arg8: memref<3x1x32xf32, #tpu.memory_space<vmem>>, %arg9: memref<3x32x64xf32, #tpu.memory_space<vmem>>, %arg10: memref<3x1x64xf32, #tpu.memory_space<vmem>>, %arg11: memref<3x64x32xf32, #tpu.memory_space<vmem>>, %arg12: memref<3x1x32xf32, #tpu.memory_space<vmem>>, %arg13: memref<32x2xf32, #tpu.memory_space<vmem>>, %arg14: memref<1x2xf32, #tpu.memory_space<vmem>>, %arg15: memref<32x300xf32, #tpu.memory_space<vmem>>, %arg16: memref<1x300xf32, #tpu.memory_space<vmem>>, %arg17: memref<15x16x16xf32, #tpu.memory_space<vmem>>, %arg18: memref<3x16x16xf32, #tpu.memory_space<vmem>>, %arg19: memref<1x16x2xf32, #tpu.memory_space<vmem>>, %arg20: memref<1x1x300xf32, #tpu.memory_space<vmem>>) attributes {dimension_semantics = [#tpu.dimension_semantics<parallel>], iteration_bounds = array<i64: 2>, scalar_prefetch = 0 : i64, scratch_operands = 0 : i64, tpu.core_type = #tpu.core_type<tc>, window_params = [{transform_indices = @transform_0, window_bounds = array<i64: 1, 16, 32>}, {pipeline_mode = #tpu.pipeline_mode<synchronous>, transform_indices = @transform_1, window_bounds = array<i64: 3, 32, 96>}, {pipeline_mode = #tpu.pipeline_mode<synchronous>, transform_indices = @transform_2, window_bounds = array<i64: 3, 1, 96>}, {pipeline_mode = #tpu.pipeline_mode<synchronous>, transform_indices = @transform_3, window_bounds = array<i64: 6, 16, 5>}, {pipeline_mode = #tpu.pipeline_mode<synchronous>, transform_indices = @transform_4, window_bounds = array<i64: 3, 1, 32>}, {pipeline_mode = #tpu.pipeline_mode<synchronous>, transform_indices = @transform_5, window_bounds = array<i64: 3, 1, 32>}, {pipeline_mode = #tpu.pipeline_mode<synchronous>, transform_indices = @transform_6, window_bounds = array<i64: 3, 1, 32>}, {pipeline_mode = #tpu.pipeline_mode<synchronous>, transform_indices = @transform_7, window_bounds = array<i64: 3, 1, 32>}, {pipeline_mode = #tpu.pipeline_mode<synchronous>, transform_indices = @transform_8, window_bounds = array<i64: 3, 32, 64>}, {pipeline_mode = #tpu.pipeline_mode<synchronous>, transform_indices = @transform_9, window_bounds = array<i64: 3, 1, 64>}, {pipeline_mode = #tpu.pipeline_mode<synchronous>, transform_indices = @transform_10, window_bounds = array<i64: 3, 64, 32>}, {pipeline_mode = #tpu.pipeline_mode<synchronous>, transform_indices = @transform_11, window_bounds = array<i64: 3, 1, 32>}, {pipeline_mode = #tpu.pipeline_mode<synchronous>, transform_indices = @transform_12, window_bounds = array<i64: 32, 2>}, {pipeline_mode = #tpu.pipeline_mode<synchronous>, transform_indices = @transform_13, window_bounds = array<i64: 1, 2>}, {pipeline_mode = #tpu.pipeline_mode<synchronous>, transform_indices = @transform_14, window_bounds = array<i64: 32, 300>}, {pipeline_mode = #tpu.pipeline_mode<synchronous>, transform_indices = @transform_15, window_bounds = array<i64: 1, 300>}, {pipeline_mode = #tpu.pipeline_mode<synchronous>, transform_indices = @transform_16, window_bounds = array<i64: 15, 16, 16>}, {pipeline_mode = #tpu.pipeline_mode<synchronous>, transform_indices = @transform_17, window_bounds = array<i64: 3, 16, 16>}, {transform_indices = @transform_18, window_bounds = array<i64: 1, 16, 2>}, {transform_indices = @transform_19, window_bounds = array<i64: 1, 1, 300>}]} {
    %c0 = arith.constant 0 : index
    %c0_0 = arith.constant 0 : index
    %c0_1 = arith.constant 0 : index
    %0 = vector.load %arg1[%c0, %c0_0, %c0_1] : memref<1x16x32xf32, #tpu.memory_space<vmem>>, vector<1x16x32xf32>
    %1 = vector.shape_cast %0 : vector<1x16x32xf32> to vector<16x32xf32>
    %cst = arith.constant 0.000000e+00 : f32
    %2 = vector.broadcast %cst : f32 to vector<16x32xf32>
    %c0_2 = arith.constant 0 : index
    %c0_3 = arith.constant 0 : index
    %c0_4 = arith.constant 0 : index
    %3 = vector.load %arg5[%c0_2, %c0_3, %c0_4] : memref<3x1x32xf32, #tpu.memory_space<vmem>>, vector<1x1x32xf32>
    %4 = vector.shape_cast %3 : vector<1x1x32xf32> to vector<1x32xf32>
    %c0_5 = arith.constant 0 : index
    %c0_6 = arith.constant 0 : index
    %c0_7 = arith.constant 0 : index
    %5 = vector.load %arg6[%c0_5, %c0_6, %c0_7] : memref<3x1x32xf32, #tpu.memory_space<vmem>>, vector<1x1x32xf32>
    %6 = vector.shape_cast %5 : vector<1x1x32xf32> to vector<1x32xf32>
    %cst_8 = arith.constant dense<0.000000e+00> : vector<16xf32>
    %7 = vector.multi_reduction <add>, %1, %cst_8 [1] : vector<16x32xf32> to vector<16xf32>
    %8 = vector.shape_cast %7 : vector<16xf32> to vector<16x1xf32>
    %cst_9 = arith.constant 3.200000e+01 : f32
    %9 = vector.broadcast %cst_9 : f32 to vector<16x1xf32>
    %10 = arith.divf %8, %9 : vector<16x1xf32>
    %11 = vector.broadcast %10 : vector<16x1xf32> to vector<16x32xf32>
    %12 = arith.subf %1, %11 : vector<16x32xf32>
    %13 = arith.mulf %12, %12 : vector<16x32xf32>
    %cst_10 = arith.constant dense<0.000000e+00> : vector<16xf32>
    %14 = vector.multi_reduction <add>, %13, %cst_10 [1] : vector<16x32xf32> to vector<16xf32>
    %15 = vector.shape_cast %14 : vector<16xf32> to vector<16x1xf32>
    %cst_11 = arith.constant 3.200000e+01 : f32
    %16 = vector.broadcast %cst_11 : f32 to vector<16x1xf32>
    %17 = arith.divf %15, %16 : vector<16x1xf32>
    %18 = vector.broadcast %10 : vector<16x1xf32> to vector<16x32xf32>
    %19 = arith.subf %1, %18 : vector<16x32xf32>
    %cst_12 = arith.constant 9.99999974E-6 : f32
    %20 = vector.broadcast %cst_12 : f32 to vector<16x1xf32>
    %21 = arith.addf %17, %20 : vector<16x1xf32>
    %22 = math.rsqrt %21 : vector<16x1xf32>
    %23 = vector.broadcast %22 : vector<16x1xf32> to vector<16x32xf32>
    %24 = arith.mulf %19, %23 : vector<16x32xf32>
    %25 = vector.broadcast %4 : vector<1x32xf32> to vector<16x32xf32>
    %26 = arith.mulf %24, %25 : vector<16x32xf32>
    %27 = vector.broadcast %6 : vector<1x32xf32> to vector<16x32xf32>
    %28 = arith.addf %26, %27 : vector<16x32xf32>
    %c0_13 = arith.constant 0 : index
    %c0_14 = arith.constant 0 : index
    %c0_15 = arith.constant 0 : index
    %29 = vector.load %arg2[%c0_13, %c0_14, %c0_15] : memref<3x32x96xf32, #tpu.memory_space<vmem>>, vector<1x32x96xf32>
    %30 = vector.shape_cast %29 : vector<1x32x96xf32> to vector<32x96xf32>
    %cst_16 = arith.constant dense<0.000000e+00> : vector<16x96xf32>
    %31 = tpu.matmul %28, %30, %cst_16 {dimension_numbers = #tpu.dot_dimension_numbers<[1], [0], [0], [1], [0, 0, 1, 1], [], []>} : vector<16x32xf32>, vector<32x96xf32>, vector<16x96xf32> -> vector<16x96xf32>
    %c0_17 = arith.constant 0 : index
    %c0_18 = arith.constant 0 : index
    %c0_19 = arith.constant 0 : index
    %32 = vector.load %arg3[%c0_17, %c0_18, %c0_19] : memref<3x1x96xf32, #tpu.memory_space<vmem>>, vector<1x1x96xf32>
    %33 = vector.shape_cast %32 : vector<1x1x96xf32> to vector<1x96xf32>
    %34 = vector.broadcast %33 : vector<1x96xf32> to vector<16x96xf32>
    %35 = arith.addf %31, %34 : vector<16x96xf32>
    %c0_20 = arith.constant 0 : index
    %c0_21 = arith.constant 0 : index
    %c0_22 = arith.constant 0 : index
    %36 = vector.load %arg17[%c0_20, %c0_21, %c0_22] : memref<15x16x16xf32, #tpu.memory_space<vmem>>, vector<1x16x16xf32>
    %37 = vector.shape_cast %36 : vector<1x16x16xf32> to vector<16x16xf32>
    %c1 = arith.constant 1 : index
    %c0_23 = arith.constant 0 : index
    %c0_24 = arith.constant 0 : index
    %38 = vector.load %arg17[%c1, %c0_23, %c0_24] : memref<15x16x16xf32, #tpu.memory_space<vmem>>, vector<1x16x16xf32>
    %39 = vector.shape_cast %38 : vector<1x16x16xf32> to vector<16x16xf32>
    %c2 = arith.constant 2 : index
    %c0_25 = arith.constant 0 : index
    %c0_26 = arith.constant 0 : index
    %40 = vector.load %arg17[%c2, %c0_25, %c0_26] : memref<15x16x16xf32, #tpu.memory_space<vmem>>, vector<1x16x16xf32>
    %41 = vector.shape_cast %40 : vector<1x16x16xf32> to vector<16x16xf32>
    %c3 = arith.constant 3 : index
    %c0_27 = arith.constant 0 : index
    %c0_28 = arith.constant 0 : index
    %42 = vector.load %arg17[%c3, %c0_27, %c0_28] : memref<15x16x16xf32, #tpu.memory_space<vmem>>, vector<1x16x16xf32>
    %43 = vector.shape_cast %42 : vector<1x16x16xf32> to vector<16x16xf32>
    %c4 = arith.constant 4 : index
    %c0_29 = arith.constant 0 : index
    %c0_30 = arith.constant 0 : index
    %44 = vector.load %arg17[%c4, %c0_29, %c0_30] : memref<15x16x16xf32, #tpu.memory_space<vmem>>, vector<1x16x16xf32>
    %45 = vector.shape_cast %44 : vector<1x16x16xf32> to vector<16x16xf32>
    %c0_31 = arith.constant 0 : index
    %c0_32 = arith.constant 0 : index
    %c0_33 = arith.constant 0 : index
    %46 = vector.load %arg18[%c0_31, %c0_32, %c0_33] : memref<3x16x16xf32, #tpu.memory_space<vmem>>, vector<1x16x16xf32>
    %47 = vector.shape_cast %46 : vector<1x16x16xf32> to vector<16x16xf32>
    %48 = vector.extract_strided_slice %35 {offsets = [0, 0], sizes = [16, 16], strides = [1, 1]} : vector<16x96xf32> to vector<16x16xf32>
    %49 = vector.extract_strided_slice %35 {offsets = [0, 32], sizes = [16, 16], strides = [1, 1]} : vector<16x96xf32> to vector<16x16xf32>
    %50 = vector.extract_strided_slice %35 {offsets = [0, 64], sizes = [16, 16], strides = [1, 1]} : vector<16x96xf32> to vector<16x16xf32>
    %cst_34 = arith.constant dense<0.000000e+00> : vector<16x16xf32>
    %51 = tpu.matmul %48, %49, %cst_34 {dimension_numbers = #tpu.dot_dimension_numbers<[1], [1], [0], [0], [0, 0, 1, 0], [], []>} : vector<16x16xf32>, vector<16x16xf32>, vector<16x16xf32> -> vector<16x16xf32>
    %c0_35 = arith.constant 0 : index
    %c0_36 = arith.constant 0 : index
    %c0_37 = arith.constant 0 : index
    %52 = vector.load %arg4[%c0_35, %c0_36, %c0_37] : memref<6x16x5xf32, #tpu.memory_space<vmem>>, vector<1x16x5xf32>
    %53 = vector.shape_cast %52 : vector<1x16x5xf32> to vector<16x5xf32>
    %cst_38 = arith.constant dense<0.000000e+00> : vector<16x5xf32>
    %54 = tpu.matmul %48, %53, %cst_38 {dimension_numbers = #tpu.dot_dimension_numbers<[1], [0], [0], [1], [0, 0, 1, 1], [], []>} : vector<16x16xf32>, vector<16x5xf32>, vector<16x5xf32> -> vector<16x5xf32>
    %55 = vector.extract_strided_slice %54 {offsets = [0, 0], sizes = [16, 1], strides = [1, 1]} : vector<16x5xf32> to vector<16x1xf32>
    %56 = vector.broadcast %55 : vector<16x1xf32> to vector<16x16xf32>
    %57 = arith.mulf %56, %37 : vector<16x16xf32>
    %58 = vector.extract_strided_slice %54 {offsets = [0, 1], sizes = [16, 1], strides = [1, 1]} : vector<16x5xf32> to vector<16x1xf32>
    %59 = vector.broadcast %58 : vector<16x1xf32> to vector<16x16xf32>
    %60 = arith.mulf %59, %39 : vector<16x16xf32>
    %61 = arith.addf %57, %60 : vector<16x16xf32>
    %62 = vector.extract_strided_slice %54 {offsets = [0, 2], sizes = [16, 1], strides = [1, 1]} : vector<16x5xf32> to vector<16x1xf32>
    %63 = vector.broadcast %62 : vector<16x1xf32> to vector<16x16xf32>
    %64 = arith.mulf %63, %41 : vector<16x16xf32>
    %65 = arith.addf %61, %64 : vector<16x16xf32>
    %66 = vector.extract_strided_slice %54 {offsets = [0, 3], sizes = [16, 1], strides = [1, 1]} : vector<16x5xf32> to vector<16x1xf32>
    %67 = vector.broadcast %66 : vector<16x1xf32> to vector<16x16xf32>
    %68 = arith.mulf %67, %43 : vector<16x16xf32>
    %69 = arith.addf %65, %68 : vector<16x16xf32>
    %70 = vector.extract_strided_slice %54 {offsets = [0, 4], sizes = [16, 1], strides = [1, 1]} : vector<16x5xf32> to vector<16x1xf32>
    %71 = vector.broadcast %70 : vector<16x1xf32> to vector<16x16xf32>
    %72 = arith.mulf %71, %45 : vector<16x16xf32>
    %73 = arith.addf %69, %72 : vector<16x16xf32>
    %74 = arith.addf %51, %73 : vector<16x16xf32>
    %cst_39 = arith.constant 2.500000e-01 : f32
    %75 = vector.broadcast %cst_39 : f32 to vector<16x16xf32>
    %76 = arith.mulf %74, %75 : vector<16x16xf32>
    %77 = arith.addf %76, %47 : vector<16x16xf32>
    %cst_40 = arith.constant dense<0xFF800000> : vector<16xf32>
    %78 = vector.multi_reduction <maximumf>, %77, %cst_40 [1] : vector<16x16xf32> to vector<16xf32>
    %79 = vector.shape_cast %78 : vector<16xf32> to vector<16x1xf32>
    %80 = vector.broadcast %79 : vector<16x1xf32> to vector<16x16xf32>
    %81 = arith.subf %77, %80 : vector<16x16xf32>
    %82 = math.exp %81 : vector<16x16xf32>
    %cst_41 = arith.constant dense<0.000000e+00> : vector<16xf32>
    %83 = vector.multi_reduction <add>, %82, %cst_41 [1] : vector<16x16xf32> to vector<16xf32>
    %84 = vector.shape_cast %83 : vector<16xf32> to vector<16x1xf32>
    %85 = tpu.reciprocal %84 {approx = true} : vector<16x1xf32> -> vector<16x1xf32>
    %86 = vector.broadcast %85 : vector<16x1xf32> to vector<16x16xf32>
    %87 = arith.mulf %82, %86 : vector<16x16xf32>
    %cst_42 = arith.constant dense<0.000000e+00> : vector<16x16xf32>
    %88 = tpu.matmul %87, %50, %cst_42 {dimension_numbers = #tpu.dot_dimension_numbers<[1], [0], [0], [1], [0, 0, 1, 1], [], []>} : vector<16x16xf32>, vector<16x16xf32>, vector<16x16xf32> -> vector<16x16xf32>
    %89 = vector.extract_strided_slice %35 {offsets = [0, 16], sizes = [16, 16], strides = [1, 1]} : vector<16x96xf32> to vector<16x16xf32>
    %90 = vector.extract_strided_slice %35 {offsets = [0, 48], sizes = [16, 16], strides = [1, 1]} : vector<16x96xf32> to vector<16x16xf32>
    %91 = vector.extract_strided_slice %35 {offsets = [0, 80], sizes = [16, 16], strides = [1, 1]} : vector<16x96xf32> to vector<16x16xf32>
    %cst_43 = arith.constant dense<0.000000e+00> : vector<16x16xf32>
    %92 = tpu.matmul %89, %90, %cst_43 {dimension_numbers = #tpu.dot_dimension_numbers<[1], [1], [0], [0], [0, 0, 1, 0], [], []>} : vector<16x16xf32>, vector<16x16xf32>, vector<16x16xf32> -> vector<16x16xf32>
    %c1_44 = arith.constant 1 : index
    %c0_45 = arith.constant 0 : index
    %c0_46 = arith.constant 0 : index
    %93 = vector.load %arg4[%c1_44, %c0_45, %c0_46] : memref<6x16x5xf32, #tpu.memory_space<vmem>>, vector<1x16x5xf32>
    %94 = vector.shape_cast %93 : vector<1x16x5xf32> to vector<16x5xf32>
    %cst_47 = arith.constant dense<0.000000e+00> : vector<16x5xf32>
    %95 = tpu.matmul %89, %94, %cst_47 {dimension_numbers = #tpu.dot_dimension_numbers<[1], [0], [0], [1], [0, 0, 1, 1], [], []>} : vector<16x16xf32>, vector<16x5xf32>, vector<16x5xf32> -> vector<16x5xf32>
    %96 = vector.extract_strided_slice %95 {offsets = [0, 0], sizes = [16, 1], strides = [1, 1]} : vector<16x5xf32> to vector<16x1xf32>
    %97 = vector.broadcast %96 : vector<16x1xf32> to vector<16x16xf32>
    %98 = arith.mulf %97, %37 : vector<16x16xf32>
    %99 = vector.extract_strided_slice %95 {offsets = [0, 1], sizes = [16, 1], strides = [1, 1]} : vector<16x5xf32> to vector<16x1xf32>
    %100 = vector.broadcast %99 : vector<16x1xf32> to vector<16x16xf32>
    %101 = arith.mulf %100, %39 : vector<16x16xf32>
    %102 = arith.addf %98, %101 : vector<16x16xf32>
    %103 = vector.extract_strided_slice %95 {offsets = [0, 2], sizes = [16, 1], strides = [1, 1]} : vector<16x5xf32> to vector<16x1xf32>
    %104 = vector.broadcast %103 : vector<16x1xf32> to vector<16x16xf32>
    %105 = arith.mulf %104, %41 : vector<16x16xf32>
    %106 = arith.addf %102, %105 : vector<16x16xf32>
    %107 = vector.extract_strided_slice %95 {offsets = [0, 3], sizes = [16, 1], strides = [1, 1]} : vector<16x5xf32> to vector<16x1xf32>
    %108 = vector.broadcast %107 : vector<16x1xf32> to vector<16x16xf32>
    %109 = arith.mulf %108, %43 : vector<16x16xf32>
    %110 = arith.addf %106, %109 : vector<16x16xf32>
    %111 = vector.extract_strided_slice %95 {offsets = [0, 4], sizes = [16, 1], strides = [1, 1]} : vector<16x5xf32> to vector<16x1xf32>
    %112 = vector.broadcast %111 : vector<16x1xf32> to vector<16x16xf32>
    %113 = arith.mulf %112, %45 : vector<16x16xf32>
    %114 = arith.addf %110, %113 : vector<16x16xf32>
    %115 = arith.addf %92, %114 : vector<16x16xf32>
    %cst_48 = arith.constant 2.500000e-01 : f32
    %116 = vector.broadcast %cst_48 : f32 to vector<16x16xf32>
    %117 = arith.mulf %115, %116 : vector<16x16xf32>
    %118 = arith.addf %117, %47 : vector<16x16xf32>
    %cst_49 = arith.constant dense<0xFF800000> : vector<16xf32>
    %119 = vector.multi_reduction <maximumf>, %118, %cst_49 [1] : vector<16x16xf32> to vector<16xf32>
    %120 = vector.shape_cast %119 : vector<16xf32> to vector<16x1xf32>
    %121 = vector.broadcast %120 : vector<16x1xf32> to vector<16x16xf32>
    %122 = arith.subf %118, %121 : vector<16x16xf32>
    %123 = math.exp %122 : vector<16x16xf32>
    %cst_50 = arith.constant dense<0.000000e+00> : vector<16xf32>
    %124 = vector.multi_reduction <add>, %123, %cst_50 [1] : vector<16x16xf32> to vector<16xf32>
    %125 = vector.shape_cast %124 : vector<16xf32> to vector<16x1xf32>
    %126 = tpu.reciprocal %125 {approx = true} : vector<16x1xf32> -> vector<16x1xf32>
    %127 = vector.broadcast %126 : vector<16x1xf32> to vector<16x16xf32>
    %128 = arith.mulf %123, %127 : vector<16x16xf32>
    %cst_51 = arith.constant dense<0.000000e+00> : vector<16x16xf32>
    %129 = tpu.matmul %128, %91, %cst_51 {dimension_numbers = #tpu.dot_dimension_numbers<[1], [0], [0], [1], [0, 0, 1, 1], [], []>} : vector<16x16xf32>, vector<16x16xf32>, vector<16x16xf32> -> vector<16x16xf32>
    %130 = tpu.concatenate %88, %129 in 1 : vector<16x16xf32>, vector<16x16xf32> -> vector<16x32xf32>
    %131 = arith.addf %2, %130 : vector<16x32xf32>
    %132 = arith.addf %1, %130 : vector<16x32xf32>
    %c0_52 = arith.constant 0 : index
    %c0_53 = arith.constant 0 : index
    %c0_54 = arith.constant 0 : index
    %133 = vector.load %arg7[%c0_52, %c0_53, %c0_54] : memref<3x1x32xf32, #tpu.memory_space<vmem>>, vector<1x1x32xf32>
    %134 = vector.shape_cast %133 : vector<1x1x32xf32> to vector<1x32xf32>
    %c0_55 = arith.constant 0 : index
    %c0_56 = arith.constant 0 : index
    %c0_57 = arith.constant 0 : index
    %135 = vector.load %arg8[%c0_55, %c0_56, %c0_57] : memref<3x1x32xf32, #tpu.memory_space<vmem>>, vector<1x1x32xf32>
    %136 = vector.shape_cast %135 : vector<1x1x32xf32> to vector<1x32xf32>
    %cst_58 = arith.constant dense<0.000000e+00> : vector<16xf32>
    %137 = vector.multi_reduction <add>, %132, %cst_58 [1] : vector<16x32xf32> to vector<16xf32>
    %138 = vector.shape_cast %137 : vector<16xf32> to vector<16x1xf32>
    %cst_59 = arith.constant 3.200000e+01 : f32
    %139 = vector.broadcast %cst_59 : f32 to vector<16x1xf32>
    %140 = arith.divf %138, %139 : vector<16x1xf32>
    %141 = vector.broadcast %140 : vector<16x1xf32> to vector<16x32xf32>
    %142 = arith.subf %132, %141 : vector<16x32xf32>
    %143 = arith.mulf %142, %142 : vector<16x32xf32>
    %cst_60 = arith.constant dense<0.000000e+00> : vector<16xf32>
    %144 = vector.multi_reduction <add>, %143, %cst_60 [1] : vector<16x32xf32> to vector<16xf32>
    %145 = vector.shape_cast %144 : vector<16xf32> to vector<16x1xf32>
    %cst_61 = arith.constant 3.200000e+01 : f32
    %146 = vector.broadcast %cst_61 : f32 to vector<16x1xf32>
    %147 = arith.divf %145, %146 : vector<16x1xf32>
    %148 = vector.broadcast %140 : vector<16x1xf32> to vector<16x32xf32>
    %149 = arith.subf %132, %148 : vector<16x32xf32>
    %cst_62 = arith.constant 9.99999974E-6 : f32
    %150 = vector.broadcast %cst_62 : f32 to vector<16x1xf32>
    %151 = arith.addf %147, %150 : vector<16x1xf32>
    %152 = math.rsqrt %151 : vector<16x1xf32>
    %153 = vector.broadcast %152 : vector<16x1xf32> to vector<16x32xf32>
    %154 = arith.mulf %149, %153 : vector<16x32xf32>
    %155 = vector.broadcast %134 : vector<1x32xf32> to vector<16x32xf32>
    %156 = arith.mulf %154, %155 : vector<16x32xf32>
    %157 = vector.broadcast %136 : vector<1x32xf32> to vector<16x32xf32>
    %158 = arith.addf %156, %157 : vector<16x32xf32>
    %c0_63 = arith.constant 0 : index
    %c0_64 = arith.constant 0 : index
    %c0_65 = arith.constant 0 : index
    %159 = vector.load %arg9[%c0_63, %c0_64, %c0_65] : memref<3x32x64xf32, #tpu.memory_space<vmem>>, vector<1x32x64xf32>
    %160 = vector.shape_cast %159 : vector<1x32x64xf32> to vector<32x64xf32>
    %cst_66 = arith.constant dense<0.000000e+00> : vector<16x64xf32>
    %161 = tpu.matmul %158, %160, %cst_66 {dimension_numbers = #tpu.dot_dimension_numbers<[1], [0], [0], [1], [0, 0, 1, 1], [], []>} : vector<16x32xf32>, vector<32x64xf32>, vector<16x64xf32> -> vector<16x64xf32>
    %c0_67 = arith.constant 0 : index
    %c0_68 = arith.constant 0 : index
    %c0_69 = arith.constant 0 : index
    %162 = vector.load %arg10[%c0_67, %c0_68, %c0_69] : memref<3x1x64xf32, #tpu.memory_space<vmem>>, vector<1x1x64xf32>
    %163 = vector.shape_cast %162 : vector<1x1x64xf32> to vector<1x64xf32>
    %164 = vector.broadcast %163 : vector<1x64xf32> to vector<16x64xf32>
    %165 = arith.addf %161, %164 : vector<16x64xf32>
    %cst_70 = arith.constant 0.000000e+00 : f32
    %166 = vector.broadcast %cst_70 : f32 to vector<16x64xf32>
    %167 = arith.maximumf %165, %166 : vector<16x64xf32>
    %c0_71 = arith.constant 0 : index
    %c0_72 = arith.constant 0 : index
    %c0_73 = arith.constant 0 : index
    %168 = vector.load %arg11[%c0_71, %c0_72, %c0_73] : memref<3x64x32xf32, #tpu.memory_space<vmem>>, vector<1x64x32xf32>
    %169 = vector.shape_cast %168 : vector<1x64x32xf32> to vector<64x32xf32>
    %cst_74 = arith.constant dense<0.000000e+00> : vector<16x32xf32>
    %170 = tpu.matmul %167, %169, %cst_74 {dimension_numbers = #tpu.dot_dimension_numbers<[1], [0], [0], [1], [0, 0, 1, 1], [], []>} : vector<16x64xf32>, vector<64x32xf32>, vector<16x32xf32> -> vector<16x32xf32>
    %c0_75 = arith.constant 0 : index
    %c0_76 = arith.constant 0 : index
    %c0_77 = arith.constant 0 : index
    %171 = vector.load %arg12[%c0_75, %c0_76, %c0_77] : memref<3x1x32xf32, #tpu.memory_space<vmem>>, vector<1x1x32xf32>
    %172 = vector.shape_cast %171 : vector<1x1x32xf32> to vector<1x32xf32>
    %173 = vector.broadcast %172 : vector<1x32xf32> to vector<16x32xf32>
    %174 = arith.addf %170, %173 : vector<16x32xf32>
    %175 = arith.addf %132, %174 : vector<16x32xf32>
    %c1_78 = arith.constant 1 : index
    %c0_79 = arith.constant 0 : index
    %c0_80 = arith.constant 0 : index
    %176 = vector.load %arg5[%c1_78, %c0_79, %c0_80] : memref<3x1x32xf32, #tpu.memory_space<vmem>>, vector<1x1x32xf32>
    %177 = vector.shape_cast %176 : vector<1x1x32xf32> to vector<1x32xf32>
    %c1_81 = arith.constant 1 : index
    %c0_82 = arith.constant 0 : index
    %c0_83 = arith.constant 0 : index
    %178 = vector.load %arg6[%c1_81, %c0_82, %c0_83] : memref<3x1x32xf32, #tpu.memory_space<vmem>>, vector<1x1x32xf32>
    %179 = vector.shape_cast %178 : vector<1x1x32xf32> to vector<1x32xf32>
    %cst_84 = arith.constant dense<0.000000e+00> : vector<16xf32>
    %180 = vector.multi_reduction <add>, %175, %cst_84 [1] : vector<16x32xf32> to vector<16xf32>
    %181 = vector.shape_cast %180 : vector<16xf32> to vector<16x1xf32>
    %cst_85 = arith.constant 3.200000e+01 : f32
    %182 = vector.broadcast %cst_85 : f32 to vector<16x1xf32>
    %183 = arith.divf %181, %182 : vector<16x1xf32>
    %184 = vector.broadcast %183 : vector<16x1xf32> to vector<16x32xf32>
    %185 = arith.subf %175, %184 : vector<16x32xf32>
    %186 = arith.mulf %185, %185 : vector<16x32xf32>
    %cst_86 = arith.constant dense<0.000000e+00> : vector<16xf32>
    %187 = vector.multi_reduction <add>, %186, %cst_86 [1] : vector<16x32xf32> to vector<16xf32>
    %188 = vector.shape_cast %187 : vector<16xf32> to vector<16x1xf32>
    %cst_87 = arith.constant 3.200000e+01 : f32
    %189 = vector.broadcast %cst_87 : f32 to vector<16x1xf32>
    %190 = arith.divf %188, %189 : vector<16x1xf32>
    %191 = vector.broadcast %183 : vector<16x1xf32> to vector<16x32xf32>
    %192 = arith.subf %175, %191 : vector<16x32xf32>
    %cst_88 = arith.constant 9.99999974E-6 : f32
    %193 = vector.broadcast %cst_88 : f32 to vector<16x1xf32>
    %194 = arith.addf %190, %193 : vector<16x1xf32>
    %195 = math.rsqrt %194 : vector<16x1xf32>
    %196 = vector.broadcast %195 : vector<16x1xf32> to vector<16x32xf32>
    %197 = arith.mulf %192, %196 : vector<16x32xf32>
    %198 = vector.broadcast %177 : vector<1x32xf32> to vector<16x32xf32>
    %199 = arith.mulf %197, %198 : vector<16x32xf32>
    %200 = vector.broadcast %179 : vector<1x32xf32> to vector<16x32xf32>
    %201 = arith.addf %199, %200 : vector<16x32xf32>
    %c1_89 = arith.constant 1 : index
    %c0_90 = arith.constant 0 : index
    %c0_91 = arith.constant 0 : index
    %202 = vector.load %arg2[%c1_89, %c0_90, %c0_91] : memref<3x32x96xf32, #tpu.memory_space<vmem>>, vector<1x32x96xf32>
    %203 = vector.shape_cast %202 : vector<1x32x96xf32> to vector<32x96xf32>
    %cst_92 = arith.constant dense<0.000000e+00> : vector<16x96xf32>
    %204 = tpu.matmul %201, %203, %cst_92 {dimension_numbers = #tpu.dot_dimension_numbers<[1], [0], [0], [1], [0, 0, 1, 1], [], []>} : vector<16x32xf32>, vector<32x96xf32>, vector<16x96xf32> -> vector<16x96xf32>
    %c1_93 = arith.constant 1 : index
    %c0_94 = arith.constant 0 : index
    %c0_95 = arith.constant 0 : index
    %205 = vector.load %arg3[%c1_93, %c0_94, %c0_95] : memref<3x1x96xf32, #tpu.memory_space<vmem>>, vector<1x1x96xf32>
    %206 = vector.shape_cast %205 : vector<1x1x96xf32> to vector<1x96xf32>
    %207 = vector.broadcast %206 : vector<1x96xf32> to vector<16x96xf32>
    %208 = arith.addf %204, %207 : vector<16x96xf32>
    %c5 = arith.constant 5 : index
    %c0_96 = arith.constant 0 : index
    %c0_97 = arith.constant 0 : index
    %209 = vector.load %arg17[%c5, %c0_96, %c0_97] : memref<15x16x16xf32, #tpu.memory_space<vmem>>, vector<1x16x16xf32>
    %210 = vector.shape_cast %209 : vector<1x16x16xf32> to vector<16x16xf32>
    %c6 = arith.constant 6 : index
    %c0_98 = arith.constant 0 : index
    %c0_99 = arith.constant 0 : index
    %211 = vector.load %arg17[%c6, %c0_98, %c0_99] : memref<15x16x16xf32, #tpu.memory_space<vmem>>, vector<1x16x16xf32>
    %212 = vector.shape_cast %211 : vector<1x16x16xf32> to vector<16x16xf32>
    %c7 = arith.constant 7 : index
    %c0_100 = arith.constant 0 : index
    %c0_101 = arith.constant 0 : index
    %213 = vector.load %arg17[%c7, %c0_100, %c0_101] : memref<15x16x16xf32, #tpu.memory_space<vmem>>, vector<1x16x16xf32>
    %214 = vector.shape_cast %213 : vector<1x16x16xf32> to vector<16x16xf32>
    %c8 = arith.constant 8 : index
    %c0_102 = arith.constant 0 : index
    %c0_103 = arith.constant 0 : index
    %215 = vector.load %arg17[%c8, %c0_102, %c0_103] : memref<15x16x16xf32, #tpu.memory_space<vmem>>, vector<1x16x16xf32>
    %216 = vector.shape_cast %215 : vector<1x16x16xf32> to vector<16x16xf32>
    %c9 = arith.constant 9 : index
    %c0_104 = arith.constant 0 : index
    %c0_105 = arith.constant 0 : index
    %217 = vector.load %arg17[%c9, %c0_104, %c0_105] : memref<15x16x16xf32, #tpu.memory_space<vmem>>, vector<1x16x16xf32>
    %218 = vector.shape_cast %217 : vector<1x16x16xf32> to vector<16x16xf32>
    %c1_106 = arith.constant 1 : index
    %c0_107 = arith.constant 0 : index
    %c0_108 = arith.constant 0 : index
    %219 = vector.load %arg18[%c1_106, %c0_107, %c0_108] : memref<3x16x16xf32, #tpu.memory_space<vmem>>, vector<1x16x16xf32>
    %220 = vector.shape_cast %219 : vector<1x16x16xf32> to vector<16x16xf32>
    %221 = vector.extract_strided_slice %208 {offsets = [0, 0], sizes = [16, 16], strides = [1, 1]} : vector<16x96xf32> to vector<16x16xf32>
    %222 = vector.extract_strided_slice %208 {offsets = [0, 32], sizes = [16, 16], strides = [1, 1]} : vector<16x96xf32> to vector<16x16xf32>
    %223 = vector.extract_strided_slice %208 {offsets = [0, 64], sizes = [16, 16], strides = [1, 1]} : vector<16x96xf32> to vector<16x16xf32>
    %cst_109 = arith.constant dense<0.000000e+00> : vector<16x16xf32>
    %224 = tpu.matmul %221, %222, %cst_109 {dimension_numbers = #tpu.dot_dimension_numbers<[1], [1], [0], [0], [0, 0, 1, 0], [], []>} : vector<16x16xf32>, vector<16x16xf32>, vector<16x16xf32> -> vector<16x16xf32>
    %c2_110 = arith.constant 2 : index
    %c0_111 = arith.constant 0 : index
    %c0_112 = arith.constant 0 : index
    %225 = vector.load %arg4[%c2_110, %c0_111, %c0_112] : memref<6x16x5xf32, #tpu.memory_space<vmem>>, vector<1x16x5xf32>
    %226 = vector.shape_cast %225 : vector<1x16x5xf32> to vector<16x5xf32>
    %cst_113 = arith.constant dense<0.000000e+00> : vector<16x5xf32>
    %227 = tpu.matmul %221, %226, %cst_113 {dimension_numbers = #tpu.dot_dimension_numbers<[1], [0], [0], [1], [0, 0, 1, 1], [], []>} : vector<16x16xf32>, vector<16x5xf32>, vector<16x5xf32> -> vector<16x5xf32>
    %228 = vector.extract_strided_slice %227 {offsets = [0, 0], sizes = [16, 1], strides = [1, 1]} : vector<16x5xf32> to vector<16x1xf32>
    %229 = vector.broadcast %228 : vector<16x1xf32> to vector<16x16xf32>
    %230 = arith.mulf %229, %210 : vector<16x16xf32>
    %231 = vector.extract_strided_slice %227 {offsets = [0, 1], sizes = [16, 1], strides = [1, 1]} : vector<16x5xf32> to vector<16x1xf32>
    %232 = vector.broadcast %231 : vector<16x1xf32> to vector<16x16xf32>
    %233 = arith.mulf %232, %212 : vector<16x16xf32>
    %234 = arith.addf %230, %233 : vector<16x16xf32>
    %235 = vector.extract_strided_slice %227 {offsets = [0, 2], sizes = [16, 1], strides = [1, 1]} : vector<16x5xf32> to vector<16x1xf32>
    %236 = vector.broadcast %235 : vector<16x1xf32> to vector<16x16xf32>
    %237 = arith.mulf %236, %214 : vector<16x16xf32>
    %238 = arith.addf %234, %237 : vector<16x16xf32>
    %239 = vector.extract_strided_slice %227 {offsets = [0, 3], sizes = [16, 1], strides = [1, 1]} : vector<16x5xf32> to vector<16x1xf32>
    %240 = vector.broadcast %239 : vector<16x1xf32> to vector<16x16xf32>
    %241 = arith.mulf %240, %216 : vector<16x16xf32>
    %242 = arith.addf %238, %241 : vector<16x16xf32>
    %243 = vector.extract_strided_slice %227 {offsets = [0, 4], sizes = [16, 1], strides = [1, 1]} : vector<16x5xf32> to vector<16x1xf32>
    %244 = vector.broadcast %243 : vector<16x1xf32> to vector<16x16xf32>
    %245 = arith.mulf %244, %218 : vector<16x16xf32>
    %246 = arith.addf %242, %245 : vector<16x16xf32>
    %247 = arith.addf %224, %246 : vector<16x16xf32>
    %cst_114 = arith.constant 2.500000e-01 : f32
    %248 = vector.broadcast %cst_114 : f32 to vector<16x16xf32>
    %249 = arith.mulf %247, %248 : vector<16x16xf32>
    %250 = arith.addf %249, %220 : vector<16x16xf32>
    %cst_115 = arith.constant dense<0xFF800000> : vector<16xf32>
    %251 = vector.multi_reduction <maximumf>, %250, %cst_115 [1] : vector<16x16xf32> to vector<16xf32>
    %252 = vector.shape_cast %251 : vector<16xf32> to vector<16x1xf32>
    %253 = vector.broadcast %252 : vector<16x1xf32> to vector<16x16xf32>
    %254 = arith.subf %250, %253 : vector<16x16xf32>
    %255 = math.exp %254 : vector<16x16xf32>
    %cst_116 = arith.constant dense<0.000000e+00> : vector<16xf32>
    %256 = vector.multi_reduction <add>, %255, %cst_116 [1] : vector<16x16xf32> to vector<16xf32>
    %257 = vector.shape_cast %256 : vector<16xf32> to vector<16x1xf32>
    %258 = tpu.reciprocal %257 {approx = true} : vector<16x1xf32> -> vector<16x1xf32>
    %259 = vector.broadcast %258 : vector<16x1xf32> to vector<16x16xf32>
    %260 = arith.mulf %255, %259 : vector<16x16xf32>
    %cst_117 = arith.constant dense<0.000000e+00> : vector<16x16xf32>
    %261 = tpu.matmul %260, %223, %cst_117 {dimension_numbers = #tpu.dot_dimension_numbers<[1], [0], [0], [1], [0, 0, 1, 1], [], []>} : vector<16x16xf32>, vector<16x16xf32>, vector<16x16xf32> -> vector<16x16xf32>
    %262 = vector.extract_strided_slice %208 {offsets = [0, 16], sizes = [16, 16], strides = [1, 1]} : vector<16x96xf32> to vector<16x16xf32>
    %263 = vector.extract_strided_slice %208 {offsets = [0, 48], sizes = [16, 16], strides = [1, 1]} : vector<16x96xf32> to vector<16x16xf32>
    %264 = vector.extract_strided_slice %208 {offsets = [0, 80], sizes = [16, 16], strides = [1, 1]} : vector<16x96xf32> to vector<16x16xf32>
    %cst_118 = arith.constant dense<0.000000e+00> : vector<16x16xf32>
    %265 = tpu.matmul %262, %263, %cst_118 {dimension_numbers = #tpu.dot_dimension_numbers<[1], [1], [0], [0], [0, 0, 1, 0], [], []>} : vector<16x16xf32>, vector<16x16xf32>, vector<16x16xf32> -> vector<16x16xf32>
    %c3_119 = arith.constant 3 : index
    %c0_120 = arith.constant 0 : index
    %c0_121 = arith.constant 0 : index
    %266 = vector.load %arg4[%c3_119, %c0_120, %c0_121] : memref<6x16x5xf32, #tpu.memory_space<vmem>>, vector<1x16x5xf32>
    %267 = vector.shape_cast %266 : vector<1x16x5xf32> to vector<16x5xf32>
    %cst_122 = arith.constant dense<0.000000e+00> : vector<16x5xf32>
    %268 = tpu.matmul %262, %267, %cst_122 {dimension_numbers = #tpu.dot_dimension_numbers<[1], [0], [0], [1], [0, 0, 1, 1], [], []>} : vector<16x16xf32>, vector<16x5xf32>, vector<16x5xf32> -> vector<16x5xf32>
    %269 = vector.extract_strided_slice %268 {offsets = [0, 0], sizes = [16, 1], strides = [1, 1]} : vector<16x5xf32> to vector<16x1xf32>
    %270 = vector.broadcast %269 : vector<16x1xf32> to vector<16x16xf32>
    %271 = arith.mulf %270, %210 : vector<16x16xf32>
    %272 = vector.extract_strided_slice %268 {offsets = [0, 1], sizes = [16, 1], strides = [1, 1]} : vector<16x5xf32> to vector<16x1xf32>
    %273 = vector.broadcast %272 : vector<16x1xf32> to vector<16x16xf32>
    %274 = arith.mulf %273, %212 : vector<16x16xf32>
    %275 = arith.addf %271, %274 : vector<16x16xf32>
    %276 = vector.extract_strided_slice %268 {offsets = [0, 2], sizes = [16, 1], strides = [1, 1]} : vector<16x5xf32> to vector<16x1xf32>
    %277 = vector.broadcast %276 : vector<16x1xf32> to vector<16x16xf32>
    %278 = arith.mulf %277, %214 : vector<16x16xf32>
    %279 = arith.addf %275, %278 : vector<16x16xf32>
    %280 = vector.extract_strided_slice %268 {offsets = [0, 3], sizes = [16, 1], strides = [1, 1]} : vector<16x5xf32> to vector<16x1xf32>
    %281 = vector.broadcast %280 : vector<16x1xf32> to vector<16x16xf32>
    %282 = arith.mulf %281, %216 : vector<16x16xf32>
    %283 = arith.addf %279, %282 : vector<16x16xf32>
    %284 = vector.extract_strided_slice %268 {offsets = [0, 4], sizes = [16, 1], strides = [1, 1]} : vector<16x5xf32> to vector<16x1xf32>
    %285 = vector.broadcast %284 : vector<16x1xf32> to vector<16x16xf32>
    %286 = arith.mulf %285, %218 : vector<16x16xf32>
    %287 = arith.addf %283, %286 : vector<16x16xf32>
    %288 = arith.addf %265, %287 : vector<16x16xf32>
    %cst_123 = arith.constant 2.500000e-01 : f32
    %289 = vector.broadcast %cst_123 : f32 to vector<16x16xf32>
    %290 = arith.mulf %288, %289 : vector<16x16xf32>
    %291 = arith.addf %290, %220 : vector<16x16xf32>
    %cst_124 = arith.constant dense<0xFF800000> : vector<16xf32>
    %292 = vector.multi_reduction <maximumf>, %291, %cst_124 [1] : vector<16x16xf32> to vector<16xf32>
    %293 = vector.shape_cast %292 : vector<16xf32> to vector<16x1xf32>
    %294 = vector.broadcast %293 : vector<16x1xf32> to vector<16x16xf32>
    %295 = arith.subf %291, %294 : vector<16x16xf32>
    %296 = math.exp %295 : vector<16x16xf32>
    %cst_125 = arith.constant dense<0.000000e+00> : vector<16xf32>
    %297 = vector.multi_reduction <add>, %296, %cst_125 [1] : vector<16x16xf32> to vector<16xf32>
    %298 = vector.shape_cast %297 : vector<16xf32> to vector<16x1xf32>
    %299 = tpu.reciprocal %298 {approx = true} : vector<16x1xf32> -> vector<16x1xf32>
    %300 = vector.broadcast %299 : vector<16x1xf32> to vector<16x16xf32>
    %301 = arith.mulf %296, %300 : vector<16x16xf32>
    %cst_126 = arith.constant dense<0.000000e+00> : vector<16x16xf32>
    %302 = tpu.matmul %301, %264, %cst_126 {dimension_numbers = #tpu.dot_dimension_numbers<[1], [0], [0], [1], [0, 0, 1, 1], [], []>} : vector<16x16xf32>, vector<16x16xf32>, vector<16x16xf32> -> vector<16x16xf32>
    %303 = tpu.concatenate %261, %302 in 1 : vector<16x16xf32>, vector<16x16xf32> -> vector<16x32xf32>
    %304 = arith.addf %131, %303 : vector<16x32xf32>
    %305 = arith.addf %175, %303 : vector<16x32xf32>
    %c1_127 = arith.constant 1 : index
    %c0_128 = arith.constant 0 : index
    %c0_129 = arith.constant 0 : index
    %306 = vector.load %arg7[%c1_127, %c0_128, %c0_129] : memref<3x1x32xf32, #tpu.memory_space<vmem>>, vector<1x1x32xf32>
    %307 = vector.shape_cast %306 : vector<1x1x32xf32> to vector<1x32xf32>
    %c1_130 = arith.constant 1 : index
    %c0_131 = arith.constant 0 : index
    %c0_132 = arith.constant 0 : index
    %308 = vector.load %arg8[%c1_130, %c0_131, %c0_132] : memref<3x1x32xf32, #tpu.memory_space<vmem>>, vector<1x1x32xf32>
    %309 = vector.shape_cast %308 : vector<1x1x32xf32> to vector<1x32xf32>
    %cst_133 = arith.constant dense<0.000000e+00> : vector<16xf32>
    %310 = vector.multi_reduction <add>, %305, %cst_133 [1] : vector<16x32xf32> to vector<16xf32>
    %311 = vector.shape_cast %310 : vector<16xf32> to vector<16x1xf32>
    %cst_134 = arith.constant 3.200000e+01 : f32
    %312 = vector.broadcast %cst_134 : f32 to vector<16x1xf32>
    %313 = arith.divf %311, %312 : vector<16x1xf32>
    %314 = vector.broadcast %313 : vector<16x1xf32> to vector<16x32xf32>
    %315 = arith.subf %305, %314 : vector<16x32xf32>
    %316 = arith.mulf %315, %315 : vector<16x32xf32>
    %cst_135 = arith.constant dense<0.000000e+00> : vector<16xf32>
    %317 = vector.multi_reduction <add>, %316, %cst_135 [1] : vector<16x32xf32> to vector<16xf32>
    %318 = vector.shape_cast %317 : vector<16xf32> to vector<16x1xf32>
    %cst_136 = arith.constant 3.200000e+01 : f32
    %319 = vector.broadcast %cst_136 : f32 to vector<16x1xf32>
    %320 = arith.divf %318, %319 : vector<16x1xf32>
    %321 = vector.broadcast %313 : vector<16x1xf32> to vector<16x32xf32>
    %322 = arith.subf %305, %321 : vector<16x32xf32>
    %cst_137 = arith.constant 9.99999974E-6 : f32
    %323 = vector.broadcast %cst_137 : f32 to vector<16x1xf32>
    %324 = arith.addf %320, %323 : vector<16x1xf32>
    %325 = math.rsqrt %324 : vector<16x1xf32>
    %326 = vector.broadcast %325 : vector<16x1xf32> to vector<16x32xf32>
    %327 = arith.mulf %322, %326 : vector<16x32xf32>
    %328 = vector.broadcast %307 : vector<1x32xf32> to vector<16x32xf32>
    %329 = arith.mulf %327, %328 : vector<16x32xf32>
    %330 = vector.broadcast %309 : vector<1x32xf32> to vector<16x32xf32>
    %331 = arith.addf %329, %330 : vector<16x32xf32>
    %c1_138 = arith.constant 1 : index
    %c0_139 = arith.constant 0 : index
    %c0_140 = arith.constant 0 : index
    %332 = vector.load %arg9[%c1_138, %c0_139, %c0_140] : memref<3x32x64xf32, #tpu.memory_space<vmem>>, vector<1x32x64xf32>
    %333 = vector.shape_cast %332 : vector<1x32x64xf32> to vector<32x64xf32>
    %cst_141 = arith.constant dense<0.000000e+00> : vector<16x64xf32>
    %334 = tpu.matmul %331, %333, %cst_141 {dimension_numbers = #tpu.dot_dimension_numbers<[1], [0], [0], [1], [0, 0, 1, 1], [], []>} : vector<16x32xf32>, vector<32x64xf32>, vector<16x64xf32> -> vector<16x64xf32>
    %c1_142 = arith.constant 1 : index
    %c0_143 = arith.constant 0 : index
    %c0_144 = arith.constant 0 : index
    %335 = vector.load %arg10[%c1_142, %c0_143, %c0_144] : memref<3x1x64xf32, #tpu.memory_space<vmem>>, vector<1x1x64xf32>
    %336 = vector.shape_cast %335 : vector<1x1x64xf32> to vector<1x64xf32>
    %337 = vector.broadcast %336 : vector<1x64xf32> to vector<16x64xf32>
    %338 = arith.addf %334, %337 : vector<16x64xf32>
    %cst_145 = arith.constant 0.000000e+00 : f32
    %339 = vector.broadcast %cst_145 : f32 to vector<16x64xf32>
    %340 = arith.maximumf %338, %339 : vector<16x64xf32>
    %c1_146 = arith.constant 1 : index
    %c0_147 = arith.constant 0 : index
    %c0_148 = arith.constant 0 : index
    %341 = vector.load %arg11[%c1_146, %c0_147, %c0_148] : memref<3x64x32xf32, #tpu.memory_space<vmem>>, vector<1x64x32xf32>
    %342 = vector.shape_cast %341 : vector<1x64x32xf32> to vector<64x32xf32>
    %cst_149 = arith.constant dense<0.000000e+00> : vector<16x32xf32>
    %343 = tpu.matmul %340, %342, %cst_149 {dimension_numbers = #tpu.dot_dimension_numbers<[1], [0], [0], [1], [0, 0, 1, 1], [], []>} : vector<16x64xf32>, vector<64x32xf32>, vector<16x32xf32> -> vector<16x32xf32>
    %c1_150 = arith.constant 1 : index
    %c0_151 = arith.constant 0 : index
    %c0_152 = arith.constant 0 : index
    %344 = vector.load %arg12[%c1_150, %c0_151, %c0_152] : memref<3x1x32xf32, #tpu.memory_space<vmem>>, vector<1x1x32xf32>
    %345 = vector.shape_cast %344 : vector<1x1x32xf32> to vector<1x32xf32>
    %346 = vector.broadcast %345 : vector<1x32xf32> to vector<16x32xf32>
    %347 = arith.addf %343, %346 : vector<16x32xf32>
    %348 = arith.addf %305, %347 : vector<16x32xf32>
    %c2_153 = arith.constant 2 : index
    %c0_154 = arith.constant 0 : index
    %c0_155 = arith.constant 0 : index
    %349 = vector.load %arg5[%c2_153, %c0_154, %c0_155] : memref<3x1x32xf32, #tpu.memory_space<vmem>>, vector<1x1x32xf32>
    %350 = vector.shape_cast %349 : vector<1x1x32xf32> to vector<1x32xf32>
    %c2_156 = arith.constant 2 : index
    %c0_157 = arith.constant 0 : index
    %c0_158 = arith.constant 0 : index
    %351 = vector.load %arg6[%c2_156, %c0_157, %c0_158] : memref<3x1x32xf32, #tpu.memory_space<vmem>>, vector<1x1x32xf32>
    %352 = vector.shape_cast %351 : vector<1x1x32xf32> to vector<1x32xf32>
    %cst_159 = arith.constant dense<0.000000e+00> : vector<16xf32>
    %353 = vector.multi_reduction <add>, %348, %cst_159 [1] : vector<16x32xf32> to vector<16xf32>
    %354 = vector.shape_cast %353 : vector<16xf32> to vector<16x1xf32>
    %cst_160 = arith.constant 3.200000e+01 : f32
    %355 = vector.broadcast %cst_160 : f32 to vector<16x1xf32>
    %356 = arith.divf %354, %355 : vector<16x1xf32>
    %357 = vector.broadcast %356 : vector<16x1xf32> to vector<16x32xf32>
    %358 = arith.subf %348, %357 : vector<16x32xf32>
    %359 = arith.mulf %358, %358 : vector<16x32xf32>
    %cst_161 = arith.constant dense<0.000000e+00> : vector<16xf32>
    %360 = vector.multi_reduction <add>, %359, %cst_161 [1] : vector<16x32xf32> to vector<16xf32>
    %361 = vector.shape_cast %360 : vector<16xf32> to vector<16x1xf32>
    %cst_162 = arith.constant 3.200000e+01 : f32
    %362 = vector.broadcast %cst_162 : f32 to vector<16x1xf32>
    %363 = arith.divf %361, %362 : vector<16x1xf32>
    %364 = vector.broadcast %356 : vector<16x1xf32> to vector<16x32xf32>
    %365 = arith.subf %348, %364 : vector<16x32xf32>
    %cst_163 = arith.constant 9.99999974E-6 : f32
    %366 = vector.broadcast %cst_163 : f32 to vector<16x1xf32>
    %367 = arith.addf %363, %366 : vector<16x1xf32>
    %368 = math.rsqrt %367 : vector<16x1xf32>
    %369 = vector.broadcast %368 : vector<16x1xf32> to vector<16x32xf32>
    %370 = arith.mulf %365, %369 : vector<16x32xf32>
    %371 = vector.broadcast %350 : vector<1x32xf32> to vector<16x32xf32>
    %372 = arith.mulf %370, %371 : vector<16x32xf32>
    %373 = vector.broadcast %352 : vector<1x32xf32> to vector<16x32xf32>
    %374 = arith.addf %372, %373 : vector<16x32xf32>
    %c2_164 = arith.constant 2 : index
    %c0_165 = arith.constant 0 : index
    %c0_166 = arith.constant 0 : index
    %375 = vector.load %arg2[%c2_164, %c0_165, %c0_166] : memref<3x32x96xf32, #tpu.memory_space<vmem>>, vector<1x32x96xf32>
    %376 = vector.shape_cast %375 : vector<1x32x96xf32> to vector<32x96xf32>
    %cst_167 = arith.constant dense<0.000000e+00> : vector<16x96xf32>
    %377 = tpu.matmul %374, %376, %cst_167 {dimension_numbers = #tpu.dot_dimension_numbers<[1], [0], [0], [1], [0, 0, 1, 1], [], []>} : vector<16x32xf32>, vector<32x96xf32>, vector<16x96xf32> -> vector<16x96xf32>
    %c2_168 = arith.constant 2 : index
    %c0_169 = arith.constant 0 : index
    %c0_170 = arith.constant 0 : index
    %378 = vector.load %arg3[%c2_168, %c0_169, %c0_170] : memref<3x1x96xf32, #tpu.memory_space<vmem>>, vector<1x1x96xf32>
    %379 = vector.shape_cast %378 : vector<1x1x96xf32> to vector<1x96xf32>
    %380 = vector.broadcast %379 : vector<1x96xf32> to vector<16x96xf32>
    %381 = arith.addf %377, %380 : vector<16x96xf32>
    %c10 = arith.constant 10 : index
    %c0_171 = arith.constant 0 : index
    %c0_172 = arith.constant 0 : index
    %382 = vector.load %arg17[%c10, %c0_171, %c0_172] : memref<15x16x16xf32, #tpu.memory_space<vmem>>, vector<1x16x16xf32>
    %383 = vector.shape_cast %382 : vector<1x16x16xf32> to vector<16x16xf32>
    %c11 = arith.constant 11 : index
    %c0_173 = arith.constant 0 : index
    %c0_174 = arith.constant 0 : index
    %384 = vector.load %arg17[%c11, %c0_173, %c0_174] : memref<15x16x16xf32, #tpu.memory_space<vmem>>, vector<1x16x16xf32>
    %385 = vector.shape_cast %384 : vector<1x16x16xf32> to vector<16x16xf32>
    %c12 = arith.constant 12 : index
    %c0_175 = arith.constant 0 : index
    %c0_176 = arith.constant 0 : index
    %386 = vector.load %arg17[%c12, %c0_175, %c0_176] : memref<15x16x16xf32, #tpu.memory_space<vmem>>, vector<1x16x16xf32>
    %387 = vector.shape_cast %386 : vector<1x16x16xf32> to vector<16x16xf32>
    %c13 = arith.constant 13 : index
    %c0_177 = arith.constant 0 : index
    %c0_178 = arith.constant 0 : index
    %388 = vector.load %arg17[%c13, %c0_177, %c0_178] : memref<15x16x16xf32, #tpu.memory_space<vmem>>, vector<1x16x16xf32>
    %389 = vector.shape_cast %388 : vector<1x16x16xf32> to vector<16x16xf32>
    %c14 = arith.constant 14 : index
    %c0_179 = arith.constant 0 : index
    %c0_180 = arith.constant 0 : index
    %390 = vector.load %arg17[%c14, %c0_179, %c0_180] : memref<15x16x16xf32, #tpu.memory_space<vmem>>, vector<1x16x16xf32>
    %391 = vector.shape_cast %390 : vector<1x16x16xf32> to vector<16x16xf32>
    %c2_181 = arith.constant 2 : index
    %c0_182 = arith.constant 0 : index
    %c0_183 = arith.constant 0 : index
    %392 = vector.load %arg18[%c2_181, %c0_182, %c0_183] : memref<3x16x16xf32, #tpu.memory_space<vmem>>, vector<1x16x16xf32>
    %393 = vector.shape_cast %392 : vector<1x16x16xf32> to vector<16x16xf32>
    %394 = vector.extract_strided_slice %381 {offsets = [0, 0], sizes = [16, 16], strides = [1, 1]} : vector<16x96xf32> to vector<16x16xf32>
    %395 = vector.extract_strided_slice %381 {offsets = [0, 32], sizes = [16, 16], strides = [1, 1]} : vector<16x96xf32> to vector<16x16xf32>
    %396 = vector.extract_strided_slice %381 {offsets = [0, 64], sizes = [16, 16], strides = [1, 1]} : vector<16x96xf32> to vector<16x16xf32>
    %cst_184 = arith.constant dense<0.000000e+00> : vector<16x16xf32>
    %397 = tpu.matmul %394, %395, %cst_184 {dimension_numbers = #tpu.dot_dimension_numbers<[1], [1], [0], [0], [0, 0, 1, 0], [], []>} : vector<16x16xf32>, vector<16x16xf32>, vector<16x16xf32> -> vector<16x16xf32>
    %c4_185 = arith.constant 4 : index
    %c0_186 = arith.constant 0 : index
    %c0_187 = arith.constant 0 : index
    %398 = vector.load %arg4[%c4_185, %c0_186, %c0_187] : memref<6x16x5xf32, #tpu.memory_space<vmem>>, vector<1x16x5xf32>
    %399 = vector.shape_cast %398 : vector<1x16x5xf32> to vector<16x5xf32>
    %cst_188 = arith.constant dense<0.000000e+00> : vector<16x5xf32>
    %400 = tpu.matmul %394, %399, %cst_188 {dimension_numbers = #tpu.dot_dimension_numbers<[1], [0], [0], [1], [0, 0, 1, 1], [], []>} : vector<16x16xf32>, vector<16x5xf32>, vector<16x5xf32> -> vector<16x5xf32>
    %401 = vector.extract_strided_slice %400 {offsets = [0, 0], sizes = [16, 1], strides = [1, 1]} : vector<16x5xf32> to vector<16x1xf32>
    %402 = vector.broadcast %401 : vector<16x1xf32> to vector<16x16xf32>
    %403 = arith.mulf %402, %383 : vector<16x16xf32>
    %404 = vector.extract_strided_slice %400 {offsets = [0, 1], sizes = [16, 1], strides = [1, 1]} : vector<16x5xf32> to vector<16x1xf32>
    %405 = vector.broadcast %404 : vector<16x1xf32> to vector<16x16xf32>
    %406 = arith.mulf %405, %385 : vector<16x16xf32>
    %407 = arith.addf %403, %406 : vector<16x16xf32>
    %408 = vector.extract_strided_slice %400 {offsets = [0, 2], sizes = [16, 1], strides = [1, 1]} : vector<16x5xf32> to vector<16x1xf32>
    %409 = vector.broadcast %408 : vector<16x1xf32> to vector<16x16xf32>
    %410 = arith.mulf %409, %387 : vector<16x16xf32>
    %411 = arith.addf %407, %410 : vector<16x16xf32>
    %412 = vector.extract_strided_slice %400 {offsets = [0, 3], sizes = [16, 1], strides = [1, 1]} : vector<16x5xf32> to vector<16x1xf32>
    %413 = vector.broadcast %412 : vector<16x1xf32> to vector<16x16xf32>
    %414 = arith.mulf %413, %389 : vector<16x16xf32>
    %415 = arith.addf %411, %414 : vector<16x16xf32>
    %416 = vector.extract_strided_slice %400 {offsets = [0, 4], sizes = [16, 1], strides = [1, 1]} : vector<16x5xf32> to vector<16x1xf32>
    %417 = vector.broadcast %416 : vector<16x1xf32> to vector<16x16xf32>
    %418 = arith.mulf %417, %391 : vector<16x16xf32>
    %419 = arith.addf %415, %418 : vector<16x16xf32>
    %420 = arith.addf %397, %419 : vector<16x16xf32>
    %cst_189 = arith.constant 2.500000e-01 : f32
    %421 = vector.broadcast %cst_189 : f32 to vector<16x16xf32>
    %422 = arith.mulf %420, %421 : vector<16x16xf32>
    %423 = arith.addf %422, %393 : vector<16x16xf32>
    %cst_190 = arith.constant dense<0xFF800000> : vector<16xf32>
    %424 = vector.multi_reduction <maximumf>, %423, %cst_190 [1] : vector<16x16xf32> to vector<16xf32>
    %425 = vector.shape_cast %424 : vector<16xf32> to vector<16x1xf32>
    %426 = vector.broadcast %425 : vector<16x1xf32> to vector<16x16xf32>
    %427 = arith.subf %423, %426 : vector<16x16xf32>
    %428 = math.exp %427 : vector<16x16xf32>
    %cst_191 = arith.constant dense<0.000000e+00> : vector<16xf32>
    %429 = vector.multi_reduction <add>, %428, %cst_191 [1] : vector<16x16xf32> to vector<16xf32>
    %430 = vector.shape_cast %429 : vector<16xf32> to vector<16x1xf32>
    %431 = tpu.reciprocal %430 {approx = true} : vector<16x1xf32> -> vector<16x1xf32>
    %432 = vector.broadcast %431 : vector<16x1xf32> to vector<16x16xf32>
    %433 = arith.mulf %428, %432 : vector<16x16xf32>
    %cst_192 = arith.constant dense<0.000000e+00> : vector<16x16xf32>
    %434 = tpu.matmul %433, %396, %cst_192 {dimension_numbers = #tpu.dot_dimension_numbers<[1], [0], [0], [1], [0, 0, 1, 1], [], []>} : vector<16x16xf32>, vector<16x16xf32>, vector<16x16xf32> -> vector<16x16xf32>
    %435 = vector.extract_strided_slice %381 {offsets = [0, 16], sizes = [16, 16], strides = [1, 1]} : vector<16x96xf32> to vector<16x16xf32>
    %436 = vector.extract_strided_slice %381 {offsets = [0, 48], sizes = [16, 16], strides = [1, 1]} : vector<16x96xf32> to vector<16x16xf32>
    %437 = vector.extract_strided_slice %381 {offsets = [0, 80], sizes = [16, 16], strides = [1, 1]} : vector<16x96xf32> to vector<16x16xf32>
    %cst_193 = arith.constant dense<0.000000e+00> : vector<16x16xf32>
    %438 = tpu.matmul %435, %436, %cst_193 {dimension_numbers = #tpu.dot_dimension_numbers<[1], [1], [0], [0], [0, 0, 1, 0], [], []>} : vector<16x16xf32>, vector<16x16xf32>, vector<16x16xf32> -> vector<16x16xf32>
    %c5_194 = arith.constant 5 : index
    %c0_195 = arith.constant 0 : index
    %c0_196 = arith.constant 0 : index
    %439 = vector.load %arg4[%c5_194, %c0_195, %c0_196] : memref<6x16x5xf32, #tpu.memory_space<vmem>>, vector<1x16x5xf32>
    %440 = vector.shape_cast %439 : vector<1x16x5xf32> to vector<16x5xf32>
    %cst_197 = arith.constant dense<0.000000e+00> : vector<16x5xf32>
    %441 = tpu.matmul %435, %440, %cst_197 {dimension_numbers = #tpu.dot_dimension_numbers<[1], [0], [0], [1], [0, 0, 1, 1], [], []>} : vector<16x16xf32>, vector<16x5xf32>, vector<16x5xf32> -> vector<16x5xf32>
    %442 = vector.extract_strided_slice %441 {offsets = [0, 0], sizes = [16, 1], strides = [1, 1]} : vector<16x5xf32> to vector<16x1xf32>
    %443 = vector.broadcast %442 : vector<16x1xf32> to vector<16x16xf32>
    %444 = arith.mulf %443, %383 : vector<16x16xf32>
    %445 = vector.extract_strided_slice %441 {offsets = [0, 1], sizes = [16, 1], strides = [1, 1]} : vector<16x5xf32> to vector<16x1xf32>
    %446 = vector.broadcast %445 : vector<16x1xf32> to vector<16x16xf32>
    %447 = arith.mulf %446, %385 : vector<16x16xf32>
    %448 = arith.addf %444, %447 : vector<16x16xf32>
    %449 = vector.extract_strided_slice %441 {offsets = [0, 2], sizes = [16, 1], strides = [1, 1]} : vector<16x5xf32> to vector<16x1xf32>
    %450 = vector.broadcast %449 : vector<16x1xf32> to vector<16x16xf32>
    %451 = arith.mulf %450, %387 : vector<16x16xf32>
    %452 = arith.addf %448, %451 : vector<16x16xf32>
    %453 = vector.extract_strided_slice %441 {offsets = [0, 3], sizes = [16, 1], strides = [1, 1]} : vector<16x5xf32> to vector<16x1xf32>
    %454 = vector.broadcast %453 : vector<16x1xf32> to vector<16x16xf32>
    %455 = arith.mulf %454, %389 : vector<16x16xf32>
    %456 = arith.addf %452, %455 : vector<16x16xf32>
    %457 = vector.extract_strided_slice %441 {offsets = [0, 4], sizes = [16, 1], strides = [1, 1]} : vector<16x5xf32> to vector<16x1xf32>
    %458 = vector.broadcast %457 : vector<16x1xf32> to vector<16x16xf32>
    %459 = arith.mulf %458, %391 : vector<16x16xf32>
    %460 = arith.addf %456, %459 : vector<16x16xf32>
    %461 = arith.addf %438, %460 : vector<16x16xf32>
    %cst_198 = arith.constant 2.500000e-01 : f32
    %462 = vector.broadcast %cst_198 : f32 to vector<16x16xf32>
    %463 = arith.mulf %461, %462 : vector<16x16xf32>
    %464 = arith.addf %463, %393 : vector<16x16xf32>
    %cst_199 = arith.constant dense<0xFF800000> : vector<16xf32>
    %465 = vector.multi_reduction <maximumf>, %464, %cst_199 [1] : vector<16x16xf32> to vector<16xf32>
    %466 = vector.shape_cast %465 : vector<16xf32> to vector<16x1xf32>
    %467 = vector.broadcast %466 : vector<16x1xf32> to vector<16x16xf32>
    %468 = arith.subf %464, %467 : vector<16x16xf32>
    %469 = math.exp %468 : vector<16x16xf32>
    %cst_200 = arith.constant dense<0.000000e+00> : vector<16xf32>
    %470 = vector.multi_reduction <add>, %469, %cst_200 [1] : vector<16x16xf32> to vector<16xf32>
    %471 = vector.shape_cast %470 : vector<16xf32> to vector<16x1xf32>
    %472 = tpu.reciprocal %471 {approx = true} : vector<16x1xf32> -> vector<16x1xf32>
    %473 = vector.broadcast %472 : vector<16x1xf32> to vector<16x16xf32>
    %474 = arith.mulf %469, %473 : vector<16x16xf32>
    %cst_201 = arith.constant dense<0.000000e+00> : vector<16x16xf32>
    %475 = tpu.matmul %474, %437, %cst_201 {dimension_numbers = #tpu.dot_dimension_numbers<[1], [0], [0], [1], [0, 0, 1, 1], [], []>} : vector<16x16xf32>, vector<16x16xf32>, vector<16x16xf32> -> vector<16x16xf32>
    %476 = tpu.concatenate %434, %475 in 1 : vector<16x16xf32>, vector<16x16xf32> -> vector<16x32xf32>
    %477 = arith.addf %304, %476 : vector<16x32xf32>
    %478 = arith.addf %348, %476 : vector<16x32xf32>
    %c2_202 = arith.constant 2 : index
    %c0_203 = arith.constant 0 : index
    %c0_204 = arith.constant 0 : index
    %479 = vector.load %arg7[%c2_202, %c0_203, %c0_204] : memref<3x1x32xf32, #tpu.memory_space<vmem>>, vector<1x1x32xf32>
    %480 = vector.shape_cast %479 : vector<1x1x32xf32> to vector<1x32xf32>
    %c2_205 = arith.constant 2 : index
    %c0_206 = arith.constant 0 : index
    %c0_207 = arith.constant 0 : index
    %481 = vector.load %arg8[%c2_205, %c0_206, %c0_207] : memref<3x1x32xf32, #tpu.memory_space<vmem>>, vector<1x1x32xf32>
    %482 = vector.shape_cast %481 : vector<1x1x32xf32> to vector<1x32xf32>
    %cst_208 = arith.constant dense<0.000000e+00> : vector<16xf32>
    %483 = vector.multi_reduction <add>, %478, %cst_208 [1] : vector<16x32xf32> to vector<16xf32>
    %484 = vector.shape_cast %483 : vector<16xf32> to vector<16x1xf32>
    %cst_209 = arith.constant 3.200000e+01 : f32
    %485 = vector.broadcast %cst_209 : f32 to vector<16x1xf32>
    %486 = arith.divf %484, %485 : vector<16x1xf32>
    %487 = vector.broadcast %486 : vector<16x1xf32> to vector<16x32xf32>
    %488 = arith.subf %478, %487 : vector<16x32xf32>
    %489 = arith.mulf %488, %488 : vector<16x32xf32>
    %cst_210 = arith.constant dense<0.000000e+00> : vector<16xf32>
    %490 = vector.multi_reduction <add>, %489, %cst_210 [1] : vector<16x32xf32> to vector<16xf32>
    %491 = vector.shape_cast %490 : vector<16xf32> to vector<16x1xf32>
    %cst_211 = arith.constant 3.200000e+01 : f32
    %492 = vector.broadcast %cst_211 : f32 to vector<16x1xf32>
    %493 = arith.divf %491, %492 : vector<16x1xf32>
    %494 = vector.broadcast %486 : vector<16x1xf32> to vector<16x32xf32>
    %495 = arith.subf %478, %494 : vector<16x32xf32>
    %cst_212 = arith.constant 9.99999974E-6 : f32
    %496 = vector.broadcast %cst_212 : f32 to vector<16x1xf32>
    %497 = arith.addf %493, %496 : vector<16x1xf32>
    %498 = math.rsqrt %497 : vector<16x1xf32>
    %499 = vector.broadcast %498 : vector<16x1xf32> to vector<16x32xf32>
    %500 = arith.mulf %495, %499 : vector<16x32xf32>
    %501 = vector.broadcast %480 : vector<1x32xf32> to vector<16x32xf32>
    %502 = arith.mulf %500, %501 : vector<16x32xf32>
    %503 = vector.broadcast %482 : vector<1x32xf32> to vector<16x32xf32>
    %504 = arith.addf %502, %503 : vector<16x32xf32>
    %c2_213 = arith.constant 2 : index
    %c0_214 = arith.constant 0 : index
    %c0_215 = arith.constant 0 : index
    %505 = vector.load %arg9[%c2_213, %c0_214, %c0_215] : memref<3x32x64xf32, #tpu.memory_space<vmem>>, vector<1x32x64xf32>
    %506 = vector.shape_cast %505 : vector<1x32x64xf32> to vector<32x64xf32>
    %cst_216 = arith.constant dense<0.000000e+00> : vector<16x64xf32>
    %507 = tpu.matmul %504, %506, %cst_216 {dimension_numbers = #tpu.dot_dimension_numbers<[1], [0], [0], [1], [0, 0, 1, 1], [], []>} : vector<16x32xf32>, vector<32x64xf32>, vector<16x64xf32> -> vector<16x64xf32>
    %c2_217 = arith.constant 2 : index
    %c0_218 = arith.constant 0 : index
    %c0_219 = arith.constant 0 : index
    %508 = vector.load %arg10[%c2_217, %c0_218, %c0_219] : memref<3x1x64xf32, #tpu.memory_space<vmem>>, vector<1x1x64xf32>
    %509 = vector.shape_cast %508 : vector<1x1x64xf32> to vector<1x64xf32>
    %510 = vector.broadcast %509 : vector<1x64xf32> to vector<16x64xf32>
    %511 = arith.addf %507, %510 : vector<16x64xf32>
    %cst_220 = arith.constant 0.000000e+00 : f32
    %512 = vector.broadcast %cst_220 : f32 to vector<16x64xf32>
    %513 = arith.maximumf %511, %512 : vector<16x64xf32>
    %c2_221 = arith.constant 2 : index
    %c0_222 = arith.constant 0 : index
    %c0_223 = arith.constant 0 : index
    %514 = vector.load %arg11[%c2_221, %c0_222, %c0_223] : memref<3x64x32xf32, #tpu.memory_space<vmem>>, vector<1x64x32xf32>
    %515 = vector.shape_cast %514 : vector<1x64x32xf32> to vector<64x32xf32>
    %cst_224 = arith.constant dense<0.000000e+00> : vector<16x32xf32>
    %516 = tpu.matmul %513, %515, %cst_224 {dimension_numbers = #tpu.dot_dimension_numbers<[1], [0], [0], [1], [0, 0, 1, 1], [], []>} : vector<16x64xf32>, vector<64x32xf32>, vector<16x32xf32> -> vector<16x32xf32>
    %c2_225 = arith.constant 2 : index
    %c0_226 = arith.constant 0 : index
    %c0_227 = arith.constant 0 : index
    %517 = vector.load %arg12[%c2_225, %c0_226, %c0_227] : memref<3x1x32xf32, #tpu.memory_space<vmem>>, vector<1x1x32xf32>
    %518 = vector.shape_cast %517 : vector<1x1x32xf32> to vector<1x32xf32>
    %519 = vector.broadcast %518 : vector<1x32xf32> to vector<16x32xf32>
    %520 = arith.addf %516, %519 : vector<16x32xf32>
    %521 = arith.addf %478, %520 : vector<16x32xf32>
    %cst_228 = arith.constant 0.000000e+00 : f32
    %522 = vector.broadcast %cst_228 : f32 to vector<16x32xf32>
    %523 = arith.maximumf %521, %522 : vector<16x32xf32>
    %c0_229 = arith.constant 0 : index
    %c0_230 = arith.constant 0 : index
    %524 = vector.load %arg13[%c0_229, %c0_230] : memref<32x2xf32, #tpu.memory_space<vmem>>, vector<32x2xf32>
    %cst_231 = arith.constant dense<0.000000e+00> : vector<16x2xf32>
    %525 = tpu.matmul %523, %524, %cst_231 {dimension_numbers = #tpu.dot_dimension_numbers<[1], [0], [0], [1], [0, 0, 1, 1], [], []>} : vector<16x32xf32>, vector<32x2xf32>, vector<16x2xf32> -> vector<16x2xf32>
    %c0_232 = arith.constant 0 : index
    %c0_233 = arith.constant 0 : index
    %526 = vector.load %arg14[%c0_232, %c0_233] : memref<1x2xf32, #tpu.memory_space<vmem>>, vector<1x2xf32>
    %527 = vector.broadcast %526 : vector<1x2xf32> to vector<16x2xf32>
    %528 = arith.addf %525, %527 : vector<16x2xf32>
    %c0_234 = arith.constant 0 : index
    %c0_235 = arith.constant 0 : index
    %c0_236 = arith.constant 0 : index
    %529 = vector.load %arg19[%c0_234, %c0_235, %c0_236] : memref<1x16x2xf32, #tpu.memory_space<vmem>>, vector<1x16x2xf32>
    %530 = vector.shape_cast %529 : vector<1x16x2xf32> to vector<16x2xf32>
    %531 = vector.shape_cast %528 : vector<16x2xf32> to vector<1x16x2xf32>
    tpu.vector_store %arg19[%c0_234, %c0_235, %c0_236], %531 {strides = array<i32>} : memref<1x16x2xf32, #tpu.memory_space<vmem>>, vector<1x16x2xf32>,
    %cst_237 = arith.constant 0.000000e+00 : f32
    %532 = vector.broadcast %cst_237 : f32 to vector<16x32xf32>
    %533 = arith.maximumf %477, %532 : vector<16x32xf32>
    %cst_238 = arith.constant dense<0.000000e+00> : vector<32xf32>
    %534 = vector.multi_reduction <add>, %533, %cst_238 [0] : vector<16x32xf32> to vector<32xf32>
    %535 = vector.shape_cast %534 : vector<32xf32> to vector<1x32xf32>
    %cst_239 = arith.constant 1.600000e+01 : f32
    %536 = vector.broadcast %cst_239 : f32 to vector<1x32xf32>
    %537 = arith.divf %535, %536 : vector<1x32xf32>
    %c0_240 = arith.constant 0 : index
    %c0_241 = arith.constant 0 : index
    %538 = vector.load %arg15[%c0_240, %c0_241] : memref<32x300xf32, #tpu.memory_space<vmem>>, vector<32x300xf32>
    %cst_242 = arith.constant dense<0.000000e+00> : vector<1x300xf32>
    %539 = tpu.matmul %537, %538, %cst_242 {dimension_numbers = #tpu.dot_dimension_numbers<[1], [0], [0], [1], [0, 0, 1, 1], [], []>} : vector<1x32xf32>, vector<32x300xf32>, vector<1x300xf32> -> vector<1x300xf32>
    %c0_243 = arith.constant 0 : index
    %c0_244 = arith.constant 0 : index
    %540 = vector.load %arg16[%c0_243, %c0_244] : memref<1x300xf32, #tpu.memory_space<vmem>>, vector<1x300xf32>
    %541 = arith.addf %539, %540 : vector<1x300xf32>
    %c0_245 = arith.constant 0 : index
    %c0_246 = arith.constant 0 : index
    %c0_247 = arith.constant 0 : index
    %542 = vector.load %arg20[%c0_245, %c0_246, %c0_247] : memref<1x1x300xf32, #tpu.memory_space<vmem>>, vector<1x1x300xf32>
    %543 = vector.shape_cast %542 : vector<1x1x300xf32> to vector<1x300xf32>
    %544 = vector.shape_cast %541 : vector<1x300xf32> to vector<1x1x300xf32>
    tpu.vector_store %arg20[%c0_245, %c0_246, %c0_247], %544 {strides = array<i32>} : memref<1x1x300xf32, #tpu.memory_space<vmem>>, vector<1x1x300xf32>,
    return
  }
  func.func @transform_0(%arg0: i32) -> (i32, i32, i32) {
    %c0_i32 = arith.constant 0 : i32
    %c0_i32_0 = arith.constant 0 : i32
    %c0_i32_1 = arith.constant 0 : i32
    return %arg0, %c0_i32, %c0_i32_0 : i32, i32, i32
  }
  func.func @transform_1(%arg0: i32) -> (i32, i32, i32) {
    %c0_i32 = arith.constant 0 : i32
    %c0_i32_0 = arith.constant 0 : i32
    %c0_i32_1 = arith.constant 0 : i32
    %c0_i32_2 = arith.constant 0 : i32
    return %c0_i32, %c0_i32_0, %c0_i32_1 : i32, i32, i32
  }
  func.func @transform_2(%arg0: i32) -> (i32, i32, i32) {
    %c0_i32 = arith.constant 0 : i32
    %c0_i32_0 = arith.constant 0 : i32
    %c0_i32_1 = arith.constant 0 : i32
    %c0_i32_2 = arith.constant 0 : i32
    return %c0_i32, %c0_i32_0, %c0_i32_1 : i32, i32, i32
  }
  func.func @transform_3(%arg0: i32) -> (i32, i32, i32) {
    %c0_i32 = arith.constant 0 : i32
    %c0_i32_0 = arith.constant 0 : i32
    %c0_i32_1 = arith.constant 0 : i32
    %c0_i32_2 = arith.constant 0 : i32
    return %c0_i32, %c0_i32_0, %c0_i32_1 : i32, i32, i32
  }
  func.func @transform_4(%arg0: i32) -> (i32, i32, i32) {
    %c0_i32 = arith.constant 0 : i32
    %c0_i32_0 = arith.constant 0 : i32
    %c0_i32_1 = arith.constant 0 : i32
    %c0_i32_2 = arith.constant 0 : i32
    return %c0_i32, %c0_i32_0, %c0_i32_1 : i32, i32, i32
  }
  func.func @transform_5(%arg0: i32) -> (i32, i32, i32) {
    %c0_i32 = arith.constant 0 : i32
    %c0_i32_0 = arith.constant 0 : i32
    %c0_i32_1 = arith.constant 0 : i32
    %c0_i32_2 = arith.constant 0 : i32
    return %c0_i32, %c0_i32_0, %c0_i32_1 : i32, i32, i32
  }
  func.func @transform_6(%arg0: i32) -> (i32, i32, i32) {
    %c0_i32 = arith.constant 0 : i32
    %c0_i32_0 = arith.constant 0 : i32
    %c0_i32_1 = arith.constant 0 : i32
    %c0_i32_2 = arith.constant 0 : i32
    return %c0_i32, %c0_i32_0, %c0_i32_1 : i32, i32, i32
  }
  func.func @transform_7(%arg0: i32) -> (i32, i32, i32) {
    %c0_i32 = arith.constant 0 : i32
    %c0_i32_0 = arith.constant 0 : i32
    %c0_i32_1 = arith.constant 0 : i32
    %c0_i32_2 = arith.constant 0 : i32
    return %c0_i32, %c0_i32_0, %c0_i32_1 : i32, i32, i32
  }
  func.func @transform_8(%arg0: i32) -> (i32, i32, i32) {
    %c0_i32 = arith.constant 0 : i32
    %c0_i32_0 = arith.constant 0 : i32
    %c0_i32_1 = arith.constant 0 : i32
    %c0_i32_2 = arith.constant 0 : i32
    return %c0_i32, %c0_i32_0, %c0_i32_1 : i32, i32, i32
  }
  func.func @transform_9(%arg0: i32) -> (i32, i32, i32) {
    %c0_i32 = arith.constant 0 : i32
    %c0_i32_0 = arith.constant 0 : i32
    %c0_i32_1 = arith.constant 0 : i32
    %c0_i32_2 = arith.constant 0 : i32
    return %c0_i32, %c0_i32_0, %c0_i32_1 : i32, i32, i32
  }
  func.func @transform_10(%arg0: i32) -> (i32, i32, i32) {
    %c0_i32 = arith.constant 0 : i32
    %c0_i32_0 = arith.constant 0 : i32
    %c0_i32_1 = arith.constant 0 : i32
    %c0_i32_2 = arith.constant 0 : i32
    return %c0_i32, %c0_i32_0, %c0_i32_1 : i32, i32, i32
  }
  func.func @transform_11(%arg0: i32) -> (i32, i32, i32) {
    %c0_i32 = arith.constant 0 : i32
    %c0_i32_0 = arith.constant 0 : i32
    %c0_i32_1 = arith.constant 0 : i32
    %c0_i32_2 = arith.constant 0 : i32
    return %c0_i32, %c0_i32_0, %c0_i32_1 : i32, i32, i32
  }
  func.func @transform_12(%arg0: i32) -> (i32, i32) {
    %c0_i32 = arith.constant 0 : i32
    %c0_i32_0 = arith.constant 0 : i32
    %c0_i32_1 = arith.constant 0 : i32
    return %c0_i32, %c0_i32_0 : i32, i32
  }
  func.func @transform_13(%arg0: i32) -> (i32, i32) {
    %c0_i32 = arith.constant 0 : i32
    %c0_i32_0 = arith.constant 0 : i32
    %c0_i32_1 = arith.constant 0 : i32
    return %c0_i32, %c0_i32_0 : i32, i32
  }
  func.func @transform_14(%arg0: i32) -> (i32, i32) {
    %c0_i32 = arith.constant 0 : i32
    %c0_i32_0 = arith.constant 0 : i32
    %c0_i32_1 = arith.constant 0 : i32
    return %c0_i32, %c0_i32_0 : i32, i32
  }
  func.func @transform_15(%arg0: i32) -> (i32, i32) {
    %c0_i32 = arith.constant 0 : i32
    %c0_i32_0 = arith.constant 0 : i32
    %c0_i32_1 = arith.constant 0 : i32
    return %c0_i32, %c0_i32_0 : i32, i32
  }
  func.func @transform_16(%arg0: i32) -> (i32, i32, i32) {
    %c0_i32 = arith.constant 0 : i32
    %c0_i32_0 = arith.constant 0 : i32
    %c0_i32_1 = arith.constant 0 : i32
    %c0_i32_2 = arith.constant 0 : i32
    return %c0_i32, %c0_i32_0, %c0_i32_1 : i32, i32, i32
  }
  func.func @transform_17(%arg0: i32) -> (i32, i32, i32) {
    %c0_i32 = arith.constant 0 : i32
    %c0_i32_0 = arith.constant 0 : i32
    %c0_i32_1 = arith.constant 0 : i32
    %c0_i32_2 = arith.constant 0 : i32
    return %c0_i32, %c0_i32_0, %c0_i32_1 : i32, i32, i32
  }
  func.func @transform_18(%arg0: i32) -> (i32, i32, i32) {
    %c0_i32 = arith.constant 0 : i32
    %c0_i32_0 = arith.constant 0 : i32
    %c0_i32_1 = arith.constant 0 : i32
    return %arg0, %c0_i32, %c0_i32_0 : i32, i32, i32
  }
  func.func @transform_19(%arg0: i32) -> (i32, i32, i32) {
    %c0_i32 = arith.constant 0 : i32
    %c0_i32_0 = arith.constant 0 : i32
    %c0_i32_1 = arith.constant 0 : i32
    return %arg0, %c0_i32, %c0_i32_0 : i32, i32, i32
  }
}

</mosaic_0001>

<llo_original>
// kernel: model_forward.4
$region0: #{model_forward.4}
  #allocation0 [shape = 'u32[]', space=smem, size = 0x4, offset = 0x4, fixed_abs, tag = 'smem constant byte address 0x4 - core index']
  #allocation1 [shape = 'u32[72,128]{1,0:T(1,128)}', space=vmem, size = 0x9000, scoped, tag = 'internal scratch']
  %s0 = inlined_call_operand.vmem [shape: f32[2,672,15], index: 0, kind: input, shape index: {}]
  %s1 = inlined_call_operand.vmem [shape: f32[2,672,15], index: 1, kind: input, shape index: {}]
  %s2 = inlined_call_operand.vmem [shape: f32[2,672,15], index: 2, kind: input, shape index: {}]
  %s3 = inlined_call_operand.vmem [shape: f32[15,32], index: 3, kind: input, shape index: {}]
  %s4 = inlined_call_operand.vmem [shape: f32[1,32], index: 4, kind: input, shape index: {}]
  %s5 = inlined_call_operand.vmem [shape: f32[2,672,32], index: 5, kind: output, shape index: {}]
  %s6 = sld [smem:[#allocation0]]
  $region53: #{model_forward.4} parent=0
    _
  %s8 = ssub.s32 1, %s6
  %s9 = scalar_select 0, %s8, %s6
  loop: start=0, step=1, limit=4
  $region2: #{model_forward.4} parent=0 // loop_pre_header
    _
  $region3: #{model_forward.4} parent=0 // loop_header
    %s11 = sphi 0, %s15
    %p12 = scmp.ge.s32.totalorder %s11, 4
    %s21 = sphi 0, %s23
    %s24 = sphi 0, %s21
    %s25 = sphi 0, %s24
    %s41 = sphi 0, %s25
    %s47 = sphi 0, %s49
    %s50 = sphi 0, %s47
    %s51 = sphi 0, %s50
    %s67 = sphi 0, %s51
    %s73 = sphi 0, %s75
    %s76 = sphi 0, %s73
    %s77 = sphi 0, %s76
    %s93 = sphi 0, %s77
    %s97 = sphi 0, %s97
    %s99 = sphi 0, %s97
    %s100 = sphi 0, %s99
    %s114 = sphi 0, %s100
    %s118 = sphi 0, %s118
    %s120 = sphi 0, %s118
    %s121 = sphi 0, %s120
    %s135 = sphi 0, %s121
    %s141 = sphi 0, %s143
    %s144 = sphi 0, %s141
    %s145 = sphi 0, %s144
    %s161 = sphi 0, %s145
  $region4: #{model_forward.4} parent=0 // loop_header_branch
    %14 = sbr.rel (%p12) target = $region8
  $region5: #{model_forward.4} parent=0 // loop_body
    %s16 = ssub.s32 %s11, 1
    %s17 = ssub.s32 %s11, 2
    %s18 = sadd.s32 %s11, 1
    %s19 = ssub.s32 %s11, %s18
    %p20 = scmp.eq.s32.totalorder %s19, 0
    %s22 = sadd.s32 %s21, 1
    %s23 = scalar_select %p20, %s21, %s22
    %p26 = pneg %p20
    %p27 = scmp.eq.s32.totalorder %s11, 1
    %p28 = por %p26, %p27
    %p29 = scmp.ne.s32.totalorder %s21, %s24
    %p30 = scmp.eq.s32.totalorder %s11, 0
    %p31 = por %p29, %p30
    %p32 = scmp.ne.s32.totalorder %s21, %s24
    %p33 = scmp.eq.s32.totalorder %s16, 1
    %p34 = por %p32, %p33
    %p35 = scmp.ne.s32.totalorder %s24, %s25
    %p36 = scmp.eq.s32.totalorder %s16, 0
    %p37 = por %p35, %p36
    %p38 = scmp.ne.s32.totalorder %s24, %s25
    %p39 = scmp.eq.s32.totalorder %s17, 1
    %p40 = por %p38, %p39
    %p42 = scmp.ne.s32.totalorder %s25, %s41
    %p43 = scmp.eq.s32.totalorder %s17, 0
    %p44 = por %p42, %p43
    %s45 = ssub.s32 %s11, %s18
    %p46 = scmp.eq.s32.totalorder %s45, 0
    %s48 = sadd.s32 %s47, 1
    %s49 = scalar_select %p46, %s47, %s48
    %p52 = pneg %p46
    %p53 = scmp.eq.s32.totalorder %s11, 1
    %p54 = por %p52, %p53
    %p55 = scmp.ne.s32.totalorder %s47, %s50
    %p56 = scmp.eq.s32.totalorder %s11, 0
    %p57 = por %p55, %p56
    %p58 = scmp.ne.s32.totalorder %s47, %s50
    %p59 = scmp.eq.s32.totalorder %s16, 1
    %p60 = por %p58, %p59
    %p61 = scmp.ne.s32.totalorder %s50, %s51
    %p62 = scmp.eq.s32.totalorder %s16, 0
    %p63 = por %p61, %p62
    %p64 = scmp.ne.s32.totalorder %s50, %s51
    %p65 = scmp.eq.s32.totalorder %s17, 1
    %p66 = por %p64, %p65
    %p68 = scmp.ne.s32.totalorder %s51, %s67
    %p69 = scmp.eq.s32.totalorder %s17, 0
    %p70 = por %p68, %p69
    %s71 = ssub.s32 %s11, %s18
    %p72 = scmp.eq.s32.totalorder %s71, 0
    %s74 = sadd.s32 %s73, 1
    %s75 = scalar_select %p72, %s73, %s74
    %p78 = pneg %p72
    %p79 = scmp.eq.s32.totalorder %s11, 1
    %p80 = por %p78, %p79
    %p81 = scmp.ne.s32.totalorder %s73, %s76
    %p82 = scmp.eq.s32.totalorder %s11, 0
    %p83 = por %p81, %p82
    %p84 = scmp.ne.s32.totalorder %s73, %s76
    %p85 = scmp.eq.s32.totalorder %s16, 1
    %p86 = por %p84, %p85
    %p87 = scmp.ne.s32.totalorder %s76, %s77
    %p88 = scmp.eq.s32.totalorder %s16, 0
    %p89 = por %p87, %p88
    %p90 = scmp.ne.s32.totalorder %s76, %s77
    %p91 = scmp.eq.s32.totalorder %s17, 1
    %p92 = por %p90, %p91
    %p94 = scmp.ne.s32.totalorder %s77, %s93
    %p95 = scmp.eq.s32.totalorder %s17, 0
    %p96 = por %p94, %p95
    %s98 = sadd.s32 %s97, 1
    %p101 = scmp.eq.s32.totalorder %s11, 1
    %p102 = scmp.ne.s32.totalorder %s97, %s99
    %p103 = scmp.eq.s32.totalorder %s11, 0
    %p104 = por %p102, %p103
    %p105 = scmp.ne.s32.totalorder %s97, %s99
    %p106 = scmp.eq.s32.totalorder %s16, 1
    %p107 = por %p105, %p106
    %p108 = scmp.ne.s32.totalorder %s99, %s100
    %p109 = scmp.eq.s32.totalorder %s16, 0
    %p110 = por %p108, %p109
    %p111 = scmp.ne.s32.totalorder %s99, %s100
    %p112 = scmp.eq.s32.totalorder %s17, 1
    %p113 = por %p111, %p112
    %p115 = scmp.ne.s32.totalorder %s100, %s114
    %p116 = scmp.eq.s32.totalorder %s17, 0
    %p117 = por %p115, %p116
    %s119 = sadd.s32 %s118, 1
    %p122 = scmp.eq.s32.totalorder %s11, 1
    %p123 = scmp.ne.s32.totalorder %s118, %s120
    %p124 = scmp.eq.s32.totalorder %s11, 0
    %p125 = por %p123, %p124
    %p126 = scmp.ne.s32.totalorder %s118, %s120
    %p127 = scmp.eq.s32.totalorder %s16, 1
    %p128 = por %p126, %p127
    %p129 = scmp.ne.s32.totalorder %s120, %s121
    %p130 = scmp.eq.s32.totalorder %s16, 0
    %p131 = por %p129, %p130
    %p132 = scmp.ne.s32.totalorder %s120, %s121
    %p133 = scmp.eq.s32.totalorder %s17, 1
    %p134 = por %p132, %p133
    %p136 = scmp.ne.s32.totalorder %s121, %s135
    %p137 = scmp.eq.s32.totalorder %s17, 0
    %p138 = por %p136, %p137
    %s139 = ssub.s32 %s11, %s18
    %p140 = scmp.eq.s32.totalorder %s139, 0
    %s142 = sadd.s32 %s141, 1
    %s143 = scalar_select %p140, %s141, %s142
    %p146 = pneg %p140
    %p147 = scmp.eq.s32.totalorder %s11, 1
    %p148 = por %p146, %p147
    %p149 = scmp.ne.s32.totalorder %s141, %s144
    %p150 = scmp.eq.s32.totalorder %s11, 0
    %p151 = por %p149, %p150
    %p152 = scmp.ne.s32.totalorder %s141, %s144
    %p153 = scmp.eq.s32.totalorder %s16, 1
    %p154 = por %p152, %p153
    %p155 = scmp.ne.s32.totalorder %s144, %s145
    %p156 = scmp.eq.s32.totalorder %s16, 0
    %p157 = por %p155, %p156
    %p158 = scmp.ne.s32.totalorder %s144, %s145
    %p159 = scmp.eq.s32.totalorder %s17, 1
    %p160 = por %p158, %p159
    %p162 = scmp.ne.s32.totalorder %s145, %s161
    %p163 = scmp.eq.s32.totalorder %s17, 0
    %p164 = por %p162, %p163
    %p165 = scmp.le.s32.totalorder 1, %s11
    %p166 = scmp.lt.s32.totalorder %s11, 3
    %p167 = pnand %p165, %p166
    %p168 = pneg %p167
    // Predicated region
    $region9: #{model_forward.4} parent=5 // pred_check
      _
    $region10: #{model_forward.4} parent=5 // pred_check_branch
      %170 = sbr.rel (%p167) target = $region12
    $region11: #{model_forward.4} parent=5 // pred_region
      %s171 = ssub.s32 %s11, 1
      // Predicated region
      $region13: #{model_forward.4} parent=11 // pred_check
        %p172 = pneg %p110
      $region14: #{model_forward.4} parent=11 // pred_check_branch
        %174 = sbr.rel (%p172) target = $region16
      $region15: #{model_forward.4} parent=11 // pred_region
        _
      $region16: #{model_forward.4} parent=11 // pred_fallthru
        _
      // Predicated region
      $region17: #{model_forward.4} parent=11 // pred_check
        %p175 = pneg %p131
      $region18: #{model_forward.4} parent=11 // pred_check_branch
        %177 = sbr.rel (%p175) target = $region20
      $region19: #{model_forward.4} parent=11 // pred_region
        _
      $region20: #{model_forward.4} parent=11 // pred_fallthru
        _
    $region12: #{model_forward.4} parent=5 // pred_fallthru
      _
    %p178 = scmp.lt.s32.totalorder %s11, 2
    // Predicated region
    $region21: #{model_forward.4} parent=5 // pred_check
      %p179 = pneg %p178
    $region22: #{model_forward.4} parent=5 // pred_check_branch
      %181 = sbr.rel (%p179) target = $region24
    $region23: #{model_forward.4} parent=5 // pred_region
      // Predicated region
      $region25: #{model_forward.4} parent=23 // pred_check
        %p182 = pneg %p31
      $region26: #{model_forward.4} parent=23 // pred_check_branch
        %184 = sbr.rel (%p182) target = $region28
      $region27: #{model_forward.4} parent=23 // pred_region
        %p185 = scmp.lt.s32.totalorder %s11, 1
        %s186 = scalar_select %p185, %s11, 1
        %s187 = smul.addr %s186, 84
        %s188 = smul.addr %s187, 8
        %s189 = scalar_lea.vmem %s0, %s188
      $region28: #{model_forward.4} parent=23 // pred_fallthru
        _
      // Predicated region
      $region29: #{model_forward.4} parent=23 // pred_check
        %p190 = pneg %p57
      $region30: #{model_forward.4} parent=23 // pred_check_branch
        %192 = sbr.rel (%p190) target = $region32
      $region31: #{model_forward.4} parent=23 // pred_region
        %p193 = scmp.lt.s32.totalorder %s11, 1
        %s194 = scalar_select %p193, %s11, 1
        %s195 = smul.addr %s194, 84
        %s196 = smul.addr %s195, 8
        %s197 = scalar_lea.vmem %s1, %s196
      $region32: #{model_forward.4} parent=23 // pred_fallthru
        _
      // Predicated region
      $region33: #{model_forward.4} parent=23 // pred_check
        %p198 = pneg %p83
      $region34: #{model_forward.4} parent=23 // pred_check_branch
        %200 = sbr.rel (%p198) target = $region36
      $region35: #{model_forward.4} parent=23 // pred_region
        %p201 = scmp.lt.s32.totalorder %s11, 1
        %s202 = scalar_select %p201, %s11, 1
        %s203 = smul.addr %s202, 84
        %s204 = smul.addr %s203, 8
        %s205 = scalar_lea.vmem %s2, %s204
      $region36: #{model_forward.4} parent=23 // pred_fallthru
        _
    $region24: #{model_forward.4} parent=5 // pred_fallthru
      _
    %p206 = scmp.le.s32.totalorder 1, %s11
    %p207 = scmp.lt.s32.totalorder %s11, 3
    %p208 = pnand %p206, %p207
    %p209 = pneg %p208
    // Predicated region
    $region37: #{model_forward.4} parent=5 // pred_check
      _
    $region38: #{model_forward.4} parent=5 // pred_check_branch
      %211 = sbr.rel (%p208) target = $region40
    $region39: #{model_forward.4} parent=5 // pred_region
      %s212 = ssub.s32 %s11, 1
      %p213 = scmp.lt.s32.totalorder %s16, 1
      %s214 = scalar_select %p213, %s16, 1
      %s215 = smul.addr %s214, 84
      %s216 = smul.addr %s215, 8
      %s217 = scalar_lea.vmem %s0, %s216
      %p218 = pneg %p37
      %p219 = pneg %p34
      %p220 = scmp.lt.s32.totalorder %s16, 1
      %s221 = scalar_select %p220, %s16, 1
      %s222 = smul.addr %s221, 84
      %s223 = smul.addr %s222, 8
      %s224 = scalar_lea.vmem %s1, %s223
      %p225 = pneg %p63
      %p226 = pneg %p60
      %p227 = scmp.lt.s32.totalorder %s16, 1
      %s228 = scalar_select %p227, %s16, 1
      %s229 = smul.addr %s228, 84
      %s230 = smul.addr %s229, 8
      %s231 = scalar_lea.vmem %s2, %s230
      %p232 = pneg %p89
      %p233 = pneg %p86
      %p234 = pneg %p110
      %p235 = pneg %p107
      %p236 = pneg %p131
      %p237 = pneg %p128
      %p238 = pneg %p157
      %p239 = pneg %p154
      %p240 = scmp.lt.s32.totalorder %s16, 1
      %s241 = scalar_select %p240, %s16, 1
      %s242 = smul.addr %s241, 84
      %s243 = smul.addr %s242, 8
      %s244 = scalar_lea.vmem %s5, %s243
      %p245 = scmp.lt.s32.totalorder %s16, 1
      %s246 = scalar_select %p245, %s16, 1
      %s247 = smul.addr %s246, 84
      %s248 = smul.addr %s247, 8
      %s249 = scalar_lea.vmem %s0, %s248
      %p250 = scmp.lt.s32.totalorder %s16, 1
      %s251 = scalar_select %p250, %s16, 1
      %s252 = smul.addr %s251, 84
      %s253 = smul.addr %s252, 8
      %s254 = scalar_lea.vmem %s1, %s253
      %p255 = scmp.lt.s32.totalorder %s16, 1
      %s256 = scalar_select %p255, %s16, 1
      %s257 = smul.addr %s256, 84
      %s258 = smul.addr %s257, 8
      %s259 = scalar_lea.vmem %s2, %s258
      %p260 = scmp.lt.s32.totalorder %s16, 1
      %s261 = scalar_select %p260, %s16, 1
      %s262 = smul.addr %s261, 84
      %s263 = smul.addr %s262, 8
      %s264 = scalar_lea.vmem %s5, %s263
      %v265 = vld [vmem:[%s3] sm:$0xff]
      %v266 = vld [vmem:[%s3 + $0x8] sm:$0x7f]
      %v267 = vld [vmem:[%s249] sm:$0xff]
      %v268 = vld [vmem:[%s249 + $0x8] sm:$0xff]
      %v269 = vld [vmem:[%s249 + $0x10] sm:$0xff]
      %v270 = vld [vmem:[%s249 + $0x18] sm:$0xff]
      %v271 = vld [vmem:[%s249 + $0x20] sm:$0xff]
      %v272 = vld [vmem:[%s249 + $0x28] sm:$0xff]
      %v273 = vld [vmem:[%s249 + $0x30] sm:$0xff]
      %v274 = vld [vmem:[%s249 + $0x38] sm:$0xff]
      %v275 = vld [vmem:[%s249 + $0x40] sm:$0xff]
      %v276 = vld [vmem:[%s249 + $0x48] sm:$0xff]
      %v277 = vld [vmem:[%s249 + $0x50] sm:$0xff]
      %v278 = vld [vmem:[%s249 + $0x58] sm:$0xff]
      %v279 = vld [vmem:[%s249 + $0x60] sm:$0xff]
      %v280 = vld [vmem:[%s249 + $0x68] sm:$0xff]
      %v281 = vld [vmem:[%s249 + $0x70] sm:$0xff]
      %v282 = vld [vmem:[%s249 + $0x78] sm:$0xff]
      %v283 = vld [vmem:[%s249 + $0x80] sm:$0xff]
      %v284 = vld [vmem:[%s249 + $0x88] sm:$0xff]
      %v285 = vld [vmem:[%s249 + $0x90] sm:$0xff]
      %v286 = vld [vmem:[%s249 + $0x98] sm:$0xff]
      %v287 = vld [vmem:[%s249 + $0xa0] sm:$0xff]
      %v288 = vld [vmem:[%s249 + $0xa8] sm:$0xff]
      %v289 = vld [vmem:[%s249 + $0xb0] sm:$0xff]
      %v290 = vld [vmem:[%s249 + $0xb8] sm:$0xff]
      %v291 = vld [vmem:[%s249 + $0xc0] sm:$0xff]
      %v292 = vld [vmem:[%s249 + $0xc8] sm:$0xff]
      %v293 = vld [vmem:[%s249 + $0xd0] sm:$0xff]
      %v294 = vld [vmem:[%s249 + $0xd8] sm:$0xff]
      %v295 = vld [vmem:[%s249 + $0xe0] sm:$0xff]
      %v296 = vld [vmem:[%s249 + $0xe8] sm:$0xff]
      %v297 = vld [vmem:[%s249 + $0xf0] sm:$0xff]
      %v298 = vld [vmem:[%s249 + $0xf8] sm:$0xff]
      %v299 = vld [vmem:[%s249 + $0x100] sm:$0xff]
      %v300 = vld [vmem:[%s249 + $0x108] sm:$0xff]
      %v301 = vld [vmem:[%s249 + $0x110] sm:$0xff]
      %v302 = vld [vmem:[%s249 + $0x118] sm:$0xff]
      %v303 = vld [vmem:[%s249 + $0x120] sm:$0xff]
      %v304 = vld [vmem:[%s249 + $0x128] sm:$0xff]
      %v305 = vld [vmem:[%s249 + $0x130] sm:$0xff]
      %v306 = vld [vmem:[%s249 + $0x138] sm:$0xff]
      %v307 = vld [vmem:[%s249 + $0x140] sm:$0xff]
      %v308 = vld [vmem:[%s249 + $0x148] sm:$0xff]
      %v309 = vld [vmem:[%s249 + $0x150] sm:$0xff]
      %v310 = vld [vmem:[%s249 + $0x158] sm:$0xff]
      %v311 = vld [vmem:[%s249 + $0x160] sm:$0xff]
      %v312 = vld [vmem:[%s249 + $0x168] sm:$0xff]
      %v313 = vld [vmem:[%s249 + $0x170] sm:$0xff]
      %v314 = vld [vmem:[%s249 + $0x178] sm:$0xff]
      %v315 = vld [vmem:[%s249 + $0x180] sm:$0xff]
      %v316 = vld [vmem:[%s249 + $0x188] sm:$0xff]
      %v317 = vld [vmem:[%s249 + $0x190] sm:$0xff]
      %v318 = vld [vmem:[%s249 + $0x198] sm:$0xff]
      %v319 = vld [vmem:[%s249 + $0x1a0] sm:$0xff]
      %v320 = vld [vmem:[%s249 + $0x1a8] sm:$0xff]
      %v321 = vld [vmem:[%s249 + $0x1b0] sm:$0xff]
      %v322 = vld [vmem:[%s249 + $0x1b8] sm:$0xff]
      %v323 = vld [vmem:[%s249 + $0x1c0] sm:$0xff]
      %v324 = vld [vmem:[%s249 + $0x1c8] sm:$0xff]
      %v325 = vld [vmem:[%s249 + $0x1d0] sm:$0xff]
      %v326 = vld [vmem:[%s249 + $0x1d8] sm:$0xff]
      %v327 = vld [vmem:[%s249 + $0x1e0] sm:$0xff]
      %v328 = vld [vmem:[%s249 + $0x1e8] sm:$0xff]
      %v329 = vld [vmem:[%s249 + $0x1f0] sm:$0xff]
      %v330 = vld [vmem:[%s249 + $0x1f8] sm:$0xff]
      %v331 = vld [vmem:[%s249 + $0x200] sm:$0xff]
      %v332 = vld [vmem:[%s249 + $0x208] sm:$0xff]
      %v333 = vld [vmem:[%s249 + $0x210] sm:$0xff]
      %v334 = vld [vmem:[%s249 + $0x218] sm:$0xff]
      %v335 = vld [vmem:[%s249 + $0x220] sm:$0xff]
      %v336 = vld [vmem:[%s249 + $0x228] sm:$0xff]
      %v337 = vld [vmem:[%s249 + $0x230] sm:$0xff]
      %v338 = vld [vmem:[%s249 + $0x238] sm:$0xff]
      %v339 = vld [vmem:[%s249 + $0x240] sm:$0xff]
      %v340 = vld [vmem:[%s249 + $0x248] sm:$0xff]
      %v341 = vld [vmem:[%s249 + $0x250] sm:$0xff]
      %v342 = vld [vmem:[%s249 + $0x258] sm:$0xff]
      %v343 = vld [vmem:[%s249 + $0x260] sm:$0xff]
      %v344 = vld [vmem:[%s249 + $0x268] sm:$0xff]
      %v345 = vld [vmem:[%s249 + $0x270] sm:$0xff]
      %v346 = vld [vmem:[%s249 + $0x278] sm:$0xff]
      %v347 = vld [vmem:[%s249 + $0x280] sm:$0xff]
      %v348 = vld [vmem:[%s249 + $0x288] sm:$0xff]
      %v349 = vld [vmem:[%s249 + $0x290] sm:$0xff]
      %v350 = vld [vmem:[%s249 + $0x298] sm:$0xff]
      %vm351 = vcmask 121856
      %v353 = vsel %vm351, %v267, 0
      %v356 = vsel %vm351, %v268, 0
      %v359 = vsel %vm351, %v269, 0
      %v362 = vsel %vm351, %v270, 0
      %v365 = vsel %vm351, %v271, 0
      %v368 = vsel %vm351, %v272, 0
      %v371 = vsel %vm351, %v273, 0
      %v374 = vsel %vm351, %v274, 0
      %v377 = vsel %vm351, %v275, 0
      %v380 = vsel %vm351, %v276, 0
      %v383 = vsel %vm351, %v277, 0
      %v386 = vsel %vm351, %v278, 0
      %v389 = vsel %vm351, %v279, 0
      %v392 = vsel %vm351, %v280, 0
      %v395 = vsel %vm351, %v281, 0
      %v398 = vsel %vm351, %v282, 0
      %v401 = vsel %vm351, %v283, 0
      %v404 = vsel %vm351, %v284, 0
      %v407 = vsel %vm351, %v285, 0
      %v410 = vsel %vm351, %v286, 0
      %v413 = vsel %vm351, %v287, 0
      %v416 = vsel %vm351, %v288, 0
      %v419 = vsel %vm351, %v289, 0
      %v422 = vsel %vm351, %v290, 0
      %v425 = vsel %vm351, %v291, 0
      %v428 = vsel %vm351, %v292, 0
      %v431 = vsel %vm351, %v293, 0
      %v434 = vsel %vm351, %v294, 0
      %v437 = vsel %vm351, %v295, 0
      %v440 = vsel %vm351, %v296, 0
      %v443 = vsel %vm351, %v297, 0
      %v446 = vsel %vm351, %v298, 0
      %v449 = vsel %vm351, %v299, 0
      %v452 = vsel %vm351, %v300, 0
      %v455 = vsel %vm351, %v301, 0
      %v458 = vsel %vm351, %v302, 0
      %v461 = vsel %vm351, %v303, 0
      %v464 = vsel %vm351, %v304, 0
      %v467 = vsel %vm351, %v305, 0
      %v470 = vsel %vm351, %v306, 0
      %v473 = vsel %vm351, %v307, 0
      %v476 = vsel %vm351, %v308, 0
      %v479 = vsel %vm351, %v309, 0
      %v482 = vsel %vm351, %v310, 0
      %v485 = vsel %vm351, %v311, 0
      %v488 = vsel %vm351, %v312, 0
      %v491 = vsel %vm351, %v313, 0
      %v494 = vsel %vm351, %v314, 0
      %v497 = vsel %vm351, %v315, 0
      %v500 = vsel %vm351, %v316, 0
      %v503 = vsel %vm351, %v317, 0
      %v506 = vsel %vm351, %v318, 0
      %v509 = vsel %vm351, %v319, 0
      %v512 = vsel %vm351, %v320, 0
      %v515 = vsel %vm351, %v321, 0
      %v518 = vsel %vm351, %v322, 0
      %v521 = vsel %vm351, %v323, 0
      %v524 = vsel %vm351, %v324, 0
      %v527 = vsel %vm351, %v325, 0
      %v530 = vsel %vm351, %v326, 0
      %v533 = vsel %vm351, %v327, 0
      %v536 = vsel %vm351, %v328, 0
      %v539 = vsel %vm351, %v329, 0
      %v542 = vsel %vm351, %v330, 0
      %v545 = vsel %vm351, %v331, 0
      %v548 = vsel %vm351, %v332, 0
      %v551 = vsel %vm351, %v333, 0
      %v554 = vsel %vm351, %v334, 0
      %v557 = vsel %vm351, %v335, 0
      %v560 = vsel %vm351, %v336, 0
      %v563 = vsel %vm351, %v337, 0
      %v566 = vsel %vm351, %v338, 0
      %v569 = vsel %vm351, %v339, 0
      %v572 = vsel %vm351, %v340, 0
      %v575 = vsel %vm351, %v341, 0
      %v578 = vsel %vm351, %v342, 0
      %v581 = vsel %vm351, %v343, 0
      %v584 = vsel %vm351, %v344, 0
      %v587 = vsel %vm351, %v345, 0
      %v590 = vsel %vm351, %v346, 0
      %v593 = vsel %vm351, %v347, 0
      %v596 = vsel %vm351, %v348, 0
      %v599 = vsel %vm351, %v349, 0
      %v602 = vsel %vm351, %v350, 0
      %vm604 = vcmask 1046528
      %v606 = vsel %vm604, %v266, 0
      %608 = vmatpush.msra.mxu0 0.0
      %609 = vmatpush.msra.mxu0 0.0
      %610 = vmatpush.msra.mxu0 0.0
      %611 = vmatpush.msra.mxu0 0.0
      %612 = vmatpush.msra.mxu0 0.0
      %613 = vmatpush.msra.mxu0 0.0
      %614 = vmatpush.msra.mxu0 0.0
      %615 = vmatpush.msra.mxu0 0.0
      %616 = vmatpush.msra.mxu0 0.0
      %617 = vmatpush.msra.mxu0 0.0
      %618 = vmatpush.msra.mxu0 0.0
      %619 = vmatpush.msra.mxu0 0.0
      %620 = vmatpush.msra.mxu0 0.0
      %621 = vmatpush.msra.mxu0 0.0
      %622 = vmatpush.msra.mxu0 %v606
      %623 = vmatpush.msra.mxu0 %v265
      %624 = vmatmul.f32.gmra.mxu0 %v353
      %v625 = vpop.f32.mrf.mxu0
      %v626 = vadd.f32 0.0, %v625
      %627 = vmatmul.f32.gmra.mxu0 %v356
      %v628 = vpop.f32.mrf.mxu0
      %v629 = vadd.f32 0.0, %v628
      %630 = vmatmul.f32.gmra.mxu0 %v359
      %v631 = vpop.f32.mrf.mxu0
      %v632 = vadd.f32 0.0, %v631
      %633 = vmatmul.f32.gmra.mxu0 %v362
      %v634 = vpop.f32.mrf.mxu0
      %v635 = vadd.f32 0.0, %v634
      %636 = vmatmul.f32.gmra.mxu0 %v365
      %v637 = vpop.f32.mrf.mxu0
      %v638 = vadd.f32 0.0, %v637
      %639 = vmatmul.f32.gmra.mxu0 %v368
      %v640 = vpop.f32.mrf.mxu0
      %v641 = vadd.f32 0.0, %v640
      %642 = vmatmul.f32.gmra.mxu0 %v371
      %v643 = vpop.f32.mrf.mxu0
      %v644 = vadd.f32 0.0, %v643
      %645 = vmatmul.f32.gmra.mxu0 %v374
      %v646 = vpop.f32.mrf.mxu0
      %v647 = vadd.f32 0.0, %v646
      %648 = vmatmul.f32.gmra.mxu0 %v377
      %v649 = vpop.f32.mrf.mxu0
      %v650 = vadd.f32 0.0, %v649
      %651 = vmatmul.f32.gmra.mxu0 %v380
      %v652 = vpop.f32.mrf.mxu0
      %v653 = vadd.f32 0.0, %v652
      %654 = vmatmul.f32.gmra.mxu0 %v383
      %v655 = vpop.f32.mrf.mxu0
      %v656 = vadd.f32 0.0, %v655
      %657 = vmatmul.f32.gmra.mxu0 %v386
      %v658 = vpop.f32.mrf.mxu0
      %v659 = vadd.f32 0.0, %v658
      %660 = vmatmul.f32.gmra.mxu0 %v389
      %v661 = vpop.f32.mrf.mxu0
      %v662 = vadd.f32 0.0, %v661
      %663 = vmatmul.f32.gmra.mxu0 %v392
      %v664 = vpop.f32.mrf.mxu0
      %v665 = vadd.f32 0.0, %v664
      %666 = vmatmul.f32.gmra.mxu0 %v395
      %v667 = vpop.f32.mrf.mxu0
      %v668 = vadd.f32 0.0, %v667
      %669 = vmatmul.f32.gmra.mxu0 %v398
      %v670 = vpop.f32.mrf.mxu0
      %v671 = vadd.f32 0.0, %v670
      %672 = vmatmul.f32.gmra.mxu0 %v401
      %v673 = vpop.f32.mrf.mxu0
      %v674 = vadd.f32 0.0, %v673
      %675 = vmatmul.f32.gmra.mxu0 %v404
      %v676 = vpop.f32.mrf.mxu0
      %v677 = vadd.f32 0.0, %v676
      %678 = vmatmul.f32.gmra.mxu0 %v407
      %v679 = vpop.f32.mrf.mxu0
      %v680 = vadd.f32 0.0, %v679
      %681 = vmatmul.f32.gmra.mxu0 %v410
      %v682 = vpop.f32.mrf.mxu0
      %v683 = vadd.f32 0.0, %v682
      %684 = vmatmul.f32.gmra.mxu0 %v413
      %v685 = vpop.f32.mrf.mxu0
      %v686 = vadd.f32 0.0, %v685
      %687 = vmatmul.f32.gmra.mxu0 %v416
      %v688 = vpop.f32.mrf.mxu0
      %v689 = vadd.f32 0.0, %v688
      %690 = vmatmul.f32.gmra.mxu0 %v419
      %v691 = vpop.f32.mrf.mxu0
      %v692 = vadd.f32 0.0, %v691
      %693 = vmatmul.f32.gmra.mxu0 %v422
      %v694 = vpop.f32.mrf.mxu0
      %v695 = vadd.f32 0.0, %v694
      %696 = vmatmul.f32.gmra.mxu0 %v425
      %v697 = vpop.f32.mrf.mxu0
      %v698 = vadd.f32 0.0, %v697
      %699 = vmatmul.f32.gmra.mxu0 %v428
      %v700 = vpop.f32.mrf.mxu0
      %v701 = vadd.f32 0.0, %v700
      %702 = vmatmul.f32.gmra.mxu0 %v431
      %v703 = vpop.f32.mrf.mxu0
      %v704 = vadd.f32 0.0, %v703
      %705 = vmatmul.f32.gmra.mxu0 %v434
      %v706 = vpop.f32.mrf.mxu0
      %v707 = vadd.f32 0.0, %v706
      %708 = vmatmul.f32.gmra.mxu0 %v437
      %v709 = vpop.f32.mrf.mxu0
      %v710 = vadd.f32 0.0, %v709
      %711 = vmatmul.f32.gmra.mxu0 %v440
      %v712 = vpop.f32.mrf.mxu0
      %v713 = vadd.f32 0.0, %v712
      %714 = vmatmul.f32.gmra.mxu0 %v443
      %v715 = vpop.f32.mrf.mxu0
      %v716 = vadd.f32 0.0, %v715
      %717 = vmatmul.f32.gmra.mxu0 %v446
      %v718 = vpop.f32.mrf.mxu0
      %v719 = vadd.f32 0.0, %v718
      %720 = vmatmul.f32.gmra.mxu0 %v449
      %v721 = vpop.f32.mrf.mxu0
      %v722 = vadd.f32 0.0, %v721
      %723 = vmatmul.f32.gmra.mxu0 %v452
      %v724 = vpop.f32.mrf.mxu0
      %v725 = vadd.f32 0.0, %v724
      %726 = vmatmul.f32.gmra.mxu0 %v455
      %v727 = vpop.f32.mrf.mxu0
      %v728 = vadd.f32 0.0, %v727
      %729 = vmatmul.f32.gmra.mxu0 %v458
      %v730 = vpop.f32.mrf.mxu0
      %v731 = vadd.f32 0.0, %v730
      %732 = vmatmul.f32.gmra.mxu0 %v461
      %v733 = vpop.f32.mrf.mxu0
      %v734 = vadd.f32 0.0, %v733
      %735 = vmatmul.f32.gmra.mxu0 %v464
      %v736 = vpop.f32.mrf.mxu0
      %v737 = vadd.f32 0.0, %v736
      %738 = vmatmul.f32.gmra.mxu0 %v467
      %v739 = vpop.f32.mrf.mxu0
      %v740 = vadd.f32 0.0, %v739
      %741 = vmatmul.f32.gmra.mxu0 %v470
      %v742 = vpop.f32.mrf.mxu0
      %v743 = vadd.f32 0.0, %v742
      %744 = vmatmul.f32.gmra.mxu0 %v473
      %v745 = vpop.f32.mrf.mxu0
      %v746 = vadd.f32 0.0, %v745
      %747 = vmatmul.f32.gmra.mxu0 %v476
      %v748 = vpop.f32.mrf.mxu0
      %v749 = vadd.f32 0.0, %v748
      %750 = vmatmul.f32.gmra.mxu0 %v479
      %v751 = vpop.f32.mrf.mxu0
      %v752 = vadd.f32 0.0, %v751
      %753 = vmatmul.f32.gmra.mxu0 %v482
      %v754 = vpop.f32.mrf.mxu0
      %v755 = vadd.f32 0.0, %v754
      %756 = vmatmul.f32.gmra.mxu0 %v485
      %v757 = vpop.f32.mrf.mxu0
      %v758 = vadd.f32 0.0, %v757
      %759 = vmatmul.f32.gmra.mxu0 %v488
      %v760 = vpop.f32.mrf.mxu0
      %v761 = vadd.f32 0.0, %v760
      %762 = vmatmul.f32.gmra.mxu0 %v491
      %v763 = vpop.f32.mrf.mxu0
      %v764 = vadd.f32 0.0, %v763
      %765 = vmatmul.f32.gmra.mxu0 %v494
      %v766 = vpop.f32.mrf.mxu0
      %v767 = vadd.f32 0.0, %v766
      %768 = vmatmul.f32.gmra.mxu0 %v497
      %v769 = vpop.f32.mrf.mxu0
      %v770 = vadd.f32 0.0, %v769
      %771 = vmatmul.f32.gmra.mxu0 %v500
      %v772 = vpop.f32.mrf.mxu0
      %v773 = vadd.f32 0.0, %v772
      %774 = vmatmul.f32.gmra.mxu0 %v503
      %v775 = vpop.f32.mrf.mxu0
      %v776 = vadd.f32 0.0, %v775
      %777 = vmatmul.f32.gmra.mxu0 %v506
      %v778 = vpop.f32.mrf.mxu0
      %v779 = vadd.f32 0.0, %v778
      %780 = vmatmul.f32.gmra.mxu0 %v509
      %v781 = vpop.f32.mrf.mxu0
      %v782 = vadd.f32 0.0, %v781
      %783 = vmatmul.f32.gmra.mxu0 %v512
      %v784 = vpop.f32.mrf.mxu0
      %v785 = vadd.f32 0.0, %v784
      %786 = vmatmul.f32.gmra.mxu0 %v515
      %v787 = vpop.f32.mrf.mxu0
      %v788 = vadd.f32 0.0, %v787
      %789 = vmatmul.f32.gmra.mxu0 %v518
      %v790 = vpop.f32.mrf.mxu0
      %v791 = vadd.f32 0.0, %v790
      %792 = vmatmul.f32.gmra.mxu0 %v521
      %v793 = vpop.f32.mrf.mxu0
      %v794 = vadd.f32 0.0, %v793
      %795 = vmatmul.f32.gmra.mxu0 %v524
      %v796 = vpop.f32.mrf.mxu0
      %v797 = vadd.f32 0.0, %v796
      %798 = vmatmul.f32.gmra.mxu0 %v527
      %v799 = vpop.f32.mrf.mxu0
      %v800 = vadd.f32 0.0, %v799
      %801 = vmatmul.f32.gmra.mxu0 %v530
      %v802 = vpop.f32.mrf.mxu0
      %v803 = vadd.f32 0.0, %v802
      %804 = vmatmul.f32.gmra.mxu0 %v533
      %v805 = vpop.f32.mrf.mxu0
      %v806 = vadd.f32 0.0, %v805
      %807 = vmatmul.f32.gmra.mxu0 %v536
      %v808 = vpop.f32.mrf.mxu0
      %v809 = vadd.f32 0.0, %v808
      %810 = vmatmul.f32.gmra.mxu0 %v539
      %v811 = vpop.f32.mrf.mxu0
      %v812 = vadd.f32 0.0, %v811
      %813 = vmatmul.f32.gmra.mxu0 %v542
      %v814 = vpop.f32.mrf.mxu0
      %v815 = vadd.f32 0.0, %v814
      %816 = vmatmul.f32.gmra.mxu0 %v545
      %v817 = vpop.f32.mrf.mxu0
      %v818 = vadd.f32 0.0, %v817
      %819 = vmatmul.f32.gmra.mxu0 %v548
      %v820 = vpop.f32.mrf.mxu0
      %v821 = vadd.f32 0.0, %v820
      %822 = vmatmul.f32.gmra.mxu0 %v551
      %v823 = vpop.f32.mrf.mxu0
      %v824 = vadd.f32 0.0, %v823
      %825 = vmatmul.f32.gmra.mxu0 %v554
      %v826 = vpop.f32.mrf.mxu0
      %v827 = vadd.f32 0.0, %v826
      %828 = vmatmul.f32.gmra.mxu0 %v557
      %v829 = vpop.f32.mrf.mxu0
      %v830 = vadd.f32 0.0, %v829
      %831 = vmatmul.f32.gmra.mxu0 %v560
      %v832 = vpop.f32.mrf.mxu0
      %v833 = vadd.f32 0.0, %v832
      %834 = vmatmul.f32.gmra.mxu0 %v563
      %v835 = vpop.f32.mrf.mxu0
      %v836 = vadd.f32 0.0, %v835
      %837 = vmatmul.f32.gmra.mxu0 %v566
      %v838 = vpop.f32.mrf.mxu0
      %v839 = vadd.f32 0.0, %v838
      %840 = vmatmul.f32.gmra.mxu0 %v569
      %v841 = vpop.f32.mrf.mxu0
      %v842 = vadd.f32 0.0, %v841
      %843 = vmatmul.f32.gmra.mxu0 %v572
      %v844 = vpop.f32.mrf.mxu0
      %v845 = vadd.f32 0.0, %v844
      %846 = vmatmul.f32.gmra.mxu0 %v575
      %v847 = vpop.f32.mrf.mxu0
      %v848 = vadd.f32 0.0, %v847
      %849 = vmatmul.f32.gmra.mxu0 %v578
      %v850 = vpop.f32.mrf.mxu0
      %v851 = vadd.f32 0.0, %v850
      %852 = vmatmul.f32.gmra.mxu0 %v581
      %v853 = vpop.f32.mrf.mxu0
      %v854 = vadd.f32 0.0, %v853
      %855 = vmatmul.f32.gmra.mxu0 %v584
      %v856 = vpop.f32.mrf.mxu0
      %v857 = vadd.f32 0.0, %v856
      %858 = vmatmul.f32.gmra.mxu0 %v587
      %v859 = vpop.f32.mrf.mxu0
      %v860 = vadd.f32 0.0, %v859
      %861 = vmatmul.f32.gmra.mxu0 %v590
      %v862 = vpop.f32.mrf.mxu0
      %v863 = vadd.f32 0.0, %v862
      %864 = vmatmul.f32.gmra.mxu0 %v593
      %v865 = vpop.f32.mrf.mxu0
      %v866 = vadd.f32 0.0, %v865
      %867 = vmatmul.f32.gmra.mxu0 %v596
      %v868 = vpop.f32.mrf.mxu0
      %v869 = vadd.f32 0.0, %v868
      %870 = vmatmul.f32.gmra.mxu0 %v599
      %v871 = vpop.f32.mrf.mxu0
      %v872 = vadd.f32 0.0, %v871
      %873 = vmatmul.f32.gmra.mxu0 %v602
      %v874 = vpop.f32.mrf.mxu0
      %v875 = vadd.f32 0.0, %v874
      %876 = vdwg.mxu0
      %v877 = vld [vmem:[%s254] sm:$0xff]
      %v878 = vld [vmem:[%s254 + $0x8] sm:$0xff]
      %v879 = vld [vmem:[%s254 + $0x10] sm:$0xff]
      %v880 = vld [vmem:[%s254 + $0x18] sm:$0xff]
      %v881 = vld [vmem:[%s254 + $0x20] sm:$0xff]
      %v882 = vld [vmem:[%s254 + $0x28] sm:$0xff]
      %v883 = vld [vmem:[%s254 + $0x30] sm:$0xff]
      %v884 = vld [vmem:[%s254 + $0x38] sm:$0xff]
      %v885 = vld [vmem:[%s254 + $0x40] sm:$0xff]
      %v886 = vld [vmem:[%s254 + $0x48] sm:$0xff]
      %v887 = vld [vmem:[%s254 + $0x50] sm:$0xff]
      %v888 = vld [vmem:[%s254 + $0x58] sm:$0xff]
      %v889 = vld [vmem:[%s254 + $0x60] sm:$0xff]
      %v890 = vld [vmem:[%s254 + $0x68] sm:$0xff]
      %v891 = vld [vmem:[%s254 + $0x70] sm:$0xff]
      %v892 = vld [vmem:[%s254 + $0x78] sm:$0xff]
      %v893 = vld [vmem:[%s254 + $0x80] sm:$0xff]
      %v894 = vld [vmem:[%s254 + $0x88] sm:$0xff]
      %v895 = vld [vmem:[%s254 + $0x90] sm:$0xff]
      %v896 = vld [vmem:[%s254 + $0x98] sm:$0xff]
      %v897 = vld [vmem:[%s254 + $0xa0] sm:$0xff]
      %v898 = vld [vmem:[%s254 + $0xa8] sm:$0xff]
      %v899 = vld [vmem:[%s254 + $0xb0] sm:$0xff]
      %v900 = vld [vmem:[%s254 + $0xb8] sm:$0xff]
      %v901 = vld [vmem:[%s254 + $0xc0] sm:$0xff]
      %v902 = vld [vmem:[%s254 + $0xc8] sm:$0xff]
      %v903 = vld [vmem:[%s254 + $0xd0] sm:$0xff]
      %v904 = vld [vmem:[%s254 + $0xd8] sm:$0xff]
      %v905 = vld [vmem:[%s254 + $0xe0] sm:$0xff]
      %v906 = vld [vmem:[%s254 + $0xe8] sm:$0xff]
      %v907 = vld [vmem:[%s254 + $0xf0] sm:$0xff]
      %v908 = vld [vmem:[%s254 + $0xf8] sm:$0xff]
      %v909 = vld [vmem:[%s254 + $0x100] sm:$0xff]
      %v910 = vld [vmem:[%s254 + $0x108] sm:$0xff]
      %v911 = vld [vmem:[%s254 + $0x110] sm:$0xff]
      %v912 = vld [vmem:[%s254 + $0x118] sm:$0xff]
      %v913 = vld [vmem:[%s254 + $0x120] sm:$0xff]
      %v914 = vld [vmem:[%s254 + $0x128] sm:$0xff]
      %v915 = vld [vmem:[%s254 + $0x130] sm:$0xff]
      %v916 = vld [vmem:[%s254 + $0x138] sm:$0xff]
      %v917 = vld [vmem:[%s254 + $0x140] sm:$0xff]
      %v918 = vld [vmem:[%s254 + $0x148] sm:$0xff]
      %v919 = vld [vmem:[%s254 + $0x150] sm:$0xff]
      %v920 = vld [vmem:[%s254 + $0x158] sm:$0xff]
      %v921 = vld [vmem:[%s254 + $0x160] sm:$0xff]
      %v922 = vld [vmem:[%s254 + $0x168] sm:$0xff]
      %v923 = vld [vmem:[%s254 + $0x170] sm:$0xff]
      %v924 = vld [vmem:[%s254 + $0x178] sm:$0xff]
      %v925 = vld [vmem:[%s254 + $0x180] sm:$0xff]
      %v926 = vld [vmem:[%s254 + $0x188] sm:$0xff]
      %v927 = vld [vmem:[%s254 + $0x190] sm:$0xff]
      %v928 = vld [vmem:[%s254 + $0x198] sm:$0xff]
      %v929 = vld [vmem:[%s254 + $0x1a0] sm:$0xff]
      %v930 = vld [vmem:[%s254 + $0x1a8] sm:$0xff]
      %v931 = vld [vmem:[%s254 + $0x1b0] sm:$0xff]
      %v932 = vld [vmem:[%s254 + $0x1b8] sm:$0xff]
      %v933 = vld [vmem:[%s254 + $0x1c0] sm:$0xff]
      %v934 = vld [vmem:[%s254 + $0x1c8] sm:$0xff]
      %v935 = vld [vmem:[%s254 + $0x1d0] sm:$0xff]
      %v936 = vld [vmem:[%s254 + $0x1d8] sm:$0xff]
      %v937 = vld [vmem:[%s254 + $0x1e0] sm:$0xff]
      %v938 = vld [vmem:[%s254 + $0x1e8] sm:$0xff]
      %v939 = vld [vmem:[%s254 + $0x1f0] sm:$0xff]
      %v940 = vld [vmem:[%s254 + $0x1f8] sm:$0xff]
      %v941 = vld [vmem:[%s254 + $0x200] sm:$0xff]
      %v942 = vld [vmem:[%s254 + $0x208] sm:$0xff]
      %v943 = vld [vmem:[%s254 + $0x210] sm:$0xff]
      %v944 = vld [vmem:[%s254 + $0x218] sm:$0xff]
      %v945 = vld [vmem:[%s254 + $0x220] sm:$0xff]
      %v946 = vld [vmem:[%s254 + $0x228] sm:$0xff]
      %v947 = vld [vmem:[%s254 + $0x230] sm:$0xff]
      %v948 = vld [vmem:[%s254 + $0x238] sm:$0xff]
      %v949 = vld [vmem:[%s254 + $0x240] sm:$0xff]
      %v950 = vld [vmem:[%s254 + $0x248] sm:$0xff]
      %v951 = vld [vmem:[%s254 + $0x250] sm:$0xff]
      %v952 = vld [vmem:[%s254 + $0x258] sm:$0xff]
      %v953 = vld [vmem:[%s254 + $0x260] sm:$0xff]
      %v954 = vld [vmem:[%s254 + $0x268] sm:$0xff]
      %v955 = vld [vmem:[%s254 + $0x270] sm:$0xff]
      %v956 = vld [vmem:[%s254 + $0x278] sm:$0xff]
      %v957 = vld [vmem:[%s254 + $0x280] sm:$0xff]
      %v958 = vld [vmem:[%s254 + $0x288] sm:$0xff]
      %v959 = vld [vmem:[%s254 + $0x290] sm:$0xff]
      %v960 = vld [vmem:[%s254 + $0x298] sm:$0xff]
      %v962 = vsel %vm351, %v877, 0
      %v965 = vsel %vm351, %v878, 0
      %v968 = vsel %vm351, %v879, 0
      %v971 = vsel %vm351, %v880, 0
      %v974 = vsel %vm351, %v881, 0
      %v977 = vsel %vm351, %v882, 0
      %v980 = vsel %vm351, %v883, 0
      %v983 = vsel %vm351, %v884, 0
      %v986 = vsel %vm351, %v885, 0
      %v989 = vsel %vm351, %v886, 0
      %v992 = vsel %vm351, %v887, 0
      %v995 = vsel %vm351, %v888, 0
      %v998 = vsel %vm351, %v889, 0
      %v1001 = vsel %vm351, %v890, 0
      %v1004 = vsel %vm351, %v891, 0
      %v1007 = vsel %vm351, %v892, 0
      %v1010 = vsel %vm351, %v893, 0
      %v1013 = vsel %vm351, %v894, 0
      %v1016 = vsel %vm351, %v895, 0
      %v1019 = vsel %vm351, %v896, 0
      %v1022 = vsel %vm351, %v897, 0
      %v1025 = vsel %vm351, %v898, 0
      %v1028 = vsel %vm351, %v899, 0
      %v1031 = vsel %vm351, %v900, 0
      %v1034 = vsel %vm351, %v901, 0
      %v1037 = vsel %vm351, %v902, 0
      %v1040 = vsel %vm351, %v903, 0
      %v1043 = vsel %vm351, %v904, 0
      %v1046 = vsel %vm351, %v905, 0
      %v1049 = vsel %vm351, %v906, 0
      %v1052 = vsel %vm351, %v907, 0
      %v1055 = vsel %vm351, %v908, 0
      %v1058 = vsel %vm351, %v909, 0
      %v1061 = vsel %vm351, %v910, 0
      %v1064 = vsel %vm351, %v911, 0
      %v1067 = vsel %vm351, %v912, 0
      %v1070 = vsel %vm351, %v913, 0
      %v1073 = vsel %vm351, %v914, 0
      %v1076 = vsel %vm351, %v915, 0
      %v1079 = vsel %vm351, %v916, 0
      %v1082 = vsel %vm351, %v917, 0
      %v1085 = vsel %vm351, %v918, 0
      %v1088 = vsel %vm351, %v919, 0
      %v1091 = vsel %vm351, %v920, 0
      %v1094 = vsel %vm351, %v921, 0
      %v1097 = vsel %vm351, %v922, 0
      %v1100 = vsel %vm351, %v923, 0
      %v1103 = vsel %vm351, %v924, 0
      %v1106 = vsel %vm351, %v925, 0
      %v1109 = vsel %vm351, %v926, 0
      %v1112 = vsel %vm351, %v927, 0
      %v1115 = vsel %vm351, %v928, 0
      %v1118 = vsel %vm351, %v929, 0
      %v1121 = vsel %vm351, %v930, 0
      %v1124 = vsel %vm351, %v931, 0
      %v1127 = vsel %vm351, %v932, 0
      %v1130 = vsel %vm351, %v933, 0
      %v1133 = vsel %vm351, %v934, 0
      %v1136 = vsel %vm351, %v935, 0
      %v1139 = vsel %vm351, %v936, 0
      %v1142 = vsel %vm351, %v937, 0
      %v1145 = vsel %vm351, %v938, 0
      %v1148 = vsel %vm351, %v939, 0
      %v1151 = vsel %vm351, %v940, 0
      %v1154 = vsel %vm351, %v941, 0
      %v1157 = vsel %vm351, %v942, 0
      %v1160 = vsel %vm351, %v943, 0
      %v1163 = vsel %vm351, %v944, 0
      %v1166 = vsel %vm351, %v945, 0
      %v1169 = vsel %vm351, %v946, 0
      %v1172 = vsel %vm351, %v947, 0
      %v1175 = vsel %vm351, %v948, 0
      %v1178 = vsel %vm351, %v949, 0
      %v1181 = vsel %vm351, %v950, 0
      %v1184 = vsel %vm351, %v951, 0
      %v1187 = vsel %vm351, %v952, 0
      %v1190 = vsel %vm351, %v953, 0
      %v1193 = vsel %vm351, %v954, 0
      %v1196 = vsel %vm351, %v955, 0
      %v1199 = vsel %vm351, %v956, 0
      %v1202 = vsel %vm351, %v957, 0
      %v1205 = vsel %vm351, %v958, 0
      %v1208 = vsel %vm351, %v959, 0
      %v1211 = vsel %vm351, %v960, 0
      %1213 = vmatpush.msra.mxu0 0.0
      %1214 = vmatpush.msra.mxu0 0.0
      %1215 = vmatpush.msra.mxu0 0.0
      %1216 = vmatpush.msra.mxu0 0.0
      %1217 = vmatpush.msra.mxu0 0.0
      %1218 = vmatpush.msra.mxu0 0.0
      %1219 = vmatpush.msra.mxu0 0.0
      %1220 = vmatpush.msra.mxu0 0.0
      %1221 = vmatpush.msra.mxu0 0.0
      %1222 = vmatpush.msra.mxu0 0.0
      %1223 = vmatpush.msra.mxu0 0.0
      %1224 = vmatpush.msra.mxu0 0.0
      %1225 = vmatpush.msra.mxu0 0.0
      %1226 = vmatpush.msra.mxu0 0.0
      %1227 = vmatpush.msra.mxu0 %v606
      %1228 = vmatpush.msra.mxu0 %v265
      %1229 = vmatmul.f32.gmra.mxu0 %v962
      %v1230 = vpop.f32.mrf.mxu0
      %v1231 = vadd.f32 0.0, %v1230
      %1232 = vmatmul.f32.gmra.mxu0 %v965
      %v1233 = vpop.f32.mrf.mxu0
      %v1234 = vadd.f32 0.0, %v1233
      %1235 = vmatmul.f32.gmra.mxu0 %v968
      %v1236 = vpop.f32.mrf.mxu0
      %v1237 = vadd.f32 0.0, %v1236
      %1238 = vmatmul.f32.gmra.mxu0 %v971
      %v1239 = vpop.f32.mrf.mxu0
      %v1240 = vadd.f32 0.0, %v1239
      %1241 = vmatmul.f32.gmra.mxu0 %v974
      %v1242 = vpop.f32.mrf.mxu0
      %v1243 = vadd.f32 0.0, %v1242
      %1244 = vmatmul.f32.gmra.mxu0 %v977
      %v1245 = vpop.f32.mrf.mxu0
      %v1246 = vadd.f32 0.0, %v1245
      %1247 = vmatmul.f32.gmra.mxu0 %v980
      %v1248 = vpop.f32.mrf.mxu0
      %v1249 = vadd.f32 0.0, %v1248
      %1250 = vmatmul.f32.gmra.mxu0 %v983
      %v1251 = vpop.f32.mrf.mxu0
      %v1252 = vadd.f32 0.0, %v1251
      %1253 = vmatmul.f32.gmra.mxu0 %v986
      %v1254 = vpop.f32.mrf.mxu0
      %v1255 = vadd.f32 0.0, %v1254
      %1256 = vmatmul.f32.gmra.mxu0 %v989
      %v1257 = vpop.f32.mrf.mxu0
      %v1258 = vadd.f32 0.0, %v1257
      %1259 = vmatmul.f32.gmra.mxu0 %v992
      %v1260 = vpop.f32.mrf.mxu0
      %v1261 = vadd.f32 0.0, %v1260
      %1262 = vmatmul.f32.gmra.mxu0 %v995
      %v1263 = vpop.f32.mrf.mxu0
      %v1264 = vadd.f32 0.0, %v1263
      %1265 = vmatmul.f32.gmra.mxu0 %v998
      %v1266 = vpop.f32.mrf.mxu0
      %v1267 = vadd.f32 0.0, %v1266
      %1268 = vmatmul.f32.gmra.mxu0 %v1001
      %v1269 = vpop.f32.mrf.mxu0
      %v1270 = vadd.f32 0.0, %v1269
      %1271 = vmatmul.f32.gmra.mxu0 %v1004
      %v1272 = vpop.f32.mrf.mxu0
      %v1273 = vadd.f32 0.0, %v1272
      %1274 = vmatmul.f32.gmra.mxu0 %v1007
      %v1275 = vpop.f32.mrf.mxu0
      %v1276 = vadd.f32 0.0, %v1275
      %1277 = vmatmul.f32.gmra.mxu0 %v1010
      %v1278 = vpop.f32.mrf.mxu0
      %v1279 = vadd.f32 0.0, %v1278
      %1280 = vmatmul.f32.gmra.mxu0 %v1013
      %v1281 = vpop.f32.mrf.mxu0
      %v1282 = vadd.f32 0.0, %v1281
      %1283 = vmatmul.f32.gmra.mxu0 %v1016
      %v1284 = vpop.f32.mrf.mxu0
      %v1285 = vadd.f32 0.0, %v1284
      %1286 = vmatmul.f32.gmra.mxu0 %v1019
      %v1287 = vpop.f32.mrf.mxu0
      %v1288 = vadd.f32 0.0, %v1287
      %1289 = vmatmul.f32.gmra.mxu0 %v1022
      %v1290 = vpop.f32.mrf.mxu0
      %v1291 = vadd.f32 0.0, %v1290
      %1292 = vmatmul.f32.gmra.mxu0 %v1025
      %v1293 = vpop.f32.mrf.mxu0
      %v1294 = vadd.f32 0.0, %v1293
      %1295 = vmatmul.f32.gmra.mxu0 %v1028
      %v1296 = vpop.f32.mrf.mxu0
      %v1297 = vadd.f32 0.0, %v1296
      %1298 = vmatmul.f32.gmra.mxu0 %v1031
      %v1299 = vpop.f32.mrf.mxu0
      %v1300 = vadd.f32 0.0, %v1299
      %1301 = vmatmul.f32.gmra.mxu0 %v1034
      %v1302 = vpop.f32.mrf.mxu0
      %v1303 = vadd.f32 0.0, %v1302
      %1304 = vmatmul.f32.gmra.mxu0 %v1037
      %v1305 = vpop.f32.mrf.mxu0
      %v1306 = vadd.f32 0.0, %v1305
      %1307 = vmatmul.f32.gmra.mxu0 %v1040
      %v1308 = vpop.f32.mrf.mxu0
      %v1309 = vadd.f32 0.0, %v1308
      %1310 = vmatmul.f32.gmra.mxu0 %v1043
      %v1311 = vpop.f32.mrf.mxu0
      %v1312 = vadd.f32 0.0, %v1311
      %1313 = vmatmul.f32.gmra.mxu0 %v1046
      %v1314 = vpop.f32.mrf.mxu0
      %v1315 = vadd.f32 0.0, %v1314
      %1316 = vmatmul.f32.gmra.mxu0 %v1049
      %v1317 = vpop.f32.mrf.mxu0
      %v1318 = vadd.f32 0.0, %v1317
      %1319 = vmatmul.f32.gmra.mxu0 %v1052
      %v1320 = vpop.f32.mrf.mxu0
      %v1321 = vadd.f32 0.0, %v1320
      %1322 = vmatmul.f32.gmra.mxu0 %v1055
      %v1323 = vpop.f32.mrf.mxu0
      %v1324 = vadd.f32 0.0, %v1323
      %1325 = vmatmul.f32.gmra.mxu0 %v1058
      %v1326 = vpop.f32.mrf.mxu0
      %v1327 = vadd.f32 0.0, %v1326
      %1328 = vmatmul.f32.gmra.mxu0 %v1061
      %v1329 = vpop.f32.mrf.mxu0
      %v1330 = vadd.f32 0.0, %v1329
      %1331 = vmatmul.f32.gmra.mxu0 %v1064
      %v1332 = vpop.f32.mrf.mxu0
      %v1333 = vadd.f32 0.0, %v1332
      %1334 = vmatmul.f32.gmra.mxu0 %v1067
      %v1335 = vpop.f32.mrf.mxu0
      %v1336 = vadd.f32 0.0, %v1335
      %1337 = vmatmul.f32.gmra.mxu0 %v1070
      %v1338 = vpop.f32.mrf.mxu0
      %v1339 = vadd.f32 0.0, %v1338
      %1340 = vmatmul.f32.gmra.mxu0 %v1073
      %v1341 = vpop.f32.mrf.mxu0
      %v1342 = vadd.f32 0.0, %v1341
      %1343 = vmatmul.f32.gmra.mxu0 %v1076
      %v1344 = vpop.f32.mrf.mxu0
      %v1345 = vadd.f32 0.0, %v1344
      %1346 = vmatmul.f32.gmra.mxu0 %v1079
      %v1347 = vpop.f32.mrf.mxu0
      %v1348 = vadd.f32 0.0, %v1347
      %1349 = vmatmul.f32.gmra.mxu0 %v1082
      %v1350 = vpop.f32.mrf.mxu0
      %v1351 = vadd.f32 0.0, %v1350
      %1352 = vmatmul.f32.gmra.mxu0 %v1085
      %v1353 = vpop.f32.mrf.mxu0
      %v1354 = vadd.f32 0.0, %v1353
      %1355 = vmatmul.f32.gmra.mxu0 %v1088
      %v1356 = vpop.f32.mrf.mxu0
      %v1357 = vadd.f32 0.0, %v1356
      %1358 = vmatmul.f32.gmra.mxu0 %v1091
      %v1359 = vpop.f32.mrf.mxu0
      %v1360 = vadd.f32 0.0, %v1359
      %1361 = vmatmul.f32.gmra.mxu0 %v1094
      %v1362 = vpop.f32.mrf.mxu0
      %v1363 = vadd.f32 0.0, %v1362
      %1364 = vmatmul.f32.gmra.mxu0 %v1097
      %v1365 = vpop.f32.mrf.mxu0
      %v1366 = vadd.f32 0.0, %v1365
      %1367 = vmatmul.f32.gmra.mxu0 %v1100
      %v1368 = vpop.f32.mrf.mxu0
      %v1369 = vadd.f32 0.0, %v1368
      %1370 = vmatmul.f32.gmra.mxu0 %v1103
      %v1371 = vpop.f32.mrf.mxu0
      %v1372 = vadd.f32 0.0, %v1371
      %1373 = vmatmul.f32.gmra.mxu0 %v1106
      %v1374 = vpop.f32.mrf.mxu0
      %v1375 = vadd.f32 0.0, %v1374
      %1376 = vmatmul.f32.gmra.mxu0 %v1109
      %v1377 = vpop.f32.mrf.mxu0
      %v1378 = vadd.f32 0.0, %v1377
      %1379 = vmatmul.f32.gmra.mxu0 %v1112
      %v1380 = vpop.f32.mrf.mxu0
      %v1381 = vadd.f32 0.0, %v1380
      %1382 = vmatmul.f32.gmra.mxu0 %v1115
      %v1383 = vpop.f32.mrf.mxu0
      %v1384 = vadd.f32 0.0, %v1383
      %1385 = vmatmul.f32.gmra.mxu0 %v1118
      %v1386 = vpop.f32.mrf.mxu0
      %v1387 = vadd.f32 0.0, %v1386
      %1388 = vmatmul.f32.gmra.mxu0 %v1121
      %v1389 = vpop.f32.mrf.mxu0
      %v1390 = vadd.f32 0.0, %v1389
      %1391 = vmatmul.f32.gmra.mxu0 %v1124
      %v1392 = vpop.f32.mrf.mxu0
      %v1393 = vadd.f32 0.0, %v1392
      %1394 = vmatmul.f32.gmra.mxu0 %v1127
      %v1395 = vpop.f32.mrf.mxu0
      %v1396 = vadd.f32 0.0, %v1395
      %1397 = vmatmul.f32.gmra.mxu0 %v1130
      %v1398 = vpop.f32.mrf.mxu0
      %v1399 = vadd.f32 0.0, %v1398
      %1400 = vmatmul.f32.gmra.mxu0 %v1133
      %v1401 = vpop.f32.mrf.mxu0
      %v1402 = vadd.f32 0.0, %v1401
      %1403 = vmatmul.f32.gmra.mxu0 %v1136
      %v1404 = vpop.f32.mrf.mxu0
      %v1405 = vadd.f32 0.0, %v1404
      %1406 = vmatmul.f32.gmra.mxu0 %v1139
      %v1407 = vpop.f32.mrf.mxu0
      %v1408 = vadd.f32 0.0, %v1407
      %1409 = vmatmul.f32.gmra.mxu0 %v1142
      %v1410 = vpop.f32.mrf.mxu0
      %v1411 = vadd.f32 0.0, %v1410
      %1412 = vmatmul.f32.gmra.mxu0 %v1145
      %v1413 = vpop.f32.mrf.mxu0
      %v1414 = vadd.f32 0.0, %v1413
      %1415 = vmatmul.f32.gmra.mxu0 %v1148
      %v1416 = vpop.f32.mrf.mxu0
      %v1417 = vadd.f32 0.0, %v1416
      %1418 = vmatmul.f32.gmra.mxu0 %v1151
      %v1419 = vpop.f32.mrf.mxu0
      %v1420 = vadd.f32 0.0, %v1419
      %1421 = vmatmul.f32.gmra.mxu0 %v1154
      %v1422 = vpop.f32.mrf.mxu0
      %v1423 = vadd.f32 0.0, %v1422
      %1424 = vmatmul.f32.gmra.mxu0 %v1157
      %v1425 = vpop.f32.mrf.mxu0
      %v1426 = vadd.f32 0.0, %v1425
      %1427 = vmatmul.f32.gmra.mxu0 %v1160
      %v1428 = vpop.f32.mrf.mxu0
      %v1429 = vadd.f32 0.0, %v1428
      %1430 = vmatmul.f32.gmra.mxu0 %v1163
      %v1431 = vpop.f32.mrf.mxu0
      %v1432 = vadd.f32 0.0, %v1431
      %1433 = vmatmul.f32.gmra.mxu0 %v1166
      %v1434 = vpop.f32.mrf.mxu0
      %v1435 = vadd.f32 0.0, %v1434
      %1436 = vmatmul.f32.gmra.mxu0 %v1169
      %v1437 = vpop.f32.mrf.mxu0
      %v1438 = vadd.f32 0.0, %v1437
      %1439 = vmatmul.f32.gmra.mxu0 %v1172
      %v1440 = vpop.f32.mrf.mxu0
      %v1441 = vadd.f32 0.0, %v1440
      %1442 = vmatmul.f32.gmra.mxu0 %v1175
      %v1443 = vpop.f32.mrf.mxu0
      %v1444 = vadd.f32 0.0, %v1443
      %1445 = vmatmul.f32.gmra.mxu0 %v1178
      %v1446 = vpop.f32.mrf.mxu0
      %v1447 = vadd.f32 0.0, %v1446
      %1448 = vmatmul.f32.gmra.mxu0 %v1181
      %v1449 = vpop.f32.mrf.mxu0
      %v1450 = vadd.f32 0.0, %v1449
      %1451 = vmatmul.f32.gmra.mxu0 %v1184
      %v1452 = vpop.f32.mrf.mxu0
      %v1453 = vadd.f32 0.0, %v1452
      %1454 = vmatmul.f32.gmra.mxu0 %v1187
      %v1455 = vpop.f32.mrf.mxu0
      %v1456 = vadd.f32 0.0, %v1455
      %1457 = vmatmul.f32.gmra.mxu0 %v1190
      %v1458 = vpop.f32.mrf.mxu0
      %v1459 = vadd.f32 0.0, %v1458
      %1460 = vmatmul.f32.gmra.mxu0 %v1193
      %v1461 = vpop.f32.mrf.mxu0
      %v1462 = vadd.f32 0.0, %v1461
      %1463 = vmatmul.f32.gmra.mxu0 %v1196
      %v1464 = vpop.f32.mrf.mxu0
      %v1465 = vadd.f32 0.0, %v1464
      %1466 = vmatmul.f32.gmra.mxu0 %v1199
      %v1467 = vpop.f32.mrf.mxu0
      %v1468 = vadd.f32 0.0, %v1467
      %1469 = vmatmul.f32.gmra.mxu0 %v1202
      %v1470 = vpop.f32.mrf.mxu0
      %v1471 = vadd.f32 0.0, %v1470
      %1472 = vmatmul.f32.gmra.mxu0 %v1205
      %v1473 = vpop.f32.mrf.mxu0
      %v1474 = vadd.f32 0.0, %v1473
      %1475 = vmatmul.f32.gmra.mxu0 %v1208
      %v1476 = vpop.f32.mrf.mxu0
      %v1477 = vadd.f32 0.0, %v1476
      %1478 = vmatmul.f32.gmra.mxu0 %v1211
      %v1479 = vpop.f32.mrf.mxu0
      %v1480 = vadd.f32 0.0, %v1479
      %1481 = vdwg.mxu0
      %v1482 = vld [vmem:[%s259] sm:$0xff]
      %v1483 = vld [vmem:[%s259 + $0x8] sm:$0xff]
      %v1484 = vld [vmem:[%s259 + $0x10] sm:$0xff]
      %v1485 = vld [vmem:[%s259 + $0x18] sm:$0xff]
      %v1486 = vld [vmem:[%s259 + $0x20] sm:$0xff]
      %v1487 = vld [vmem:[%s259 + $0x28] sm:$0xff]
      %v1488 = vld [vmem:[%s259 + $0x30] sm:$0xff]
      %v1489 = vld [vmem:[%s259 + $0x38] sm:$0xff]
      %v1490 = vld [vmem:[%s259 + $0x40] sm:$0xff]
      %v1491 = vld [vmem:[%s259 + $0x48] sm:$0xff]
      %v1492 = vld [vmem:[%s259 + $0x50] sm:$0xff]
      %v1493 = vld [vmem:[%s259 + $0x58] sm:$0xff]
      %v1494 = vld [vmem:[%s259 + $0x60] sm:$0xff]
      %v1495 = vld [vmem:[%s259 + $0x68] sm:$0xff]
      %v1496 = vld [vmem:[%s259 + $0x70] sm:$0xff]
      %v1497 = vld [vmem:[%s259 + $0x78] sm:$0xff]
      %v1498 = vld [vmem:[%s259 + $0x80] sm:$0xff]
      %v1499 = vld [vmem:[%s259 + $0x88] sm:$0xff]
      %v1500 = vld [vmem:[%s259 + $0x90] sm:$0xff]
      %v1501 = vld [vmem:[%s259 + $0x98] sm:$0xff]
      %v1502 = vld [vmem:[%s259 + $0xa0] sm:$0xff]
      %v1503 = vld [vmem:[%s259 + $0xa8] sm:$0xff]
      %v1504 = vld [vmem:[%s259 + $0xb0] sm:$0xff]
      %v1505 = vld [vmem:[%s259 + $0xb8] sm:$0xff]
      %v1506 = vld [vmem:[%s259 + $0xc0] sm:$0xff]
      %v1507 = vld [vmem:[%s259 + $0xc8] sm:$0xff]
      %v1508 = vld [vmem:[%s259 + $0xd0] sm:$0xff]
      %v1509 = vld [vmem:[%s259 + $0xd8] sm:$0xff]
      %v1510 = vld [vmem:[%s259 + $0xe0] sm:$0xff]
      %v1511 = vld [vmem:[%s259 + $0xe8] sm:$0xff]
      %v1512 = vld [vmem:[%s259 + $0xf0] sm:$0xff]
      %v1513 = vld [vmem:[%s259 + $0xf8] sm:$0xff]
      %v1514 = vld [vmem:[%s259 + $0x100] sm:$0xff]
      %v1515 = vld [vmem:[%s259 + $0x108] sm:$0xff]
      %v1516 = vld [vmem:[%s259 + $0x110] sm:$0xff]
      %v1517 = vld [vmem:[%s259 + $0x118] sm:$0xff]
      %v1518 = vld [vmem:[%s259 + $0x120] sm:$0xff]
      %v1519 = vld [vmem:[%s259 + $0x128] sm:$0xff]
      %v1520 = vld [vmem:[%s259 + $0x130] sm:$0xff]
      %v1521 = vld [vmem:[%s259 + $0x138] sm:$0xff]
      %v1522 = vld [vmem:[%s259 + $0x140] sm:$0xff]
      %v1523 = vld [vmem:[%s259 + $0x148] sm:$0xff]
      %v1524 = vld [vmem:[%s259 + $0x150] sm:$0xff]
      %v1525 = vld [vmem:[%s259 + $0x158] sm:$0xff]
      %v1526 = vld [vmem:[%s259 + $0x160] sm:$0xff]
      %v1527 = vld [vmem:[%s259 + $0x168] sm:$0xff]
      %v1528 = vld [vmem:[%s259 + $0x170] sm:$0xff]
      %v1529 = vld [vmem:[%s259 + $0x178] sm:$0xff]
      %v1530 = vld [vmem:[%s259 + $0x180] sm:$0xff]
      %v1531 = vld [vmem:[%s259 + $0x188] sm:$0xff]
      %v1532 = vld [vmem:[%s259 + $0x190] sm:$0xff]
      %v1533 = vld [vmem:[%s259 + $0x198] sm:$0xff]
      %v1534 = vld [vmem:[%s259 + $0x1a0] sm:$0xff]
      %v1535 = vld [vmem:[%s259 + $0x1a8] sm:$0xff]
      %v1536 = vld [vmem:[%s259 + $0x1b0] sm:$0xff]
      %v1537 = vld [vmem:[%s259 + $0x1b8] sm:$0xff]
      %v1538 = vld [vmem:[%s259 + $0x1c0] sm:$0xff]
      %v1539 = vld [vmem:[%s259 + $0x1c8] sm:$0xff]
      %v1540 = vld [vmem:[%s259 + $0x1d0] sm:$0xff]
      %v1541 = vld [vmem:[%s259 + $0x1d8] sm:$0xff]
      %v1542 = vld [vmem:[%s259 + $0x1e0] sm:$0xff]
      %v1543 = vld [vmem:[%s259 + $0x1e8] sm:$0xff]
      %v1544 = vld [vmem:[%s259 + $0x1f0] sm:$0xff]
      %v1545 = vld [vmem:[%s259 + $0x1f8] sm:$0xff]
      %v1546 = vld [vmem:[%s259 + $0x200] sm:$0xff]
      %v1547 = vld [vmem:[%s259 + $0x208] sm:$0xff]
      %v1548 = vld [vmem:[%s259 + $0x210] sm:$0xff]
      %v1549 = vld [vmem:[%s259 + $0x218] sm:$0xff]
      %v1550 = vld [vmem:[%s259 + $0x220] sm:$0xff]
      %v1551 = vld [vmem:[%s259 + $0x228] sm:$0xff]
      %v1552 = vld [vmem:[%s259 + $0x230] sm:$0xff]
      %v1553 = vld [vmem:[%s259 + $0x238] sm:$0xff]
      %v1554 = vld [vmem:[%s259 + $0x240] sm:$0xff]
      %v1555 = vld [vmem:[%s259 + $0x248] sm:$0xff]
      %v1556 = vld [vmem:[%s259 + $0x250] sm:$0xff]
      %v1557 = vld [vmem:[%s259 + $0x258] sm:$0xff]
      %v1558 = vld [vmem:[%s259 + $0x260] sm:$0xff]
      %v1559 = vld [vmem:[%s259 + $0x268] sm:$0xff]
      %v1560 = vld [vmem:[%s259 + $0x270] sm:$0xff]
      %v1561 = vld [vmem:[%s259 + $0x278] sm:$0xff]
      %v1562 = vld [vmem:[%s259 + $0x280] sm:$0xff]
      %v1563 = vld [vmem:[%s259 + $0x288] sm:$0xff]
      %v1564 = vld [vmem:[%s259 + $0x290] sm:$0xff]
      %v1565 = vld [vmem:[%s259 + $0x298] sm:$0xff]
      %v1567 = vsel %vm351, %v1482, 0
      %v1570 = vsel %vm351, %v1483, 0
      %v1573 = vsel %vm351, %v1484, 0
      %v1576 = vsel %vm351, %v1485, 0
      %v1579 = vsel %vm351, %v1486, 0
      %v1582 = vsel %vm351, %v1487, 0
      %v1585 = vsel %vm351, %v1488, 0
      %v1588 = vsel %vm351, %v1489, 0
      %v1591 = vsel %vm351, %v1490, 0
      %v1594 = vsel %vm351, %v1491, 0
      %v1597 = vsel %vm351, %v1492, 0
      %v1600 = vsel %vm351, %v1493, 0
      %v1603 = vsel %vm351, %v1494, 0
      %v1606 = vsel %vm351, %v1495, 0
      %v1609 = vsel %vm351, %v1496, 0
      %v1612 = vsel %vm351, %v1497, 0
      %v1615 = vsel %vm351, %v1498, 0
      %v1618 = vsel %vm351, %v1499, 0
      %v1621 = vsel %vm351, %v1500, 0
      %v1624 = vsel %vm351, %v1501, 0
      %v1627 = vsel %vm351, %v1502, 0
      %v1630 = vsel %vm351, %v1503, 0
      %v1633 = vsel %vm351, %v1504, 0
      %v1636 = vsel %vm351, %v1505, 0
      %v1639 = vsel %vm351, %v1506, 0
      %v1642 = vsel %vm351, %v1507, 0
      %v1645 = vsel %vm351, %v1508, 0
      %v1648 = vsel %vm351, %v1509, 0
      %v1651 = vsel %vm351, %v1510, 0
      %v1654 = vsel %vm351, %v1511, 0
      %v1657 = vsel %vm351, %v1512, 0
      %v1660 = vsel %vm351, %v1513, 0
      %v1663 = vsel %vm351, %v1514, 0
      %v1666 = vsel %vm351, %v1515, 0
      %v1669 = vsel %vm351, %v1516, 0
      %v1672 = vsel %vm351, %v1517, 0
      %v1675 = vsel %vm351, %v1518, 0
      %v1678 = vsel %vm351, %v1519, 0
      %v1681 = vsel %vm351, %v1520, 0
      %v1684 = vsel %vm351, %v1521, 0
      %v1687 = vsel %vm351, %v1522, 0
      %v1690 = vsel %vm351, %v1523, 0
      %v1693 = vsel %vm351, %v1524, 0
      %v1696 = vsel %vm351, %v1525, 0
      %v1699 = vsel %vm351, %v1526, 0
      %v1702 = vsel %vm351, %v1527, 0
      %v1705 = vsel %vm351, %v1528, 0
      %v1708 = vsel %vm351, %v1529, 0
      %v1711 = vsel %vm351, %v1530, 0
      %v1714 = vsel %vm351, %v1531, 0
      %v1717 = vsel %vm351, %v1532, 0
      %v1720 = vsel %vm351, %v1533, 0
      %v1723 = vsel %vm351, %v1534, 0
      %v1726 = vsel %vm351, %v1535, 0
      %v1729 = vsel %vm351, %v1536, 0
      %v1732 = vsel %vm351, %v1537, 0
      %v1735 = vsel %vm351, %v1538, 0
      %v1738 = vsel %vm351, %v1539, 0
      %v1741 = vsel %vm351, %v1540, 0
      %v1744 = vsel %vm351, %v1541, 0
      %v1747 = vsel %vm351, %v1542, 0
      %v1750 = vsel %vm351, %v1543, 0
      %v1753 = vsel %vm351, %v1544, 0
      %v1756 = vsel %vm351, %v1545, 0
      %v1759 = vsel %vm351, %v1546, 0
      %v1762 = vsel %vm351, %v1547, 0
      %v1765 = vsel %vm351, %v1548, 0
      %v1768 = vsel %vm351, %v1549, 0
      %v1771 = vsel %vm351, %v1550, 0
      %v1774 = vsel %vm351, %v1551, 0
      %v1777 = vsel %vm351, %v1552, 0
      %v1780 = vsel %vm351, %v1553, 0
      %v1783 = vsel %vm351, %v1554, 0
      %v1786 = vsel %vm351, %v1555, 0
      %v1789 = vsel %vm351, %v1556, 0
      %v1792 = vsel %vm351, %v1557, 0
      %v1795 = vsel %vm351, %v1558, 0
      %v1798 = vsel %vm351, %v1559, 0
      %v1801 = vsel %vm351, %v1560, 0
      %v1804 = vsel %vm351, %v1561, 0
      %v1807 = vsel %vm351, %v1562, 0
      %v1810 = vsel %vm351, %v1563, 0
      %v1813 = vsel %vm351, %v1564, 0
      %v1816 = vsel %vm351, %v1565, 0
      %1818 = vmatpush.msra.mxu0 0.0
      %1819 = vmatpush.msra.mxu0 0.0
      %1820 = vmatpush.msra.mxu0 0.0
      %1821 = vmatpush.msra.mxu0 0.0
      %1822 = vmatpush.msra.mxu0 0.0
      %1823 = vmatpush.msra.mxu0 0.0
      %1824 = vmatpush.msra.mxu0 0.0
      %1825 = vmatpush.msra.mxu0 0.0
      %1826 = vmatpush.msra.mxu0 0.0
      %1827 = vmatpush.msra.mxu0 0.0
      %1828 = vmatpush.msra.mxu0 0.0
      %1829 = vmatpush.msra.mxu0 0.0
      %1830 = vmatpush.msra.mxu0 0.0
      %1831 = vmatpush.msra.mxu0 0.0
      %1832 = vmatpush.msra.mxu0 %v606
      %1833 = vmatpush.msra.mxu0 %v265
      %1834 = vmatmul.f32.gmra.mxu0 %v1567
      %v1835 = vpop.f32.mrf.mxu0
      %v1836 = vadd.f32 0.0, %v1835
      %1837 = vmatmul.f32.gmra.mxu0 %v1570
      %v1838 = vpop.f32.mrf.mxu0
      %v1839 = vadd.f32 0.0, %v1838
      %1840 = vmatmul.f32.gmra.mxu0 %v1573
      %v1841 = vpop.f32.mrf.mxu0
      %v1842 = vadd.f32 0.0, %v1841
      %1843 = vmatmul.f32.gmra.mxu0 %v1576
      %v1844 = vpop.f32.mrf.mxu0
      %v1845 = vadd.f32 0.0, %v1844
      %1846 = vmatmul.f32.gmra.mxu0 %v1579
      %v1847 = vpop.f32.mrf.mxu0
      %v1848 = vadd.f32 0.0, %v1847
      %1849 = vmatmul.f32.gmra.mxu0 %v1582
      %v1850 = vpop.f32.mrf.mxu0
      %v1851 = vadd.f32 0.0, %v1850
      %1852 = vmatmul.f32.gmra.mxu0 %v1585
      %v1853 = vpop.f32.mrf.mxu0
      %v1854 = vadd.f32 0.0, %v1853
      %1855 = vmatmul.f32.gmra.mxu0 %v1588
      %v1856 = vpop.f32.mrf.mxu0
      %v1857 = vadd.f32 0.0, %v1856
      %1858 = vmatmul.f32.gmra.mxu0 %v1591
      %v1859 = vpop.f32.mrf.mxu0
      %v1860 = vadd.f32 0.0, %v1859
      %1861 = vmatmul.f32.gmra.mxu0 %v1594
      %v1862 = vpop.f32.mrf.mxu0
      %v1863 = vadd.f32 0.0, %v1862
      %1864 = vmatmul.f32.gmra.mxu0 %v1597
      %v1865 = vpop.f32.mrf.mxu0
      %v1866 = vadd.f32 0.0, %v1865
      %1867 = vmatmul.f32.gmra.mxu0 %v1600
      %v1868 = vpop.f32.mrf.mxu0
      %v1869 = vadd.f32 0.0, %v1868
      %1870 = vmatmul.f32.gmra.mxu0 %v1603
      %v1871 = vpop.f32.mrf.mxu0
      %v1872 = vadd.f32 0.0, %v1871
      %1873 = vmatmul.f32.gmra.mxu0 %v1606
      %v1874 = vpop.f32.mrf.mxu0
      %v1875 = vadd.f32 0.0, %v1874
      %1876 = vmatmul.f32.gmra.mxu0 %v1609
      %v1877 = vpop.f32.mrf.mxu0
      %v1878 = vadd.f32 0.0, %v1877
      %1879 = vmatmul.f32.gmra.mxu0 %v1612
      %v1880 = vpop.f32.mrf.mxu0
      %v1881 = vadd.f32 0.0, %v1880
      %1882 = vmatmul.f32.gmra.mxu0 %v1615
      %v1883 = vpop.f32.mrf.mxu0
      %v1884 = vadd.f32 0.0, %v1883
      %1885 = vmatmul.f32.gmra.mxu0 %v1618
      %v1886 = vpop.f32.mrf.mxu0
      %v1887 = vadd.f32 0.0, %v1886
      %1888 = vmatmul.f32.gmra.mxu0 %v1621
      %v1889 = vpop.f32.mrf.mxu0
      %v1890 = vadd.f32 0.0, %v1889
      %1891 = vmatmul.f32.gmra.mxu0 %v1624
      %v1892 = vpop.f32.mrf.mxu0
      %v1893 = vadd.f32 0.0, %v1892
      %1894 = vmatmul.f32.gmra.mxu0 %v1627
      %v1895 = vpop.f32.mrf.mxu0
      %v1896 = vadd.f32 0.0, %v1895
      %1897 = vmatmul.f32.gmra.mxu0 %v1630
      %v1898 = vpop.f32.mrf.mxu0
      %v1899 = vadd.f32 0.0, %v1898
      %1900 = vmatmul.f32.gmra.mxu0 %v1633
      %v1901 = vpop.f32.mrf.mxu0
      %v1902 = vadd.f32 0.0, %v1901
      %1903 = vmatmul.f32.gmra.mxu0 %v1636
      %v1904 = vpop.f32.mrf.mxu0
      %v1905 = vadd.f32 0.0, %v1904
      %1906 = vmatmul.f32.gmra.mxu0 %v1639
      %v1907 = vpop.f32.mrf.mxu0
      %v1908 = vadd.f32 0.0, %v1907
      %1909 = vmatmul.f32.gmra.mxu0 %v1642
      %v1910 = vpop.f32.mrf.mxu0
      %v1911 = vadd.f32 0.0, %v1910
      %1912 = vmatmul.f32.gmra.mxu0 %v1645
      %v1913 = vpop.f32.mrf.mxu0
      %v1914 = vadd.f32 0.0, %v1913
      %1915 = vmatmul.f32.gmra.mxu0 %v1648
      %v1916 = vpop.f32.mrf.mxu0
      %v1917 = vadd.f32 0.0, %v1916
      %1918 = vmatmul.f32.gmra.mxu0 %v1651
      %v1919 = vpop.f32.mrf.mxu0
      %v1920 = vadd.f32 0.0, %v1919
      %1921 = vmatmul.f32.gmra.mxu0 %v1654
      %v1922 = vpop.f32.mrf.mxu0
      %v1923 = vadd.f32 0.0, %v1922
      %1924 = vmatmul.f32.gmra.mxu0 %v1657
      %v1925 = vpop.f32.mrf.mxu0
      %v1926 = vadd.f32 0.0, %v1925
      %1927 = vmatmul.f32.gmra.mxu0 %v1660
      %v1928 = vpop.f32.mrf.mxu0
      %v1929 = vadd.f32 0.0, %v1928
      %1930 = vmatmul.f32.gmra.mxu0 %v1663
      %v1931 = vpop.f32.mrf.mxu0
      %v1932 = vadd.f32 0.0, %v1931
      %1933 = vmatmul.f32.gmra.mxu0 %v1666
      %v1934 = vpop.f32.mrf.mxu0
      %v1935 = vadd.f32 0.0, %v1934
      %1936 = vmatmul.f32.gmra.mxu0 %v1669
      %v1937 = vpop.f32.mrf.mxu0
      %v1938 = vadd.f32 0.0, %v1937
      %1939 = vmatmul.f32.gmra.mxu0 %v1672
      %v1940 = vpop.f32.mrf.mxu0
      %v1941 = vadd.f32 0.0, %v1940
      %1942 = vmatmul.f32.gmra.mxu0 %v1675
      %v1943 = vpop.f32.mrf.mxu0
      %v1944 = vadd.f32 0.0, %v1943
      %1945 = vmatmul.f32.gmra.mxu0 %v1678
      %v1946 = vpop.f32.mrf.mxu0
      %v1947 = vadd.f32 0.0, %v1946
      %1948 = vmatmul.f32.gmra.mxu0 %v1681
      %v1949 = vpop.f32.mrf.mxu0
      %v1950 = vadd.f32 0.0, %v1949
      %1951 = vmatmul.f32.gmra.mxu0 %v1684
      %v1952 = vpop.f32.mrf.mxu0
      %v1953 = vadd.f32 0.0, %v1952
      %1954 = vmatmul.f32.gmra.mxu0 %v1687
      %v1955 = vpop.f32.mrf.mxu0
      %v1956 = vadd.f32 0.0, %v1955
      %1957 = vmatmul.f32.gmra.mxu0 %v1690
      %v1958 = vpop.f32.mrf.mxu0
      %v1959 = vadd.f32 0.0, %v1958
      %1960 = vmatmul.f32.gmra.mxu0 %v1693
      %v1961 = vpop.f32.mrf.mxu0
      %v1962 = vadd.f32 0.0, %v1961
      %1963 = vmatmul.f32.gmra.mxu0 %v1696
      %v1964 = vpop.f32.mrf.mxu0
      %v1965 = vadd.f32 0.0, %v1964
      %1966 = vmatmul.f32.gmra.mxu0 %v1699
      %v1967 = vpop.f32.mrf.mxu0
      %v1968 = vadd.f32 0.0, %v1967
      %1969 = vmatmul.f32.gmra.mxu0 %v1702
      %v1970 = vpop.f32.mrf.mxu0
      %v1971 = vadd.f32 0.0, %v1970
      %1972 = vmatmul.f32.gmra.mxu0 %v1705
      %v1973 = vpop.f32.mrf.mxu0
      %v1974 = vadd.f32 0.0, %v1973
      %1975 = vmatmul.f32.gmra.mxu0 %v1708
      %v1976 = vpop.f32.mrf.mxu0
      %v1977 = vadd.f32 0.0, %v1976
      %1978 = vmatmul.f32.gmra.mxu0 %v1711
      %v1979 = vpop.f32.mrf.mxu0
      %v1980 = vadd.f32 0.0, %v1979
      %1981 = vmatmul.f32.gmra.mxu0 %v1714
      %v1982 = vpop.f32.mrf.mxu0
      %v1983 = vadd.f32 0.0, %v1982
      %1984 = vmatmul.f32.gmra.mxu0 %v1717
      %v1985 = vpop.f32.mrf.mxu0
      %v1986 = vadd.f32 0.0, %v1985
      %1987 = vmatmul.f32.gmra.mxu0 %v1720
      %v1988 = vpop.f32.mrf.mxu0
      %v1989 = vadd.f32 0.0, %v1988
      %1990 = vmatmul.f32.gmra.mxu0 %v1723
      %v1991 = vpop.f32.mrf.mxu0
      %v1992 = vadd.f32 0.0, %v1991
      %1993 = vmatmul.f32.gmra.mxu0 %v1726
      %v1994 = vpop.f32.mrf.mxu0
      %v1995 = vadd.f32 0.0, %v1994
      %1996 = vmatmul.f32.gmra.mxu0 %v1729
      %v1997 = vpop.f32.mrf.mxu0
      %v1998 = vadd.f32 0.0, %v1997
      %1999 = vmatmul.f32.gmra.mxu0 %v1732
      %v2000 = vpop.f32.mrf.mxu0
      %v2001 = vadd.f32 0.0, %v2000
      %2002 = vmatmul.f32.gmra.mxu0 %v1735
      %v2003 = vpop.f32.mrf.mxu0
      %v2004 = vadd.f32 0.0, %v2003
      %2005 = vmatmul.f32.gmra.mxu0 %v1738
      %v2006 = vpop.f32.mrf.mxu0
      %v2007 = vadd.f32 0.0, %v2006
      %2008 = vmatmul.f32.gmra.mxu0 %v1741
      %v2009 = vpop.f32.mrf.mxu0
      %v2010 = vadd.f32 0.0, %v2009
      %2011 = vmatmul.f32.gmra.mxu0 %v1744
      %v2012 = vpop.f32.mrf.mxu0
      %v2013 = vadd.f32 0.0, %v2012
      %2014 = vmatmul.f32.gmra.mxu0 %v1747
      %v2015 = vpop.f32.mrf.mxu0
      %v2016 = vadd.f32 0.0, %v2015
      %2017 = vmatmul.f32.gmra.mxu0 %v1750
      %v2018 = vpop.f32.mrf.mxu0
      %v2019 = vadd.f32 0.0, %v2018
      %2020 = vmatmul.f32.gmra.mxu0 %v1753
      %v2021 = vpop.f32.mrf.mxu0
      %v2022 = vadd.f32 0.0, %v2021
      %2023 = vmatmul.f32.gmra.mxu0 %v1756
      %v2024 = vpop.f32.mrf.mxu0
      %v2025 = vadd.f32 0.0, %v2024
      %2026 = vmatmul.f32.gmra.mxu0 %v1759
      %v2027 = vpop.f32.mrf.mxu0
      %v2028 = vadd.f32 0.0, %v2027
      %2029 = vmatmul.f32.gmra.mxu0 %v1762
      %v2030 = vpop.f32.mrf.mxu0
      %v2031 = vadd.f32 0.0, %v2030
      %2032 = vmatmul.f32.gmra.mxu0 %v1765
      %v2033 = vpop.f32.mrf.mxu0
      %v2034 = vadd.f32 0.0, %v2033
      %2035 = vmatmul.f32.gmra.mxu0 %v1768
      %v2036 = vpop.f32.mrf.mxu0
      %v2037 = vadd.f32 0.0, %v2036
      %2038 = vmatmul.f32.gmra.mxu0 %v1771
      %v2039 = vpop.f32.mrf.mxu0
      %v2040 = vadd.f32 0.0, %v2039
      %2041 = vmatmul.f32.gmra.mxu0 %v1774
      %v2042 = vpop.f32.mrf.mxu0
      %v2043 = vadd.f32 0.0, %v2042
      %2044 = vmatmul.f32.gmra.mxu0 %v1777
      %v2045 = vpop.f32.mrf.mxu0
      %v2046 = vadd.f32 0.0, %v2045
      %2047 = vmatmul.f32.gmra.mxu0 %v1780
      %v2048 = vpop.f32.mrf.mxu0
      %v2049 = vadd.f32 0.0, %v2048
      %2050 = vmatmul.f32.gmra.mxu0 %v1783
      %v2051 = vpop.f32.mrf.mxu0
      %v2052 = vadd.f32 0.0, %v2051
      %2053 = vmatmul.f32.gmra.mxu0 %v1786
      %v2054 = vpop.f32.mrf.mxu0
      %v2055 = vadd.f32 0.0, %v2054
      %2056 = vmatmul.f32.gmra.mxu0 %v1789
      %v2057 = vpop.f32.mrf.mxu0
      %v2058 = vadd.f32 0.0, %v2057
      %2059 = vmatmul.f32.gmra.mxu0 %v1792
      %v2060 = vpop.f32.mrf.mxu0
      %v2061 = vadd.f32 0.0, %v2060
      %2062 = vmatmul.f32.gmra.mxu0 %v1795
      %v2063 = vpop.f32.mrf.mxu0
      %v2064 = vadd.f32 0.0, %v2063
      %2065 = vmatmul.f32.gmra.mxu0 %v1798
      %v2066 = vpop.f32.mrf.mxu0
      %v2067 = vadd.f32 0.0, %v2066
      %2068 = vmatmul.f32.gmra.mxu0 %v1801
      %v2069 = vpop.f32.mrf.mxu0
      %v2070 = vadd.f32 0.0, %v2069
      %2071 = vmatmul.f32.gmra.mxu0 %v1804
      %v2072 = vpop.f32.mrf.mxu0
      %v2073 = vadd.f32 0.0, %v2072
      %2074 = vmatmul.f32.gmra.mxu0 %v1807
      %v2075 = vpop.f32.mrf.mxu0
      %v2076 = vadd.f32 0.0, %v2075
      %2077 = vmatmul.f32.gmra.mxu0 %v1810
      %v2078 = vpop.f32.mrf.mxu0
      %v2079 = vadd.f32 0.0, %v2078
      %2080 = vmatmul.f32.gmra.mxu0 %v1813
      %v2081 = vpop.f32.mrf.mxu0
      %v2082 = vadd.f32 0.0, %v2081
      %2083 = vmatmul.f32.gmra.mxu0 %v1816
      %v2084 = vpop.f32.mrf.mxu0
      %v2085 = vadd.f32 0.0, %v2084
      %2086 = vdwg.mxu0
      %v2087 = vmax.f32 %v626, %v1231
      %v2088 = vmax.f32 %v629, %v1234
      %v2089 = vmax.f32 %v632, %v1237
      %v2090 = vmax.f32 %v635, %v1240
      %v2091 = vmax.f32 %v638, %v1243
      %v2092 = vmax.f32 %v641, %v1246
      %v2093 = vmax.f32 %v644, %v1249
      %v2094 = vmax.f32 %v647, %v1252
      %v2095 = vmax.f32 %v650, %v1255
      %v2096 = vmax.f32 %v653, %v1258
      %v2097 = vmax.f32 %v656, %v1261
      %v2098 = vmax.f32 %v659, %v1264
      %v2099 = vmax.f32 %v662, %v1267
      %v2100 = vmax.f32 %v665, %v1270
      %v2101 = vmax.f32 %v668, %v1273
      %v2102 = vmax.f32 %v671, %v1276
      %v2103 = vmax.f32 %v674, %v1279
      %v2104 = vmax.f32 %v677, %v1282
      %v2105 = vmax.f32 %v680, %v1285
      %v2106 = vmax.f32 %v683, %v1288
      %v2107 = vmax.f32 %v686, %v1291
      %v2108 = vmax.f32 %v689, %v1294
      %v2109 = vmax.f32 %v692, %v1297
      %v2110 = vmax.f32 %v695, %v1300
      %v2111 = vmax.f32 %v698, %v1303
      %v2112 = vmax.f32 %v701, %v1306
      %v2113 = vmax.f32 %v704, %v1309
      %v2114 = vmax.f32 %v707, %v1312
      %v2115 = vmax.f32 %v710, %v1315
      %v2116 = vmax.f32 %v713, %v1318
      %v2117 = vmax.f32 %v716, %v1321
      %v2118 = vmax.f32 %v719, %v1324
      %v2119 = vmax.f32 %v722, %v1327
      %v2120 = vmax.f32 %v725, %v1330
      %v2121 = vmax.f32 %v728, %v1333
      %v2122 = vmax.f32 %v731, %v1336
      %v2123 = vmax.f32 %v734, %v1339
      %v2124 = vmax.f32 %v737, %v1342
      %v2125 = vmax.f32 %v740, %v1345
      %v2126 = vmax.f32 %v743, %v1348
      %v2127 = vmax.f32 %v746, %v1351
      %v2128 = vmax.f32 %v749, %v1354
      %v2129 = vmax.f32 %v752, %v1357
      %v2130 = vmax.f32 %v755, %v1360
      %v2131 = vmax.f32 %v758, %v1363
      %v2132 = vmax.f32 %v761, %v1366
      %v2133 = vmax.f32 %v764, %v1369
      %v2134 = vmax.f32 %v767, %v1372
      %v2135 = vmax.f32 %v770, %v1375
      %v2136 = vmax.f32 %v773, %v1378
      %v2137 = vmax.f32 %v776, %v1381
      %v2138 = vmax.f32 %v779, %v1384
      %v2139 = vmax.f32 %v782, %v1387
      %v2140 = vmax.f32 %v785, %v1390
      %v2141 = vmax.f32 %v788, %v1393
      %v2142 = vmax.f32 %v791, %v1396
      %v2143 = vmax.f32 %v794, %v1399
      %v2144 = vmax.f32 %v797, %v1402
      %v2145 = vmax.f32 %v800, %v1405
      %v2146 = vmax.f32 %v803, %v1408
      %v2147 = vmax.f32 %v806, %v1411
      %v2148 = vmax.f32 %v809, %v1414
      %v2149 = vmax.f32 %v812, %v1417
      %v2150 = vmax.f32 %v815, %v1420
      %v2151 = vmax.f32 %v818, %v1423
      %v2152 = vmax.f32 %v821, %v1426
      %v2153 = vmax.f32 %v824, %v1429
      %v2154 = vmax.f32 %v827, %v1432
      %v2155 = vmax.f32 %v830, %v1435
      %v2156 = vmax.f32 %v833, %v1438
      %v2157 = vmax.f32 %v836, %v1441
      %v2158 = vmax.f32 %v839, %v1444
      %v2159 = vmax.f32 %v842, %v1447
      %v2160 = vmax.f32 %v845, %v1450
      %v2161 = vmax.f32 %v848, %v1453
      %v2162 = vmax.f32 %v851, %v1456
      %v2163 = vmax.f32 %v854, %v1459
      %v2164 = vmax.f32 %v857, %v1462
      %v2165 = vmax.f32 %v860, %v1465
      %v2166 = vmax.f32 %v863, %v1468
      %v2167 = vmax.f32 %v866, %v1471
      %v2168 = vmax.f32 %v869, %v1474
      %v2169 = vmax.f32 %v872, %v1477
      %v2170 = vmax.f32 %v875, %v1480
      %v2171 = vmax.f32 %v2087, %v1836
      %v2172 = vmax.f32 %v2088, %v1839
      %v2173 = vmax.f32 %v2089, %v1842
      %v2174 = vmax.f32 %v2090, %v1845
      %v2175 = vmax.f32 %v2091, %v1848
      %v2176 = vmax.f32 %v2092, %v1851
      %v2177 = vmax.f32 %v2093, %v1854
      %v2178 = vmax.f32 %v2094, %v1857
      %v2179 = vmax.f32 %v2095, %v1860
      %v2180 = vmax.f32 %v2096, %v1863
      %v2181 = vmax.f32 %v2097, %v1866
      %v2182 = vmax.f32 %v2098, %v1869
      %v2183 = vmax.f32 %v2099, %v1872
      %v2184 = vmax.f32 %v2100, %v1875
      %v2185 = vmax.f32 %v2101, %v1878
      %v2186 = vmax.f32 %v2102, %v1881
      %v2187 = vmax.f32 %v2103, %v1884
      %v2188 = vmax.f32 %v2104, %v1887
      %v2189 = vmax.f32 %v2105, %v1890
      %v2190 = vmax.f32 %v2106, %v1893
      %v2191 = vmax.f32 %v2107, %v1896
      %v2192 = vmax.f32 %v2108, %v1899
      %v2193 = vmax.f32 %v2109, %v1902
      %v2194 = vmax.f32 %v2110, %v1905
      %v2195 = vmax.f32 %v2111, %v1908
      %v2196 = vmax.f32 %v2112, %v1911
      %v2197 = vmax.f32 %v2113, %v1914
      %v2198 = vmax.f32 %v2114, %v1917
      %v2199 = vmax.f32 %v2115, %v1920
      %v2200 = vmax.f32 %v2116, %v1923
      %v2201 = vmax.f32 %v2117, %v1926
      %v2202 = vmax.f32 %v2118, %v1929
      %v2203 = vmax.f32 %v2119, %v1932
      %v2204 = vmax.f32 %v2120, %v1935
      %v2205 = vmax.f32 %v2121, %v1938
      %v2206 = vmax.f32 %v2122, %v1941
      %v2207 = vmax.f32 %v2123, %v1944
      %v2208 = vmax.f32 %v2124, %v1947
      %v2209 = vmax.f32 %v2125, %v1950
      %v2210 = vmax.f32 %v2126, %v1953
      %v2211 = vmax.f32 %v2127, %v1956
      %v2212 = vmax.f32 %v2128, %v1959
      %v2213 = vmax.f32 %v2129, %v1962
      %v2214 = vmax.f32 %v2130, %v1965
      %v2215 = vmax.f32 %v2131, %v1968
      %v2216 = vmax.f32 %v2132, %v1971
      %v2217 = vmax.f32 %v2133, %v1974
      %v2218 = vmax.f32 %v2134, %v1977
      %v2219 = vmax.f32 %v2135, %v1980
      %v2220 = vmax.f32 %v2136, %v1983
      %v2221 = vmax.f32 %v2137, %v1986
      %v2222 = vmax.f32 %v2138, %v1989
      %v2223 = vmax.f32 %v2139, %v1992
      %v2224 = vmax.f32 %v2140, %v1995
      %v2225 = vmax.f32 %v2141, %v1998
      %v2226 = vmax.f32 %v2142, %v2001
      %v2227 = vmax.f32 %v2143, %v2004
      %v2228 = vmax.f32 %v2144, %v2007
      %v2229 = vmax.f32 %v2145, %v2010
      %v2230 = vmax.f32 %v2146, %v2013
      %v2231 = vmax.f32 %v2147, %v2016
      %v2232 = vmax.f32 %v2148, %v2019
      %v2233 = vmax.f32 %v2149, %v2022
      %v2234 = vmax.f32 %v2150, %v2025
      %v2235 = vmax.f32 %v2151, %v2028
      %v2236 = vmax.f32 %v2152, %v2031
      %v2237 = vmax.f32 %v2153, %v2034
      %v2238 = vmax.f32 %v2154, %v2037
      %v2239 = vmax.f32 %v2155, %v2040
      %v2240 = vmax.f32 %v2156, %v2043
      %v2241 = vmax.f32 %v2157, %v2046
      %v2242 = vmax.f32 %v2158, %v2049
      %v2243 = vmax.f32 %v2159, %v2052
      %v2244 = vmax.f32 %v2160, %v2055
      %v2245 = vmax.f32 %v2161, %v2058
      %v2246 = vmax.f32 %v2162, %v2061
      %v2247 = vmax.f32 %v2163, %v2064
      %v2248 = vmax.f32 %v2164, %v2067
      %v2249 = vmax.f32 %v2165, %v2070
      %v2250 = vmax.f32 %v2166, %v2073
      %v2251 = vmax.f32 %v2167, %v2076
      %v2252 = vmax.f32 %v2168, %v2079
      %v2253 = vmax.f32 %v2169, %v2082
      %v2254 = vmax.f32 %v2170, %v2085
      %v2255 = vld [vmem:[%s4] sm:$0x1]
      %v2257 = vperm.slane %v2255, 0
      %v2259 = vadd.f32 %v2171, %v2257
      %v2260 = vadd.f32 %v2172, %v2257
      %v2261 = vadd.f32 %v2173, %v2257
      %v2262 = vadd.f32 %v2174, %v2257
      %v2263 = vadd.f32 %v2175, %v2257
      %v2264 = vadd.f32 %v2176, %v2257
      %v2265 = vadd.f32 %v2177, %v2257
      %v2266 = vadd.f32 %v2178, %v2257
      %v2267 = vadd.f32 %v2179, %v2257
      %v2268 = vadd.f32 %v2180, %v2257
      %v2269 = vadd.f32 %v2181, %v2257
      %v2270 = vadd.f32 %v2182, %v2257
      %v2271 = vadd.f32 %v2183, %v2257
      %v2272 = vadd.f32 %v2184, %v2257
      %v2273 = vadd.f32 %v2185, %v2257
      %v2274 = vadd.f32 %v2186, %v2257
      %v2275 = vadd.f32 %v2187, %v2257
      %v2276 = vadd.f32 %v2188, %v2257
      %v2277 = vadd.f32 %v2189, %v2257
      %v2278 = vadd.f32 %v2190, %v2257
      %v2279 = vadd.f32 %v2191, %v2257
      %v2280 = vadd.f32 %v2192, %v2257
      %v2281 = vadd.f32 %v2193, %v2257
      %v2282 = vadd.f32 %v2194, %v2257
      %v2283 = vadd.f32 %v2195, %v2257
      %v2284 = vadd.f32 %v2196, %v2257
      %v2285 = vadd.f32 %v2197, %v2257
      %v2286 = vadd.f32 %v2198, %v2257
      %v2287 = vadd.f32 %v2199, %v2257
      %v2288 = vadd.f32 %v2200, %v2257
      %v2289 = vadd.f32 %v2201, %v2257
      %v2290 = vadd.f32 %v2202, %v2257
      %v2291 = vadd.f32 %v2203, %v2257
      %v2292 = vadd.f32 %v2204, %v2257
      %v2293 = vadd.f32 %v2205, %v2257
      %v2294 = vadd.f32 %v2206, %v2257
      %v2295 = vadd.f32 %v2207, %v2257
      %v2296 = vadd.f32 %v2208, %v2257
      %v2297 = vadd.f32 %v2209, %v2257
      %v2298 = vadd.f32 %v2210, %v2257
      %v2299 = vadd.f32 %v2211, %v2257
      %v2300 = vadd.f32 %v2212, %v2257
      %v2301 = vadd.f32 %v2213, %v2257
      %v2302 = vadd.f32 %v2214, %v2257
      %v2303 = vadd.f32 %v2215, %v2257
      %v2304 = vadd.f32 %v2216, %v2257
      %v2305 = vadd.f32 %v2217, %v2257
      %v2306 = vadd.f32 %v2218, %v2257
      %v2307 = vadd.f32 %v2219, %v2257
      %v2308 = vadd.f32 %v2220, %v2257
      %v2309 = vadd.f32 %v2221, %v2257
      %v2310 = vadd.f32 %v2222, %v2257
      %v2311 = vadd.f32 %v2223, %v2257
      %v2312 = vadd.f32 %v2224, %v2257
      %v2313 = vadd.f32 %v2225, %v2257
      %v2314 = vadd.f32 %v2226, %v2257
      %v2315 = vadd.f32 %v2227, %v2257
      %v2316 = vadd.f32 %v2228, %v2257
      %v2317 = vadd.f32 %v2229, %v2257
      %v2318 = vadd.f32 %v2230, %v2257
      %v2319 = vadd.f32 %v2231, %v2257
      %v2320 = vadd.f32 %v2232, %v2257
      %v2321 = vadd.f32 %v2233, %v2257
      %v2322 = vadd.f32 %v2234, %v2257
      %v2323 = vadd.f32 %v2235, %v2257
      %v2324 = vadd.f32 %v2236, %v2257
      %v2325 = vadd.f32 %v2237, %v2257
      %v2326 = vadd.f32 %v2238, %v2257
      %v2327 = vadd.f32 %v2239, %v2257
      %v2328 = vadd.f32 %v2240, %v2257
      %v2329 = vadd.f32 %v2241, %v2257
      %v2330 = vadd.f32 %v2242, %v2257
      %v2331 = vadd.f32 %v2243, %v2257
      %v2332 = vadd.f32 %v2244, %v2257
      %v2333 = vadd.f32 %v2245, %v2257
      %v2334 = vadd.f32 %v2246, %v2257
      %v2335 = vadd.f32 %v2247, %v2257
      %v2336 = vadd.f32 %v2248, %v2257
      %v2337 = vadd.f32 %v2249, %v2257
      %v2338 = vadd.f32 %v2250, %v2257
      %v2339 = vadd.f32 %v2251, %v2257
      %v2340 = vadd.f32 %v2252, %v2257
      %v2341 = vadd.f32 %v2253, %v2257
      %v2342 = vadd.f32 %v2254, %v2257
      %v2343 = vmax.f32 %v2259, 0.0
      %v2344 = vmax.f32 %v2260, 0.0
      %v2345 = vmax.f32 %v2261, 0.0
      %v2346 = vmax.f32 %v2262, 0.0
      %v2347 = vmax.f32 %v2263, 0.0
      %v2348 = vmax.f32 %v2264, 0.0
      %v2349 = vmax.f32 %v2265, 0.0
      %v2350 = vmax.f32 %v2266, 0.0
      %v2351 = vmax.f32 %v2267, 0.0
      %v2352 = vmax.f32 %v2268, 0.0
      %v2353 = vmax.f32 %v2269, 0.0
      %v2354 = vmax.f32 %v2270, 0.0
      %v2355 = vmax.f32 %v2271, 0.0
      %v2356 = vmax.f32 %v2272, 0.0
      %v2357 = vmax.f32 %v2273, 0.0
      %v2358 = vmax.f32 %v2274, 0.0
      %v2359 = vmax.f32 %v2275, 0.0
      %v2360 = vmax.f32 %v2276, 0.0
      %v2361 = vmax.f32 %v2277, 0.0
      %v2362 = vmax.f32 %v2278, 0.0
      %v2363 = vmax.f32 %v2279, 0.0
      %v2364 = vmax.f32 %v2280, 0.0
      %v2365 = vmax.f32 %v2281, 0.0
      %v2366 = vmax.f32 %v2282, 0.0
      %v2367 = vmax.f32 %v2283, 0.0
      %v2368 = vmax.f32 %v2284, 0.0
      %v2369 = vmax.f32 %v2285, 0.0
      %v2370 = vmax.f32 %v2286, 0.0
      %v2371 = vmax.f32 %v2287, 0.0
      %v2372 = vmax.f32 %v2288, 0.0
      %v2373 = vmax.f32 %v2289, 0.0
      %v2374 = vmax.f32 %v2290, 0.0
      %v2375 = vmax.f32 %v2291, 0.0
      %v2376 = vmax.f32 %v2292, 0.0
      %v2377 = vmax.f32 %v2293, 0.0
      %v2378 = vmax.f32 %v2294, 0.0
      %v2379 = vmax.f32 %v2295, 0.0
      %v2380 = vmax.f32 %v2296, 0.0
      %v2381 = vmax.f32 %v2297, 0.0
      %v2382 = vmax.f32 %v2298, 0.0
      %v2383 = vmax.f32 %v2299, 0.0
      %v2384 = vmax.f32 %v2300, 0.0
      %v2385 = vmax.f32 %v2301, 0.0
      %v2386 = vmax.f32 %v2302, 0.0
      %v2387 = vmax.f32 %v2303, 0.0
      %v2388 = vmax.f32 %v2304, 0.0
      %v2389 = vmax.f32 %v2305, 0.0
      %v2390 = vmax.f32 %v2306, 0.0
      %v2391 = vmax.f32 %v2307, 0.0
      %v2392 = vmax.f32 %v2308, 0.0
      %v2393 = vmax.f32 %v2309, 0.0
      %v2394 = vmax.f32 %v2310, 0.0
      %v2395 = vmax.f32 %v2311, 0.0
      %v2396 = vmax.f32 %v2312, 0.0
      %v2397 = vmax.f32 %v2313, 0.0
      %v2398 = vmax.f32 %v2314, 0.0
      %v2399 = vmax.f32 %v2315, 0.0
      %v2400 = vmax.f32 %v2316, 0.0
      %v2401 = vmax.f32 %v2317, 0.0
      %v2402 = vmax.f32 %v2318, 0.0
      %v2403 = vmax.f32 %v2319, 0.0
      %v2404 = vmax.f32 %v2320, 0.0
      %v2405 = vmax.f32 %v2321, 0.0
      %v2406 = vmax.f32 %v2322, 0.0
      %v2407 = vmax.f32 %v2323, 0.0
      %v2408 = vmax.f32 %v2324, 0.0
      %v2409 = vmax.f32 %v2325, 0.0
      %v2410 = vmax.f32 %v2326, 0.0
      %v2411 = vmax.f32 %v2327, 0.0
      %v2412 = vmax.f32 %v2328, 0.0
      %v2413 = vmax.f32 %v2329, 0.0
      %v2414 = vmax.f32 %v2330, 0.0
      %v2415 = vmax.f32 %v2331, 0.0
      %v2416 = vmax.f32 %v2332, 0.0
      %v2417 = vmax.f32 %v2333, 0.0
      %v2418 = vmax.f32 %v2334, 0.0
      %v2419 = vmax.f32 %v2335, 0.0
      %v2420 = vmax.f32 %v2336, 0.0
      %v2421 = vmax.f32 %v2337, 0.0
      %v2422 = vmax.f32 %v2338, 0.0
      %v2423 = vmax.f32 %v2339, 0.0
      %v2424 = vmax.f32 %v2340, 0.0
      %v2425 = vmax.f32 %v2341, 0.0
      %v2426 = vmax.f32 %v2342, 0.0
      %vm2427 = vcmask 261120
      %2428 = vst.msk [vmem:[%s264] sm:$0xff] %vm2427, %v2343
      %2429 = vst.msk [vmem:[%s264 + $0x8] sm:$0xff] %vm2427, %v2344
      %2430 = vst.msk [vmem:[%s264 + $0x10] sm:$0xff] %vm2427, %v2345
      %2431 = vst.msk [vmem:[%s264 + $0x18] sm:$0xff] %vm2427, %v2346
      %2432 = vst.msk [vmem:[%s264 + $0x20] sm:$0xff] %vm2427, %v2347
      %2433 = vst.msk [vmem:[%s264 + $0x28] sm:$0xff] %vm2427, %v2348
      %2434 = vst.msk [vmem:[%s264 + $0x30] sm:$0xff] %vm2427, %v2349
      %2435 = vst.msk [vmem:[%s264 + $0x38] sm:$0xff] %vm2427, %v2350
      %2436 = vst.msk [vmem:[%s264 + $0x40] sm:$0xff] %vm2427, %v2351
      %2437 = vst.msk [vmem:[%s264 + $0x48] sm:$0xff] %vm2427, %v2352
      %2438 = vst.msk [vmem:[%s264 + $0x50] sm:$0xff] %vm2427, %v2353
      %2439 = vst.msk [vmem:[%s264 + $0x58] sm:$0xff] %vm2427, %v2354
      %2440 = vst.msk [vmem:[%s264 + $0x60] sm:$0xff] %vm2427, %v2355
      %2441 = vst.msk [vmem:[%s264 + $0x68] sm:$0xff] %vm2427, %v2356
      %2442 = vst.msk [vmem:[%s264 + $0x70] sm:$0xff] %vm2427, %v2357
      %2443 = vst.msk [vmem:[%s264 + $0x78] sm:$0xff] %vm2427, %v2358
      %2444 = vst.msk [vmem:[%s264 + $0x80] sm:$0xff] %vm2427, %v2359
      %2445 = vst.msk [vmem:[%s264 + $0x88] sm:$0xff] %vm2427, %v2360
      %2446 = vst.msk [vmem:[%s264 + $0x90] sm:$0xff] %vm2427, %v2361
      %2447 = vst.msk [vmem:[%s264 + $0x98] sm:$0xff] %vm2427, %v2362
      %2448 = vst.msk [vmem:[%s264 + $0xa0] sm:$0xff] %vm2427, %v2363
      %2449 = vst.msk [vmem:[%s264 + $0xa8] sm:$0xff] %vm2427, %v2364
      %2450 = vst.msk [vmem:[%s264 + $0xb0] sm:$0xff] %vm2427, %v2365
      %2451 = vst.msk [vmem:[%s264 + $0xb8] sm:$0xff] %vm2427, %v2366
      %2452 = vst.msk [vmem:[%s264 + $0xc0] sm:$0xff] %vm2427, %v2367
      %2453 = vst.msk [vmem:[%s264 + $0xc8] sm:$0xff] %vm2427, %v2368
      %2454 = vst.msk [vmem:[%s264 + $0xd0] sm:$0xff] %vm2427, %v2369
      %2455 = vst.msk [vmem:[%s264 + $0xd8] sm:$0xff] %vm2427, %v2370
      %2456 = vst.msk [vmem:[%s264 + $0xe0] sm:$0xff] %vm2427, %v2371
      %2457 = vst.msk [vmem:[%s264 + $0xe8] sm:$0xff] %vm2427, %v2372
      %2458 = vst.msk [vmem:[%s264 + $0xf0] sm:$0xff] %vm2427, %v2373
      %2459 = vst.msk [vmem:[%s264 + $0xf8] sm:$0xff] %vm2427, %v2374
      %2460 = vst.msk [vmem:[%s264 + $0x100] sm:$0xff] %vm2427, %v2375
      %2461 = vst.msk [vmem:[%s264 + $0x108] sm:$0xff] %vm2427, %v2376
      %2462 = vst.msk [vmem:[%s264 + $0x110] sm:$0xff] %vm2427, %v2377
      %2463 = vst.msk [vmem:[%s264 + $0x118] sm:$0xff] %vm2427, %v2378
      %2464 = vst.msk [vmem:[%s264 + $0x120] sm:$0xff] %vm2427, %v2379
      %2465 = vst.msk [vmem:[%s264 + $0x128] sm:$0xff] %vm2427, %v2380
      %2466 = vst.msk [vmem:[%s264 + $0x130] sm:$0xff] %vm2427, %v2381
      %2467 = vst.msk [vmem:[%s264 + $0x138] sm:$0xff] %vm2427, %v2382
      %2468 = vst.msk [vmem:[%s264 + $0x140] sm:$0xff] %vm2427, %v2383
      %2469 = vst.msk [vmem:[%s264 + $0x148] sm:$0xff] %vm2427, %v2384
      %2470 = vst.msk [vmem:[%s264 + $0x150] sm:$0xff] %vm2427, %v2385
      %2471 = vst.msk [vmem:[%s264 + $0x158] sm:$0xff] %vm2427, %v2386
      %2472 = vst.msk [vmem:[%s264 + $0x160] sm:$0xff] %vm2427, %v2387
      %2473 = vst.msk [vmem:[%s264 + $0x168] sm:$0xff] %vm2427, %v2388
      %2474 = vst.msk [vmem:[%s264 + $0x170] sm:$0xff] %vm2427, %v2389
      %2475 = vst.msk [vmem:[%s264 + $0x178] sm:$0xff] %vm2427, %v2390
      %2476 = vst.msk [vmem:[%s264 + $0x180] sm:$0xff] %vm2427, %v2391
      %2477 = vst.msk [vmem:[%s264 + $0x188] sm:$0xff] %vm2427, %v2392
      %2478 = vst.msk [vmem:[%s264 + $0x190] sm:$0xff] %vm2427, %v2393
      %2479 = vst.msk [vmem:[%s264 + $0x198] sm:$0xff] %vm2427, %v2394
      %2480 = vst.msk [vmem:[%s264 + $0x1a0] sm:$0xff] %vm2427, %v2395
      %2481 = vst.msk [vmem:[%s264 + $0x1a8] sm:$0xff] %vm2427, %v2396
      %2482 = vst.msk [vmem:[%s264 + $0x1b0] sm:$0xff] %vm2427, %v2397
      %2483 = vst.msk [vmem:[%s264 + $0x1b8] sm:$0xff] %vm2427, %v2398
      %2484 = vst.msk [vmem:[%s264 + $0x1c0] sm:$0xff] %vm2427, %v2399
      %2485 = vst.msk [vmem:[%s264 + $0x1c8] sm:$0xff] %vm2427, %v2400
      %2486 = vst.msk [vmem:[%s264 + $0x1d0] sm:$0xff] %vm2427, %v2401
      %2487 = vst.msk [vmem:[%s264 + $0x1d8] sm:$0xff] %vm2427, %v2402
      %2488 = vst.msk [vmem:[%s264 + $0x1e0] sm:$0xff] %vm2427, %v2403
      %2489 = vst.msk [vmem:[%s264 + $0x1e8] sm:$0xff] %vm2427, %v2404
      %2490 = vst.msk [vmem:[%s264 + $0x1f0] sm:$0xff] %vm2427, %v2405
      %2491 = vst.msk [vmem:[%s264 + $0x1f8] sm:$0xff] %vm2427, %v2406
      %2492 = vst.msk [vmem:[%s264 + $0x200] sm:$0xff] %vm2427, %v2407
      %2493 = vst.msk [vmem:[%s264 + $0x208] sm:$0xff] %vm2427, %v2408
      %2494 = vst.msk [vmem:[%s264 + $0x210] sm:$0xff] %vm2427, %v2409
      %2495 = vst.msk [vmem:[%s264 + $0x218] sm:$0xff] %vm2427, %v2410
      %2496 = vst.msk [vmem:[%s264 + $0x220] sm:$0xff] %vm2427, %v2411
      %2497 = vst.msk [vmem:[%s264 + $0x228] sm:$0xff] %vm2427, %v2412
      %2498 = vst.msk [vmem:[%s264 + $0x230] sm:$0xff] %vm2427, %v2413
      %2499 = vst.msk [vmem:[%s264 + $0x238] sm:$0xff] %vm2427, %v2414
      %2500 = vst.msk [vmem:[%s264 + $0x240] sm:$0xff] %vm2427, %v2415
      %2501 = vst.msk [vmem:[%s264 + $0x248] sm:$0xff] %vm2427, %v2416
      %2502 = vst.msk [vmem:[%s264 + $0x250] sm:$0xff] %vm2427, %v2417
      %2503 = vst.msk [vmem:[%s264 + $0x258] sm:$0xff] %vm2427, %v2418
      %2504 = vst.msk [vmem:[%s264 + $0x260] sm:$0xff] %vm2427, %v2419
      %2505 = vst.msk [vmem:[%s264 + $0x268] sm:$0xff] %vm2427, %v2420
      %2506 = vst.msk [vmem:[%s264 + $0x270] sm:$0xff] %vm2427, %v2421
      %2507 = vst.msk [vmem:[%s264 + $0x278] sm:$0xff] %vm2427, %v2422
      %2508 = vst.msk [vmem:[%s264 + $0x280] sm:$0xff] %vm2427, %v2423
      %2509 = vst.msk [vmem:[%s264 + $0x288] sm:$0xff] %vm2427, %v2424
      %2510 = vst.msk [vmem:[%s264 + $0x290] sm:$0xff] %vm2427, %v2425
      %2511 = vst.msk [vmem:[%s264 + $0x298] sm:$0xff] %vm2427, %v2426
      %p2512 = scmp.lt.s32.totalorder %s16, 1
      %s2513 = scalar_select %p2512, %s16, 1
      %s2514 = smul.addr %s2513, 84
      %s2515 = smul.addr %s2514, 8
      %s2516 = scalar_lea.vmem %s5, %s2515
      // Predicated region
      $region41: #{model_forward.4} parent=39 // pred_check
        %p2517 = pneg %p154
      $region42: #{model_forward.4} parent=39 // pred_check_branch
        %2519 = sbr.rel (%p2517) target = $region44
      $region43: #{model_forward.4} parent=39 // pred_region
        _
      $region44: #{model_forward.4} parent=39 // pred_fallthru
        _
    $region40: #{model_forward.4} parent=5 // pred_fallthru
      _
    %p2520 = scmp.le.s32.totalorder 2, %s11
    // Predicated region
    $region45: #{model_forward.4} parent=5 // pred_check
      %p2521 = pneg %p2520
    $region46: #{model_forward.4} parent=5 // pred_check_branch
      %2523 = sbr.rel (%p2521) target = $region48
    $region47: #{model_forward.4} parent=5 // pred_region
      %s2524 = ssub.s32 %s11, 2
      // Predicated region
      $region49: #{model_forward.4} parent=47 // pred_check
        %p2525 = pneg %p160
      $region50: #{model_forward.4} parent=47 // pred_check_branch
        %2527 = sbr.rel (%p2525) target = $region52
      $region51: #{model_forward.4} parent=47 // pred_region
        %p2528 = scmp.lt.s32.totalorder %s17, 1
        %s2529 = scalar_select %p2528, %s17, 1
        %s2530 = smul.addr %s2529, 84
        %s2531 = smul.addr %s2530, 8
        %s2532 = scalar_lea.vmem %s5, %s2531
      $region52: #{model_forward.4} parent=47 // pred_fallthru
        _
    $region48: #{model_forward.4} parent=5 // pred_fallthru
      _
  $region6: #{model_forward.4} parent=0 // loop_footer
    %s15 = sadd.s32 1, %s11
  $region7: #{model_forward.4} parent=0 // loop_footer_branch
    %10 = sbr.rel target = $region3
  $region8: #{model_forward.4} parent=0 // loop_exit
    _

// kernel: model_forward.5
$region0: #{model_forward.5}
  #allocation0 [shape = 'u32[]', space=smem, size = 0x4, offset = 0x4, fixed_abs, tag = 'smem constant byte address 0x4 - core index']
  #allocation1 [shape = 'u32[72,128]{1,0:T(1,128)}', space=vmem, size = 0x9000, scoped, tag = 'internal scratch']
  %s0 = inlined_call_operand.vmem [shape: f32[2,160,384], index: 0, kind: input, shape index: {}]
  %s1 = inlined_call_operand.vmem [shape: f32[2,160,384], index: 1, kind: input, shape index: {}]
  %s2 = inlined_call_operand.vmem [shape: f32[2,160,384], index: 2, kind: input, shape index: {}]
  %s3 = inlined_call_operand.vmem [shape: f32[384,64], index: 3, kind: input, shape index: {}]
  %s4 = inlined_call_operand.vmem [shape: f32[1,64], index: 4, kind: input, shape index: {}]
  %s5 = inlined_call_operand.vmem [shape: f32[2,160,64], index: 5, kind: output, shape index: {}]
  %s6 = sld [smem:[#allocation0]]
  $region53: #{model_forward.5} parent=0
    _
  %s8 = ssub.s32 1, %s6
  %s9 = scalar_select 0, %s8, %s6
  loop: start=0, step=1, limit=4
  $region2: #{model_forward.5} parent=0 // loop_pre_header
    _
  $region3: #{model_forward.5} parent=0 // loop_header
    %s11 = sphi 0, %s15
    %p12 = scmp.ge.s32.totalorder %s11, 4
    %s21 = sphi 0, %s23
    %s24 = sphi 0, %s21
    %s25 = sphi 0, %s24
    %s41 = sphi 0, %s25
    %s47 = sphi 0, %s49
    %s50 = sphi 0, %s47
    %s51 = sphi 0, %s50
    %s67 = sphi 0, %s51
    %s73 = sphi 0, %s75
    %s76 = sphi 0, %s73
    %s77 = sphi 0, %s76
    %s93 = sphi 0, %s77
    %s97 = sphi 0, %s97
    %s99 = sphi 0, %s97
    %s100 = sphi 0, %s99
    %s114 = sphi 0, %s100
    %s118 = sphi 0, %s118
    %s120 = sphi 0, %s118
    %s121 = sphi 0, %s120
    %s135 = sphi 0, %s121
    %s141 = sphi 0, %s143
    %s144 = sphi 0, %s141
    %s145 = sphi 0, %s144
    %s161 = sphi 0, %s145
  $region4: #{model_forward.5} parent=0 // loop_header_branch
    %14 = sbr.rel (%p12) target = $region8
  $region5: #{model_forward.5} parent=0 // loop_body
    %s16 = ssub.s32 %s11, 1
    %s17 = ssub.s32 %s11, 2
    %s18 = sadd.s32 %s11, 1
    %s19 = ssub.s32 %s11, %s18
    %p20 = scmp.eq.s32.totalorder %s19, 0
    %s22 = sadd.s32 %s21, 1
    %s23 = scalar_select %p20, %s21, %s22
    %p26 = pneg %p20
    %p27 = scmp.eq.s32.totalorder %s11, 1
    %p28 = por %p26, %p27
    %p29 = scmp.ne.s32.totalorder %s21, %s24
    %p30 = scmp.eq.s32.totalorder %s11, 0
    %p31 = por %p29, %p30
    %p32 = scmp.ne.s32.totalorder %s21, %s24
    %p33 = scmp.eq.s32.totalorder %s16, 1
    %p34 = por %p32, %p33
    %p35 = scmp.ne.s32.totalorder %s24, %s25
    %p36 = scmp.eq.s32.totalorder %s16, 0
    %p37 = por %p35, %p36
    %p38 = scmp.ne.s32.totalorder %s24, %s25
    %p39 = scmp.eq.s32.totalorder %s17, 1
    %p40 = por %p38, %p39
    %p42 = scmp.ne.s32.totalorder %s25, %s41
    %p43 = scmp.eq.s32.totalorder %s17, 0
    %p44 = por %p42, %p43
    %s45 = ssub.s32 %s11, %s18
    %p46 = scmp.eq.s32.totalorder %s45, 0
    %s48 = sadd.s32 %s47, 1
    %s49 = scalar_select %p46, %s47, %s48
    %p52 = pneg %p46
    %p53 = scmp.eq.s32.totalorder %s11, 1
    %p54 = por %p52, %p53
    %p55 = scmp.ne.s32.totalorder %s47, %s50
    %p56 = scmp.eq.s32.totalorder %s11, 0
    %p57 = por %p55, %p56
    %p58 = scmp.ne.s32.totalorder %s47, %s50
    %p59 = scmp.eq.s32.totalorder %s16, 1
    %p60 = por %p58, %p59
    %p61 = scmp.ne.s32.totalorder %s50, %s51
    %p62 = scmp.eq.s32.totalorder %s16, 0
    %p63 = por %p61, %p62
    %p64 = scmp.ne.s32.totalorder %s50, %s51
    %p65 = scmp.eq.s32.totalorder %s17, 1
    %p66 = por %p64, %p65
    %p68 = scmp.ne.s32.totalorder %s51, %s67
    %p69 = scmp.eq.s32.totalorder %s17, 0
    %p70 = por %p68, %p69
    %s71 = ssub.s32 %s11, %s18
    %p72 = scmp.eq.s32.totalorder %s71, 0
    %s74 = sadd.s32 %s73, 1
    %s75 = scalar_select %p72, %s73, %s74
    %p78 = pneg %p72
    %p79 = scmp.eq.s32.totalorder %s11, 1
    %p80 = por %p78, %p79
    %p81 = scmp.ne.s32.totalorder %s73, %s76
    %p82 = scmp.eq.s32.totalorder %s11, 0
    %p83 = por %p81, %p82
    %p84 = scmp.ne.s32.totalorder %s73, %s76
    %p85 = scmp.eq.s32.totalorder %s16, 1
    %p86 = por %p84, %p85
    %p87 = scmp.ne.s32.totalorder %s76, %s77
    %p88 = scmp.eq.s32.totalorder %s16, 0
    %p89 = por %p87, %p88
    %p90 = scmp.ne.s32.totalorder %s76, %s77
    %p91 = scmp.eq.s32.totalorder %s17, 1
    %p92 = por %p90, %p91
    %p94 = scmp.ne.s32.totalorder %s77, %s93
    %p95 = scmp.eq.s32.totalorder %s17, 0
    %p96 = por %p94, %p95
    %s98 = sadd.s32 %s97, 1
    %p101 = scmp.eq.s32.totalorder %s11, 1
    %p102 = scmp.ne.s32.totalorder %s97, %s99
    %p103 = scmp.eq.s32.totalorder %s11, 0
    %p104 = por %p102, %p103
    %p105 = scmp.ne.s32.totalorder %s97, %s99
    %p106 = scmp.eq.s32.totalorder %s16, 1
    %p107 = por %p105, %p106
    %p108 = scmp.ne.s32.totalorder %s99, %s100
    %p109 = scmp.eq.s32.totalorder %s16, 0
    %p110 = por %p108, %p109
    %p111 = scmp.ne.s32.totalorder %s99, %s100
    %p112 = scmp.eq.s32.totalorder %s17, 1
    %p113 = por %p111, %p112
    %p115 = scmp.ne.s32.totalorder %s100, %s114
    %p116 = scmp.eq.s32.totalorder %s17, 0
    %p117 = por %p115, %p116
    %s119 = sadd.s32 %s118, 1
    %p122 = scmp.eq.s32.totalorder %s11, 1
    %p123 = scmp.ne.s32.totalorder %s118, %s120
    %p124 = scmp.eq.s32.totalorder %s11, 0
    %p125 = por %p123, %p124
    %p126 = scmp.ne.s32.totalorder %s118, %s120
    %p127 = scmp.eq.s32.totalorder %s16, 1
    %p128 = por %p126, %p127
    %p129 = scmp.ne.s32.totalorder %s120, %s121
    %p130 = scmp.eq.s32.totalorder %s16, 0
    %p131 = por %p129, %p130
    %p132 = scmp.ne.s32.totalorder %s120, %s121
    %p133 = scmp.eq.s32.totalorder %s17, 1
    %p134 = por %p132, %p133
    %p136 = scmp.ne.s32.totalorder %s121, %s135
    %p137 = scmp.eq.s32.totalorder %s17, 0
    %p138 = por %p136, %p137
    %s139 = ssub.s32 %s11, %s18
    %p140 = scmp.eq.s32.totalorder %s139, 0
    %s142 = sadd.s32 %s141, 1
    %s143 = scalar_select %p140, %s141, %s142
    %p146 = pneg %p140
    %p147 = scmp.eq.s32.totalorder %s11, 1
    %p148 = por %p146, %p147
    %p149 = scmp.ne.s32.totalorder %s141, %s144
    %p150 = scmp.eq.s32.totalorder %s11, 0
    %p151 = por %p149, %p150
    %p152 = scmp.ne.s32.totalorder %s141, %s144
    %p153 = scmp.eq.s32.totalorder %s16, 1
    %p154 = por %p152, %p153
    %p155 = scmp.ne.s32.totalorder %s144, %s145
    %p156 = scmp.eq.s32.totalorder %s16, 0
    %p157 = por %p155, %p156
    %p158 = scmp.ne.s32.totalorder %s144, %s145
    %p159 = scmp.eq.s32.totalorder %s17, 1
    %p160 = por %p158, %p159
    %p162 = scmp.ne.s32.totalorder %s145, %s161
    %p163 = scmp.eq.s32.totalorder %s17, 0
    %p164 = por %p162, %p163
    %p165 = scmp.le.s32.totalorder 1, %s11
    %p166 = scmp.lt.s32.totalorder %s11, 3
    %p167 = pnand %p165, %p166
    %p168 = pneg %p167
    // Predicated region
    $region9: #{model_forward.5} parent=5 // pred_check
      _
    $region10: #{model_forward.5} parent=5 // pred_check_branch
      %170 = sbr.rel (%p167) target = $region12
    $region11: #{model_forward.5} parent=5 // pred_region
      %s171 = ssub.s32 %s11, 1
      // Predicated region
      $region13: #{model_forward.5} parent=11 // pred_check
        %p172 = pneg %p110
      $region14: #{model_forward.5} parent=11 // pred_check_branch
        %174 = sbr.rel (%p172) target = $region16
      $region15: #{model_forward.5} parent=11 // pred_region
        _
      $region16: #{model_forward.5} parent=11 // pred_fallthru
        _
      // Predicated region
      $region17: #{model_forward.5} parent=11 // pred_check
        %p175 = pneg %p131
      $region18: #{model_forward.5} parent=11 // pred_check_branch
        %177 = sbr.rel (%p175) target = $region20
      $region19: #{model_forward.5} parent=11 // pred_region
        _
      $region20: #{model_forward.5} parent=11 // pred_fallthru
        _
    $region12: #{model_forward.5} parent=5 // pred_fallthru
      _
    %p178 = scmp.lt.s32.totalorder %s11, 2
    // Predicated region
    $region21: #{model_forward.5} parent=5 // pred_check
      %p179 = pneg %p178
    $region22: #{model_forward.5} parent=5 // pred_check_branch
      %181 = sbr.rel (%p179) target = $region24
    $region23: #{model_forward.5} parent=5 // pred_region
      // Predicated region
      $region25: #{model_forward.5} parent=23 // pred_check
        %p182 = pneg %p31
      $region26: #{model_forward.5} parent=23 // pred_check_branch
        %184 = sbr.rel (%p182) target = $region28
      $region27: #{model_forward.5} parent=23 // pred_region
        %p185 = scmp.lt.s32.totalorder %s11, 1
        %s186 = scalar_select %p185, %s11, 1
        %s187 = smul.addr %s186, 60
        %s188 = smul.addr %s187, 8
        %s189 = scalar_lea.vmem %s0, %s188
      $region28: #{model_forward.5} parent=23 // pred_fallthru
        _
      // Predicated region
      $region29: #{model_forward.5} parent=23 // pred_check
        %p190 = pneg %p57
      $region30: #{model_forward.5} parent=23 // pred_check_branch
        %192 = sbr.rel (%p190) target = $region32
      $region31: #{model_forward.5} parent=23 // pred_region
        %p193 = scmp.lt.s32.totalorder %s11, 1
        %s194 = scalar_select %p193, %s11, 1
        %s195 = smul.addr %s194, 60
        %s196 = smul.addr %s195, 8
        %s197 = scalar_lea.vmem %s1, %s196
      $region32: #{model_forward.5} parent=23 // pred_fallthru
        _
      // Predicated region
      $region33: #{model_forward.5} parent=23 // pred_check
        %p198 = pneg %p83
      $region34: #{model_forward.5} parent=23 // pred_check_branch
        %200 = sbr.rel (%p198) target = $region36
      $region35: #{model_forward.5} parent=23 // pred_region
        %p201 = scmp.lt.s32.totalorder %s11, 1
        %s202 = scalar_select %p201, %s11, 1
        %s203 = smul.addr %s202, 60
        %s204 = smul.addr %s203, 8
        %s205 = scalar_lea.vmem %s2, %s204
      $region36: #{model_forward.5} parent=23 // pred_fallthru
        _
    $region24: #{model_forward.5} parent=5 // pred_fallthru
      _
    %p206 = scmp.le.s32.totalorder 1, %s11
    %p207 = scmp.lt.s32.totalorder %s11, 3
    %p208 = pnand %p206, %p207
    %p209 = pneg %p208
    // Predicated region
    $region37: #{model_forward.5} parent=5 // pred_check
      _
    $region38: #{model_forward.5} parent=5 // pred_check_branch
      %211 = sbr.rel (%p208) target = $region40
    $region39: #{model_forward.5} parent=5 // pred_region
      %s212 = ssub.s32 %s11, 1
      %p213 = scmp.lt.s32.totalorder %s16, 1
      %s214 = scalar_select %p213, %s16, 1
      %s215 = smul.addr %s214, 60
      %s216 = smul.addr %s215, 8
      %s217 = scalar_lea.vmem %s0, %s216
      %p218 = pneg %p37
      %p219 = pneg %p34
      %p220 = scmp.lt.s32.totalorder %s16, 1
      %s221 = scalar_select %p220, %s16, 1
      %s222 = smul.addr %s221, 60
      %s223 = smul.addr %s222, 8
      %s224 = scalar_lea.vmem %s1, %s223
      %p225 = pneg %p63
      %p226 = pneg %p60
      %p227 = scmp.lt.s32.totalorder %s16, 1
      %s228 = scalar_select %p227, %s16, 1
      %s229 = smul.addr %s228, 60
      %s230 = smul.addr %s229, 8
      %s231 = scalar_lea.vmem %s2, %s230
      %p232 = pneg %p89
      %p233 = pneg %p86
      %p234 = pneg %p110
      %p235 = pneg %p107
      %p236 = pneg %p131
      %p237 = pneg %p128
      %p238 = pneg %p157
      %p239 = pneg %p154
      %p240 = scmp.lt.s32.totalorder %s16, 1
      %s241 = scalar_select %p240, %s16, 1
      %s242 = smul.addr %s241, 20
      %s243 = smul.addr %s242, 8
      %s244 = scalar_lea.vmem %s5, %s243
      %p245 = scmp.lt.s32.totalorder %s16, 1
      %s246 = scalar_select %p245, %s16, 1
      %s247 = smul.addr %s246, 60
      %s248 = smul.addr %s247, 8
      %s249 = scalar_lea.vmem %s0, %s248
      %p250 = scmp.lt.s32.totalorder %s16, 1
      %s251 = scalar_select %p250, %s16, 1
      %s252 = smul.addr %s251, 60
      %s253 = smul.addr %s252, 8
      %s254 = scalar_lea.vmem %s1, %s253
      %p255 = scmp.lt.s32.totalorder %s16, 1
      %s256 = scalar_select %p255, %s16, 1
      %s257 = smul.addr %s256, 60
      %s258 = smul.addr %s257, 8
      %s259 = scalar_lea.vmem %s2, %s258
      %p260 = scmp.lt.s32.totalorder %s16, 1
      %s261 = scalar_select %p260, %s16, 1
      %s262 = smul.addr %s261, 20
      %s263 = smul.addr %s262, 8
      %s264 = scalar_lea.vmem %s5, %s263
      %v265 = vld [vmem:[%s3] sm:$0xff]
      %v266 = vld [vmem:[%s3 + $0x8] sm:$0xff]
      %v267 = vld [vmem:[%s3 + $0x10] sm:$0xff]
      %v268 = vld [vmem:[%s3 + $0x18] sm:$0xff]
      %v269 = vld [vmem:[%s3 + $0x20] sm:$0xff]
      %v270 = vld [vmem:[%s3 + $0x28] sm:$0xff]
      %v271 = vld [vmem:[%s3 + $0x30] sm:$0xff]
      %v272 = vld [vmem:[%s3 + $0x38] sm:$0xff]
      %v273 = vld [vmem:[%s3 + $0x40] sm:$0xff]
      %v274 = vld [vmem:[%s3 + $0x48] sm:$0xff]
      %v275 = vld [vmem:[%s3 + $0x50] sm:$0xff]
      %v276 = vld [vmem:[%s3 + $0x58] sm:$0xff]
      %v277 = vld [vmem:[%s3 + $0x60] sm:$0xff]
      %v278 = vld [vmem:[%s3 + $0x68] sm:$0xff]
      %v279 = vld [vmem:[%s3 + $0x70] sm:$0xff]
      %v280 = vld [vmem:[%s3 + $0x78] sm:$0xff]
      %v281 = vld [vmem:[%s3 + $0x80] sm:$0xff]
      %v282 = vld [vmem:[%s3 + $0x88] sm:$0xff]
      %v283 = vld [vmem:[%s3 + $0x90] sm:$0xff]
      %v284 = vld [vmem:[%s3 + $0x98] sm:$0xff]
      %v285 = vld [vmem:[%s3 + $0xa0] sm:$0xff]
      %v286 = vld [vmem:[%s3 + $0xa8] sm:$0xff]
      %v287 = vld [vmem:[%s3 + $0xb0] sm:$0xff]
      %v288 = vld [vmem:[%s3 + $0xb8] sm:$0xff]
      %v289 = vld [vmem:[%s3 + $0xc0] sm:$0xff]
      %v290 = vld [vmem:[%s3 + $0xc8] sm:$0xff]
      %v291 = vld [vmem:[%s3 + $0xd0] sm:$0xff]
      %v292 = vld [vmem:[%s3 + $0xd8] sm:$0xff]
      %v293 = vld [vmem:[%s3 + $0xe0] sm:$0xff]
      %v294 = vld [vmem:[%s3 + $0xe8] sm:$0xff]
      %v295 = vld [vmem:[%s3 + $0xf0] sm:$0xff]
      %v296 = vld [vmem:[%s3 + $0xf8] sm:$0xff]
      %v297 = vld [vmem:[%s3 + $0x100] sm:$0xff]
      %v298 = vld [vmem:[%s3 + $0x108] sm:$0xff]
      %v299 = vld [vmem:[%s3 + $0x110] sm:$0xff]
      %v300 = vld [vmem:[%s3 + $0x118] sm:$0xff]
      %v301 = vld [vmem:[%s3 + $0x120] sm:$0xff]
      %v302 = vld [vmem:[%s3 + $0x128] sm:$0xff]
      %v303 = vld [vmem:[%s3 + $0x130] sm:$0xff]
      %v304 = vld [vmem:[%s3 + $0x138] sm:$0xff]
      %v305 = vld [vmem:[%s3 + $0x140] sm:$0xff]
      %v306 = vld [vmem:[%s3 + $0x148] sm:$0xff]
      %v307 = vld [vmem:[%s3 + $0x150] sm:$0xff]
      %v308 = vld [vmem:[%s3 + $0x158] sm:$0xff]
      %v309 = vld [vmem:[%s3 + $0x160] sm:$0xff]
      %v310 = vld [vmem:[%s3 + $0x168] sm:$0xff]
      %v311 = vld [vmem:[%s3 + $0x170] sm:$0xff]
      %v312 = vld [vmem:[%s3 + $0x178] sm:$0xff]
      %v313 = vld [vmem:[%s249] sm:$0xff]
      %v314 = vld [vmem:[%s249 + $0x8] sm:$0xff]
      %v315 = vld [vmem:[%s249 + $0x10] sm:$0xff]
      %v316 = vld [vmem:[%s249 + $0x18] sm:$0xff]
      %v317 = vld [vmem:[%s249 + $0x20] sm:$0xff]
      %v318 = vld [vmem:[%s249 + $0x28] sm:$0xff]
      %v319 = vld [vmem:[%s249 + $0x30] sm:$0xff]
      %v320 = vld [vmem:[%s249 + $0x38] sm:$0xff]
      %v321 = vld [vmem:[%s249 + $0x40] sm:$0xff]
      %v322 = vld [vmem:[%s249 + $0x48] sm:$0xff]
      %v323 = vld [vmem:[%s249 + $0x50] sm:$0xff]
      %v324 = vld [vmem:[%s249 + $0x58] sm:$0xff]
      %v325 = vld [vmem:[%s249 + $0x60] sm:$0xff]
      %v326 = vld [vmem:[%s249 + $0x68] sm:$0xff]
      %v327 = vld [vmem:[%s249 + $0x70] sm:$0xff]
      %v328 = vld [vmem:[%s249 + $0x78] sm:$0xff]
      %v329 = vld [vmem:[%s249 + $0x80] sm:$0xff]
      %v330 = vld [vmem:[%s249 + $0x88] sm:$0xff]
      %v331 = vld [vmem:[%s249 + $0x90] sm:$0xff]
      %v332 = vld [vmem:[%s249 + $0x98] sm:$0xff]
      %v333 = vld [vmem:[%s249 + $0xa0] sm:$0xff]
      %v334 = vld [vmem:[%s249 + $0xa8] sm:$0xff]
      %v335 = vld [vmem:[%s249 + $0xb0] sm:$0xff]
      %v336 = vld [vmem:[%s249 + $0xb8] sm:$0xff]
      %v337 = vld [vmem:[%s249 + $0xc0] sm:$0xff]
      %v338 = vld [vmem:[%s249 + $0xc8] sm:$0xff]
      %v339 = vld [vmem:[%s249 + $0xd0] sm:$0xff]
      %v340 = vld [vmem:[%s249 + $0xd8] sm:$0xff]
      %v341 = vld [vmem:[%s249 + $0xe0] sm:$0xff]
      %v342 = vld [vmem:[%s249 + $0xe8] sm:$0xff]
      %v343 = vld [vmem:[%s249 + $0xf0] sm:$0xff]
      %v344 = vld [vmem:[%s249 + $0xf8] sm:$0xff]
      %v345 = vld [vmem:[%s249 + $0x100] sm:$0xff]
      %v346 = vld [vmem:[%s249 + $0x108] sm:$0xff]
      %v347 = vld [vmem:[%s249 + $0x110] sm:$0xff]
      %v348 = vld [vmem:[%s249 + $0x118] sm:$0xff]
      %v349 = vld [vmem:[%s249 + $0x120] sm:$0xff]
      %v350 = vld [vmem:[%s249 + $0x128] sm:$0xff]
      %v351 = vld [vmem:[%s249 + $0x130] sm:$0xff]
      %v352 = vld [vmem:[%s249 + $0x138] sm:$0xff]
      %v353 = vld [vmem:[%s249 + $0x140] sm:$0xff]
      %v354 = vld [vmem:[%s249 + $0x148] sm:$0xff]
      %v355 = vld [vmem:[%s249 + $0x150] sm:$0xff]
      %v356 = vld [vmem:[%s249 + $0x158] sm:$0xff]
      %v357 = vld [vmem:[%s249 + $0x160] sm:$0xff]
      %v358 = vld [vmem:[%s249 + $0x168] sm:$0xff]
      %v359 = vld [vmem:[%s249 + $0x170] sm:$0xff]
      %v360 = vld [vmem:[%s249 + $0x178] sm:$0xff]
      %v361 = vld [vmem:[%s249 + $0x180] sm:$0xff]
      %v362 = vld [vmem:[%s249 + $0x188] sm:$0xff]
      %v363 = vld [vmem:[%s249 + $0x190] sm:$0xff]
      %v364 = vld [vmem:[%s249 + $0x198] sm:$0xff]
      %v365 = vld [vmem:[%s249 + $0x1a0] sm:$0xff]
      %v366 = vld [vmem:[%s249 + $0x1a8] sm:$0xff]
      %v367 = vld [vmem:[%s249 + $0x1b0] sm:$0xff]
      %v368 = vld [vmem:[%s249 + $0x1b8] sm:$0xff]
      %v369 = vld [vmem:[%s249 + $0x1c0] sm:$0xff]
      %v370 = vld [vmem:[%s249 + $0x1c8] sm:$0xff]
      %v371 = vld [vmem:[%s249 + $0x1d0] sm:$0xff]
      %v372 = vld [vmem:[%s249 + $0x1d8] sm:$0xff]
      %373 = vmatpush.msra.mxu0 %v280
      %374 = vmatpush.msra.mxu0 %v279
      %375 = vmatpush.msra.mxu0 %v278
      %376 = vmatpush.msra.mxu0 %v277
      %377 = vmatpush.msra.mxu0 %v276
      %378 = vmatpush.msra.mxu0 %v275
      %379 = vmatpush.msra.mxu0 %v274
      %380 = vmatpush.msra.mxu0 %v273
      %381 = vmatpush.msra.mxu0 %v272
      %382 = vmatpush.msra.mxu0 %v271
      %383 = vmatpush.msra.mxu0 %v270
      %384 = vmatpush.msra.mxu0 %v269
      %385 = vmatpush.msra.mxu0 %v268
      %386 = vmatpush.msra.mxu0 %v267
      %387 = vmatpush.msra.mxu0 %v266
      %388 = vmatpush.msra.mxu0 %v265
      %389 = vmatmul.f32.gmra.mxu0 %v313
      %v390 = vpop.f32.mrf.mxu0
      %v391 = vadd.f32 0.0, %v390
      %392 = vmatmul.f32.gmra.mxu0 %v316
      %v393 = vpop.f32.mrf.mxu0
      %v394 = vadd.f32 0.0, %v393
      %395 = vmatmul.f32.gmra.mxu0 %v319
      %v396 = vpop.f32.mrf.mxu0
      %v397 = vadd.f32 0.0, %v396
      %398 = vmatmul.f32.gmra.mxu0 %v322
      %v399 = vpop.f32.mrf.mxu0
      %v400 = vadd.f32 0.0, %v399
      %401 = vmatmul.f32.gmra.mxu0 %v325
      %v402 = vpop.f32.mrf.mxu0
      %v403 = vadd.f32 0.0, %v402
      %404 = vmatmul.f32.gmra.mxu0 %v328
      %v405 = vpop.f32.mrf.mxu0
      %v406 = vadd.f32 0.0, %v405
      %407 = vmatmul.f32.gmra.mxu0 %v331
      %v408 = vpop.f32.mrf.mxu0
      %v409 = vadd.f32 0.0, %v408
      %410 = vmatmul.f32.gmra.mxu0 %v334
      %v411 = vpop.f32.mrf.mxu0
      %v412 = vadd.f32 0.0, %v411
      %413 = vmatmul.f32.gmra.mxu0 %v337
      %v414 = vpop.f32.mrf.mxu0
      %v415 = vadd.f32 0.0, %v414
      %416 = vmatmul.f32.gmra.mxu0 %v340
      %v417 = vpop.f32.mrf.mxu0
      %v418 = vadd.f32 0.0, %v417
      %419 = vmatmul.f32.gmra.mxu0 %v343
      %v420 = vpop.f32.mrf.mxu0
      %v421 = vadd.f32 0.0, %v420
      %422 = vmatmul.f32.gmra.mxu0 %v346
      %v423 = vpop.f32.mrf.mxu0
      %v424 = vadd.f32 0.0, %v423
      %425 = vmatmul.f32.gmra.mxu0 %v349
      %v426 = vpop.f32.mrf.mxu0
      %v427 = vadd.f32 0.0, %v426
      %428 = vmatmul.f32.gmra.mxu0 %v352
      %v429 = vpop.f32.mrf.mxu0
      %v430 = vadd.f32 0.0, %v429
      %431 = vmatmul.f32.gmra.mxu0 %v355
      %v432 = vpop.f32.mrf.mxu0
      %v433 = vadd.f32 0.0, %v432
      %434 = vmatmul.f32.gmra.mxu0 %v358
      %v435 = vpop.f32.mrf.mxu0
      %v436 = vadd.f32 0.0, %v435
      %437 = vmatmul.f32.gmra.mxu0 %v361
      %v438 = vpop.f32.mrf.mxu0
      %v439 = vadd.f32 0.0, %v438
      %440 = vmatmul.f32.gmra.mxu0 %v364
      %v441 = vpop.f32.mrf.mxu0
      %v442 = vadd.f32 0.0, %v441
      %443 = vmatmul.f32.gmra.mxu0 %v367
      %v444 = vpop.f32.mrf.mxu0
      %v445 = vadd.f32 0.0, %v444
      %446 = vmatmul.f32.gmra.mxu0 %v370
      %v447 = vpop.f32.mrf.mxu0
      %v448 = vadd.f32 0.0, %v447
      %449 = vdwg.mxu0
      %450 = vmatpush.msra.mxu0 %v296
      %451 = vmatpush.msra.mxu0 %v295
      %452 = vmatpush.msra.mxu0 %v294
      %453 = vmatpush.msra.mxu0 %v293
      %454 = vmatpush.msra.mxu0 %v292
      %455 = vmatpush.msra.mxu0 %v291
      %456 = vmatpush.msra.mxu0 %v290
      %457 = vmatpush.msra.mxu0 %v289
      %458 = vmatpush.msra.mxu0 %v288
      %459 = vmatpush.msra.mxu0 %v287
      %460 = vmatpush.msra.mxu0 %v286
      %461 = vmatpush.msra.mxu0 %v285
      %462 = vmatpush.msra.mxu0 %v284
      %463 = vmatpush.msra.mxu0 %v283
      %464 = vmatpush.msra.mxu0 %v282
      %465 = vmatpush.msra.mxu0 %v281
      %466 = vmatmul.f32.gmra.mxu0 %v314
      %v467 = vpop.f32.mrf.mxu0
      %v468 = vadd.f32 %v391, %v467
      %469 = vmatmul.f32.gmra.mxu0 %v317
      %v470 = vpop.f32.mrf.mxu0
      %v471 = vadd.f32 %v394, %v470
      %472 = vmatmul.f32.gmra.mxu0 %v320
      %v473 = vpop.f32.mrf.mxu0
      %v474 = vadd.f32 %v397, %v473
      %475 = vmatmul.f32.gmra.mxu0 %v323
      %v476 = vpop.f32.mrf.mxu0
      %v477 = vadd.f32 %v400, %v476
      %478 = vmatmul.f32.gmra.mxu0 %v326
      %v479 = vpop.f32.mrf.mxu0
      %v480 = vadd.f32 %v403, %v479
      %481 = vmatmul.f32.gmra.mxu0 %v329
      %v482 = vpop.f32.mrf.mxu0
      %v483 = vadd.f32 %v406, %v482
      %484 = vmatmul.f32.gmra.mxu0 %v332
      %v485 = vpop.f32.mrf.mxu0
      %v486 = vadd.f32 %v409, %v485
      %487 = vmatmul.f32.gmra.mxu0 %v335
      %v488 = vpop.f32.mrf.mxu0
      %v489 = vadd.f32 %v412, %v488
      %490 = vmatmul.f32.gmra.mxu0 %v338
      %v491 = vpop.f32.mrf.mxu0
      %v492 = vadd.f32 %v415, %v491
      %493 = vmatmul.f32.gmra.mxu0 %v341
      %v494 = vpop.f32.mrf.mxu0
      %v495 = vadd.f32 %v418, %v494
      %496 = vmatmul.f32.gmra.mxu0 %v344
      %v497 = vpop.f32.mrf.mxu0
      %v498 = vadd.f32 %v421, %v497
      %499 = vmatmul.f32.gmra.mxu0 %v347
      %v500 = vpop.f32.mrf.mxu0
      %v501 = vadd.f32 %v424, %v500
      %502 = vmatmul.f32.gmra.mxu0 %v350
      %v503 = vpop.f32.mrf.mxu0
      %v504 = vadd.f32 %v427, %v503
      %505 = vmatmul.f32.gmra.mxu0 %v353
      %v506 = vpop.f32.mrf.mxu0
      %v507 = vadd.f32 %v430, %v506
      %508 = vmatmul.f32.gmra.mxu0 %v356
      %v509 = vpop.f32.mrf.mxu0
      %v510 = vadd.f32 %v433, %v509
      %511 = vmatmul.f32.gmra.mxu0 %v359
      %v512 = vpop.f32.mrf.mxu0
      %v513 = vadd.f32 %v436, %v512
      %514 = vmatmul.f32.gmra.mxu0 %v362
      %v515 = vpop.f32.mrf.mxu0
      %v516 = vadd.f32 %v439, %v515
      %517 = vmatmul.f32.gmra.mxu0 %v365
      %v518 = vpop.f32.mrf.mxu0
      %v519 = vadd.f32 %v442, %v518
      %520 = vmatmul.f32.gmra.mxu0 %v368
      %v521 = vpop.f32.mrf.mxu0
      %v522 = vadd.f32 %v445, %v521
      %523 = vmatmul.f32.gmra.mxu0 %v371
      %v524 = vpop.f32.mrf.mxu0
      %v525 = vadd.f32 %v448, %v524
      %526 = vdwg.mxu0
      %527 = vmatpush.msra.mxu0 %v312
      %528 = vmatpush.msra.mxu0 %v311
      %529 = vmatpush.msra.mxu0 %v310
      %530 = vmatpush.msra.mxu0 %v309
      %531 = vmatpush.msra.mxu0 %v308
      %532 = vmatpush.msra.mxu0 %v307
      %533 = vmatpush.msra.mxu0 %v306
      %534 = vmatpush.msra.mxu0 %v305
      %535 = vmatpush.msra.mxu0 %v304
      %536 = vmatpush.msra.mxu0 %v303
      %537 = vmatpush.msra.mxu0 %v302
      %538 = vmatpush.msra.mxu0 %v301
      %539 = vmatpush.msra.mxu0 %v300
      %540 = vmatpush.msra.mxu0 %v299
      %541 = vmatpush.msra.mxu0 %v298
      %542 = vmatpush.msra.mxu0 %v297
      %543 = vmatmul.f32.gmra.mxu0 %v315
      %v544 = vpop.f32.mrf.mxu0
      %v545 = vadd.f32 %v468, %v544
      %546 = vmatmul.f32.gmra.mxu0 %v318
      %v547 = vpop.f32.mrf.mxu0
      %v548 = vadd.f32 %v471, %v547
      %549 = vmatmul.f32.gmra.mxu0 %v321
      %v550 = vpop.f32.mrf.mxu0
      %v551 = vadd.f32 %v474, %v550
      %552 = vmatmul.f32.gmra.mxu0 %v324
      %v553 = vpop.f32.mrf.mxu0
      %v554 = vadd.f32 %v477, %v553
      %555 = vmatmul.f32.gmra.mxu0 %v327
      %v556 = vpop.f32.mrf.mxu0
      %v557 = vadd.f32 %v480, %v556
      %558 = vmatmul.f32.gmra.mxu0 %v330
      %v559 = vpop.f32.mrf.mxu0
      %v560 = vadd.f32 %v483, %v559
      %561 = vmatmul.f32.gmra.mxu0 %v333
      %v562 = vpop.f32.mrf.mxu0
      %v563 = vadd.f32 %v486, %v562
      %564 = vmatmul.f32.gmra.mxu0 %v336
      %v565 = vpop.f32.mrf.mxu0
      %v566 = vadd.f32 %v489, %v565
      %567 = vmatmul.f32.gmra.mxu0 %v339
      %v568 = vpop.f32.mrf.mxu0
      %v569 = vadd.f32 %v492, %v568
      %570 = vmatmul.f32.gmra.mxu0 %v342
      %v571 = vpop.f32.mrf.mxu0
      %v572 = vadd.f32 %v495, %v571
      %573 = vmatmul.f32.gmra.mxu0 %v345
      %v574 = vpop.f32.mrf.mxu0
      %v575 = vadd.f32 %v498, %v574
      %576 = vmatmul.f32.gmra.mxu0 %v348
      %v577 = vpop.f32.mrf.mxu0
      %v578 = vadd.f32 %v501, %v577
      %579 = vmatmul.f32.gmra.mxu0 %v351
      %v580 = vpop.f32.mrf.mxu0
      %v581 = vadd.f32 %v504, %v580
      %582 = vmatmul.f32.gmra.mxu0 %v354
      %v583 = vpop.f32.mrf.mxu0
      %v584 = vadd.f32 %v507, %v583
      %585 = vmatmul.f32.gmra.mxu0 %v357
      %v586 = vpop.f32.mrf.mxu0
      %v587 = vadd.f32 %v510, %v586
      %588 = vmatmul.f32.gmra.mxu0 %v360
      %v589 = vpop.f32.mrf.mxu0
      %v590 = vadd.f32 %v513, %v589
      %591 = vmatmul.f32.gmra.mxu0 %v363
      %v592 = vpop.f32.mrf.mxu0
      %v593 = vadd.f32 %v516, %v592
      %594 = vmatmul.f32.gmra.mxu0 %v366
      %v595 = vpop.f32.mrf.mxu0
      %v596 = vadd.f32 %v519, %v595
      %597 = vmatmul.f32.gmra.mxu0 %v369
      %v598 = vpop.f32.mrf.mxu0
      %v599 = vadd.f32 %v522, %v598
      %600 = vmatmul.f32.gmra.mxu0 %v372
      %v601 = vpop.f32.mrf.mxu0
      %v602 = vadd.f32 %v525, %v601
      %603 = vdwg.mxu0
      %v604 = vld [vmem:[%s254] sm:$0xff]
      %v605 = vld [vmem:[%s254 + $0x8] sm:$0xff]
      %v606 = vld [vmem:[%s254 + $0x10] sm:$0xff]
      %v607 = vld [vmem:[%s254 + $0x18] sm:$0xff]
      %v608 = vld [vmem:[%s254 + $0x20] sm:$0xff]
      %v609 = vld [vmem:[%s254 + $0x28] sm:$0xff]
      %v610 = vld [vmem:[%s254 + $0x30] sm:$0xff]
      %v611 = vld [vmem:[%s254 + $0x38] sm:$0xff]
      %v612 = vld [vmem:[%s254 + $0x40] sm:$0xff]
      %v613 = vld [vmem:[%s254 + $0x48] sm:$0xff]
      %v614 = vld [vmem:[%s254 + $0x50] sm:$0xff]
      %v615 = vld [vmem:[%s254 + $0x58] sm:$0xff]
      %v616 = vld [vmem:[%s254 + $0x60] sm:$0xff]
      %v617 = vld [vmem:[%s254 + $0x68] sm:$0xff]
      %v618 = vld [vmem:[%s254 + $0x70] sm:$0xff]
      %v619 = vld [vmem:[%s254 + $0x78] sm:$0xff]
      %v620 = vld [vmem:[%s254 + $0x80] sm:$0xff]
      %v621 = vld [vmem:[%s254 + $0x88] sm:$0xff]
      %v622 = vld [vmem:[%s254 + $0x90] sm:$0xff]
      %v623 = vld [vmem:[%s254 + $0x98] sm:$0xff]
      %v624 = vld [vmem:[%s254 + $0xa0] sm:$0xff]
      %v625 = vld [vmem:[%s254 + $0xa8] sm:$0xff]
      %v626 = vld [vmem:[%s254 + $0xb0] sm:$0xff]
      %v627 = vld [vmem:[%s254 + $0xb8] sm:$0xff]
      %v628 = vld [vmem:[%s254 + $0xc0] sm:$0xff]
      %v629 = vld [vmem:[%s254 + $0xc8] sm:$0xff]
      %v630 = vld [vmem:[%s254 + $0xd0] sm:$0xff]
      %v631 = vld [vmem:[%s254 + $0xd8] sm:$0xff]
      %v632 = vld [vmem:[%s254 + $0xe0] sm:$0xff]
      %v633 = vld [vmem:[%s254 + $0xe8] sm:$0xff]
      %v634 = vld [vmem:[%s254 + $0xf0] sm:$0xff]
      %v635 = vld [vmem:[%s254 + $0xf8] sm:$0xff]
      %v636 = vld [vmem:[%s254 + $0x100] sm:$0xff]
      %v637 = vld [vmem:[%s254 + $0x108] sm:$0xff]
      %v638 = vld [vmem:[%s254 + $0x110] sm:$0xff]
      %v639 = vld [vmem:[%s254 + $0x118] sm:$0xff]
      %v640 = vld [vmem:[%s254 + $0x120] sm:$0xff]
      %v641 = vld [vmem:[%s254 + $0x128] sm:$0xff]
      %v642 = vld [vmem:[%s254 + $0x130] sm:$0xff]
      %v643 = vld [vmem:[%s254 + $0x138] sm:$0xff]
      %v644 = vld [vmem:[%s254 + $0x140] sm:$0xff]
      %v645 = vld [vmem:[%s254 + $0x148] sm:$0xff]
      %v646 = vld [vmem:[%s254 + $0x150] sm:$0xff]
      %v647 = vld [vmem:[%s254 + $0x158] sm:$0xff]
      %v648 = vld [vmem:[%s254 + $0x160] sm:$0xff]
      %v649 = vld [vmem:[%s254 + $0x168] sm:$0xff]
      %v650 = vld [vmem:[%s254 + $0x170] sm:$0xff]
      %v651 = vld [vmem:[%s254 + $0x178] sm:$0xff]
      %v652 = vld [vmem:[%s254 + $0x180] sm:$0xff]
      %v653 = vld [vmem:[%s254 + $0x188] sm:$0xff]
      %v654 = vld [vmem:[%s254 + $0x190] sm:$0xff]
      %v655 = vld [vmem:[%s254 + $0x198] sm:$0xff]
      %v656 = vld [vmem:[%s254 + $0x1a0] sm:$0xff]
      %v657 = vld [vmem:[%s254 + $0x1a8] sm:$0xff]
      %v658 = vld [vmem:[%s254 + $0x1b0] sm:$0xff]
      %v659 = vld [vmem:[%s254 + $0x1b8] sm:$0xff]
      %v660 = vld [vmem:[%s254 + $0x1c0] sm:$0xff]
      %v661 = vld [vmem:[%s254 + $0x1c8] sm:$0xff]
      %v662 = vld [vmem:[%s254 + $0x1d0] sm:$0xff]
      %v663 = vld [vmem:[%s254 + $0x1d8] sm:$0xff]
      %664 = vmatpush.msra.mxu0 %v280
      %665 = vmatpush.msra.mxu0 %v279
      %666 = vmatpush.msra.mxu0 %v278
      %667 = vmatpush.msra.mxu0 %v277
      %668 = vmatpush.msra.mxu0 %v276
      %669 = vmatpush.msra.mxu0 %v275
      %670 = vmatpush.msra.mxu0 %v274
      %671 = vmatpush.msra.mxu0 %v273
      %672 = vmatpush.msra.mxu0 %v272
      %673 = vmatpush.msra.mxu0 %v271
      %674 = vmatpush.msra.mxu0 %v270
      %675 = vmatpush.msra.mxu0 %v269
      %676 = vmatpush.msra.mxu0 %v268
      %677 = vmatpush.msra.mxu0 %v267
      %678 = vmatpush.msra.mxu0 %v266
      %679 = vmatpush.msra.mxu0 %v265
      %680 = vmatmul.f32.gmra.mxu0 %v604
      %v681 = vpop.f32.mrf.mxu0
      %v682 = vadd.f32 0.0, %v681
      %683 = vmatmul.f32.gmra.mxu0 %v607
      %v684 = vpop.f32.mrf.mxu0
      %v685 = vadd.f32 0.0, %v684
      %686 = vmatmul.f32.gmra.mxu0 %v610
      %v687 = vpop.f32.mrf.mxu0
      %v688 = vadd.f32 0.0, %v687
      %689 = vmatmul.f32.gmra.mxu0 %v613
      %v690 = vpop.f32.mrf.mxu0
      %v691 = vadd.f32 0.0, %v690
      %692 = vmatmul.f32.gmra.mxu0 %v616
      %v693 = vpop.f32.mrf.mxu0
      %v694 = vadd.f32 0.0, %v693
      %695 = vmatmul.f32.gmra.mxu0 %v619
      %v696 = vpop.f32.mrf.mxu0
      %v697 = vadd.f32 0.0, %v696
      %698 = vmatmul.f32.gmra.mxu0 %v622
      %v699 = vpop.f32.mrf.mxu0
      %v700 = vadd.f32 0.0, %v699
      %701 = vmatmul.f32.gmra.mxu0 %v625
      %v702 = vpop.f32.mrf.mxu0
      %v703 = vadd.f32 0.0, %v702
      %704 = vmatmul.f32.gmra.mxu0 %v628
      %v705 = vpop.f32.mrf.mxu0
      %v706 = vadd.f32 0.0, %v705
      %707 = vmatmul.f32.gmra.mxu0 %v631
      %v708 = vpop.f32.mrf.mxu0
      %v709 = vadd.f32 0.0, %v708
      %710 = vmatmul.f32.gmra.mxu0 %v634
      %v711 = vpop.f32.mrf.mxu0
      %v712 = vadd.f32 0.0, %v711
      %713 = vmatmul.f32.gmra.mxu0 %v637
      %v714 = vpop.f32.mrf.mxu0
      %v715 = vadd.f32 0.0, %v714
      %716 = vmatmul.f32.gmra.mxu0 %v640
      %v717 = vpop.f32.mrf.mxu0
      %v718 = vadd.f32 0.0, %v717
      %719 = vmatmul.f32.gmra.mxu0 %v643
      %v720 = vpop.f32.mrf.mxu0
      %v721 = vadd.f32 0.0, %v720
      %722 = vmatmul.f32.gmra.mxu0 %v646
      %v723 = vpop.f32.mrf.mxu0
      %v724 = vadd.f32 0.0, %v723
      %725 = vmatmul.f32.gmra.mxu0 %v649
      %v726 = vpop.f32.mrf.mxu0
      %v727 = vadd.f32 0.0, %v726
      %728 = vmatmul.f32.gmra.mxu0 %v652
      %v729 = vpop.f32.mrf.mxu0
      %v730 = vadd.f32 0.0, %v729
      %731 = vmatmul.f32.gmra.mxu0 %v655
      %v732 = vpop.f32.mrf.mxu0
      %v733 = vadd.f32 0.0, %v732
      %734 = vmatmul.f32.gmra.mxu0 %v658
      %v735 = vpop.f32.mrf.mxu0
      %v736 = vadd.f32 0.0, %v735
      %737 = vmatmul.f32.gmra.mxu0 %v661
      %v738 = vpop.f32.mrf.mxu0
      %v739 = vadd.f32 0.0, %v738
      %740 = vdwg.mxu0
      %741 = vmatpush.msra.mxu0 %v296
      %742 = vmatpush.msra.mxu0 %v295
      %743 = vmatpush.msra.mxu0 %v294
      %744 = vmatpush.msra.mxu0 %v293
      %745 = vmatpush.msra.mxu0 %v292
      %746 = vmatpush.msra.mxu0 %v291
      %747 = vmatpush.msra.mxu0 %v290
      %748 = vmatpush.msra.mxu0 %v289
      %749 = vmatpush.msra.mxu0 %v288
      %750 = vmatpush.msra.mxu0 %v287
      %751 = vmatpush.msra.mxu0 %v286
      %752 = vmatpush.msra.mxu0 %v285
      %753 = vmatpush.msra.mxu0 %v284
      %754 = vmatpush.msra.mxu0 %v283
      %755 = vmatpush.msra.mxu0 %v282
      %756 = vmatpush.msra.mxu0 %v281
      %757 = vmatmul.f32.gmra.mxu0 %v605
      %v758 = vpop.f32.mrf.mxu0
      %v759 = vadd.f32 %v682, %v758
      %760 = vmatmul.f32.gmra.mxu0 %v608
      %v761 = vpop.f32.mrf.mxu0
      %v762 = vadd.f32 %v685, %v761
      %763 = vmatmul.f32.gmra.mxu0 %v611
      %v764 = vpop.f32.mrf.mxu0
      %v765 = vadd.f32 %v688, %v764
      %766 = vmatmul.f32.gmra.mxu0 %v614
      %v767 = vpop.f32.mrf.mxu0
      %v768 = vadd.f32 %v691, %v767
      %769 = vmatmul.f32.gmra.mxu0 %v617
      %v770 = vpop.f32.mrf.mxu0
      %v771 = vadd.f32 %v694, %v770
      %772 = vmatmul.f32.gmra.mxu0 %v620
      %v773 = vpop.f32.mrf.mxu0
      %v774 = vadd.f32 %v697, %v773
      %775 = vmatmul.f32.gmra.mxu0 %v623
      %v776 = vpop.f32.mrf.mxu0
      %v777 = vadd.f32 %v700, %v776
      %778 = vmatmul.f32.gmra.mxu0 %v626
      %v779 = vpop.f32.mrf.mxu0
      %v780 = vadd.f32 %v703, %v779
      %781 = vmatmul.f32.gmra.mxu0 %v629
      %v782 = vpop.f32.mrf.mxu0
      %v783 = vadd.f32 %v706, %v782
      %784 = vmatmul.f32.gmra.mxu0 %v632
      %v785 = vpop.f32.mrf.mxu0
      %v786 = vadd.f32 %v709, %v785
      %787 = vmatmul.f32.gmra.mxu0 %v635
      %v788 = vpop.f32.mrf.mxu0
      %v789 = vadd.f32 %v712, %v788
      %790 = vmatmul.f32.gmra.mxu0 %v638
      %v791 = vpop.f32.mrf.mxu0
      %v792 = vadd.f32 %v715, %v791
      %793 = vmatmul.f32.gmra.mxu0 %v641
      %v794 = vpop.f32.mrf.mxu0
      %v795 = vadd.f32 %v718, %v794
      %796 = vmatmul.f32.gmra.mxu0 %v644
      %v797 = vpop.f32.mrf.mxu0
      %v798 = vadd.f32 %v721, %v797
      %799 = vmatmul.f32.gmra.mxu0 %v647
      %v800 = vpop.f32.mrf.mxu0
      %v801 = vadd.f32 %v724, %v800
      %802 = vmatmul.f32.gmra.mxu0 %v650
      %v803 = vpop.f32.mrf.mxu0
      %v804 = vadd.f32 %v727, %v803
      %805 = vmatmul.f32.gmra.mxu0 %v653
      %v806 = vpop.f32.mrf.mxu0
      %v807 = vadd.f32 %v730, %v806
      %808 = vmatmul.f32.gmra.mxu0 %v656
      %v809 = vpop.f32.mrf.mxu0
      %v810 = vadd.f32 %v733, %v809
      %811 = vmatmul.f32.gmra.mxu0 %v659
      %v812 = vpop.f32.mrf.mxu0
      %v813 = vadd.f32 %v736, %v812
      %814 = vmatmul.f32.gmra.mxu0 %v662
      %v815 = vpop.f32.mrf.mxu0
      %v816 = vadd.f32 %v739, %v815
      %817 = vdwg.mxu0
      %818 = vmatpush.msra.mxu0 %v312
      %819 = vmatpush.msra.mxu0 %v311
      %820 = vmatpush.msra.mxu0 %v310
      %821 = vmatpush.msra.mxu0 %v309
      %822 = vmatpush.msra.mxu0 %v308
      %823 = vmatpush.msra.mxu0 %v307
      %824 = vmatpush.msra.mxu0 %v306
      %825 = vmatpush.msra.mxu0 %v305
      %826 = vmatpush.msra.mxu0 %v304
      %827 = vmatpush.msra.mxu0 %v303
      %828 = vmatpush.msra.mxu0 %v302
      %829 = vmatpush.msra.mxu0 %v301
      %830 = vmatpush.msra.mxu0 %v300
      %831 = vmatpush.msra.mxu0 %v299
      %832 = vmatpush.msra.mxu0 %v298
      %833 = vmatpush.msra.mxu0 %v297
      %834 = vmatmul.f32.gmra.mxu0 %v606
      %v835 = vpop.f32.mrf.mxu0
      %v836 = vadd.f32 %v759, %v835
      %837 = vmatmul.f32.gmra.mxu0 %v609
      %v838 = vpop.f32.mrf.mxu0
      %v839 = vadd.f32 %v762, %v838
      %840 = vmatmul.f32.gmra.mxu0 %v612
      %v841 = vpop.f32.mrf.mxu0
      %v842 = vadd.f32 %v765, %v841
      %843 = vmatmul.f32.gmra.mxu0 %v615
      %v844 = vpop.f32.mrf.mxu0
      %v845 = vadd.f32 %v768, %v844
      %846 = vmatmul.f32.gmra.mxu0 %v618
      %v847 = vpop.f32.mrf.mxu0
      %v848 = vadd.f32 %v771, %v847
      %849 = vmatmul.f32.gmra.mxu0 %v621
      %v850 = vpop.f32.mrf.mxu0
      %v851 = vadd.f32 %v774, %v850
      %852 = vmatmul.f32.gmra.mxu0 %v624
      %v853 = vpop.f32.mrf.mxu0
      %v854 = vadd.f32 %v777, %v853
      %855 = vmatmul.f32.gmra.mxu0 %v627
      %v856 = vpop.f32.mrf.mxu0
      %v857 = vadd.f32 %v780, %v856
      %858 = vmatmul.f32.gmra.mxu0 %v630
      %v859 = vpop.f32.mrf.mxu0
      %v860 = vadd.f32 %v783, %v859
      %861 = vmatmul.f32.gmra.mxu0 %v633
      %v862 = vpop.f32.mrf.mxu0
      %v863 = vadd.f32 %v786, %v862
      %864 = vmatmul.f32.gmra.mxu0 %v636
      %v865 = vpop.f32.mrf.mxu0
      %v866 = vadd.f32 %v789, %v865
      %867 = vmatmul.f32.gmra.mxu0 %v639
      %v868 = vpop.f32.mrf.mxu0
      %v869 = vadd.f32 %v792, %v868
      %870 = vmatmul.f32.gmra.mxu0 %v642
      %v871 = vpop.f32.mrf.mxu0
      %v872 = vadd.f32 %v795, %v871
      %873 = vmatmul.f32.gmra.mxu0 %v645
      %v874 = vpop.f32.mrf.mxu0
      %v875 = vadd.f32 %v798, %v874
      %876 = vmatmul.f32.gmra.mxu0 %v648
      %v877 = vpop.f32.mrf.mxu0
      %v878 = vadd.f32 %v801, %v877
      %879 = vmatmul.f32.gmra.mxu0 %v651
      %v880 = vpop.f32.mrf.mxu0
      %v881 = vadd.f32 %v804, %v880
      %882 = vmatmul.f32.gmra.mxu0 %v654
      %v883 = vpop.f32.mrf.mxu0
      %v884 = vadd.f32 %v807, %v883
      %885 = vmatmul.f32.gmra.mxu0 %v657
      %v886 = vpop.f32.mrf.mxu0
      %v887 = vadd.f32 %v810, %v886
      %888 = vmatmul.f32.gmra.mxu0 %v660
      %v889 = vpop.f32.mrf.mxu0
      %v890 = vadd.f32 %v813, %v889
      %891 = vmatmul.f32.gmra.mxu0 %v663
      %v892 = vpop.f32.mrf.mxu0
      %v893 = vadd.f32 %v816, %v892
      %894 = vdwg.mxu0
      %v895 = vld [vmem:[%s259] sm:$0xff]
      %v896 = vld [vmem:[%s259 + $0x8] sm:$0xff]
      %v897 = vld [vmem:[%s259 + $0x10] sm:$0xff]
      %v898 = vld [vmem:[%s259 + $0x18] sm:$0xff]
      %v899 = vld [vmem:[%s259 + $0x20] sm:$0xff]
      %v900 = vld [vmem:[%s259 + $0x28] sm:$0xff]
      %v901 = vld [vmem:[%s259 + $0x30] sm:$0xff]
      %v902 = vld [vmem:[%s259 + $0x38] sm:$0xff]
      %v903 = vld [vmem:[%s259 + $0x40] sm:$0xff]
      %v904 = vld [vmem:[%s259 + $0x48] sm:$0xff]
      %v905 = vld [vmem:[%s259 + $0x50] sm:$0xff]
      %v906 = vld [vmem:[%s259 + $0x58] sm:$0xff]
      %v907 = vld [vmem:[%s259 + $0x60] sm:$0xff]
      %v908 = vld [vmem:[%s259 + $0x68] sm:$0xff]
      %v909 = vld [vmem:[%s259 + $0x70] sm:$0xff]
      %v910 = vld [vmem:[%s259 + $0x78] sm:$0xff]
      %v911 = vld [vmem:[%s259 + $0x80] sm:$0xff]
      %v912 = vld [vmem:[%s259 + $0x88] sm:$0xff]
      %v913 = vld [vmem:[%s259 + $0x90] sm:$0xff]
      %v914 = vld [vmem:[%s259 + $0x98] sm:$0xff]
      %v915 = vld [vmem:[%s259 + $0xa0] sm:$0xff]
      %v916 = vld [vmem:[%s259 + $0xa8] sm:$0xff]
      %v917 = vld [vmem:[%s259 + $0xb0] sm:$0xff]
      %v918 = vld [vmem:[%s259 + $0xb8] sm:$0xff]
      %v919 = vld [vmem:[%s259 + $0xc0] sm:$0xff]
      %v920 = vld [vmem:[%s259 + $0xc8] sm:$0xff]
      %v921 = vld [vmem:[%s259 + $0xd0] sm:$0xff]
      %v922 = vld [vmem:[%s259 + $0xd8] sm:$0xff]
      %v923 = vld [vmem:[%s259 + $0xe0] sm:$0xff]
      %v924 = vld [vmem:[%s259 + $0xe8] sm:$0xff]
      %v925 = vld [vmem:[%s259 + $0xf0] sm:$0xff]
      %v926 = vld [vmem:[%s259 + $0xf8] sm:$0xff]
      %v927 = vld [vmem:[%s259 + $0x100] sm:$0xff]
      %v928 = vld [vmem:[%s259 + $0x108] sm:$0xff]
      %v929 = vld [vmem:[%s259 + $0x110] sm:$0xff]
      %v930 = vld [vmem:[%s259 + $0x118] sm:$0xff]
      %v931 = vld [vmem:[%s259 + $0x120] sm:$0xff]
      %v932 = vld [vmem:[%s259 + $0x128] sm:$0xff]
      %v933 = vld [vmem:[%s259 + $0x130] sm:$0xff]
      %v934 = vld [vmem:[%s259 + $0x138] sm:$0xff]
      %v935 = vld [vmem:[%s259 + $0x140] sm:$0xff]
      %v936 = vld [vmem:[%s259 + $0x148] sm:$0xff]
      %v937 = vld [vmem:[%s259 + $0x150] sm:$0xff]
      %v938 = vld [vmem:[%s259 + $0x158] sm:$0xff]
      %v939 = vld [vmem:[%s259 + $0x160] sm:$0xff]
      %v940 = vld [vmem:[%s259 + $0x168] sm:$0xff]
      %v941 = vld [vmem:[%s259 + $0x170] sm:$0xff]
      %v942 = vld [vmem:[%s259 + $0x178] sm:$0xff]
      %v943 = vld [vmem:[%s259 + $0x180] sm:$0xff]
      %v944 = vld [vmem:[%s259 + $0x188] sm:$0xff]
      %v945 = vld [vmem:[%s259 + $0x190] sm:$0xff]
      %v946 = vld [vmem:[%s259 + $0x198] sm:$0xff]
      %v947 = vld [vmem:[%s259 + $0x1a0] sm:$0xff]
      %v948 = vld [vmem:[%s259 + $0x1a8] sm:$0xff]
      %v949 = vld [vmem:[%s259 + $0x1b0] sm:$0xff]
      %v950 = vld [vmem:[%s259 + $0x1b8] sm:$0xff]
      %v951 = vld [vmem:[%s259 + $0x1c0] sm:$0xff]
      %v952 = vld [vmem:[%s259 + $0x1c8] sm:$0xff]
      %v953 = vld [vmem:[%s259 + $0x1d0] sm:$0xff]
      %v954 = vld [vmem:[%s259 + $0x1d8] sm:$0xff]
      %955 = vmatpush.msra.mxu0 %v280
      %956 = vmatpush.msra.mxu0 %v279
      %957 = vmatpush.msra.mxu0 %v278
      %958 = vmatpush.msra.mxu0 %v277
      %959 = vmatpush.msra.mxu0 %v276
      %960 = vmatpush.msra.mxu0 %v275
      %961 = vmatpush.msra.mxu0 %v274
      %962 = vmatpush.msra.mxu0 %v273
      %963 = vmatpush.msra.mxu0 %v272
      %964 = vmatpush.msra.mxu0 %v271
      %965 = vmatpush.msra.mxu0 %v270
      %966 = vmatpush.msra.mxu0 %v269
      %967 = vmatpush.msra.mxu0 %v268
      %968 = vmatpush.msra.mxu0 %v267
      %969 = vmatpush.msra.mxu0 %v266
      %970 = vmatpush.msra.mxu0 %v265
      %971 = vmatmul.f32.gmra.mxu0 %v895
      %v972 = vpop.f32.mrf.mxu0
      %v973 = vadd.f32 0.0, %v972
      %974 = vmatmul.f32.gmra.mxu0 %v898
      %v975 = vpop.f32.mrf.mxu0
      %v976 = vadd.f32 0.0, %v975
      %977 = vmatmul.f32.gmra.mxu0 %v901
      %v978 = vpop.f32.mrf.mxu0
      %v979 = vadd.f32 0.0, %v978
      %980 = vmatmul.f32.gmra.mxu0 %v904
      %v981 = vpop.f32.mrf.mxu0
      %v982 = vadd.f32 0.0, %v981
      %983 = vmatmul.f32.gmra.mxu0 %v907
      %v984 = vpop.f32.mrf.mxu0
      %v985 = vadd.f32 0.0, %v984
      %986 = vmatmul.f32.gmra.mxu0 %v910
      %v987 = vpop.f32.mrf.mxu0
      %v988 = vadd.f32 0.0, %v987
      %989 = vmatmul.f32.gmra.mxu0 %v913
      %v990 = vpop.f32.mrf.mxu0
      %v991 = vadd.f32 0.0, %v990
      %992 = vmatmul.f32.gmra.mxu0 %v916
      %v993 = vpop.f32.mrf.mxu0
      %v994 = vadd.f32 0.0, %v993
      %995 = vmatmul.f32.gmra.mxu0 %v919
      %v996 = vpop.f32.mrf.mxu0
      %v997 = vadd.f32 0.0, %v996
      %998 = vmatmul.f32.gmra.mxu0 %v922
      %v999 = vpop.f32.mrf.mxu0
      %v1000 = vadd.f32 0.0, %v999
      %1001 = vmatmul.f32.gmra.mxu0 %v925
      %v1002 = vpop.f32.mrf.mxu0
      %v1003 = vadd.f32 0.0, %v1002
      %1004 = vmatmul.f32.gmra.mxu0 %v928
      %v1005 = vpop.f32.mrf.mxu0
      %v1006 = vadd.f32 0.0, %v1005
      %1007 = vmatmul.f32.gmra.mxu0 %v931
      %v1008 = vpop.f32.mrf.mxu0
      %v1009 = vadd.f32 0.0, %v1008
      %1010 = vmatmul.f32.gmra.mxu0 %v934
      %v1011 = vpop.f32.mrf.mxu0
      %v1012 = vadd.f32 0.0, %v1011
      %1013 = vmatmul.f32.gmra.mxu0 %v937
      %v1014 = vpop.f32.mrf.mxu0
      %v1015 = vadd.f32 0.0, %v1014
      %1016 = vmatmul.f32.gmra.mxu0 %v940
      %v1017 = vpop.f32.mrf.mxu0
      %v1018 = vadd.f32 0.0, %v1017
      %1019 = vmatmul.f32.gmra.mxu0 %v943
      %v1020 = vpop.f32.mrf.mxu0
      %v1021 = vadd.f32 0.0, %v1020
      %1022 = vmatmul.f32.gmra.mxu0 %v946
      %v1023 = vpop.f32.mrf.mxu0
      %v1024 = vadd.f32 0.0, %v1023
      %1025 = vmatmul.f32.gmra.mxu0 %v949
      %v1026 = vpop.f32.mrf.mxu0
      %v1027 = vadd.f32 0.0, %v1026
      %1028 = vmatmul.f32.gmra.mxu0 %v952
      %v1029 = vpop.f32.mrf.mxu0
      %v1030 = vadd.f32 0.0, %v1029
      %1031 = vdwg.mxu0
      %1032 = vmatpush.msra.mxu0 %v296
      %1033 = vmatpush.msra.mxu0 %v295
      %1034 = vmatpush.msra.mxu0 %v294
      %1035 = vmatpush.msra.mxu0 %v293
      %1036 = vmatpush.msra.mxu0 %v292
      %1037 = vmatpush.msra.mxu0 %v291
      %1038 = vmatpush.msra.mxu0 %v290
      %1039 = vmatpush.msra.mxu0 %v289
      %1040 = vmatpush.msra.mxu0 %v288
      %1041 = vmatpush.msra.mxu0 %v287
      %1042 = vmatpush.msra.mxu0 %v286
      %1043 = vmatpush.msra.mxu0 %v285
      %1044 = vmatpush.msra.mxu0 %v284
      %1045 = vmatpush.msra.mxu0 %v283
      %1046 = vmatpush.msra.mxu0 %v282
      %1047 = vmatpush.msra.mxu0 %v281
      %1048 = vmatmul.f32.gmra.mxu0 %v896
      %v1049 = vpop.f32.mrf.mxu0
      %v1050 = vadd.f32 %v973, %v1049
      %1051 = vmatmul.f32.gmra.mxu0 %v899
      %v1052 = vpop.f32.mrf.mxu0
      %v1053 = vadd.f32 %v976, %v1052
      %1054 = vmatmul.f32.gmra.mxu0 %v902
      %v1055 = vpop.f32.mrf.mxu0
      %v1056 = vadd.f32 %v979, %v1055
      %1057 = vmatmul.f32.gmra.mxu0 %v905
      %v1058 = vpop.f32.mrf.mxu0
      %v1059 = vadd.f32 %v982, %v1058
      %1060 = vmatmul.f32.gmra.mxu0 %v908
      %v1061 = vpop.f32.mrf.mxu0
      %v1062 = vadd.f32 %v985, %v1061
      %1063 = vmatmul.f32.gmra.mxu0 %v911
      %v1064 = vpop.f32.mrf.mxu0
      %v1065 = vadd.f32 %v988, %v1064
      %1066 = vmatmul.f32.gmra.mxu0 %v914
      %v1067 = vpop.f32.mrf.mxu0
      %v1068 = vadd.f32 %v991, %v1067
      %1069 = vmatmul.f32.gmra.mxu0 %v917
      %v1070 = vpop.f32.mrf.mxu0
      %v1071 = vadd.f32 %v994, %v1070
      %1072 = vmatmul.f32.gmra.mxu0 %v920
      %v1073 = vpop.f32.mrf.mxu0
      %v1074 = vadd.f32 %v997, %v1073
      %1075 = vmatmul.f32.gmra.mxu0 %v923
      %v1076 = vpop.f32.mrf.mxu0
      %v1077 = vadd.f32 %v1000, %v1076
      %1078 = vmatmul.f32.gmra.mxu0 %v926
      %v1079 = vpop.f32.mrf.mxu0
      %v1080 = vadd.f32 %v1003, %v1079
      %1081 = vmatmul.f32.gmra.mxu0 %v929
      %v1082 = vpop.f32.mrf.mxu0
      %v1083 = vadd.f32 %v1006, %v1082
      %1084 = vmatmul.f32.gmra.mxu0 %v932
      %v1085 = vpop.f32.mrf.mxu0
      %v1086 = vadd.f32 %v1009, %v1085
      %1087 = vmatmul.f32.gmra.mxu0 %v935
      %v1088 = vpop.f32.mrf.mxu0
      %v1089 = vadd.f32 %v1012, %v1088
      %1090 = vmatmul.f32.gmra.mxu0 %v938
      %v1091 = vpop.f32.mrf.mxu0
      %v1092 = vadd.f32 %v1015, %v1091
      %1093 = vmatmul.f32.gmra.mxu0 %v941
      %v1094 = vpop.f32.mrf.mxu0
      %v1095 = vadd.f32 %v1018, %v1094
      %1096 = vmatmul.f32.gmra.mxu0 %v944
      %v1097 = vpop.f32.mrf.mxu0
      %v1098 = vadd.f32 %v1021, %v1097
      %1099 = vmatmul.f32.gmra.mxu0 %v947
      %v1100 = vpop.f32.mrf.mxu0
      %v1101 = vadd.f32 %v1024, %v1100
      %1102 = vmatmul.f32.gmra.mxu0 %v950
      %v1103 = vpop.f32.mrf.mxu0
      %v1104 = vadd.f32 %v1027, %v1103
      %1105 = vmatmul.f32.gmra.mxu0 %v953
      %v1106 = vpop.f32.mrf.mxu0
      %v1107 = vadd.f32 %v1030, %v1106
      %1108 = vdwg.mxu0
      %1109 = vmatpush.msra.mxu0 %v312
      %1110 = vmatpush.msra.mxu0 %v311
      %1111 = vmatpush.msra.mxu0 %v310
      %1112 = vmatpush.msra.mxu0 %v309
      %1113 = vmatpush.msra.mxu0 %v308
      %1114 = vmatpush.msra.mxu0 %v307
      %1115 = vmatpush.msra.mxu0 %v306
      %1116 = vmatpush.msra.mxu0 %v305
      %1117 = vmatpush.msra.mxu0 %v304
      %1118 = vmatpush.msra.mxu0 %v303
      %1119 = vmatpush.msra.mxu0 %v302
      %1120 = vmatpush.msra.mxu0 %v301
      %1121 = vmatpush.msra.mxu0 %v300
      %1122 = vmatpush.msra.mxu0 %v299
      %1123 = vmatpush.msra.mxu0 %v298
      %1124 = vmatpush.msra.mxu0 %v297
      %1125 = vmatmul.f32.gmra.mxu0 %v897
      %v1126 = vpop.f32.mrf.mxu0
      %v1127 = vadd.f32 %v1050, %v1126
      %1128 = vmatmul.f32.gmra.mxu0 %v900
      %v1129 = vpop.f32.mrf.mxu0
      %v1130 = vadd.f32 %v1053, %v1129
      %1131 = vmatmul.f32.gmra.mxu0 %v903
      %v1132 = vpop.f32.mrf.mxu0
      %v1133 = vadd.f32 %v1056, %v1132
      %1134 = vmatmul.f32.gmra.mxu0 %v906
      %v1135 = vpop.f32.mrf.mxu0
      %v1136 = vadd.f32 %v1059, %v1135
      %1137 = vmatmul.f32.gmra.mxu0 %v909
      %v1138 = vpop.f32.mrf.mxu0
      %v1139 = vadd.f32 %v1062, %v1138
      %1140 = vmatmul.f32.gmra.mxu0 %v912
      %v1141 = vpop.f32.mrf.mxu0
      %v1142 = vadd.f32 %v1065, %v1141
      %1143 = vmatmul.f32.gmra.mxu0 %v915
      %v1144 = vpop.f32.mrf.mxu0
      %v1145 = vadd.f32 %v1068, %v1144
      %1146 = vmatmul.f32.gmra.mxu0 %v918
      %v1147 = vpop.f32.mrf.mxu0
      %v1148 = vadd.f32 %v1071, %v1147
      %1149 = vmatmul.f32.gmra.mxu0 %v921
      %v1150 = vpop.f32.mrf.mxu0
      %v1151 = vadd.f32 %v1074, %v1150
      %1152 = vmatmul.f32.gmra.mxu0 %v924
      %v1153 = vpop.f32.mrf.mxu0
      %v1154 = vadd.f32 %v1077, %v1153
      %1155 = vmatmul.f32.gmra.mxu0 %v927
      %v1156 = vpop.f32.mrf.mxu0
      %v1157 = vadd.f32 %v1080, %v1156
      %1158 = vmatmul.f32.gmra.mxu0 %v930
      %v1159 = vpop.f32.mrf.mxu0
      %v1160 = vadd.f32 %v1083, %v1159
      %1161 = vmatmul.f32.gmra.mxu0 %v933
      %v1162 = vpop.f32.mrf.mxu0
      %v1163 = vadd.f32 %v1086, %v1162
      %1164 = vmatmul.f32.gmra.mxu0 %v936
      %v1165 = vpop.f32.mrf.mxu0
      %v1166 = vadd.f32 %v1089, %v1165
      %1167 = vmatmul.f32.gmra.mxu0 %v939
      %v1168 = vpop.f32.mrf.mxu0
      %v1169 = vadd.f32 %v1092, %v1168
      %1170 = vmatmul.f32.gmra.mxu0 %v942
      %v1171 = vpop.f32.mrf.mxu0
      %v1172 = vadd.f32 %v1095, %v1171
      %1173 = vmatmul.f32.gmra.mxu0 %v945
      %v1174 = vpop.f32.mrf.mxu0
      %v1175 = vadd.f32 %v1098, %v1174
      %1176 = vmatmul.f32.gmra.mxu0 %v948
      %v1177 = vpop.f32.mrf.mxu0
      %v1178 = vadd.f32 %v1101, %v1177
      %1179 = vmatmul.f32.gmra.mxu0 %v951
      %v1180 = vpop.f32.mrf.mxu0
      %v1181 = vadd.f32 %v1104, %v1180
      %1182 = vmatmul.f32.gmra.mxu0 %v954
      %v1183 = vpop.f32.mrf.mxu0
      %v1184 = vadd.f32 %v1107, %v1183
      %1185 = vdwg.mxu0
      %v1186 = vmax.f32 %v545, %v836
      %v1187 = vmax.f32 %v548, %v839
      %v1188 = vmax.f32 %v551, %v842
      %v1189 = vmax.f32 %v554, %v845
      %v1190 = vmax.f32 %v557, %v848
      %v1191 = vmax.f32 %v560, %v851
      %v1192 = vmax.f32 %v563, %v854
      %v1193 = vmax.f32 %v566, %v857
      %v1194 = vmax.f32 %v569, %v860
      %v1195 = vmax.f32 %v572, %v863
      %v1196 = vmax.f32 %v575, %v866
      %v1197 = vmax.f32 %v578, %v869
      %v1198 = vmax.f32 %v581, %v872
      %v1199 = vmax.f32 %v584, %v875
      %v1200 = vmax.f32 %v587, %v878
      %v1201 = vmax.f32 %v590, %v881
      %v1202 = vmax.f32 %v593, %v884
      %v1203 = vmax.f32 %v596, %v887
      %v1204 = vmax.f32 %v599, %v890
      %v1205 = vmax.f32 %v602, %v893
      %v1206 = vmax.f32 %v1186, %v1127
      %v1207 = vmax.f32 %v1187, %v1130
      %v1208 = vmax.f32 %v1188, %v1133
      %v1209 = vmax.f32 %v1189, %v1136
      %v1210 = vmax.f32 %v1190, %v1139
      %v1211 = vmax.f32 %v1191, %v1142
      %v1212 = vmax.f32 %v1192, %v1145
      %v1213 = vmax.f32 %v1193, %v1148
      %v1214 = vmax.f32 %v1194, %v1151
      %v1215 = vmax.f32 %v1195, %v1154
      %v1216 = vmax.f32 %v1196, %v1157
      %v1217 = vmax.f32 %v1197, %v1160
      %v1218 = vmax.f32 %v1198, %v1163
      %v1219 = vmax.f32 %v1199, %v1166
      %v1220 = vmax.f32 %v1200, %v1169
      %v1221 = vmax.f32 %v1201, %v1172
      %v1222 = vmax.f32 %v1202, %v1175
      %v1223 = vmax.f32 %v1203, %v1178
      %v1224 = vmax.f32 %v1204, %v1181
      %v1225 = vmax.f32 %v1205, %v1184
      %v1226 = vld [vmem:[%s4] sm:$0x1]
      %v1228 = vperm.slane %v1226, 0
      %v1230 = vadd.f32 %v1206, %v1228
      %v1231 = vadd.f32 %v1207, %v1228
      %v1232 = vadd.f32 %v1208, %v1228
      %v1233 = vadd.f32 %v1209, %v1228
      %v1234 = vadd.f32 %v1210, %v1228
      %v1235 = vadd.f32 %v1211, %v1228
      %v1236 = vadd.f32 %v1212, %v1228
      %v1237 = vadd.f32 %v1213, %v1228
      %v1238 = vadd.f32 %v1214, %v1228
      %v1239 = vadd.f32 %v1215, %v1228
      %v1240 = vadd.f32 %v1216, %v1228
      %v1241 = vadd.f32 %v1217, %v1228
      %v1242 = vadd.f32 %v1218, %v1228
      %v1243 = vadd.f32 %v1219, %v1228
      %v1244 = vadd.f32 %v1220, %v1228
      %v1245 = vadd.f32 %v1221, %v1228
      %v1246 = vadd.f32 %v1222, %v1228
      %v1247 = vadd.f32 %v1223, %v1228
      %v1248 = vadd.f32 %v1224, %v1228
      %v1249 = vadd.f32 %v1225, %v1228
      %v1250 = vmax.f32 %v1230, 0.0
      %v1251 = vmax.f32 %v1231, 0.0
      %v1252 = vmax.f32 %v1232, 0.0
      %v1253 = vmax.f32 %v1233, 0.0
      %v1254 = vmax.f32 %v1234, 0.0
      %v1255 = vmax.f32 %v1235, 0.0
      %v1256 = vmax.f32 %v1236, 0.0
      %v1257 = vmax.f32 %v1237, 0.0
      %v1258 = vmax.f32 %v1238, 0.0
      %v1259 = vmax.f32 %v1239, 0.0
      %v1260 = vmax.f32 %v1240, 0.0
      %v1261 = vmax.f32 %v1241, 0.0
      %v1262 = vmax.f32 %v1242, 0.0
      %v1263 = vmax.f32 %v1243, 0.0
      %v1264 = vmax.f32 %v1244, 0.0
      %v1265 = vmax.f32 %v1245, 0.0
      %v1266 = vmax.f32 %v1246, 0.0
      %v1267 = vmax.f32 %v1247, 0.0
      %v1268 = vmax.f32 %v1248, 0.0
      %v1269 = vmax.f32 %v1249, 0.0
      %vm1270 = vcmask 523264
      %1271 = vst.msk [vmem:[%s264] sm:$0xff] %vm1270, %v1250
      %1272 = vst.msk [vmem:[%s264 + $0x8] sm:$0xff] %vm1270, %v1251
      %1273 = vst.msk [vmem:[%s264 + $0x10] sm:$0xff] %vm1270, %v1252
      %1274 = vst.msk [vmem:[%s264 + $0x18] sm:$0xff] %vm1270, %v1253
      %1275 = vst.msk [vmem:[%s264 + $0x20] sm:$0xff] %vm1270, %v1254
      %1276 = vst.msk [vmem:[%s264 + $0x28] sm:$0xff] %vm1270, %v1255
      %1277 = vst.msk [vmem:[%s264 + $0x30] sm:$0xff] %vm1270, %v1256
      %1278 = vst.msk [vmem:[%s264 + $0x38] sm:$0xff] %vm1270, %v1257
      %1279 = vst.msk [vmem:[%s264 + $0x40] sm:$0xff] %vm1270, %v1258
      %1280 = vst.msk [vmem:[%s264 + $0x48] sm:$0xff] %vm1270, %v1259
      %1281 = vst.msk [vmem:[%s264 + $0x50] sm:$0xff] %vm1270, %v1260
      %1282 = vst.msk [vmem:[%s264 + $0x58] sm:$0xff] %vm1270, %v1261
      %1283 = vst.msk [vmem:[%s264 + $0x60] sm:$0xff] %vm1270, %v1262
      %1284 = vst.msk [vmem:[%s264 + $0x68] sm:$0xff] %vm1270, %v1263
      %1285 = vst.msk [vmem:[%s264 + $0x70] sm:$0xff] %vm1270, %v1264
      %1286 = vst.msk [vmem:[%s264 + $0x78] sm:$0xff] %vm1270, %v1265
      %1287 = vst.msk [vmem:[%s264 + $0x80] sm:$0xff] %vm1270, %v1266
      %1288 = vst.msk [vmem:[%s264 + $0x88] sm:$0xff] %vm1270, %v1267
      %1289 = vst.msk [vmem:[%s264 + $0x90] sm:$0xff] %vm1270, %v1268
      %1290 = vst.msk [vmem:[%s264 + $0x98] sm:$0xff] %vm1270, %v1269
      %p1291 = scmp.lt.s32.totalorder %s16, 1
      %s1292 = scalar_select %p1291, %s16, 1
      %s1293 = smul.addr %s1292, 20
      %s1294 = smul.addr %s1293, 8
      %s1295 = scalar_lea.vmem %s5, %s1294
      // Predicated region
      $region41: #{model_forward.5} parent=39 // pred_check
        %p1296 = pneg %p154
      $region42: #{model_forward.5} parent=39 // pred_check_branch
        %1298 = sbr.rel (%p1296) target = $region44
      $region43: #{model_forward.5} parent=39 // pred_region
        _
      $region44: #{model_forward.5} parent=39 // pred_fallthru
        _
    $region40: #{model_forward.5} parent=5 // pred_fallthru
      _
    %p1299 = scmp.le.s32.totalorder 2, %s11
    // Predicated region
    $region45: #{model_forward.5} parent=5 // pred_check
      %p1300 = pneg %p1299
    $region46: #{model_forward.5} parent=5 // pred_check_branch
      %1302 = sbr.rel (%p1300) target = $region48
    $region47: #{model_forward.5} parent=5 // pred_region
      %s1303 = ssub.s32 %s11, 2
      // Predicated region
      $region49: #{model_forward.5} parent=47 // pred_check
        %p1304 = pneg %p160
      $region50: #{model_forward.5} parent=47 // pred_check_branch
        %1306 = sbr.rel (%p1304) target = $region52
      $region51: #{model_forward.5} parent=47 // pred_region
        %p1307 = scmp.lt.s32.totalorder %s17, 1
        %s1308 = scalar_select %p1307, %s17, 1
        %s1309 = smul.addr %s1308, 20
        %s1310 = smul.addr %s1309, 8
        %s1311 = scalar_lea.vmem %s5, %s1310
      $region52: #{model_forward.5} parent=47 // pred_fallthru
        _
    $region48: #{model_forward.5} parent=5 // pred_fallthru
      _
  $region6: #{model_forward.5} parent=0 // loop_footer
    %s15 = sadd.s32 1, %s11
  $region7: #{model_forward.5} parent=0 // loop_footer_branch
    %10 = sbr.rel target = $region3
  $region8: #{model_forward.5} parent=0 // loop_exit
    _

// kernel: model_forward.6
$region0: #{model_forward.6}
  #allocation0 [shape = 'u32[]', space=smem, size = 0x4, offset = 0x4, fixed_abs, tag = 'smem constant byte address 0x4 - core index']
  #allocation1 [shape = 'u32[72,128]{1,0:T(1,128)}', space=vmem, size = 0x9000, scoped, tag = 'internal scratch']
  %s0 = inlined_call_operand.vmem [shape: f32[2,16,1152], index: 0, kind: input, shape index: {}]
  %s1 = inlined_call_operand.vmem [shape: f32[2,16,1152], index: 1, kind: input, shape index: {}]
  %s2 = inlined_call_operand.vmem [shape: f32[2,16,1152], index: 2, kind: input, shape index: {}]
  %s3 = inlined_call_operand.vmem [shape: f32[1152,32], index: 3, kind: input, shape index: {}]
  %s4 = inlined_call_operand.vmem [shape: f32[1,32], index: 4, kind: input, shape index: {}]
  %s5 = inlined_call_operand.vmem [shape: f32[2,16,32], index: 5, kind: output, shape index: {}]
  %s6 = sld [smem:[#allocation0]]
  $region53: #{model_forward.6} parent=0
    _
  %s8 = ssub.s32 1, %s6
  %s9 = scalar_select 0, %s8, %s6
  loop: start=0, step=1, limit=4
  $region2: #{model_forward.6} parent=0 // loop_pre_header
    _
  $region3: #{model_forward.6} parent=0 // loop_header
    %s11 = sphi 0, %s15
    %p12 = scmp.ge.s32.totalorder %s11, 4
    %s21 = sphi 0, %s23
    %s24 = sphi 0, %s21
    %s25 = sphi 0, %s24
    %s41 = sphi 0, %s25
    %s47 = sphi 0, %s49
    %s50 = sphi 0, %s47
    %s51 = sphi 0, %s50
    %s67 = sphi 0, %s51
    %s73 = sphi 0, %s75
    %s76 = sphi 0, %s73
    %s77 = sphi 0, %s76
    %s93 = sphi 0, %s77
    %s97 = sphi 0, %s97
    %s99 = sphi 0, %s97
    %s100 = sphi 0, %s99
    %s114 = sphi 0, %s100
    %s118 = sphi 0, %s118
    %s120 = sphi 0, %s118
    %s121 = sphi 0, %s120
    %s135 = sphi 0, %s121
    %s141 = sphi 0, %s143
    %s144 = sphi 0, %s141
    %s145 = sphi 0, %s144
    %s161 = sphi 0, %s145
  $region4: #{model_forward.6} parent=0 // loop_header_branch
    %14 = sbr.rel (%p12) target = $region8
  $region5: #{model_forward.6} parent=0 // loop_body
    %s16 = ssub.s32 %s11, 1
    %s17 = ssub.s32 %s11, 2
    %s18 = sadd.s32 %s11, 1
    %s19 = ssub.s32 %s11, %s18
    %p20 = scmp.eq.s32.totalorder %s19, 0
    %s22 = sadd.s32 %s21, 1
    %s23 = scalar_select %p20, %s21, %s22
    %p26 = pneg %p20
    %p27 = scmp.eq.s32.totalorder %s11, 1
    %p28 = por %p26, %p27
    %p29 = scmp.ne.s32.totalorder %s21, %s24
    %p30 = scmp.eq.s32.totalorder %s11, 0
    %p31 = por %p29, %p30
    %p32 = scmp.ne.s32.totalorder %s21, %s24
    %p33 = scmp.eq.s32.totalorder %s16, 1
    %p34 = por %p32, %p33
    %p35 = scmp.ne.s32.totalorder %s24, %s25
    %p36 = scmp.eq.s32.totalorder %s16, 0
    %p37 = por %p35, %p36
    %p38 = scmp.ne.s32.totalorder %s24, %s25
    %p39 = scmp.eq.s32.totalorder %s17, 1
    %p40 = por %p38, %p39
    %p42 = scmp.ne.s32.totalorder %s25, %s41
    %p43 = scmp.eq.s32.totalorder %s17, 0
    %p44 = por %p42, %p43
    %s45 = ssub.s32 %s11, %s18
    %p46 = scmp.eq.s32.totalorder %s45, 0
    %s48 = sadd.s32 %s47, 1
    %s49 = scalar_select %p46, %s47, %s48
    %p52 = pneg %p46
    %p53 = scmp.eq.s32.totalorder %s11, 1
    %p54 = por %p52, %p53
    %p55 = scmp.ne.s32.totalorder %s47, %s50
    %p56 = scmp.eq.s32.totalorder %s11, 0
    %p57 = por %p55, %p56
    %p58 = scmp.ne.s32.totalorder %s47, %s50
    %p59 = scmp.eq.s32.totalorder %s16, 1
    %p60 = por %p58, %p59
    %p61 = scmp.ne.s32.totalorder %s50, %s51
    %p62 = scmp.eq.s32.totalorder %s16, 0
    %p63 = por %p61, %p62
    %p64 = scmp.ne.s32.totalorder %s50, %s51
    %p65 = scmp.eq.s32.totalorder %s17, 1
    %p66 = por %p64, %p65
    %p68 = scmp.ne.s32.totalorder %s51, %s67
    %p69 = scmp.eq.s32.totalorder %s17, 0
    %p70 = por %p68, %p69
    %s71 = ssub.s32 %s11, %s18
    %p72 = scmp.eq.s32.totalorder %s71, 0
    %s74 = sadd.s32 %s73, 1
    %s75 = scalar_select %p72, %s73, %s74
    %p78 = pneg %p72
    %p79 = scmp.eq.s32.totalorder %s11, 1
    %p80 = por %p78, %p79
    %p81 = scmp.ne.s32.totalorder %s73, %s76
    %p82 = scmp.eq.s32.totalorder %s11, 0
    %p83 = por %p81, %p82
    %p84 = scmp.ne.s32.totalorder %s73, %s76
    %p85 = scmp.eq.s32.totalorder %s16, 1
    %p86 = por %p84, %p85
    %p87 = scmp.ne.s32.totalorder %s76, %s77
    %p88 = scmp.eq.s32.totalorder %s16, 0
    %p89 = por %p87, %p88
    %p90 = scmp.ne.s32.totalorder %s76, %s77
    %p91 = scmp.eq.s32.totalorder %s17, 1
    %p92 = por %p90, %p91
    %p94 = scmp.ne.s32.totalorder %s77, %s93
    %p95 = scmp.eq.s32.totalorder %s17, 0
    %p96 = por %p94, %p95
    %s98 = sadd.s32 %s97, 1
    %p101 = scmp.eq.s32.totalorder %s11, 1
    %p102 = scmp.ne.s32.totalorder %s97, %s99
    %p103 = scmp.eq.s32.totalorder %s11, 0
    %p104 = por %p102, %p103
    %p105 = scmp.ne.s32.totalorder %s97, %s99
    %p106 = scmp.eq.s32.totalorder %s16, 1
    %p107 = por %p105, %p106
    %p108 = scmp.ne.s32.totalorder %s99, %s100
    %p109 = scmp.eq.s32.totalorder %s16, 0
    %p110 = por %p108, %p109
    %p111 = scmp.ne.s32.totalorder %s99, %s100
    %p112 = scmp.eq.s32.totalorder %s17, 1
    %p113 = por %p111, %p112
    %p115 = scmp.ne.s32.totalorder %s100, %s114
    %p116 = scmp.eq.s32.totalorder %s17, 0
    %p117 = por %p115, %p116
    %s119 = sadd.s32 %s118, 1
    %p122 = scmp.eq.s32.totalorder %s11, 1
    %p123 = scmp.ne.s32.totalorder %s118, %s120
    %p124 = scmp.eq.s32.totalorder %s11, 0
    %p125 = por %p123, %p124
    %p126 = scmp.ne.s32.totalorder %s118, %s120
    %p127 = scmp.eq.s32.totalorder %s16, 1
    %p128 = por %p126, %p127
    %p129 = scmp.ne.s32.totalorder %s120, %s121
    %p130 = scmp.eq.s32.totalorder %s16, 0
    %p131 = por %p129, %p130
    %p132 = scmp.ne.s32.totalorder %s120, %s121
    %p133 = scmp.eq.s32.totalorder %s17, 1
    %p134 = por %p132, %p133
    %p136 = scmp.ne.s32.totalorder %s121, %s135
    %p137 = scmp.eq.s32.totalorder %s17, 0
    %p138 = por %p136, %p137
    %s139 = ssub.s32 %s11, %s18
    %p140 = scmp.eq.s32.totalorder %s139, 0
    %s142 = sadd.s32 %s141, 1
    %s143 = scalar_select %p140, %s141, %s142
    %p146 = pneg %p140
    %p147 = scmp.eq.s32.totalorder %s11, 1
    %p148 = por %p146, %p147
    %p149 = scmp.ne.s32.totalorder %s141, %s144
    %p150 = scmp.eq.s32.totalorder %s11, 0
    %p151 = por %p149, %p150
    %p152 = scmp.ne.s32.totalorder %s141, %s144
    %p153 = scmp.eq.s32.totalorder %s16, 1
    %p154 = por %p152, %p153
    %p155 = scmp.ne.s32.totalorder %s144, %s145
    %p156 = scmp.eq.s32.totalorder %s16, 0
    %p157 = por %p155, %p156
    %p158 = scmp.ne.s32.totalorder %s144, %s145
    %p159 = scmp.eq.s32.totalorder %s17, 1
    %p160 = por %p158, %p159
    %p162 = scmp.ne.s32.totalorder %s145, %s161
    %p163 = scmp.eq.s32.totalorder %s17, 0
    %p164 = por %p162, %p163
    %p165 = scmp.le.s32.totalorder 1, %s11
    %p166 = scmp.lt.s32.totalorder %s11, 3
    %p167 = pnand %p165, %p166
    %p168 = pneg %p167
    // Predicated region
    $region9: #{model_forward.6} parent=5 // pred_check
      _
    $region10: #{model_forward.6} parent=5 // pred_check_branch
      %170 = sbr.rel (%p167) target = $region12
    $region11: #{model_forward.6} parent=5 // pred_region
      %s171 = ssub.s32 %s11, 1
      // Predicated region
      $region13: #{model_forward.6} parent=11 // pred_check
        %p172 = pneg %p110
      $region14: #{model_forward.6} parent=11 // pred_check_branch
        %174 = sbr.rel (%p172) target = $region16
      $region15: #{model_forward.6} parent=11 // pred_region
        _
      $region16: #{model_forward.6} parent=11 // pred_fallthru
        _
      // Predicated region
      $region17: #{model_forward.6} parent=11 // pred_check
        %p175 = pneg %p131
      $region18: #{model_forward.6} parent=11 // pred_check_branch
        %177 = sbr.rel (%p175) target = $region20
      $region19: #{model_forward.6} parent=11 // pred_region
        _
      $region20: #{model_forward.6} parent=11 // pred_fallthru
        _
    $region12: #{model_forward.6} parent=5 // pred_fallthru
      _
    %p178 = scmp.lt.s32.totalorder %s11, 2
    // Predicated region
    $region21: #{model_forward.6} parent=5 // pred_check
      %p179 = pneg %p178
    $region22: #{model_forward.6} parent=5 // pred_check_branch
      %181 = sbr.rel (%p179) target = $region24
    $region23: #{model_forward.6} parent=5 // pred_region
      // Predicated region
      $region25: #{model_forward.6} parent=23 // pred_check
        %p182 = pneg %p31
      $region26: #{model_forward.6} parent=23 // pred_check_branch
        %184 = sbr.rel (%p182) target = $region28
      $region27: #{model_forward.6} parent=23 // pred_region
        %p185 = scmp.lt.s32.totalorder %s11, 1
        %s186 = scalar_select %p185, %s11, 1
        %s187 = smul.addr %s186, 18
        %s188 = smul.addr %s187, 8
        %s189 = scalar_lea.vmem %s0, %s188
      $region28: #{model_forward.6} parent=23 // pred_fallthru
        _
      // Predicated region
      $region29: #{model_forward.6} parent=23 // pred_check
        %p190 = pneg %p57
      $region30: #{model_forward.6} parent=23 // pred_check_branch
        %192 = sbr.rel (%p190) target = $region32
      $region31: #{model_forward.6} parent=23 // pred_region
        %p193 = scmp.lt.s32.totalorder %s11, 1
        %s194 = scalar_select %p193, %s11, 1
        %s195 = smul.addr %s194, 18
        %s196 = smul.addr %s195, 8
        %s197 = scalar_lea.vmem %s1, %s196
      $region32: #{model_forward.6} parent=23 // pred_fallthru
        _
      // Predicated region
      $region33: #{model_forward.6} parent=23 // pred_check
        %p198 = pneg %p83
      $region34: #{model_forward.6} parent=23 // pred_check_branch
        %200 = sbr.rel (%p198) target = $region36
      $region35: #{model_forward.6} parent=23 // pred_region
        %p201 = scmp.lt.s32.totalorder %s11, 1
        %s202 = scalar_select %p201, %s11, 1
        %s203 = smul.addr %s202, 18
        %s204 = smul.addr %s203, 8
        %s205 = scalar_lea.vmem %s2, %s204
      $region36: #{model_forward.6} parent=23 // pred_fallthru
        _
    $region24: #{model_forward.6} parent=5 // pred_fallthru
      _
    %p206 = scmp.le.s32.totalorder 1, %s11
    %p207 = scmp.lt.s32.totalorder %s11, 3
    %p208 = pnand %p206, %p207
    %p209 = pneg %p208
    // Predicated region
    $region37: #{model_forward.6} parent=5 // pred_check
      _
    $region38: #{model_forward.6} parent=5 // pred_check_branch
      %211 = sbr.rel (%p208) target = $region40
    $region39: #{model_forward.6} parent=5 // pred_region
      %s212 = ssub.s32 %s11, 1
      %p213 = scmp.lt.s32.totalorder %s16, 1
      %s214 = scalar_select %p213, %s16, 1
      %s215 = smul.addr %s214, 18
      %s216 = smul.addr %s215, 8
      %s217 = scalar_lea.vmem %s0, %s216
      %p218 = pneg %p37
      %p219 = pneg %p34
      %p220 = scmp.lt.s32.totalorder %s16, 1
      %s221 = scalar_select %p220, %s16, 1
      %s222 = smul.addr %s221, 18
      %s223 = smul.addr %s222, 8
      %s224 = scalar_lea.vmem %s1, %s223
      %p225 = pneg %p63
      %p226 = pneg %p60
      %p227 = scmp.lt.s32.totalorder %s16, 1
      %s228 = scalar_select %p227, %s16, 1
      %s229 = smul.addr %s228, 18
      %s230 = smul.addr %s229, 8
      %s231 = scalar_lea.vmem %s2, %s230
      %p232 = pneg %p89
      %p233 = pneg %p86
      %p234 = pneg %p110
      %p235 = pneg %p107
      %p236 = pneg %p131
      %p237 = pneg %p128
      %p238 = pneg %p157
      %p239 = pneg %p154
      %p240 = scmp.lt.s32.totalorder %s16, 1
      %s241 = scalar_select %p240, %s16, 1
      %s242 = smul.addr %s241, 2
      %s243 = smul.addr %s242, 8
      %s244 = scalar_lea.vmem %s5, %s243
      %p245 = scmp.lt.s32.totalorder %s16, 1
      %s246 = scalar_select %p245, %s16, 1
      %s247 = smul.addr %s246, 18
      %s248 = smul.addr %s247, 8
      %s249 = scalar_lea.vmem %s0, %s248
      %p250 = scmp.lt.s32.totalorder %s16, 1
      %s251 = scalar_select %p250, %s16, 1
      %s252 = smul.addr %s251, 18
      %s253 = smul.addr %s252, 8
      %s254 = scalar_lea.vmem %s1, %s253
      %p255 = scmp.lt.s32.totalorder %s16, 1
      %s256 = scalar_select %p255, %s16, 1
      %s257 = smul.addr %s256, 18
      %s258 = smul.addr %s257, 8
      %s259 = scalar_lea.vmem %s2, %s258
      %p260 = scmp.lt.s32.totalorder %s16, 1
      %s261 = scalar_select %p260, %s16, 1
      %s262 = smul.addr %s261, 2
      %s263 = smul.addr %s262, 8
      %s264 = scalar_lea.vmem %s5, %s263
      %v265 = vld [vmem:[%s3] sm:$0xff]
      %v266 = vld [vmem:[%s3 + $0x8] sm:$0xff]
      %v267 = vld [vmem:[%s3 + $0x10] sm:$0xff]
      %v268 = vld [vmem:[%s3 + $0x18] sm:$0xff]
      %v269 = vld [vmem:[%s3 + $0x20] sm:$0xff]
      %v270 = vld [vmem:[%s3 + $0x28] sm:$0xff]
      %v271 = vld [vmem:[%s3 + $0x30] sm:$0xff]
      %v272 = vld [vmem:[%s3 + $0x38] sm:$0xff]
      %v273 = vld [vmem:[%s3 + $0x40] sm:$0xff]
      %v274 = vld [vmem:[%s3 + $0x48] sm:$0xff]
      %v275 = vld [vmem:[%s3 + $0x50] sm:$0xff]
      %v276 = vld [vmem:[%s3 + $0x58] sm:$0xff]
      %v277 = vld [vmem:[%s3 + $0x60] sm:$0xff]
      %v278 = vld [vmem:[%s3 + $0x68] sm:$0xff]
      %v279 = vld [vmem:[%s3 + $0x70] sm:$0xff]
      %v280 = vld [vmem:[%s3 + $0x78] sm:$0xff]
      %v281 = vld [vmem:[%s3 + $0x80] sm:$0xff]
      %v282 = vld [vmem:[%s3 + $0x88] sm:$0xff]
      %v283 = vld [vmem:[%s3 + $0x90] sm:$0xff]
      %v284 = vld [vmem:[%s3 + $0x98] sm:$0xff]
      %v285 = vld [vmem:[%s3 + $0xa0] sm:$0xff]
      %v286 = vld [vmem:[%s3 + $0xa8] sm:$0xff]
      %v287 = vld [vmem:[%s3 + $0xb0] sm:$0xff]
      %v288 = vld [vmem:[%s3 + $0xb8] sm:$0xff]
      %v289 = vld [vmem:[%s3 + $0xc0] sm:$0xff]
      %v290 = vld [vmem:[%s3 + $0xc8] sm:$0xff]
      %v291 = vld [vmem:[%s3 + $0xd0] sm:$0xff]
      %v292 = vld [vmem:[%s3 + $0xd8] sm:$0xff]
      %v293 = vld [vmem:[%s3 + $0xe0] sm:$0xff]
      %v294 = vld [vmem:[%s3 + $0xe8] sm:$0xff]
      %v295 = vld [vmem:[%s3 + $0xf0] sm:$0xff]
      %v296 = vld [vmem:[%s3 + $0xf8] sm:$0xff]
      %v297 = vld [vmem:[%s3 + $0x100] sm:$0xff]
      %v298 = vld [vmem:[%s3 + $0x108] sm:$0xff]
      %v299 = vld [vmem:[%s3 + $0x110] sm:$0xff]
      %v300 = vld [vmem:[%s3 + $0x118] sm:$0xff]
      %v301 = vld [vmem:[%s3 + $0x120] sm:$0xff]
      %v302 = vld [vmem:[%s3 + $0x128] sm:$0xff]
      %v303 = vld [vmem:[%s3 + $0x130] sm:$0xff]
      %v304 = vld [vmem:[%s3 + $0x138] sm:$0xff]
      %v305 = vld [vmem:[%s3 + $0x140] sm:$0xff]
      %v306 = vld [vmem:[%s3 + $0x148] sm:$0xff]
      %v307 = vld [vmem:[%s3 + $0x150] sm:$0xff]
      %v308 = vld [vmem:[%s3 + $0x158] sm:$0xff]
      %v309 = vld [vmem:[%s3 + $0x160] sm:$0xff]
      %v310 = vld [vmem:[%s3 + $0x168] sm:$0xff]
      %v311 = vld [vmem:[%s3 + $0x170] sm:$0xff]
      %v312 = vld [vmem:[%s3 + $0x178] sm:$0xff]
      %v313 = vld [vmem:[%s3 + $0x180] sm:$0xff]
      %v314 = vld [vmem:[%s3 + $0x188] sm:$0xff]
      %v315 = vld [vmem:[%s3 + $0x190] sm:$0xff]
      %v316 = vld [vmem:[%s3 + $0x198] sm:$0xff]
      %v317 = vld [vmem:[%s3 + $0x1a0] sm:$0xff]
      %v318 = vld [vmem:[%s3 + $0x1a8] sm:$0xff]
      %v319 = vld [vmem:[%s3 + $0x1b0] sm:$0xff]
      %v320 = vld [vmem:[%s3 + $0x1b8] sm:$0xff]
      %v321 = vld [vmem:[%s3 + $0x1c0] sm:$0xff]
      %v322 = vld [vmem:[%s3 + $0x1c8] sm:$0xff]
      %v323 = vld [vmem:[%s3 + $0x1d0] sm:$0xff]
      %v324 = vld [vmem:[%s3 + $0x1d8] sm:$0xff]
      %v325 = vld [vmem:[%s3 + $0x1e0] sm:$0xff]
      %v326 = vld [vmem:[%s3 + $0x1e8] sm:$0xff]
      %v327 = vld [vmem:[%s3 + $0x1f0] sm:$0xff]
      %v328 = vld [vmem:[%s3 + $0x1f8] sm:$0xff]
      %v329 = vld [vmem:[%s3 + $0x200] sm:$0xff]
      %v330 = vld [vmem:[%s3 + $0x208] sm:$0xff]
      %v331 = vld [vmem:[%s3 + $0x210] sm:$0xff]
      %v332 = vld [vmem:[%s3 + $0x218] sm:$0xff]
      %v333 = vld [vmem:[%s3 + $0x220] sm:$0xff]
      %v334 = vld [vmem:[%s3 + $0x228] sm:$0xff]
      %v335 = vld [vmem:[%s3 + $0x230] sm:$0xff]
      %v336 = vld [vmem:[%s3 + $0x238] sm:$0xff]
      %v337 = vld [vmem:[%s3 + $0x240] sm:$0xff]
      %v338 = vld [vmem:[%s3 + $0x248] sm:$0xff]
      %v339 = vld [vmem:[%s3 + $0x250] sm:$0xff]
      %v340 = vld [vmem:[%s3 + $0x258] sm:$0xff]
      %v341 = vld [vmem:[%s3 + $0x260] sm:$0xff]
      %v342 = vld [vmem:[%s3 + $0x268] sm:$0xff]
      %v343 = vld [vmem:[%s3 + $0x270] sm:$0xff]
      %v344 = vld [vmem:[%s3 + $0x278] sm:$0xff]
      %v345 = vld [vmem:[%s3 + $0x280] sm:$0xff]
      %v346 = vld [vmem:[%s3 + $0x288] sm:$0xff]
      %v347 = vld [vmem:[%s3 + $0x290] sm:$0xff]
      %v348 = vld [vmem:[%s3 + $0x298] sm:$0xff]
      %v349 = vld [vmem:[%s3 + $0x2a0] sm:$0xff]
      %v350 = vld [vmem:[%s3 + $0x2a8] sm:$0xff]
      %v351 = vld [vmem:[%s3 + $0x2b0] sm:$0xff]
      %v352 = vld [vmem:[%s3 + $0x2b8] sm:$0xff]
      %v353 = vld [vmem:[%s3 + $0x2c0] sm:$0xff]
      %v354 = vld [vmem:[%s3 + $0x2c8] sm:$0xff]
      %v355 = vld [vmem:[%s3 + $0x2d0] sm:$0xff]
      %v356 = vld [vmem:[%s3 + $0x2d8] sm:$0xff]
      %v357 = vld [vmem:[%s3 + $0x2e0] sm:$0xff]
      %v358 = vld [vmem:[%s3 + $0x2e8] sm:$0xff]
      %v359 = vld [vmem:[%s3 + $0x2f0] sm:$0xff]
      %v360 = vld [vmem:[%s3 + $0x2f8] sm:$0xff]
      %v361 = vld [vmem:[%s3 + $0x300] sm:$0xff]
      %v362 = vld [vmem:[%s3 + $0x308] sm:$0xff]
      %v363 = vld [vmem:[%s3 + $0x310] sm:$0xff]
      %v364 = vld [vmem:[%s3 + $0x318] sm:$0xff]
      %v365 = vld [vmem:[%s3 + $0x320] sm:$0xff]
      %v366 = vld [vmem:[%s3 + $0x328] sm:$0xff]
      %v367 = vld [vmem:[%s3 + $0x330] sm:$0xff]
      %v368 = vld [vmem:[%s3 + $0x338] sm:$0xff]
      %v369 = vld [vmem:[%s3 + $0x340] sm:$0xff]
      %v370 = vld [vmem:[%s3 + $0x348] sm:$0xff]
      %v371 = vld [vmem:[%s3 + $0x350] sm:$0xff]
      %v372 = vld [vmem:[%s3 + $0x358] sm:$0xff]
      %v373 = vld [vmem:[%s3 + $0x360] sm:$0xff]
      %v374 = vld [vmem:[%s3 + $0x368] sm:$0xff]
      %v375 = vld [vmem:[%s3 + $0x370] sm:$0xff]
      %v376 = vld [vmem:[%s3 + $0x378] sm:$0xff]
      %v377 = vld [vmem:[%s3 + $0x380] sm:$0xff]
      %v378 = vld [vmem:[%s3 + $0x388] sm:$0xff]
      %v379 = vld [vmem:[%s3 + $0x390] sm:$0xff]
      %v380 = vld [vmem:[%s3 + $0x398] sm:$0xff]
      %v381 = vld [vmem:[%s3 + $0x3a0] sm:$0xff]
      %v382 = vld [vmem:[%s3 + $0x3a8] sm:$0xff]
      %v383 = vld [vmem:[%s3 + $0x3b0] sm:$0xff]
      %v384 = vld [vmem:[%s3 + $0x3b8] sm:$0xff]
      %v385 = vld [vmem:[%s3 + $0x3c0] sm:$0xff]
      %v386 = vld [vmem:[%s3 + $0x3c8] sm:$0xff]
      %v387 = vld [vmem:[%s3 + $0x3d0] sm:$0xff]
      %v388 = vld [vmem:[%s3 + $0x3d8] sm:$0xff]
      %v389 = vld [vmem:[%s3 + $0x3e0] sm:$0xff]
      %v390 = vld [vmem:[%s3 + $0x3e8] sm:$0xff]
      %v391 = vld [vmem:[%s3 + $0x3f0] sm:$0xff]
      %v392 = vld [vmem:[%s3 + $0x3f8] sm:$0xff]
      %v393 = vld [vmem:[%s3 + $0x400] sm:$0xff]
      %v394 = vld [vmem:[%s3 + $0x408] sm:$0xff]
      %v395 = vld [vmem:[%s3 + $0x410] sm:$0xff]
      %v396 = vld [vmem:[%s3 + $0x418] sm:$0xff]
      %v397 = vld [vmem:[%s3 + $0x420] sm:$0xff]
      %v398 = vld [vmem:[%s3 + $0x428] sm:$0xff]
      %v399 = vld [vmem:[%s3 + $0x430] sm:$0xff]
      %v400 = vld [vmem:[%s3 + $0x438] sm:$0xff]
      %v401 = vld [vmem:[%s3 + $0x440] sm:$0xff]
      %v402 = vld [vmem:[%s3 + $0x448] sm:$0xff]
      %v403 = vld [vmem:[%s3 + $0x450] sm:$0xff]
      %v404 = vld [vmem:[%s3 + $0x458] sm:$0xff]
      %v405 = vld [vmem:[%s3 + $0x460] sm:$0xff]
      %v406 = vld [vmem:[%s3 + $0x468] sm:$0xff]
      %v407 = vld [vmem:[%s3 + $0x470] sm:$0xff]
      %v408 = vld [vmem:[%s3 + $0x478] sm:$0xff]
      %v409 = vld [vmem:[%s249] sm:$0xff]
      %v410 = vld [vmem:[%s249 + $0x8] sm:$0xff]
      %v411 = vld [vmem:[%s249 + $0x10] sm:$0xff]
      %v412 = vld [vmem:[%s249 + $0x18] sm:$0xff]
      %v413 = vld [vmem:[%s249 + $0x20] sm:$0xff]
      %v414 = vld [vmem:[%s249 + $0x28] sm:$0xff]
      %v415 = vld [vmem:[%s249 + $0x30] sm:$0xff]
      %v416 = vld [vmem:[%s249 + $0x38] sm:$0xff]
      %v417 = vld [vmem:[%s249 + $0x40] sm:$0xff]
      %v418 = vld [vmem:[%s249 + $0x48] sm:$0xff]
      %v419 = vld [vmem:[%s249 + $0x50] sm:$0xff]
      %v420 = vld [vmem:[%s249 + $0x58] sm:$0xff]
      %v421 = vld [vmem:[%s249 + $0x60] sm:$0xff]
      %v422 = vld [vmem:[%s249 + $0x68] sm:$0xff]
      %v423 = vld [vmem:[%s249 + $0x70] sm:$0xff]
      %v424 = vld [vmem:[%s249 + $0x78] sm:$0xff]
      %v425 = vld [vmem:[%s249 + $0x80] sm:$0xff]
      %v426 = vld [vmem:[%s249 + $0x88] sm:$0xff]
      %427 = vmatpush.msra.mxu0 %v280
      %428 = vmatpush.msra.mxu0 %v279
      %429 = vmatpush.msra.mxu0 %v278
      %430 = vmatpush.msra.mxu0 %v277
      %431 = vmatpush.msra.mxu0 %v276
      %432 = vmatpush.msra.mxu0 %v275
      %433 = vmatpush.msra.mxu0 %v274
      %434 = vmatpush.msra.mxu0 %v273
      %435 = vmatpush.msra.mxu0 %v272
      %436 = vmatpush.msra.mxu0 %v271
      %437 = vmatpush.msra.mxu0 %v270
      %438 = vmatpush.msra.mxu0 %v269
      %439 = vmatpush.msra.mxu0 %v268
      %440 = vmatpush.msra.mxu0 %v267
      %441 = vmatpush.msra.mxu0 %v266
      %442 = vmatpush.msra.mxu0 %v265
      %443 = vmatmul.f32.gmra.mxu0 %v409
      %v444 = vpop.f32.mrf.mxu0
      %v445 = vadd.f32 0.0, %v444
      %446 = vmatmul.f32.gmra.mxu0 %v418
      %v447 = vpop.f32.mrf.mxu0
      %v448 = vadd.f32 0.0, %v447
      %449 = vdwg.mxu0
      %450 = vmatpush.msra.mxu0 %v296
      %451 = vmatpush.msra.mxu0 %v295
      %452 = vmatpush.msra.mxu0 %v294
      %453 = vmatpush.msra.mxu0 %v293
      %454 = vmatpush.msra.mxu0 %v292
      %455 = vmatpush.msra.mxu0 %v291
      %456 = vmatpush.msra.mxu0 %v290
      %457 = vmatpush.msra.mxu0 %v289
      %458 = vmatpush.msra.mxu0 %v288
      %459 = vmatpush.msra.mxu0 %v287
      %460 = vmatpush.msra.mxu0 %v286
      %461 = vmatpush.msra.mxu0 %v285
      %462 = vmatpush.msra.mxu0 %v284
      %463 = vmatpush.msra.mxu0 %v283
      %464 = vmatpush.msra.mxu0 %v282
      %465 = vmatpush.msra.mxu0 %v281
      %466 = vmatmul.f32.gmra.mxu0 %v410
      %v467 = vpop.f32.mrf.mxu0
      %v468 = vadd.f32 %v445, %v467
      %469 = vmatmul.f32.gmra.mxu0 %v419
      %v470 = vpop.f32.mrf.mxu0
      %v471 = vadd.f32 %v448, %v470
      %472 = vdwg.mxu0
      %473 = vmatpush.msra.mxu0 %v312
      %474 = vmatpush.msra.mxu0 %v311
      %475 = vmatpush.msra.mxu0 %v310
      %476 = vmatpush.msra.mxu0 %v309
      %477 = vmatpush.msra.mxu0 %v308
      %478 = vmatpush.msra.mxu0 %v307
      %479 = vmatpush.msra.mxu0 %v306
      %480 = vmatpush.msra.mxu0 %v305
      %481 = vmatpush.msra.mxu0 %v304
      %482 = vmatpush.msra.mxu0 %v303
      %483 = vmatpush.msra.mxu0 %v302
      %484 = vmatpush.msra.mxu0 %v301
      %485 = vmatpush.msra.mxu0 %v300
      %486 = vmatpush.msra.mxu0 %v299
      %487 = vmatpush.msra.mxu0 %v298
      %488 = vmatpush.msra.mxu0 %v297
      %489 = vmatmul.f32.gmra.mxu0 %v411
      %v490 = vpop.f32.mrf.mxu0
      %v491 = vadd.f32 %v468, %v490
      %492 = vmatmul.f32.gmra.mxu0 %v420
      %v493 = vpop.f32.mrf.mxu0
      %v494 = vadd.f32 %v471, %v493
      %495 = vdwg.mxu0
      %496 = vmatpush.msra.mxu0 %v328
      %497 = vmatpush.msra.mxu0 %v327
      %498 = vmatpush.msra.mxu0 %v326
      %499 = vmatpush.msra.mxu0 %v325
      %500 = vmatpush.msra.mxu0 %v324
      %501 = vmatpush.msra.mxu0 %v323
      %502 = vmatpush.msra.mxu0 %v322
      %503 = vmatpush.msra.mxu0 %v321
      %504 = vmatpush.msra.mxu0 %v320
      %505 = vmatpush.msra.mxu0 %v319
      %506 = vmatpush.msra.mxu0 %v318
      %507 = vmatpush.msra.mxu0 %v317
      %508 = vmatpush.msra.mxu0 %v316
      %509 = vmatpush.msra.mxu0 %v315
      %510 = vmatpush.msra.mxu0 %v314
      %511 = vmatpush.msra.mxu0 %v313
      %512 = vmatmul.f32.gmra.mxu0 %v412
      %v513 = vpop.f32.mrf.mxu0
      %v514 = vadd.f32 %v491, %v513
      %515 = vmatmul.f32.gmra.mxu0 %v421
      %v516 = vpop.f32.mrf.mxu0
      %v517 = vadd.f32 %v494, %v516
      %518 = vdwg.mxu0
      %519 = vmatpush.msra.mxu0 %v344
      %520 = vmatpush.msra.mxu0 %v343
      %521 = vmatpush.msra.mxu0 %v342
      %522 = vmatpush.msra.mxu0 %v341
      %523 = vmatpush.msra.mxu0 %v340
      %524 = vmatpush.msra.mxu0 %v339
      %525 = vmatpush.msra.mxu0 %v338
      %526 = vmatpush.msra.mxu0 %v337
      %527 = vmatpush.msra.mxu0 %v336
      %528 = vmatpush.msra.mxu0 %v335
      %529 = vmatpush.msra.mxu0 %v334
      %530 = vmatpush.msra.mxu0 %v333
      %531 = vmatpush.msra.mxu0 %v332
      %532 = vmatpush.msra.mxu0 %v331
      %533 = vmatpush.msra.mxu0 %v330
      %534 = vmatpush.msra.mxu0 %v329
      %535 = vmatmul.f32.gmra.mxu0 %v413
      %v536 = vpop.f32.mrf.mxu0
      %v537 = vadd.f32 %v514, %v536
      %538 = vmatmul.f32.gmra.mxu0 %v422
      %v539 = vpop.f32.mrf.mxu0
      %v540 = vadd.f32 %v517, %v539
      %541 = vdwg.mxu0
      %542 = vmatpush.msra.mxu0 %v360
      %543 = vmatpush.msra.mxu0 %v359
      %544 = vmatpush.msra.mxu0 %v358
      %545 = vmatpush.msra.mxu0 %v357
      %546 = vmatpush.msra.mxu0 %v356
      %547 = vmatpush.msra.mxu0 %v355
      %548 = vmatpush.msra.mxu0 %v354
      %549 = vmatpush.msra.mxu0 %v353
      %550 = vmatpush.msra.mxu0 %v352
      %551 = vmatpush.msra.mxu0 %v351
      %552 = vmatpush.msra.mxu0 %v350
      %553 = vmatpush.msra.mxu0 %v349
      %554 = vmatpush.msra.mxu0 %v348
      %555 = vmatpush.msra.mxu0 %v347
      %556 = vmatpush.msra.mxu0 %v346
      %557 = vmatpush.msra.mxu0 %v345
      %558 = vmatmul.f32.gmra.mxu0 %v414
      %v559 = vpop.f32.mrf.mxu0
      %v560 = vadd.f32 %v537, %v559
      %561 = vmatmul.f32.gmra.mxu0 %v423
      %v562 = vpop.f32.mrf.mxu0
      %v563 = vadd.f32 %v540, %v562
      %564 = vdwg.mxu0
      %565 = vmatpush.msra.mxu0 %v376
      %566 = vmatpush.msra.mxu0 %v375
      %567 = vmatpush.msra.mxu0 %v374
      %568 = vmatpush.msra.mxu0 %v373
      %569 = vmatpush.msra.mxu0 %v372
      %570 = vmatpush.msra.mxu0 %v371
      %571 = vmatpush.msra.mxu0 %v370
      %572 = vmatpush.msra.mxu0 %v369
      %573 = vmatpush.msra.mxu0 %v368
      %574 = vmatpush.msra.mxu0 %v367
      %575 = vmatpush.msra.mxu0 %v366
      %576 = vmatpush.msra.mxu0 %v365
      %577 = vmatpush.msra.mxu0 %v364
      %578 = vmatpush.msra.mxu0 %v363
      %579 = vmatpush.msra.mxu0 %v362
      %580 = vmatpush.msra.mxu0 %v361
      %581 = vmatmul.f32.gmra.mxu0 %v415
      %v582 = vpop.f32.mrf.mxu0
      %v583 = vadd.f32 %v560, %v582
      %584 = vmatmul.f32.gmra.mxu0 %v424
      %v585 = vpop.f32.mrf.mxu0
      %v586 = vadd.f32 %v563, %v585
      %587 = vdwg.mxu0
      %588 = vmatpush.msra.mxu0 %v392
      %589 = vmatpush.msra.mxu0 %v391
      %590 = vmatpush.msra.mxu0 %v390
      %591 = vmatpush.msra.mxu0 %v389
      %592 = vmatpush.msra.mxu0 %v388
      %593 = vmatpush.msra.mxu0 %v387
      %594 = vmatpush.msra.mxu0 %v386
      %595 = vmatpush.msra.mxu0 %v385
      %596 = vmatpush.msra.mxu0 %v384
      %597 = vmatpush.msra.mxu0 %v383
      %598 = vmatpush.msra.mxu0 %v382
      %599 = vmatpush.msra.mxu0 %v381
      %600 = vmatpush.msra.mxu0 %v380
      %601 = vmatpush.msra.mxu0 %v379
      %602 = vmatpush.msra.mxu0 %v378
      %603 = vmatpush.msra.mxu0 %v377
      %604 = vmatmul.f32.gmra.mxu0 %v416
      %v605 = vpop.f32.mrf.mxu0
      %v606 = vadd.f32 %v583, %v605
      %607 = vmatmul.f32.gmra.mxu0 %v425
      %v608 = vpop.f32.mrf.mxu0
      %v609 = vadd.f32 %v586, %v608
      %610 = vdwg.mxu0
      %611 = vmatpush.msra.mxu0 %v408
      %612 = vmatpush.msra.mxu0 %v407
      %613 = vmatpush.msra.mxu0 %v406
      %614 = vmatpush.msra.mxu0 %v405
      %615 = vmatpush.msra.mxu0 %v404
      %616 = vmatpush.msra.mxu0 %v403
      %617 = vmatpush.msra.mxu0 %v402
      %618 = vmatpush.msra.mxu0 %v401
      %619 = vmatpush.msra.mxu0 %v400
      %620 = vmatpush.msra.mxu0 %v399
      %621 = vmatpush.msra.mxu0 %v398
      %622 = vmatpush.msra.mxu0 %v397
      %623 = vmatpush.msra.mxu0 %v396
      %624 = vmatpush.msra.mxu0 %v395
      %625 = vmatpush.msra.mxu0 %v394
      %626 = vmatpush.msra.mxu0 %v393
      %627 = vmatmul.f32.gmra.mxu0 %v417
      %v628 = vpop.f32.mrf.mxu0
      %v629 = vadd.f32 %v606, %v628
      %630 = vmatmul.f32.gmra.mxu0 %v426
      %v631 = vpop.f32.mrf.mxu0
      %v632 = vadd.f32 %v609, %v631
      %633 = vdwg.mxu0
      %v634 = vld [vmem:[%s254] sm:$0xff]
      %v635 = vld [vmem:[%s254 + $0x8] sm:$0xff]
      %v636 = vld [vmem:[%s254 + $0x10] sm:$0xff]
      %v637 = vld [vmem:[%s254 + $0x18] sm:$0xff]
      %v638 = vld [vmem:[%s254 + $0x20] sm:$0xff]
      %v639 = vld [vmem:[%s254 + $0x28] sm:$0xff]
      %v640 = vld [vmem:[%s254 + $0x30] sm:$0xff]
      %v641 = vld [vmem:[%s254 + $0x38] sm:$0xff]
      %v642 = vld [vmem:[%s254 + $0x40] sm:$0xff]
      %v643 = vld [vmem:[%s254 + $0x48] sm:$0xff]
      %v644 = vld [vmem:[%s254 + $0x50] sm:$0xff]
      %v645 = vld [vmem:[%s254 + $0x58] sm:$0xff]
      %v646 = vld [vmem:[%s254 + $0x60] sm:$0xff]
      %v647 = vld [vmem:[%s254 + $0x68] sm:$0xff]
      %v648 = vld [vmem:[%s254 + $0x70] sm:$0xff]
      %v649 = vld [vmem:[%s254 + $0x78] sm:$0xff]
      %v650 = vld [vmem:[%s254 + $0x80] sm:$0xff]
      %v651 = vld [vmem:[%s254 + $0x88] sm:$0xff]
      %652 = vmatpush.msra.mxu0 %v280
      %653 = vmatpush.msra.mxu0 %v279
      %654 = vmatpush.msra.mxu0 %v278
      %655 = vmatpush.msra.mxu0 %v277
      %656 = vmatpush.msra.mxu0 %v276
      %657 = vmatpush.msra.mxu0 %v275
      %658 = vmatpush.msra.mxu0 %v274
      %659 = vmatpush.msra.mxu0 %v273
      %660 = vmatpush.msra.mxu0 %v272
      %661 = vmatpush.msra.mxu0 %v271
      %662 = vmatpush.msra.mxu0 %v270
      %663 = vmatpush.msra.mxu0 %v269
      %664 = vmatpush.msra.mxu0 %v268
      %665 = vmatpush.msra.mxu0 %v267
      %666 = vmatpush.msra.mxu0 %v266
      %667 = vmatpush.msra.mxu0 %v265
      %668 = vmatmul.f32.gmra.mxu0 %v634
      %v669 = vpop.f32.mrf.mxu0
      %v670 = vadd.f32 0.0, %v669
      %671 = vmatmul.f32.gmra.mxu0 %v643
      %v672 = vpop.f32.mrf.mxu0
      %v673 = vadd.f32 0.0, %v672
      %674 = vdwg.mxu0
      %675 = vmatpush.msra.mxu0 %v296
      %676 = vmatpush.msra.mxu0 %v295
      %677 = vmatpush.msra.mxu0 %v294
      %678 = vmatpush.msra.mxu0 %v293
      %679 = vmatpush.msra.mxu0 %v292
      %680 = vmatpush.msra.mxu0 %v291
      %681 = vmatpush.msra.mxu0 %v290
      %682 = vmatpush.msra.mxu0 %v289
      %683 = vmatpush.msra.mxu0 %v288
      %684 = vmatpush.msra.mxu0 %v287
      %685 = vmatpush.msra.mxu0 %v286
      %686 = vmatpush.msra.mxu0 %v285
      %687 = vmatpush.msra.mxu0 %v284
      %688 = vmatpush.msra.mxu0 %v283
      %689 = vmatpush.msra.mxu0 %v282
      %690 = vmatpush.msra.mxu0 %v281
      %691 = vmatmul.f32.gmra.mxu0 %v635
      %v692 = vpop.f32.mrf.mxu0
      %v693 = vadd.f32 %v670, %v692
      %694 = vmatmul.f32.gmra.mxu0 %v644
      %v695 = vpop.f32.mrf.mxu0
      %v696 = vadd.f32 %v673, %v695
      %697 = vdwg.mxu0
      %698 = vmatpush.msra.mxu0 %v312
      %699 = vmatpush.msra.mxu0 %v311
      %700 = vmatpush.msra.mxu0 %v310
      %701 = vmatpush.msra.mxu0 %v309
      %702 = vmatpush.msra.mxu0 %v308
      %703 = vmatpush.msra.mxu0 %v307
      %704 = vmatpush.msra.mxu0 %v306
      %705 = vmatpush.msra.mxu0 %v305
      %706 = vmatpush.msra.mxu0 %v304
      %707 = vmatpush.msra.mxu0 %v303
      %708 = vmatpush.msra.mxu0 %v302
      %709 = vmatpush.msra.mxu0 %v301
      %710 = vmatpush.msra.mxu0 %v300
      %711 = vmatpush.msra.mxu0 %v299
      %712 = vmatpush.msra.mxu0 %v298
      %713 = vmatpush.msra.mxu0 %v297
      %714 = vmatmul.f32.gmra.mxu0 %v636
      %v715 = vpop.f32.mrf.mxu0
      %v716 = vadd.f32 %v693, %v715
      %717 = vmatmul.f32.gmra.mxu0 %v645
      %v718 = vpop.f32.mrf.mxu0
      %v719 = vadd.f32 %v696, %v718
      %720 = vdwg.mxu0
      %721 = vmatpush.msra.mxu0 %v328
      %722 = vmatpush.msra.mxu0 %v327
      %723 = vmatpush.msra.mxu0 %v326
      %724 = vmatpush.msra.mxu0 %v325
      %725 = vmatpush.msra.mxu0 %v324
      %726 = vmatpush.msra.mxu0 %v323
      %727 = vmatpush.msra.mxu0 %v322
      %728 = vmatpush.msra.mxu0 %v321
      %729 = vmatpush.msra.mxu0 %v320
      %730 = vmatpush.msra.mxu0 %v319
      %731 = vmatpush.msra.mxu0 %v318
      %732 = vmatpush.msra.mxu0 %v317
      %733 = vmatpush.msra.mxu0 %v316
      %734 = vmatpush.msra.mxu0 %v315
      %735 = vmatpush.msra.mxu0 %v314
      %736 = vmatpush.msra.mxu0 %v313
      %737 = vmatmul.f32.gmra.mxu0 %v637
      %v738 = vpop.f32.mrf.mxu0
      %v739 = vadd.f32 %v716, %v738
      %740 = vmatmul.f32.gmra.mxu0 %v646
      %v741 = vpop.f32.mrf.mxu0
      %v742 = vadd.f32 %v719, %v741
      %743 = vdwg.mxu0
      %744 = vmatpush.msra.mxu0 %v344
      %745 = vmatpush.msra.mxu0 %v343
      %746 = vmatpush.msra.mxu0 %v342
      %747 = vmatpush.msra.mxu0 %v341
      %748 = vmatpush.msra.mxu0 %v340
      %749 = vmatpush.msra.mxu0 %v339
      %750 = vmatpush.msra.mxu0 %v338
      %751 = vmatpush.msra.mxu0 %v337
      %752 = vmatpush.msra.mxu0 %v336
      %753 = vmatpush.msra.mxu0 %v335
      %754 = vmatpush.msra.mxu0 %v334
      %755 = vmatpush.msra.mxu0 %v333
      %756 = vmatpush.msra.mxu0 %v332
      %757 = vmatpush.msra.mxu0 %v331
      %758 = vmatpush.msra.mxu0 %v330
      %759 = vmatpush.msra.mxu0 %v329
      %760 = vmatmul.f32.gmra.mxu0 %v638
      %v761 = vpop.f32.mrf.mxu0
      %v762 = vadd.f32 %v739, %v761
      %763 = vmatmul.f32.gmra.mxu0 %v647
      %v764 = vpop.f32.mrf.mxu0
      %v765 = vadd.f32 %v742, %v764
      %766 = vdwg.mxu0
      %767 = vmatpush.msra.mxu0 %v360
      %768 = vmatpush.msra.mxu0 %v359
      %769 = vmatpush.msra.mxu0 %v358
      %770 = vmatpush.msra.mxu0 %v357
      %771 = vmatpush.msra.mxu0 %v356
      %772 = vmatpush.msra.mxu0 %v355
      %773 = vmatpush.msra.mxu0 %v354
      %774 = vmatpush.msra.mxu0 %v353
      %775 = vmatpush.msra.mxu0 %v352
      %776 = vmatpush.msra.mxu0 %v351
      %777 = vmatpush.msra.mxu0 %v350
      %778 = vmatpush.msra.mxu0 %v349
      %779 = vmatpush.msra.mxu0 %v348
      %780 = vmatpush.msra.mxu0 %v347
      %781 = vmatpush.msra.mxu0 %v346
      %782 = vmatpush.msra.mxu0 %v345
      %783 = vmatmul.f32.gmra.mxu0 %v639
      %v784 = vpop.f32.mrf.mxu0
      %v785 = vadd.f32 %v762, %v784
      %786 = vmatmul.f32.gmra.mxu0 %v648
      %v787 = vpop.f32.mrf.mxu0
      %v788 = vadd.f32 %v765, %v787
      %789 = vdwg.mxu0
      %790 = vmatpush.msra.mxu0 %v376
      %791 = vmatpush.msra.mxu0 %v375
      %792 = vmatpush.msra.mxu0 %v374
      %793 = vmatpush.msra.mxu0 %v373
      %794 = vmatpush.msra.mxu0 %v372
      %795 = vmatpush.msra.mxu0 %v371
      %796 = vmatpush.msra.mxu0 %v370
      %797 = vmatpush.msra.mxu0 %v369
      %798 = vmatpush.msra.mxu0 %v368
      %799 = vmatpush.msra.mxu0 %v367
      %800 = vmatpush.msra.mxu0 %v366
      %801 = vmatpush.msra.mxu0 %v365
      %802 = vmatpush.msra.mxu0 %v364
      %803 = vmatpush.msra.mxu0 %v363
      %804 = vmatpush.msra.mxu0 %v362
      %805 = vmatpush.msra.mxu0 %v361
      %806 = vmatmul.f32.gmra.mxu0 %v640
      %v807 = vpop.f32.mrf.mxu0
      %v808 = vadd.f32 %v785, %v807
      %809 = vmatmul.f32.gmra.mxu0 %v649
      %v810 = vpop.f32.mrf.mxu0
      %v811 = vadd.f32 %v788, %v810
      %812 = vdwg.mxu0
      %813 = vmatpush.msra.mxu0 %v392
      %814 = vmatpush.msra.mxu0 %v391
      %815 = vmatpush.msra.mxu0 %v390
      %816 = vmatpush.msra.mxu0 %v389
      %817 = vmatpush.msra.mxu0 %v388
      %818 = vmatpush.msra.mxu0 %v387
      %819 = vmatpush.msra.mxu0 %v386
      %820 = vmatpush.msra.mxu0 %v385
      %821 = vmatpush.msra.mxu0 %v384
      %822 = vmatpush.msra.mxu0 %v383
      %823 = vmatpush.msra.mxu0 %v382
      %824 = vmatpush.msra.mxu0 %v381
      %825 = vmatpush.msra.mxu0 %v380
      %826 = vmatpush.msra.mxu0 %v379
      %827 = vmatpush.msra.mxu0 %v378
      %828 = vmatpush.msra.mxu0 %v377
      %829 = vmatmul.f32.gmra.mxu0 %v641
      %v830 = vpop.f32.mrf.mxu0
      %v831 = vadd.f32 %v808, %v830
      %832 = vmatmul.f32.gmra.mxu0 %v650
      %v833 = vpop.f32.mrf.mxu0
      %v834 = vadd.f32 %v811, %v833
      %835 = vdwg.mxu0
      %836 = vmatpush.msra.mxu0 %v408
      %837 = vmatpush.msra.mxu0 %v407
      %838 = vmatpush.msra.mxu0 %v406
      %839 = vmatpush.msra.mxu0 %v405
      %840 = vmatpush.msra.mxu0 %v404
      %841 = vmatpush.msra.mxu0 %v403
      %842 = vmatpush.msra.mxu0 %v402
      %843 = vmatpush.msra.mxu0 %v401
      %844 = vmatpush.msra.mxu0 %v400
      %845 = vmatpush.msra.mxu0 %v399
      %846 = vmatpush.msra.mxu0 %v398
      %847 = vmatpush.msra.mxu0 %v397
      %848 = vmatpush.msra.mxu0 %v396
      %849 = vmatpush.msra.mxu0 %v395
      %850 = vmatpush.msra.mxu0 %v394
      %851 = vmatpush.msra.mxu0 %v393
      %852 = vmatmul.f32.gmra.mxu0 %v642
      %v853 = vpop.f32.mrf.mxu0
      %v854 = vadd.f32 %v831, %v853
      %855 = vmatmul.f32.gmra.mxu0 %v651
      %v856 = vpop.f32.mrf.mxu0
      %v857 = vadd.f32 %v834, %v856
      %858 = vdwg.mxu0
      %v859 = vld [vmem:[%s259] sm:$0xff]
      %v860 = vld [vmem:[%s259 + $0x8] sm:$0xff]
      %v861 = vld [vmem:[%s259 + $0x10] sm:$0xff]
      %v862 = vld [vmem:[%s259 + $0x18] sm:$0xff]
      %v863 = vld [vmem:[%s259 + $0x20] sm:$0xff]
      %v864 = vld [vmem:[%s259 + $0x28] sm:$0xff]
      %v865 = vld [vmem:[%s259 + $0x30] sm:$0xff]
      %v866 = vld [vmem:[%s259 + $0x38] sm:$0xff]
      %v867 = vld [vmem:[%s259 + $0x40] sm:$0xff]
      %v868 = vld [vmem:[%s259 + $0x48] sm:$0xff]
      %v869 = vld [vmem:[%s259 + $0x50] sm:$0xff]
      %v870 = vld [vmem:[%s259 + $0x58] sm:$0xff]
      %v871 = vld [vmem:[%s259 + $0x60] sm:$0xff]
      %v872 = vld [vmem:[%s259 + $0x68] sm:$0xff]
      %v873 = vld [vmem:[%s259 + $0x70] sm:$0xff]
      %v874 = vld [vmem:[%s259 + $0x78] sm:$0xff]
      %v875 = vld [vmem:[%s259 + $0x80] sm:$0xff]
      %v876 = vld [vmem:[%s259 + $0x88] sm:$0xff]
      %877 = vmatpush.msra.mxu0 %v280
      %878 = vmatpush.msra.mxu0 %v279
      %879 = vmatpush.msra.mxu0 %v278
      %880 = vmatpush.msra.mxu0 %v277
      %881 = vmatpush.msra.mxu0 %v276
      %882 = vmatpush.msra.mxu0 %v275
      %883 = vmatpush.msra.mxu0 %v274
      %884 = vmatpush.msra.mxu0 %v273
      %885 = vmatpush.msra.mxu0 %v272
      %886 = vmatpush.msra.mxu0 %v271
      %887 = vmatpush.msra.mxu0 %v270
      %888 = vmatpush.msra.mxu0 %v269
      %889 = vmatpush.msra.mxu0 %v268
      %890 = vmatpush.msra.mxu0 %v267
      %891 = vmatpush.msra.mxu0 %v266
      %892 = vmatpush.msra.mxu0 %v265
      %893 = vmatmul.f32.gmra.mxu0 %v859
      %v894 = vpop.f32.mrf.mxu0
      %v895 = vadd.f32 0.0, %v894
      %896 = vmatmul.f32.gmra.mxu0 %v868
      %v897 = vpop.f32.mrf.mxu0
      %v898 = vadd.f32 0.0, %v897
      %899 = vdwg.mxu0
      %900 = vmatpush.msra.mxu0 %v296
      %901 = vmatpush.msra.mxu0 %v295
      %902 = vmatpush.msra.mxu0 %v294
      %903 = vmatpush.msra.mxu0 %v293
      %904 = vmatpush.msra.mxu0 %v292
      %905 = vmatpush.msra.mxu0 %v291
      %906 = vmatpush.msra.mxu0 %v290
      %907 = vmatpush.msra.mxu0 %v289
      %908 = vmatpush.msra.mxu0 %v288
      %909 = vmatpush.msra.mxu0 %v287
      %910 = vmatpush.msra.mxu0 %v286
      %911 = vmatpush.msra.mxu0 %v285
      %912 = vmatpush.msra.mxu0 %v284
      %913 = vmatpush.msra.mxu0 %v283
      %914 = vmatpush.msra.mxu0 %v282
      %915 = vmatpush.msra.mxu0 %v281
      %916 = vmatmul.f32.gmra.mxu0 %v860
      %v917 = vpop.f32.mrf.mxu0
      %v918 = vadd.f32 %v895, %v917
      %919 = vmatmul.f32.gmra.mxu0 %v869
      %v920 = vpop.f32.mrf.mxu0
      %v921 = vadd.f32 %v898, %v920
      %922 = vdwg.mxu0
      %923 = vmatpush.msra.mxu0 %v312
      %924 = vmatpush.msra.mxu0 %v311
      %925 = vmatpush.msra.mxu0 %v310
      %926 = vmatpush.msra.mxu0 %v309
      %927 = vmatpush.msra.mxu0 %v308
      %928 = vmatpush.msra.mxu0 %v307
      %929 = vmatpush.msra.mxu0 %v306
      %930 = vmatpush.msra.mxu0 %v305
      %931 = vmatpush.msra.mxu0 %v304
      %932 = vmatpush.msra.mxu0 %v303
      %933 = vmatpush.msra.mxu0 %v302
      %934 = vmatpush.msra.mxu0 %v301
      %935 = vmatpush.msra.mxu0 %v300
      %936 = vmatpush.msra.mxu0 %v299
      %937 = vmatpush.msra.mxu0 %v298
      %938 = vmatpush.msra.mxu0 %v297
      %939 = vmatmul.f32.gmra.mxu0 %v861
      %v940 = vpop.f32.mrf.mxu0
      %v941 = vadd.f32 %v918, %v940
      %942 = vmatmul.f32.gmra.mxu0 %v870
      %v943 = vpop.f32.mrf.mxu0
      %v944 = vadd.f32 %v921, %v943
      %945 = vdwg.mxu0
      %946 = vmatpush.msra.mxu0 %v328
      %947 = vmatpush.msra.mxu0 %v327
      %948 = vmatpush.msra.mxu0 %v326
      %949 = vmatpush.msra.mxu0 %v325
      %950 = vmatpush.msra.mxu0 %v324
      %951 = vmatpush.msra.mxu0 %v323
      %952 = vmatpush.msra.mxu0 %v322
      %953 = vmatpush.msra.mxu0 %v321
      %954 = vmatpush.msra.mxu0 %v320
      %955 = vmatpush.msra.mxu0 %v319
      %956 = vmatpush.msra.mxu0 %v318
      %957 = vmatpush.msra.mxu0 %v317
      %958 = vmatpush.msra.mxu0 %v316
      %959 = vmatpush.msra.mxu0 %v315
      %960 = vmatpush.msra.mxu0 %v314
      %961 = vmatpush.msra.mxu0 %v313
      %962 = vmatmul.f32.gmra.mxu0 %v862
      %v963 = vpop.f32.mrf.mxu0
      %v964 = vadd.f32 %v941, %v963
      %965 = vmatmul.f32.gmra.mxu0 %v871
      %v966 = vpop.f32.mrf.mxu0
      %v967 = vadd.f32 %v944, %v966
      %968 = vdwg.mxu0
      %969 = vmatpush.msra.mxu0 %v344
      %970 = vmatpush.msra.mxu0 %v343
      %971 = vmatpush.msra.mxu0 %v342
      %972 = vmatpush.msra.mxu0 %v341
      %973 = vmatpush.msra.mxu0 %v340
      %974 = vmatpush.msra.mxu0 %v339
      %975 = vmatpush.msra.mxu0 %v338
      %976 = vmatpush.msra.mxu0 %v337
      %977 = vmatpush.msra.mxu0 %v336
      %978 = vmatpush.msra.mxu0 %v335
      %979 = vmatpush.msra.mxu0 %v334
      %980 = vmatpush.msra.mxu0 %v333
      %981 = vmatpush.msra.mxu0 %v332
      %982 = vmatpush.msra.mxu0 %v331
      %983 = vmatpush.msra.mxu0 %v330
      %984 = vmatpush.msra.mxu0 %v329
      %985 = vmatmul.f32.gmra.mxu0 %v863
      %v986 = vpop.f32.mrf.mxu0
      %v987 = vadd.f32 %v964, %v986
      %988 = vmatmul.f32.gmra.mxu0 %v872
      %v989 = vpop.f32.mrf.mxu0
      %v990 = vadd.f32 %v967, %v989
      %991 = vdwg.mxu0
      %992 = vmatpush.msra.mxu0 %v360
      %993 = vmatpush.msra.mxu0 %v359
      %994 = vmatpush.msra.mxu0 %v358
      %995 = vmatpush.msra.mxu0 %v357
      %996 = vmatpush.msra.mxu0 %v356
      %997 = vmatpush.msra.mxu0 %v355
      %998 = vmatpush.msra.mxu0 %v354
      %999 = vmatpush.msra.mxu0 %v353
      %1000 = vmatpush.msra.mxu0 %v352
      %1001 = vmatpush.msra.mxu0 %v351
      %1002 = vmatpush.msra.mxu0 %v350
      %1003 = vmatpush.msra.mxu0 %v349
      %1004 = vmatpush.msra.mxu0 %v348
      %1005 = vmatpush.msra.mxu0 %v347
      %1006 = vmatpush.msra.mxu0 %v346
      %1007 = vmatpush.msra.mxu0 %v345
      %1008 = vmatmul.f32.gmra.mxu0 %v864
      %v1009 = vpop.f32.mrf.mxu0
      %v1010 = vadd.f32 %v987, %v1009
      %1011 = vmatmul.f32.gmra.mxu0 %v873
      %v1012 = vpop.f32.mrf.mxu0
      %v1013 = vadd.f32 %v990, %v1012
      %1014 = vdwg.mxu0
      %1015 = vmatpush.msra.mxu0 %v376
      %1016 = vmatpush.msra.mxu0 %v375
      %1017 = vmatpush.msra.mxu0 %v374
      %1018 = vmatpush.msra.mxu0 %v373
      %1019 = vmatpush.msra.mxu0 %v372
      %1020 = vmatpush.msra.mxu0 %v371
      %1021 = vmatpush.msra.mxu0 %v370
      %1022 = vmatpush.msra.mxu0 %v369
      %1023 = vmatpush.msra.mxu0 %v368
      %1024 = vmatpush.msra.mxu0 %v367
      %1025 = vmatpush.msra.mxu0 %v366
      %1026 = vmatpush.msra.mxu0 %v365
      %1027 = vmatpush.msra.mxu0 %v364
      %1028 = vmatpush.msra.mxu0 %v363
      %1029 = vmatpush.msra.mxu0 %v362
      %1030 = vmatpush.msra.mxu0 %v361
      %1031 = vmatmul.f32.gmra.mxu0 %v865
      %v1032 = vpop.f32.mrf.mxu0
      %v1033 = vadd.f32 %v1010, %v1032
      %1034 = vmatmul.f32.gmra.mxu0 %v874
      %v1035 = vpop.f32.mrf.mxu0
      %v1036 = vadd.f32 %v1013, %v1035
      %1037 = vdwg.mxu0
      %1038 = vmatpush.msra.mxu0 %v392
      %1039 = vmatpush.msra.mxu0 %v391
      %1040 = vmatpush.msra.mxu0 %v390
      %1041 = vmatpush.msra.mxu0 %v389
      %1042 = vmatpush.msra.mxu0 %v388
      %1043 = vmatpush.msra.mxu0 %v387
      %1044 = vmatpush.msra.mxu0 %v386
      %1045 = vmatpush.msra.mxu0 %v385
      %1046 = vmatpush.msra.mxu0 %v384
      %1047 = vmatpush.msra.mxu0 %v383
      %1048 = vmatpush.msra.mxu0 %v382
      %1049 = vmatpush.msra.mxu0 %v381
      %1050 = vmatpush.msra.mxu0 %v380
      %1051 = vmatpush.msra.mxu0 %v379
      %1052 = vmatpush.msra.mxu0 %v378
      %1053 = vmatpush.msra.mxu0 %v377
      %1054 = vmatmul.f32.gmra.mxu0 %v866
      %v1055 = vpop.f32.mrf.mxu0
      %v1056 = vadd.f32 %v1033, %v1055
      %1057 = vmatmul.f32.gmra.mxu0 %v875
      %v1058 = vpop.f32.mrf.mxu0
      %v1059 = vadd.f32 %v1036, %v1058
      %1060 = vdwg.mxu0
      %1061 = vmatpush.msra.mxu0 %v408
      %1062 = vmatpush.msra.mxu0 %v407
      %1063 = vmatpush.msra.mxu0 %v406
      %1064 = vmatpush.msra.mxu0 %v405
      %1065 = vmatpush.msra.mxu0 %v404
      %1066 = vmatpush.msra.mxu0 %v403
      %1067 = vmatpush.msra.mxu0 %v402
      %1068 = vmatpush.msra.mxu0 %v401
      %1069 = vmatpush.msra.mxu0 %v400
      %1070 = vmatpush.msra.mxu0 %v399
      %1071 = vmatpush.msra.mxu0 %v398
      %1072 = vmatpush.msra.mxu0 %v397
      %1073 = vmatpush.msra.mxu0 %v396
      %1074 = vmatpush.msra.mxu0 %v395
      %1075 = vmatpush.msra.mxu0 %v394
      %1076 = vmatpush.msra.mxu0 %v393
      %1077 = vmatmul.f32.gmra.mxu0 %v867
      %v1078 = vpop.f32.mrf.mxu0
      %v1079 = vadd.f32 %v1056, %v1078
      %1080 = vmatmul.f32.gmra.mxu0 %v876
      %v1081 = vpop.f32.mrf.mxu0
      %v1082 = vadd.f32 %v1059, %v1081
      %1083 = vdwg.mxu0
      %v1084 = vmax.f32 %v629, %v854
      %v1085 = vmax.f32 %v632, %v857
      %v1086 = vmax.f32 %v1084, %v1079
      %v1087 = vmax.f32 %v1085, %v1082
      %v1088 = vld [vmem:[%s4] sm:$0x1]
      %v1090 = vperm.slane %v1088, 0
      %v1092 = vadd.f32 %v1086, %v1090
      %v1093 = vadd.f32 %v1087, %v1090
      %v1094 = vmax.f32 %v1092, 0.0
      %v1095 = vmax.f32 %v1093, 0.0
      %vm1096 = vcmask 261120
      %1097 = vst.msk [vmem:[%s264] sm:$0xff] %vm1096, %v1094
      %1098 = vst.msk [vmem:[%s264 + $0x8] sm:$0xff] %vm1096, %v1095
      %p1099 = scmp.lt.s32.totalorder %s16, 1
      %s1100 = scalar_select %p1099, %s16, 1
      %s1101 = smul.addr %s1100, 2
      %s1102 = smul.addr %s1101, 8
      %s1103 = scalar_lea.vmem %s5, %s1102
      // Predicated region
      $region41: #{model_forward.6} parent=39 // pred_check
        %p1104 = pneg %p154
      $region42: #{model_forward.6} parent=39 // pred_check_branch
        %1106 = sbr.rel (%p1104) target = $region44
      $region43: #{model_forward.6} parent=39 // pred_region
        _
      $region44: #{model_forward.6} parent=39 // pred_fallthru
        _
    $region40: #{model_forward.6} parent=5 // pred_fallthru
      _
    %p1107 = scmp.le.s32.totalorder 2, %s11
    // Predicated region
    $region45: #{model_forward.6} parent=5 // pred_check
      %p1108 = pneg %p1107
    $region46: #{model_forward.6} parent=5 // pred_check_branch
      %1110 = sbr.rel (%p1108) target = $region48
    $region47: #{model_forward.6} parent=5 // pred_region
      %s1111 = ssub.s32 %s11, 2
      // Predicated region
      $region49: #{model_forward.6} parent=47 // pred_check
        %p1112 = pneg %p160
      $region50: #{model_forward.6} parent=47 // pred_check_branch
        %1114 = sbr.rel (%p1112) target = $region52
      $region51: #{model_forward.6} parent=47 // pred_region
        %p1115 = scmp.lt.s32.totalorder %s17, 1
        %s1116 = scalar_select %p1115, %s17, 1
        %s1117 = smul.addr %s1116, 2
        %s1118 = smul.addr %s1117, 8
        %s1119 = scalar_lea.vmem %s5, %s1118
      $region52: #{model_forward.6} parent=47 // pred_fallthru
        _
    $region48: #{model_forward.6} parent=5 // pred_fallthru
      _
  $region6: #{model_forward.6} parent=0 // loop_footer
    %s15 = sadd.s32 1, %s11
  $region7: #{model_forward.6} parent=0 // loop_footer_branch
    %10 = sbr.rel target = $region3
  $region8: #{model_forward.6} parent=0 // loop_exit
    _

// kernel: model_forward.7
$region0: #{model_forward.7}
  #allocation0 [shape = 'u32[]', space=smem, size = 0x4, offset = 0x4, fixed_abs, tag = 'smem constant byte address 0x4 - core index']
  #allocation1 [shape = 'u32[72,128]{1,0:T(1,128)}', space=vmem, size = 0x9000, scoped, tag = 'internal scratch']
  %s0 = inlined_call_operand.vmem [shape: f32[2,16,32], index: 0, kind: input, shape index: {}]
  %s1 = inlined_call_operand.vmem [shape: f32[3,32,96], index: 1, kind: input, shape index: {}]
  %s2 = inlined_call_operand.vmem [shape: f32[3,1,96], index: 2, kind: input, shape index: {}]
  %s3 = inlined_call_operand.vmem [shape: f32[6,16,5], index: 3, kind: input, shape index: {}]
  %s4 = inlined_call_operand.vmem [shape: f32[3,1,32], index: 4, kind: input, shape index: {}]
  %s5 = inlined_call_operand.vmem [shape: f32[3,1,32], index: 5, kind: input, shape index: {}]
  %s6 = inlined_call_operand.vmem [shape: f32[3,1,32], index: 6, kind: input, shape index: {}]
  %s7 = inlined_call_operand.vmem [shape: f32[3,1,32], index: 7, kind: input, shape index: {}]
  %s8 = inlined_call_operand.vmem [shape: f32[3,32,64], index: 8, kind: input, shape index: {}]
  %s9 = inlined_call_operand.vmem [shape: f32[3,1,64], index: 9, kind: input, shape index: {}]
  %s10 = inlined_call_operand.vmem [shape: f32[3,64,32], index: 10, kind: input, shape index: {}]
  %s11 = inlined_call_operand.vmem [shape: f32[3,1,32], index: 11, kind: input, shape index: {}]
  %s12 = inlined_call_operand.vmem [shape: f32[32,2], index: 12, kind: input, shape index: {}]
  %s13 = inlined_call_operand.vmem [shape: f32[1,2], index: 13, kind: input, shape index: {}]
  %s14 = inlined_call_operand.vmem [shape: f32[32,300], index: 14, kind: input, shape index: {}]
  %s15 = inlined_call_operand.vmem [shape: f32[1,300], index: 15, kind: input, shape index: {}]
  %s16 = inlined_call_operand.vmem [shape: f32[15,16,16], index: 16, kind: input, shape index: {}]
  %s17 = inlined_call_operand.vmem [shape: f32[3,16,16], index: 17, kind: input, shape index: {}]
  %s18 = inlined_call_operand.vmem [shape: f32[2,16,2], index: 18, kind: output, shape index: {0}]
  %s19 = inlined_call_operand.vmem [shape: f32[2,1,300], index: 19, kind: output, shape index: {1}]
  %20 = xla_tuple %s18, %s19
  %s21 = sld [smem:[#allocation0]]
  $region113: #{model_forward.7} parent=0
    _
  %s23 = ssub.s32 1, %s21
  %s24 = scalar_select 0, %s23, %s21
  loop: start=0, step=1, limit=4
  $region2: #{model_forward.7} parent=0 // loop_pre_header
    _
  $region3: #{model_forward.7} parent=0 // loop_header
    %s26 = sphi 0, %s30
    %p27 = scmp.ge.s32.totalorder %s26, 4
    %s36 = sphi 0, %s38
    %s39 = sphi 0, %s36
    %s40 = sphi 0, %s39
    %s56 = sphi 0, %s40
    %s60 = sphi 0, %s60
    %s62 = sphi 0, %s60
    %s63 = sphi 0, %s62
    %s77 = sphi 0, %s63
    %s81 = sphi 0, %s81
    %s83 = sphi 0, %s81
    %s84 = sphi 0, %s83
    %s98 = sphi 0, %s84
    %s102 = sphi 0, %s102
    %s104 = sphi 0, %s102
    %s105 = sphi 0, %s104
    %s119 = sphi 0, %s105
    %s123 = sphi 0, %s123
    %s125 = sphi 0, %s123
    %s126 = sphi 0, %s125
    %s140 = sphi 0, %s126
    %s144 = sphi 0, %s144
    %s146 = sphi 0, %s144
    %s147 = sphi 0, %s146
    %s161 = sphi 0, %s147
    %s165 = sphi 0, %s165
    %s167 = sphi 0, %s165
    %s168 = sphi 0, %s167
    %s182 = sphi 0, %s168
    %s186 = sphi 0, %s186
    %s188 = sphi 0, %s186
    %s189 = sphi 0, %s188
    %s203 = sphi 0, %s189
    %s207 = sphi 0, %s207
    %s209 = sphi 0, %s207
    %s210 = sphi 0, %s209
    %s224 = sphi 0, %s210
    %s228 = sphi 0, %s228
    %s230 = sphi 0, %s228
    %s231 = sphi 0, %s230
    %s245 = sphi 0, %s231
    %s249 = sphi 0, %s249
    %s251 = sphi 0, %s249
    %s252 = sphi 0, %s251
    %s266 = sphi 0, %s252
    %s270 = sphi 0, %s270
    %s272 = sphi 0, %s270
    %s273 = sphi 0, %s272
    %s287 = sphi 0, %s273
    %s291 = sphi 0, %s291
    %s293 = sphi 0, %s291
    %s294 = sphi 0, %s293
    %s308 = sphi 0, %s294
    %s312 = sphi 0, %s312
    %s314 = sphi 0, %s312
    %s315 = sphi 0, %s314
    %s329 = sphi 0, %s315
    %s333 = sphi 0, %s333
    %s335 = sphi 0, %s333
    %s336 = sphi 0, %s335
    %s350 = sphi 0, %s336
    %s354 = sphi 0, %s354
    %s356 = sphi 0, %s354
    %s357 = sphi 0, %s356
    %s371 = sphi 0, %s357
    %s375 = sphi 0, %s375
    %s377 = sphi 0, %s375
    %s378 = sphi 0, %s377
    %s392 = sphi 0, %s378
    %s396 = sphi 0, %s396
    %s398 = sphi 0, %s396
    %s399 = sphi 0, %s398
    %s413 = sphi 0, %s399
    %s419 = sphi 0, %s421
    %s422 = sphi 0, %s419
    %s423 = sphi 0, %s422
    %s439 = sphi 0, %s423
    %s445 = sphi 0, %s447
    %s448 = sphi 0, %s445
    %s449 = sphi 0, %s448
    %s465 = sphi 0, %s449
  $region4: #{model_forward.7} parent=0 // loop_header_branch
    %29 = sbr.rel (%p27) target = $region8
  $region5: #{model_forward.7} parent=0 // loop_body
    %s31 = ssub.s32 %s26, 1
    %s32 = ssub.s32 %s26, 2
    %s33 = sadd.s32 %s26, 1
    %s34 = ssub.s32 %s26, %s33
    %p35 = scmp.eq.s32.totalorder %s34, 0
    %s37 = sadd.s32 %s36, 1
    %s38 = scalar_select %p35, %s36, %s37
    %p41 = pneg %p35
    %p42 = scmp.eq.s32.totalorder %s26, 1
    %p43 = por %p41, %p42
    %p44 = scmp.ne.s32.totalorder %s36, %s39
    %p45 = scmp.eq.s32.totalorder %s26, 0
    %p46 = por %p44, %p45
    %p47 = scmp.ne.s32.totalorder %s36, %s39
    %p48 = scmp.eq.s32.totalorder %s31, 1
    %p49 = por %p47, %p48
    %p50 = scmp.ne.s32.totalorder %s39, %s40
    %p51 = scmp.eq.s32.totalorder %s31, 0
    %p52 = por %p50, %p51
    %p53 = scmp.ne.s32.totalorder %s39, %s40
    %p54 = scmp.eq.s32.totalorder %s32, 1
    %p55 = por %p53, %p54
    %p57 = scmp.ne.s32.totalorder %s40, %s56
    %p58 = scmp.eq.s32.totalorder %s32, 0
    %p59 = por %p57, %p58
    %s61 = sadd.s32 %s60, 1
    %p64 = scmp.eq.s32.totalorder %s26, 1
    %p65 = scmp.ne.s32.totalorder %s60, %s62
    %p66 = scmp.eq.s32.totalorder %s26, 0
    %p67 = por %p65, %p66
    %p68 = scmp.ne.s32.totalorder %s60, %s62
    %p69 = scmp.eq.s32.totalorder %s31, 1
    %p70 = por %p68, %p69
    %p71 = scmp.ne.s32.totalorder %s62, %s63
    %p72 = scmp.eq.s32.totalorder %s31, 0
    %p73 = por %p71, %p72
    %p74 = scmp.ne.s32.totalorder %s62, %s63
    %p75 = scmp.eq.s32.totalorder %s32, 1
    %p76 = por %p74, %p75
    %p78 = scmp.ne.s32.totalorder %s63, %s77
    %p79 = scmp.eq.s32.totalorder %s32, 0
    %p80 = por %p78, %p79
    %s82 = sadd.s32 %s81, 1
    %p85 = scmp.eq.s32.totalorder %s26, 1
    %p86 = scmp.ne.s32.totalorder %s81, %s83
    %p87 = scmp.eq.s32.totalorder %s26, 0
    %p88 = por %p86, %p87
    %p89 = scmp.ne.s32.totalorder %s81, %s83
    %p90 = scmp.eq.s32.totalorder %s31, 1
    %p91 = por %p89, %p90
    %p92 = scmp.ne.s32.totalorder %s83, %s84
    %p93 = scmp.eq.s32.totalorder %s31, 0
    %p94 = por %p92, %p93
    %p95 = scmp.ne.s32.totalorder %s83, %s84
    %p96 = scmp.eq.s32.totalorder %s32, 1
    %p97 = por %p95, %p96
    %p99 = scmp.ne.s32.totalorder %s84, %s98
    %p100 = scmp.eq.s32.totalorder %s32, 0
    %p101 = por %p99, %p100
    %s103 = sadd.s32 %s102, 1
    %p106 = scmp.eq.s32.totalorder %s26, 1
    %p107 = scmp.ne.s32.totalorder %s102, %s104
    %p108 = scmp.eq.s32.totalorder %s26, 0
    %p109 = por %p107, %p108
    %p110 = scmp.ne.s32.totalorder %s102, %s104
    %p111 = scmp.eq.s32.totalorder %s31, 1
    %p112 = por %p110, %p111
    %p113 = scmp.ne.s32.totalorder %s104, %s105
    %p114 = scmp.eq.s32.totalorder %s31, 0
    %p115 = por %p113, %p114
    %p116 = scmp.ne.s32.totalorder %s104, %s105
    %p117 = scmp.eq.s32.totalorder %s32, 1
    %p118 = por %p116, %p117
    %p120 = scmp.ne.s32.totalorder %s105, %s119
    %p121 = scmp.eq.s32.totalorder %s32, 0
    %p122 = por %p120, %p121
    %s124 = sadd.s32 %s123, 1
    %p127 = scmp.eq.s32.totalorder %s26, 1
    %p128 = scmp.ne.s32.totalorder %s123, %s125
    %p129 = scmp.eq.s32.totalorder %s26, 0
    %p130 = por %p128, %p129
    %p131 = scmp.ne.s32.totalorder %s123, %s125
    %p132 = scmp.eq.s32.totalorder %s31, 1
    %p133 = por %p131, %p132
    %p134 = scmp.ne.s32.totalorder %s125, %s126
    %p135 = scmp.eq.s32.totalorder %s31, 0
    %p136 = por %p134, %p135
    %p137 = scmp.ne.s32.totalorder %s125, %s126
    %p138 = scmp.eq.s32.totalorder %s32, 1
    %p139 = por %p137, %p138
    %p141 = scmp.ne.s32.totalorder %s126, %s140
    %p142 = scmp.eq.s32.totalorder %s32, 0
    %p143 = por %p141, %p142
    %s145 = sadd.s32 %s144, 1
    %p148 = scmp.eq.s32.totalorder %s26, 1
    %p149 = scmp.ne.s32.totalorder %s144, %s146
    %p150 = scmp.eq.s32.totalorder %s26, 0
    %p151 = por %p149, %p150
    %p152 = scmp.ne.s32.totalorder %s144, %s146
    %p153 = scmp.eq.s32.totalorder %s31, 1
    %p154 = por %p152, %p153
    %p155 = scmp.ne.s32.totalorder %s146, %s147
    %p156 = scmp.eq.s32.totalorder %s31, 0
    %p157 = por %p155, %p156
    %p158 = scmp.ne.s32.totalorder %s146, %s147
    %p159 = scmp.eq.s32.totalorder %s32, 1
    %p160 = por %p158, %p159
    %p162 = scmp.ne.s32.totalorder %s147, %s161
    %p163 = scmp.eq.s32.totalorder %s32, 0
    %p164 = por %p162, %p163
    %s166 = sadd.s32 %s165, 1
    %p169 = scmp.eq.s32.totalorder %s26, 1
    %p170 = scmp.ne.s32.totalorder %s165, %s167
    %p171 = scmp.eq.s32.totalorder %s26, 0
    %p172 = por %p170, %p171
    %p173 = scmp.ne.s32.totalorder %s165, %s167
    %p174 = scmp.eq.s32.totalorder %s31, 1
    %p175 = por %p173, %p174
    %p176 = scmp.ne.s32.totalorder %s167, %s168
    %p177 = scmp.eq.s32.totalorder %s31, 0
    %p178 = por %p176, %p177
    %p179 = scmp.ne.s32.totalorder %s167, %s168
    %p180 = scmp.eq.s32.totalorder %s32, 1
    %p181 = por %p179, %p180
    %p183 = scmp.ne.s32.totalorder %s168, %s182
    %p184 = scmp.eq.s32.totalorder %s32, 0
    %p185 = por %p183, %p184
    %s187 = sadd.s32 %s186, 1
    %p190 = scmp.eq.s32.totalorder %s26, 1
    %p191 = scmp.ne.s32.totalorder %s186, %s188
    %p192 = scmp.eq.s32.totalorder %s26, 0
    %p193 = por %p191, %p192
    %p194 = scmp.ne.s32.totalorder %s186, %s188
    %p195 = scmp.eq.s32.totalorder %s31, 1
    %p196 = por %p194, %p195
    %p197 = scmp.ne.s32.totalorder %s188, %s189
    %p198 = scmp.eq.s32.totalorder %s31, 0
    %p199 = por %p197, %p198
    %p200 = scmp.ne.s32.totalorder %s188, %s189
    %p201 = scmp.eq.s32.totalorder %s32, 1
    %p202 = por %p200, %p201
    %p204 = scmp.ne.s32.totalorder %s189, %s203
    %p205 = scmp.eq.s32.totalorder %s32, 0
    %p206 = por %p204, %p205
    %s208 = sadd.s32 %s207, 1
    %p211 = scmp.eq.s32.totalorder %s26, 1
    %p212 = scmp.ne.s32.totalorder %s207, %s209
    %p213 = scmp.eq.s32.totalorder %s26, 0
    %p214 = por %p212, %p213
    %p215 = scmp.ne.s32.totalorder %s207, %s209
    %p216 = scmp.eq.s32.totalorder %s31, 1
    %p217 = por %p215, %p216
    %p218 = scmp.ne.s32.totalorder %s209, %s210
    %p219 = scmp.eq.s32.totalorder %s31, 0
    %p220 = por %p218, %p219
    %p221 = scmp.ne.s32.totalorder %s209, %s210
    %p222 = scmp.eq.s32.totalorder %s32, 1
    %p223 = por %p221, %p222
    %p225 = scmp.ne.s32.totalorder %s210, %s224
    %p226 = scmp.eq.s32.totalorder %s32, 0
    %p227 = por %p225, %p226
    %s229 = sadd.s32 %s228, 1
    %p232 = scmp.eq.s32.totalorder %s26, 1
    %p233 = scmp.ne.s32.totalorder %s228, %s230
    %p234 = scmp.eq.s32.totalorder %s26, 0
    %p235 = por %p233, %p234
    %p236 = scmp.ne.s32.totalorder %s228, %s230
    %p237 = scmp.eq.s32.totalorder %s31, 1
    %p238 = por %p236, %p237
    %p239 = scmp.ne.s32.totalorder %s230, %s231
    %p240 = scmp.eq.s32.totalorder %s31, 0
    %p241 = por %p239, %p240
    %p242 = scmp.ne.s32.totalorder %s230, %s231
    %p243 = scmp.eq.s32.totalorder %s32, 1
    %p244 = por %p242, %p243
    %p246 = scmp.ne.s32.totalorder %s231, %s245
    %p247 = scmp.eq.s32.totalorder %s32, 0
    %p248 = por %p246, %p247
    %s250 = sadd.s32 %s249, 1
    %p253 = scmp.eq.s32.totalorder %s26, 1
    %p254 = scmp.ne.s32.totalorder %s249, %s251
    %p255 = scmp.eq.s32.totalorder %s26, 0
    %p256 = por %p254, %p255
    %p257 = scmp.ne.s32.totalorder %s249, %s251
    %p258 = scmp.eq.s32.totalorder %s31, 1
    %p259 = por %p257, %p258
    %p260 = scmp.ne.s32.totalorder %s251, %s252
    %p261 = scmp.eq.s32.totalorder %s31, 0
    %p262 = por %p260, %p261
    %p263 = scmp.ne.s32.totalorder %s251, %s252
    %p264 = scmp.eq.s32.totalorder %s32, 1
    %p265 = por %p263, %p264
    %p267 = scmp.ne.s32.totalorder %s252, %s266
    %p268 = scmp.eq.s32.totalorder %s32, 0
    %p269 = por %p267, %p268
    %s271 = sadd.s32 %s270, 1
    %p274 = scmp.eq.s32.totalorder %s26, 1
    %p275 = scmp.ne.s32.totalorder %s270, %s272
    %p276 = scmp.eq.s32.totalorder %s26, 0
    %p277 = por %p275, %p276
    %p278 = scmp.ne.s32.totalorder %s270, %s272
    %p279 = scmp.eq.s32.totalorder %s31, 1
    %p280 = por %p278, %p279
    %p281 = scmp.ne.s32.totalorder %s272, %s273
    %p282 = scmp.eq.s32.totalorder %s31, 0
    %p283 = por %p281, %p282
    %p284 = scmp.ne.s32.totalorder %s272, %s273
    %p285 = scmp.eq.s32.totalorder %s32, 1
    %p286 = por %p284, %p285
    %p288 = scmp.ne.s32.totalorder %s273, %s287
    %p289 = scmp.eq.s32.totalorder %s32, 0
    %p290 = por %p288, %p289
    %s292 = sadd.s32 %s291, 1
    %p295 = scmp.eq.s32.totalorder %s26, 1
    %p296 = scmp.ne.s32.totalorder %s291, %s293
    %p297 = scmp.eq.s32.totalorder %s26, 0
    %p298 = por %p296, %p297
    %p299 = scmp.ne.s32.totalorder %s291, %s293
    %p300 = scmp.eq.s32.totalorder %s31, 1
    %p301 = por %p299, %p300
    %p302 = scmp.ne.s32.totalorder %s293, %s294
    %p303 = scmp.eq.s32.totalorder %s31, 0
    %p304 = por %p302, %p303
    %p305 = scmp.ne.s32.totalorder %s293, %s294
    %p306 = scmp.eq.s32.totalorder %s32, 1
    %p307 = por %p305, %p306
    %p309 = scmp.ne.s32.totalorder %s294, %s308
    %p310 = scmp.eq.s32.totalorder %s32, 0
    %p311 = por %p309, %p310
    %s313 = sadd.s32 %s312, 1
    %p316 = scmp.eq.s32.totalorder %s26, 1
    %p317 = scmp.ne.s32.totalorder %s312, %s314
    %p318 = scmp.eq.s32.totalorder %s26, 0
    %p319 = por %p317, %p318
    %p320 = scmp.ne.s32.totalorder %s312, %s314
    %p321 = scmp.eq.s32.totalorder %s31, 1
    %p322 = por %p320, %p321
    %p323 = scmp.ne.s32.totalorder %s314, %s315
    %p324 = scmp.eq.s32.totalorder %s31, 0
    %p325 = por %p323, %p324
    %p326 = scmp.ne.s32.totalorder %s314, %s315
    %p327 = scmp.eq.s32.totalorder %s32, 1
    %p328 = por %p326, %p327
    %p330 = scmp.ne.s32.totalorder %s315, %s329
    %p331 = scmp.eq.s32.totalorder %s32, 0
    %p332 = por %p330, %p331
    %s334 = sadd.s32 %s333, 1
    %p337 = scmp.eq.s32.totalorder %s26, 1
    %p338 = scmp.ne.s32.totalorder %s333, %s335
    %p339 = scmp.eq.s32.totalorder %s26, 0
    %p340 = por %p338, %p339
    %p341 = scmp.ne.s32.totalorder %s333, %s335
    %p342 = scmp.eq.s32.totalorder %s31, 1
    %p343 = por %p341, %p342
    %p344 = scmp.ne.s32.totalorder %s335, %s336
    %p345 = scmp.eq.s32.totalorder %s31, 0
    %p346 = por %p344, %p345
    %p347 = scmp.ne.s32.totalorder %s335, %s336
    %p348 = scmp.eq.s32.totalorder %s32, 1
    %p349 = por %p347, %p348
    %p351 = scmp.ne.s32.totalorder %s336, %s350
    %p352 = scmp.eq.s32.totalorder %s32, 0
    %p353 = por %p351, %p352
    %s355 = sadd.s32 %s354, 1
    %p358 = scmp.eq.s32.totalorder %s26, 1
    %p359 = scmp.ne.s32.totalorder %s354, %s356
    %p360 = scmp.eq.s32.totalorder %s26, 0
    %p361 = por %p359, %p360
    %p362 = scmp.ne.s32.totalorder %s354, %s356
    %p363 = scmp.eq.s32.totalorder %s31, 1
    %p364 = por %p362, %p363
    %p365 = scmp.ne.s32.totalorder %s356, %s357
    %p366 = scmp.eq.s32.totalorder %s31, 0
    %p367 = por %p365, %p366
    %p368 = scmp.ne.s32.totalorder %s356, %s357
    %p369 = scmp.eq.s32.totalorder %s32, 1
    %p370 = por %p368, %p369
    %p372 = scmp.ne.s32.totalorder %s357, %s371
    %p373 = scmp.eq.s32.totalorder %s32, 0
    %p374 = por %p372, %p373
    %s376 = sadd.s32 %s375, 1
    %p379 = scmp.eq.s32.totalorder %s26, 1
    %p380 = scmp.ne.s32.totalorder %s375, %s377
    %p381 = scmp.eq.s32.totalorder %s26, 0
    %p382 = por %p380, %p381
    %p383 = scmp.ne.s32.totalorder %s375, %s377
    %p384 = scmp.eq.s32.totalorder %s31, 1
    %p385 = por %p383, %p384
    %p386 = scmp.ne.s32.totalorder %s377, %s378
    %p387 = scmp.eq.s32.totalorder %s31, 0
    %p388 = por %p386, %p387
    %p389 = scmp.ne.s32.totalorder %s377, %s378
    %p390 = scmp.eq.s32.totalorder %s32, 1
    %p391 = por %p389, %p390
    %p393 = scmp.ne.s32.totalorder %s378, %s392
    %p394 = scmp.eq.s32.totalorder %s32, 0
    %p395 = por %p393, %p394
    %s397 = sadd.s32 %s396, 1
    %p400 = scmp.eq.s32.totalorder %s26, 1
    %p401 = scmp.ne.s32.totalorder %s396, %s398
    %p402 = scmp.eq.s32.totalorder %s26, 0
    %p403 = por %p401, %p402
    %p404 = scmp.ne.s32.totalorder %s396, %s398
    %p405 = scmp.eq.s32.totalorder %s31, 1
    %p406 = por %p404, %p405
    %p407 = scmp.ne.s32.totalorder %s398, %s399
    %p408 = scmp.eq.s32.totalorder %s31, 0
    %p409 = por %p407, %p408
    %p410 = scmp.ne.s32.totalorder %s398, %s399
    %p411 = scmp.eq.s32.totalorder %s32, 1
    %p412 = por %p410, %p411
    %p414 = scmp.ne.s32.totalorder %s399, %s413
    %p415 = scmp.eq.s32.totalorder %s32, 0
    %p416 = por %p414, %p415
    %s417 = ssub.s32 %s26, %s33
    %p418 = scmp.eq.s32.totalorder %s417, 0
    %s420 = sadd.s32 %s419, 1
    %s421 = scalar_select %p418, %s419, %s420
    %p424 = pneg %p418
    %p425 = scmp.eq.s32.totalorder %s26, 1
    %p426 = por %p424, %p425
    %p427 = scmp.ne.s32.totalorder %s419, %s422
    %p428 = scmp.eq.s32.totalorder %s26, 0
    %p429 = por %p427, %p428
    %p430 = scmp.ne.s32.totalorder %s419, %s422
    %p431 = scmp.eq.s32.totalorder %s31, 1
    %p432 = por %p430, %p431
    %p433 = scmp.ne.s32.totalorder %s422, %s423
    %p434 = scmp.eq.s32.totalorder %s31, 0
    %p435 = por %p433, %p434
    %p436 = scmp.ne.s32.totalorder %s422, %s423
    %p437 = scmp.eq.s32.totalorder %s32, 1
    %p438 = por %p436, %p437
    %p440 = scmp.ne.s32.totalorder %s423, %s439
    %p441 = scmp.eq.s32.totalorder %s32, 0
    %p442 = por %p440, %p441
    %s443 = ssub.s32 %s26, %s33
    %p444 = scmp.eq.s32.totalorder %s443, 0
    %s446 = sadd.s32 %s445, 1
    %s447 = scalar_select %p444, %s445, %s446
    %p450 = pneg %p444
    %p451 = scmp.eq.s32.totalorder %s26, 1
    %p452 = por %p450, %p451
    %p453 = scmp.ne.s32.totalorder %s445, %s448
    %p454 = scmp.eq.s32.totalorder %s26, 0
    %p455 = por %p453, %p454
    %p456 = scmp.ne.s32.totalorder %s445, %s448
    %p457 = scmp.eq.s32.totalorder %s31, 1
    %p458 = por %p456, %p457
    %p459 = scmp.ne.s32.totalorder %s448, %s449
    %p460 = scmp.eq.s32.totalorder %s31, 0
    %p461 = por %p459, %p460
    %p462 = scmp.ne.s32.totalorder %s448, %s449
    %p463 = scmp.eq.s32.totalorder %s32, 1
    %p464 = por %p462, %p463
    %p466 = scmp.ne.s32.totalorder %s449, %s465
    %p467 = scmp.eq.s32.totalorder %s32, 0
    %p468 = por %p466, %p467
    %p469 = scmp.le.s32.totalorder 1, %s26
    %p470 = scmp.lt.s32.totalorder %s26, 3
    %p471 = pnand %p469, %p470
    %p472 = pneg %p471
    // Predicated region
    $region9: #{model_forward.7} parent=5 // pred_check
      _
    $region10: #{model_forward.7} parent=5 // pred_check_branch
      %474 = sbr.rel (%p471) target = $region12
    $region11: #{model_forward.7} parent=5 // pred_region
      %s475 = ssub.s32 %s26, 1
      // Predicated region
      $region13: #{model_forward.7} parent=11 // pred_check
        %p476 = pneg %p73
      $region14: #{model_forward.7} parent=11 // pred_check_branch
        %478 = sbr.rel (%p476) target = $region16
      $region15: #{model_forward.7} parent=11 // pred_region
        _
      $region16: #{model_forward.7} parent=11 // pred_fallthru
        _
      // Predicated region
      $region17: #{model_forward.7} parent=11 // pred_check
        %p479 = pneg %p94
      $region18: #{model_forward.7} parent=11 // pred_check_branch
        %481 = sbr.rel (%p479) target = $region20
      $region19: #{model_forward.7} parent=11 // pred_region
        _
      $region20: #{model_forward.7} parent=11 // pred_fallthru
        _
      // Predicated region
      $region21: #{model_forward.7} parent=11 // pred_check
        %p482 = pneg %p115
      $region22: #{model_forward.7} parent=11 // pred_check_branch
        %484 = sbr.rel (%p482) target = $region24
      $region23: #{model_forward.7} parent=11 // pred_region
        _
      $region24: #{model_forward.7} parent=11 // pred_fallthru
        _
      // Predicated region
      $region25: #{model_forward.7} parent=11 // pred_check
        %p485 = pneg %p136
      $region26: #{model_forward.7} parent=11 // pred_check_branch
        %487 = sbr.rel (%p485) target = $region28
      $region27: #{model_forward.7} parent=11 // pred_region
        _
      $region28: #{model_forward.7} parent=11 // pred_fallthru
        _
      // Predicated region
      $region29: #{model_forward.7} parent=11 // pred_check
        %p488 = pneg %p157
      $region30: #{model_forward.7} parent=11 // pred_check_branch
        %490 = sbr.rel (%p488) target = $region32
      $region31: #{model_forward.7} parent=11 // pred_region
        _
      $region32: #{model_forward.7} parent=11 // pred_fallthru
        _
      // Predicated region
      $region33: #{model_forward.7} parent=11 // pred_check
        %p491 = pneg %p178
      $region34: #{model_forward.7} parent=11 // pred_check_branch
        %493 = sbr.rel (%p491) target = $region36
      $region35: #{model_forward.7} parent=11 // pred_region
        _
      $region36: #{model_forward.7} parent=11 // pred_fallthru
        _
      // Predicated region
      $region37: #{model_forward.7} parent=11 // pred_check
        %p494 = pneg %p199
      $region38: #{model_forward.7} parent=11 // pred_check_branch
        %496 = sbr.rel (%p494) target = $region40
      $region39: #{model_forward.7} parent=11 // pred_region
        _
      $region40: #{model_forward.7} parent=11 // pred_fallthru
        _
      // Predicated region
      $region41: #{model_forward.7} parent=11 // pred_check
        %p497 = pneg %p220
      $region42: #{model_forward.7} parent=11 // pred_check_branch
        %499 = sbr.rel (%p497) target = $region44
      $region43: #{model_forward.7} parent=11 // pred_region
        _
      $region44: #{model_forward.7} parent=11 // pred_fallthru
        _
      // Predicated region
      $region45: #{model_forward.7} parent=11 // pred_check
        %p500 = pneg %p241
      $region46: #{model_forward.7} parent=11 // pred_check_branch
        %502 = sbr.rel (%p500) target = $region48
      $region47: #{model_forward.7} parent=11 // pred_region
        _
      $region48: #{model_forward.7} parent=11 // pred_fallthru
        _
      // Predicated region
      $region49: #{model_forward.7} parent=11 // pred_check
        %p503 = pneg %p262
      $region50: #{model_forward.7} parent=11 // pred_check_branch
        %505 = sbr.rel (%p503) target = $region52
      $region51: #{model_forward.7} parent=11 // pred_region
        _
      $region52: #{model_forward.7} parent=11 // pred_fallthru
        _
      // Predicated region
      $region53: #{model_forward.7} parent=11 // pred_check
        %p506 = pneg %p283
      $region54: #{model_forward.7} parent=11 // pred_check_branch
        %508 = sbr.rel (%p506) target = $region56
      $region55: #{model_forward.7} parent=11 // pred_region
        _
      $region56: #{model_forward.7} parent=11 // pred_fallthru
        _
      // Predicated region
      $region57: #{model_forward.7} parent=11 // pred_check
        %p509 = pneg %p304
      $region58: #{model_forward.7} parent=11 // pred_check_branch
        %511 = sbr.rel (%p509) target = $region60
      $region59: #{model_forward.7} parent=11 // pred_region
        _
      $region60: #{model_forward.7} parent=11 // pred_fallthru
        _
      // Predicated region
      $region61: #{model_forward.7} parent=11 // pred_check
        %p512 = pneg %p325
      $region62: #{model_forward.7} parent=11 // pred_check_branch
        %514 = sbr.rel (%p512) target = $region64
      $region63: #{model_forward.7} parent=11 // pred_region
        _
      $region64: #{model_forward.7} parent=11 // pred_fallthru
        _
      // Predicated region
      $region65: #{model_forward.7} parent=11 // pred_check
        %p515 = pneg %p346
      $region66: #{model_forward.7} parent=11 // pred_check_branch
        %517 = sbr.rel (%p515) target = $region68
      $region67: #{model_forward.7} parent=11 // pred_region
        _
      $region68: #{model_forward.7} parent=11 // pred_fallthru
        _
      // Predicated region
      $region69: #{model_forward.7} parent=11 // pred_check
        %p518 = pneg %p367
      $region70: #{model_forward.7} parent=11 // pred_check_branch
        %520 = sbr.rel (%p518) target = $region72
      $region71: #{model_forward.7} parent=11 // pred_region
        _
      $region72: #{model_forward.7} parent=11 // pred_fallthru
        _
      // Predicated region
      $region73: #{model_forward.7} parent=11 // pred_check
        %p521 = pneg %p388
      $region74: #{model_forward.7} parent=11 // pred_check_branch
        %523 = sbr.rel (%p521) target = $region76
      $region75: #{model_forward.7} parent=11 // pred_region
        _
      $region76: #{model_forward.7} parent=11 // pred_fallthru
        _
      // Predicated region
      $region77: #{model_forward.7} parent=11 // pred_check
        %p524 = pneg %p409
      $region78: #{model_forward.7} parent=11 // pred_check_branch
        %526 = sbr.rel (%p524) target = $region80
      $region79: #{model_forward.7} parent=11 // pred_region
        _
      $region80: #{model_forward.7} parent=11 // pred_fallthru
        _
    $region12: #{model_forward.7} parent=5 // pred_fallthru
      _
    %p527 = scmp.lt.s32.totalorder %s26, 2
    // Predicated region
    $region81: #{model_forward.7} parent=5 // pred_check
      %p528 = pneg %p527
    $region82: #{model_forward.7} parent=5 // pred_check_branch
      %530 = sbr.rel (%p528) target = $region84
    $region83: #{model_forward.7} parent=5 // pred_region
      // Predicated region
      $region85: #{model_forward.7} parent=83 // pred_check
        %p531 = pneg %p46
      $region86: #{model_forward.7} parent=83 // pred_check_branch
        %533 = sbr.rel (%p531) target = $region88
      $region87: #{model_forward.7} parent=83 // pred_region
        %p534 = scmp.lt.s32.totalorder %s26, 1
        %s535 = scalar_select %p534, %s26, 1
        %s536 = smul.addr %s535, 2
        %s537 = smul.addr %s536, 8
        %s538 = scalar_lea.vmem %s0, %s537
      $region88: #{model_forward.7} parent=83 // pred_fallthru
        _
    $region84: #{model_forward.7} parent=5 // pred_fallthru
      _
    %p539 = scmp.le.s32.totalorder 1, %s26
    %p540 = scmp.lt.s32.totalorder %s26, 3
    %p541 = pnand %p539, %p540
    %p542 = pneg %p541
    // Predicated region
    $region89: #{model_forward.7} parent=5 // pred_check
      _
    $region90: #{model_forward.7} parent=5 // pred_check_branch
      %544 = sbr.rel (%p541) target = $region92
    $region91: #{model_forward.7} parent=5 // pred_region
      %s545 = ssub.s32 %s26, 1
      %p546 = scmp.lt.s32.totalorder %s31, 1
      %s547 = scalar_select %p546, %s31, 1
      %s548 = smul.addr %s547, 2
      %s549 = smul.addr %s548, 8
      %s550 = scalar_lea.vmem %s0, %s549
      %p551 = pneg %p52
      %p552 = pneg %p49
      %p553 = pneg %p73
      %p554 = pneg %p70
      %p555 = pneg %p94
      %p556 = pneg %p91
      %p557 = pneg %p115
      %p558 = pneg %p112
      %p559 = pneg %p136
      %p560 = pneg %p133
      %p561 = pneg %p157
      %p562 = pneg %p154
      %p563 = pneg %p178
      %p564 = pneg %p175
      %p565 = pneg %p199
      %p566 = pneg %p196
      %p567 = pneg %p220
      %p568 = pneg %p217
      %p569 = pneg %p241
      %p570 = pneg %p238
      %p571 = pneg %p262
      %p572 = pneg %p259
      %p573 = pneg %p283
      %p574 = pneg %p280
      %p575 = pneg %p304
      %p576 = pneg %p301
      %p577 = pneg %p325
      %p578 = pneg %p322
      %p579 = pneg %p346
      %p580 = pneg %p343
      %p581 = pneg %p367
      %p582 = pneg %p364
      %p583 = pneg %p388
      %p584 = pneg %p385
      %p585 = pneg %p409
      %p586 = pneg %p406
      %p587 = pneg %p435
      %p588 = pneg %p432
      %p589 = scmp.lt.s32.totalorder %s31, 1
      %s590 = scalar_select %p589, %s31, 1
      %s591 = smul.addr %s590, 2
      %s592 = smul.addr %s591, 8
      %s593 = scalar_lea.vmem %s18, %s592
      %p594 = pneg %p461
      %p595 = pneg %p458
      %p596 = scmp.lt.s32.totalorder %s31, 1
      %s597 = scalar_select %p596, %s31, 1
      %s598 = smul.addr %s597, 3
      %s599 = scalar_lea.vmem %s19, %s598
      %p600 = scmp.lt.s32.totalorder %s31, 1
      %s601 = scalar_select %p600, %s31, 1
      %s602 = smul.addr %s601, 2
      %s603 = smul.addr %s602, 8
      %s604 = scalar_lea.vmem %s0, %s603
      %p605 = scmp.lt.s32.totalorder %s31, 1
      %s606 = scalar_select %p605, %s31, 1
      %s607 = smul.addr %s606, 2
      %s608 = smul.addr %s607, 8
      %s609 = scalar_lea.vmem %s18, %s608
      %p610 = scmp.lt.s32.totalorder %s31, 1
      %s611 = scalar_select %p610, %s31, 1
      %s612 = smul.addr %s611, 3
      %s613 = scalar_lea.vmem %s19, %s612
      %v614 = vld [vmem:[%s604] sm:$0xff]
      %v615 = vld [vmem:[%s604 + $0x8] sm:$0xff]
      %v616 = vld [vmem:[%s4] sm:$0x1]
      %v617 = vld [vmem:[%s5] sm:$0x1]
      %vm618 = vcmask 261120
      %v619 = vsel %vm618, %v614, 0.0
      %620 = vadd.xlane.f32.xlu0 %v619
      %v621 = vpop.xlane.xlu0 %620
      %v622 = vsel %vm618, %v615, 0.0
      %623 = vadd.xlane.f32.xlu0 %v622
      %v624 = vpop.xlane.xlu0 %623
      %v625 = vrcp.pop 32.0
      %v626 = vmul.f32 32.0, %v625
      %v627 = vsub.f32 1.0, %v626
      %v628 = vmul.f32 %v625, %v627
      %v629 = vadd.f32 %v625, %v628
      %vm630 = vweird.f32 %v625
      %v631 = vsel %vm630, %v625, %v629
      %v632 = vmul.f32 %v621, %v631
      %v633 = vmul.f32 %v624, %v631
      %v634 = vsub.f32 %v614, %v632
      %v635 = vsub.f32 %v615, %v633
      %v636 = vmul.f32 %v634, %v634
      %v637 = vmul.f32 %v635, %v635
      %v638 = vsel %vm618, %v636, 0.0
      %639 = vadd.xlane.f32.xlu0 %v638
      %v640 = vpop.xlane.xlu0 %639
      %v641 = vsel %vm618, %v637, 0.0
      %642 = vadd.xlane.f32.xlu0 %v641
      %v643 = vpop.xlane.xlu0 %642
      %v644 = vmul.f32 %v640, %v631
      %v645 = vmul.f32 %v643, %v631
      %v646 = vadd.f32 %v644, 1e-05
      %v647 = vadd.f32 %v645, 1e-05
      %v648 = vrsqrt.pop %v646
      %v649 = vmul.f32 %v648, %v646
      %v650 = vmul.f32 %v649, %v648
      %v651 = vmul.f32 0.5, %v650
      %v652 = vsub.f32 1.5, %v651
      %v653 = vmul.f32 %v648, %v652
      %vm654 = vweird.f32 %v646
      %vm655 = vweird.f32 %v648
      %vm656 = vmor %vm654, %vm655
      %v657 = vsel %vm656, %v648, %v653
      %v658 = vrsqrt.pop %v647
      %v659 = vmul.f32 %v658, %v647
      %v660 = vmul.f32 %v659, %v658
      %v661 = vmul.f32 0.5, %v660
      %v662 = vsub.f32 1.5, %v661
      %v663 = vmul.f32 %v658, %v662
      %vm664 = vweird.f32 %v647
      %vm665 = vweird.f32 %v658
      %vm666 = vmor %vm664, %vm665
      %v667 = vsel %vm666, %v658, %v663
      %v668 = vmul.f32 %v634, %v657
      %v669 = vmul.f32 %v635, %v667
      %v671 = vperm.slane %v616, 0
      %v673 = vmul.f32 %v668, %v671
      %v674 = vmul.f32 %v669, %v671
      %v676 = vperm.slane %v617, 0
      %v678 = vadd.f32 %v673, %v676
      %v679 = vadd.f32 %v674, %v676
      %v680 = vld [vmem:[%s1] sm:$0xff]
      %v681 = vld [vmem:[%s1 + $0x8] sm:$0xff]
      %v682 = vld [vmem:[%s1 + $0x10] sm:$0xff]
      %v683 = vld [vmem:[%s1 + $0x18] sm:$0xff]
      %v684 = vld [vmem:[%s2] sm:$0x1]
      %v686 = vperm.slane %v684, 0
      %v689 = vsel %vm618, %v678, 0
      %v692 = vsel %vm618, %v679, 0
      %694 = vmatpush.msra.mxu0 0.0
      %695 = vmatpush.msra.mxu0 0.0
      %696 = vmatpush.msra.mxu0 0.0
      %697 = vmatpush.msra.mxu0 0.0
      %698 = vmatpush.msra.mxu0 0.0
      %699 = vmatpush.msra.mxu0 0.0
      %700 = vmatpush.msra.mxu0 0.0
      %701 = vmatpush.msra.mxu0 0.0
      %702 = vmatpush.msra.mxu0 0.0
      %703 = vmatpush.msra.mxu0 0.0
      %704 = vmatpush.msra.mxu0 0.0
      %705 = vmatpush.msra.mxu0 0.0
      %706 = vmatpush.msra.mxu0 %v683
      %707 = vmatpush.msra.mxu0 %v682
      %708 = vmatpush.msra.mxu0 %v681
      %709 = vmatpush.msra.mxu0 %v680
      %710 = vmatmul.f32.gmra.mxu0 %v689
      %v711 = vpop.f32.mrf.mxu0
      %v712 = vadd.f32 %v686, %v711
      %713 = vmatmul.f32.gmra.mxu0 %v692
      %v714 = vpop.f32.mrf.mxu0
      %v715 = vadd.f32 %v686, %v714
      %716 = vdwg.mxu0
      %v717 = vld [vmem:[%s16] sm:$0xff]
      %v718 = vld [vmem:[%s16 + $0x8] sm:$0xff]
      %s719 = scalar_lea.vmem %s16, 16
      %v720 = vld [vmem:[%s719] sm:$0xff]
      %v721 = vld [vmem:[%s719 + $0x8] sm:$0xff]
      %s722 = scalar_lea.vmem %s16, 32
      %v723 = vld [vmem:[%s722] sm:$0xff]
      %v724 = vld [vmem:[%s722 + $0x8] sm:$0xff]
      %s725 = scalar_lea.vmem %s16, 48
      %v726 = vld [vmem:[%s725] sm:$0xff]
      %v727 = vld [vmem:[%s725 + $0x8] sm:$0xff]
      %s728 = scalar_lea.vmem %s16, 64
      %v729 = vld [vmem:[%s728] sm:$0xff]
      %v730 = vld [vmem:[%s728 + $0x8] sm:$0xff]
      %v731 = vld [vmem:[%s17] sm:$0xff]
      %v732 = vld [vmem:[%s17 + $0x8] sm:$0xff]
      %v733 = vld [vmem:[%s3] sm:$0xff]
      %v734 = vld [vmem:[%s3 + $0x8] sm:$0xff]
      %vm735 = vcmask 130048
      %v737 = vsel %vm735, %v712, 0
      %v740 = vsel %vm735, %v715, 0
      %742 = vmatpush.msra.mxu0 0.0
      %743 = vmatpush.msra.mxu0 0.0
      %744 = vmatpush.msra.mxu0 0.0
      %745 = vmatpush.msra.mxu0 0.0
      %746 = vmatpush.msra.mxu0 0.0
      %747 = vmatpush.msra.mxu0 0.0
      %748 = vmatpush.msra.mxu0 0.0
      %749 = vmatpush.msra.mxu0 0.0
      %750 = vmatpush.msra.mxu0 0.0
      %751 = vmatpush.msra.mxu0 0.0
      %752 = vmatpush.msra.mxu0 0.0
      %753 = vmatpush.msra.mxu0 0.0
      %754 = vmatpush.msra.mxu0 0.0
      %755 = vmatpush.msra.mxu0 0.0
      %756 = vmatpush.msra.mxu0 %v734
      %757 = vmatpush.msra.mxu0 %v733
      %758 = vmatmul.f32.gmra.mxu0 %v737
      %v759 = vpop.f32.mrf.mxu0
      %v760 = vadd.f32 0.0, %v759
      %761 = vmatmul.f32.gmra.mxu0 %v740
      %v762 = vpop.f32.mrf.mxu0
      %v763 = vadd.f32 0.0, %v762
      %764 = vdwg.mxu0
      %766 = vset.pattern.permute.xlu0 0
      %767 = vperm.xlu0 %766, %v760
      %v768 = vpop.permute.xlu0 %767
      %771 = vset.pattern.permute.xlu0 0
      %772 = vperm.xlu0 %771, %v763
      %v773 = vpop.permute.xlu0 %772
      %v775 = vmul.f32 %v768, %v717
      %v776 = vmul.f32 %v773, %v718
      %777 = vset.pattern.permute.xlu0 1
      %778 = vperm.xlu0 %777, %v760
      %v779 = vpop.permute.xlu0 %778
      %781 = vset.pattern.permute.xlu0 1
      %782 = vperm.xlu0 %781, %v763
      %v783 = vpop.permute.xlu0 %782
      %v785 = vmul.f32 %v779, %v720
      %v786 = vmul.f32 %v783, %v721
      %v787 = vadd.f32 %v775, %v785
      %v788 = vadd.f32 %v776, %v786
      %789 = vset.pattern.permute.xlu0 2
      %790 = vperm.xlu0 %789, %v760
      %v791 = vpop.permute.xlu0 %790
      %793 = vset.pattern.permute.xlu0 2
      %794 = vperm.xlu0 %793, %v763
      %v795 = vpop.permute.xlu0 %794
      %v797 = vmul.f32 %v791, %v723
      %v798 = vmul.f32 %v795, %v724
      %v799 = vadd.f32 %v787, %v797
      %v800 = vadd.f32 %v788, %v798
      %801 = vset.pattern.permute.xlu0 3
      %802 = vperm.xlu0 %801, %v760
      %v803 = vpop.permute.xlu0 %802
      %805 = vset.pattern.permute.xlu0 3
      %806 = vperm.xlu0 %805, %v763
      %v807 = vpop.permute.xlu0 %806
      %v809 = vmul.f32 %v803, %v726
      %v810 = vmul.f32 %v807, %v727
      %v811 = vadd.f32 %v799, %v809
      %v812 = vadd.f32 %v800, %v810
      %813 = vset.pattern.permute.xlu0 4
      %814 = vperm.xlu0 %813, %v760
      %v815 = vpop.permute.xlu0 %814
      %817 = vset.pattern.permute.xlu0 4
      %818 = vperm.xlu0 %817, %v763
      %v819 = vpop.permute.xlu0 %818
      %v821 = vmul.f32 %v815, %v729
      %v822 = vmul.f32 %v819, %v730
      %v823 = vadd.f32 %v811, %v821
      %v824 = vadd.f32 %v812, %v822
      %825 = vrot.lane.b32.xlu0 %v712, 96
      %v826 = vpop.permute.xlu0 %825
      %827 = vrot.lane.b32.xlu0 %v715, 96
      %v828 = vpop.permute.xlu0 %827
      %v829 = vsel %vm735, %v826, 0
      %v831 = vsel %vm735, %v828, 0
      %833 = vmatpush.xpose.msra.mxu0 0.0
      %834 = vmatpush.xpose.msra.mxu0 0.0
      %835 = vmatpush.xpose.msra.mxu0 0.0
      %836 = vmatpush.xpose.msra.mxu0 0.0
      %837 = vmatpush.xpose.msra.mxu0 0.0
      %838 = vmatpush.xpose.msra.mxu0 0.0
      %839 = vmatpush.xpose.msra.mxu0 0.0
      %840 = vmatpush.xpose.msra.mxu0 0.0
      %841 = vmatpush.xpose.msra.mxu0 0.0
      %842 = vmatpush.xpose.msra.mxu0 0.0
      %843 = vmatpush.xpose.msra.mxu0 0.0
      %844 = vmatpush.xpose.msra.mxu0 0.0
      %845 = vmatpush.xpose.msra.mxu0 0.0
      %846 = vmatpush.xpose.msra.mxu0 0.0
      %847 = vmatpush.xpose.msra.mxu0 %v831
      %848 = vmatpush.xpose.msra.mxu0 %v829
      %849 = vmatmul.f32.gmra.mxu0 %v737
      %v850 = vpop.f32.mrf.mxu0
      %v851 = vadd.f32 %v823, %v850
      %852 = vmatmul.f32.gmra.mxu0 %v740
      %v853 = vpop.f32.mrf.mxu0
      %v854 = vadd.f32 %v824, %v853
      %855 = vdwg.mxu0
      %v856 = vmul.f32 %v851, 0.25
      %v857 = vmul.f32 %v854, 0.25
      %v858 = vadd.f32 %v856, %v731
      %v859 = vadd.f32 %v857, %v732
      %v860 = vsel %vm735, %v858, -inf
      %861 = vmax.xlane.f32.xlu0 %v860
      %v862 = vpop.xlane.xlu0 %861
      %v863 = vsel %vm735, %v859, -inf
      %864 = vmax.xlane.f32.xlu0 %v863
      %v865 = vpop.xlane.xlu0 %864
      %v866 = vsub.f32 %v858, %v862
      %v867 = vsub.f32 %v859, %v865
      %v868 = vmul.f32 %v866, 1.442695
      %v869 = vpow.pop %v868
      %v870 = vmul.f32 %v867, 1.442695
      %v871 = vpow.pop %v870
      %v872 = vsel %vm735, %v869, 0.0
      %873 = vadd.xlane.f32.xlu0 %v872
      %v874 = vpop.xlane.xlu0 %873
      %v875 = vsel %vm735, %v871, 0.0
      %876 = vadd.xlane.f32.xlu0 %v875
      %v877 = vpop.xlane.xlu0 %876
      %v878 = vrcp.pop %v874
      %v879 = vrcp.pop %v877
      %v880 = vmul.f32 %v869, %v878
      %v881 = vmul.f32 %v871, %v879
      %882 = vrot.lane.b32.xlu0 %v712, 64
      %v883 = vpop.permute.xlu0 %882
      %884 = vrot.lane.b32.xlu0 %v715, 64
      %v885 = vpop.permute.xlu0 %884
      %v889 = vsel %vm735, %v880, 0
      %v892 = vsel %vm735, %v881, 0
      %894 = vmatpush.msra.mxu0 0.0
      %895 = vmatpush.msra.mxu0 0.0
      %896 = vmatpush.msra.mxu0 0.0
      %897 = vmatpush.msra.mxu0 0.0
      %898 = vmatpush.msra.mxu0 0.0
      %899 = vmatpush.msra.mxu0 0.0
      %900 = vmatpush.msra.mxu0 0.0
      %901 = vmatpush.msra.mxu0 0.0
      %902 = vmatpush.msra.mxu0 0.0
      %903 = vmatpush.msra.mxu0 0.0
      %904 = vmatpush.msra.mxu0 0.0
      %905 = vmatpush.msra.mxu0 0.0
      %906 = vmatpush.msra.mxu0 0.0
      %907 = vmatpush.msra.mxu0 0.0
      %908 = vmatpush.msra.mxu0 %v885
      %909 = vmatpush.msra.mxu0 %v883
      %910 = vmatmul.f32.gmra.mxu0 %v889
      %v911 = vpop.f32.mrf.mxu0
      %v912 = vadd.f32 0.0, %v911
      %913 = vmatmul.f32.gmra.mxu0 %v892
      %v914 = vpop.f32.mrf.mxu0
      %v915 = vadd.f32 0.0, %v914
      %916 = vdwg.mxu0
      %s917 = scalar_lea.vmem %s3, 16
      %v918 = vld [vmem:[%s917] sm:$0xff]
      %v919 = vld [vmem:[%s917 + $0x8] sm:$0xff]
      %920 = vrot.lane.b32.xlu0 %v712, 112
      %v921 = vpop.permute.xlu0 %920
      %922 = vrot.lane.b32.xlu0 %v715, 112
      %v923 = vpop.permute.xlu0 %922
      %v924 = vsel %vm735, %v921, 0
      %v926 = vsel %vm735, %v923, 0
      %928 = vmatpush.msra.mxu0 0.0
      %929 = vmatpush.msra.mxu0 0.0
      %930 = vmatpush.msra.mxu0 0.0
      %931 = vmatpush.msra.mxu0 0.0
      %932 = vmatpush.msra.mxu0 0.0
      %933 = vmatpush.msra.mxu0 0.0
      %934 = vmatpush.msra.mxu0 0.0
      %935 = vmatpush.msra.mxu0 0.0
      %936 = vmatpush.msra.mxu0 0.0
      %937 = vmatpush.msra.mxu0 0.0
      %938 = vmatpush.msra.mxu0 0.0
      %939 = vmatpush.msra.mxu0 0.0
      %940 = vmatpush.msra.mxu0 0.0
      %941 = vmatpush.msra.mxu0 0.0
      %942 = vmatpush.msra.mxu0 %v919
      %943 = vmatpush.msra.mxu0 %v918
      %944 = vmatmul.f32.gmra.mxu0 %v924
      %v945 = vpop.f32.mrf.mxu0
      %v946 = vadd.f32 0.0, %v945
      %947 = vmatmul.f32.gmra.mxu0 %v926
      %v948 = vpop.f32.mrf.mxu0
      %v949 = vadd.f32 0.0, %v948
      %950 = vdwg.mxu0
      %952 = vset.pattern.permute.xlu0 0
      %953 = vperm.xlu0 %952, %v946
      %v954 = vpop.permute.xlu0 %953
      %957 = vset.pattern.permute.xlu0 0
      %958 = vperm.xlu0 %957, %v949
      %v959 = vpop.permute.xlu0 %958
      %v961 = vmul.f32 %v954, %v717
      %v962 = vmul.f32 %v959, %v718
      %963 = vset.pattern.permute.xlu0 1
      %964 = vperm.xlu0 %963, %v946
      %v965 = vpop.permute.xlu0 %964
      %967 = vset.pattern.permute.xlu0 1
      %968 = vperm.xlu0 %967, %v949
      %v969 = vpop.permute.xlu0 %968
      %v971 = vmul.f32 %v965, %v720
      %v972 = vmul.f32 %v969, %v721
      %v973 = vadd.f32 %v961, %v971
      %v974 = vadd.f32 %v962, %v972
      %975 = vset.pattern.permute.xlu0 2
      %976 = vperm.xlu0 %975, %v946
      %v977 = vpop.permute.xlu0 %976
      %979 = vset.pattern.permute.xlu0 2
      %980 = vperm.xlu0 %979, %v949
      %v981 = vpop.permute.xlu0 %980
      %v983 = vmul.f32 %v977, %v723
      %v984 = vmul.f32 %v981, %v724
      %v985 = vadd.f32 %v973, %v983
      %v986 = vadd.f32 %v974, %v984
      %987 = vset.pattern.permute.xlu0 3
      %988 = vperm.xlu0 %987, %v946
      %v989 = vpop.permute.xlu0 %988
      %991 = vset.pattern.permute.xlu0 3
      %992 = vperm.xlu0 %991, %v949
      %v993 = vpop.permute.xlu0 %992
      %v995 = vmul.f32 %v989, %v726
      %v996 = vmul.f32 %v993, %v727
      %v997 = vadd.f32 %v985, %v995
      %v998 = vadd.f32 %v986, %v996
      %999 = vset.pattern.permute.xlu0 4
      %1000 = vperm.xlu0 %999, %v946
      %v1001 = vpop.permute.xlu0 %1000
      %1003 = vset.pattern.permute.xlu0 4
      %1004 = vperm.xlu0 %1003, %v949
      %v1005 = vpop.permute.xlu0 %1004
      %v1007 = vmul.f32 %v1001, %v729
      %v1008 = vmul.f32 %v1005, %v730
      %v1009 = vadd.f32 %v997, %v1007
      %v1010 = vadd.f32 %v998, %v1008
      %1011 = vrot.lane.b32.xlu0 %v712, 80
      %v1012 = vpop.permute.xlu0 %1011
      %1013 = vrot.lane.b32.xlu0 %v715, 80
      %v1014 = vpop.permute.xlu0 %1013
      %v1015 = vsel %vm735, %v1012, 0
      %v1017 = vsel %vm735, %v1014, 0
      %1019 = vmatpush.xpose.msra.mxu0 0.0
      %1020 = vmatpush.xpose.msra.mxu0 0.0
      %1021 = vmatpush.xpose.msra.mxu0 0.0
      %1022 = vmatpush.xpose.msra.mxu0 0.0
      %1023 = vmatpush.xpose.msra.mxu0 0.0
      %1024 = vmatpush.xpose.msra.mxu0 0.0
      %1025 = vmatpush.xpose.msra.mxu0 0.0
      %1026 = vmatpush.xpose.msra.mxu0 0.0
      %1027 = vmatpush.xpose.msra.mxu0 0.0
      %1028 = vmatpush.xpose.msra.mxu0 0.0
      %1029 = vmatpush.xpose.msra.mxu0 0.0
      %1030 = vmatpush.xpose.msra.mxu0 0.0
      %1031 = vmatpush.xpose.msra.mxu0 0.0
      %1032 = vmatpush.xpose.msra.mxu0 0.0
      %1033 = vmatpush.xpose.msra.mxu0 %v1017
      %1034 = vmatpush.xpose.msra.mxu0 %v1015
      %1035 = vmatmul.f32.gmra.mxu0 %v924
      %v1036 = vpop.f32.mrf.mxu0
      %v1037 = vadd.f32 %v1009, %v1036
      %1038 = vmatmul.f32.gmra.mxu0 %v926
      %v1039 = vpop.f32.mrf.mxu0
      %v1040 = vadd.f32 %v1010, %v1039
      %1041 = vdwg.mxu0
      %v1042 = vmul.f32 %v1037, 0.25
      %v1043 = vmul.f32 %v1040, 0.25
      %v1044 = vadd.f32 %v1042, %v731
      %v1045 = vadd.f32 %v1043, %v732
      %v1046 = vsel %vm735, %v1044, -inf
      %1047 = vmax.xlane.f32.xlu0 %v1046
      %v1048 = vpop.xlane.xlu0 %1047
      %v1049 = vsel %vm735, %v1045, -inf
      %1050 = vmax.xlane.f32.xlu0 %v1049
      %v1051 = vpop.xlane.xlu0 %1050
      %v1052 = vsub.f32 %v1044, %v1048
      %v1053 = vsub.f32 %v1045, %v1051
      %v1054 = vmul.f32 %v1052, 1.442695
      %v1055 = vpow.pop %v1054
      %v1056 = vmul.f32 %v1053, 1.442695
      %v1057 = vpow.pop %v1056
      %v1058 = vsel %vm735, %v1055, 0.0
      %1059 = vadd.xlane.f32.xlu0 %v1058
      %v1060 = vpop.xlane.xlu0 %1059
      %v1061 = vsel %vm735, %v1057, 0.0
      %1062 = vadd.xlane.f32.xlu0 %v1061
      %v1063 = vpop.xlane.xlu0 %1062
      %v1064 = vrcp.pop %v1060
      %v1065 = vrcp.pop %v1063
      %v1066 = vmul.f32 %v1055, %v1064
      %v1067 = vmul.f32 %v1057, %v1065
      %1068 = vrot.lane.b32.xlu0 %v712, 48
      %v1069 = vpop.permute.xlu0 %1068
      %1070 = vrot.lane.b32.xlu0 %v715, 48
      %v1071 = vpop.permute.xlu0 %1070
      %v1075 = vsel %vm735, %v1066, 0
      %v1078 = vsel %vm735, %v1067, 0
      %1080 = vmatpush.msra.mxu0 0.0
      %1081 = vmatpush.msra.mxu0 0.0
      %1082 = vmatpush.msra.mxu0 0.0
      %1083 = vmatpush.msra.mxu0 0.0
      %1084 = vmatpush.msra.mxu0 0.0
      %1085 = vmatpush.msra.mxu0 0.0
      %1086 = vmatpush.msra.mxu0 0.0
      %1087 = vmatpush.msra.mxu0 0.0
      %1088 = vmatpush.msra.mxu0 0.0
      %1089 = vmatpush.msra.mxu0 0.0
      %1090 = vmatpush.msra.mxu0 0.0
      %1091 = vmatpush.msra.mxu0 0.0
      %1092 = vmatpush.msra.mxu0 0.0
      %1093 = vmatpush.msra.mxu0 0.0
      %1094 = vmatpush.msra.mxu0 %v1071
      %1095 = vmatpush.msra.mxu0 %v1069
      %1096 = vmatmul.f32.gmra.mxu0 %v1075
      %v1097 = vpop.f32.mrf.mxu0
      %v1098 = vadd.f32 0.0, %v1097
      %1099 = vmatmul.f32.gmra.mxu0 %v1078
      %v1100 = vpop.f32.mrf.mxu0
      %v1101 = vadd.f32 0.0, %v1100
      %1102 = vdwg.mxu0
      %1105 = vrot.lane.b32.xlu0 %v1098, 16
      %v1106 = vpop.permute.xlu0 %1105
      %1107 = vrot.lane.b32.xlu0 %v1101, 16
      %v1108 = vpop.permute.xlu0 %1107
      %v1111 = vsel %vm735, %v912, %v1106
      %v1112 = vsel %vm735, %v915, %v1108
      %v1113 = vadd.f32 %v1111, 0.0
      %v1114 = vadd.f32 %v1112, 0.0
      %v1115 = vadd.f32 %v614, %v1111
      %v1116 = vadd.f32 %v615, %v1112
      %v1117 = vld [vmem:[%s6] sm:$0x1]
      %v1118 = vld [vmem:[%s7] sm:$0x1]
      %v1119 = vsel %vm618, %v1115, 0.0
      %1120 = vadd.xlane.f32.xlu0 %v1119
      %v1121 = vpop.xlane.xlu0 %1120
      %v1122 = vsel %vm618, %v1116, 0.0
      %1123 = vadd.xlane.f32.xlu0 %v1122
      %v1124 = vpop.xlane.xlu0 %1123
      %v1125 = vmul.f32 %v1121, %v631
      %v1126 = vmul.f32 %v1124, %v631
      %v1127 = vsub.f32 %v1115, %v1125
      %v1128 = vsub.f32 %v1116, %v1126
      %v1129 = vmul.f32 %v1127, %v1127
      %v1130 = vmul.f32 %v1128, %v1128
      %v1131 = vsel %vm618, %v1129, 0.0
      %1132 = vadd.xlane.f32.xlu0 %v1131
      %v1133 = vpop.xlane.xlu0 %1132
      %v1134 = vsel %vm618, %v1130, 0.0
      %1135 = vadd.xlane.f32.xlu0 %v1134
      %v1136 = vpop.xlane.xlu0 %1135
      %v1137 = vmul.f32 %v1133, %v631
      %v1138 = vmul.f32 %v1136, %v631
      %v1139 = vadd.f32 %v1137, 1e-05
      %v1140 = vadd.f32 %v1138, 1e-05
      %v1141 = vrsqrt.pop %v1139
      %v1142 = vmul.f32 %v1141, %v1139
      %v1143 = vmul.f32 %v1142, %v1141
      %v1144 = vmul.f32 0.5, %v1143
      %v1145 = vsub.f32 1.5, %v1144
      %v1146 = vmul.f32 %v1141, %v1145
      %vm1147 = vweird.f32 %v1139
      %vm1148 = vweird.f32 %v1141
      %vm1149 = vmor %vm1147, %vm1148
      %v1150 = vsel %vm1149, %v1141, %v1146
      %v1151 = vrsqrt.pop %v1140
      %v1152 = vmul.f32 %v1151, %v1140
      %v1153 = vmul.f32 %v1152, %v1151
      %v1154 = vmul.f32 0.5, %v1153
      %v1155 = vsub.f32 1.5, %v1154
      %v1156 = vmul.f32 %v1151, %v1155
      %vm1157 = vweird.f32 %v1140
      %vm1158 = vweird.f32 %v1151
      %vm1159 = vmor %vm1157, %vm1158
      %v1160 = vsel %vm1159, %v1151, %v1156
      %v1161 = vmul.f32 %v1127, %v1150
      %v1162 = vmul.f32 %v1128, %v1160
      %v1164 = vperm.slane %v1117, 0
      %v1166 = vmul.f32 %v1161, %v1164
      %v1167 = vmul.f32 %v1162, %v1164
      %v1169 = vperm.slane %v1118, 0
      %v1171 = vadd.f32 %v1166, %v1169
      %v1172 = vadd.f32 %v1167, %v1169
      %v1173 = vld [vmem:[%s8] sm:$0xff]
      %v1174 = vld [vmem:[%s8 + $0x8] sm:$0xff]
      %v1175 = vld [vmem:[%s8 + $0x10] sm:$0xff]
      %v1176 = vld [vmem:[%s8 + $0x18] sm:$0xff]
      %v1177 = vld [vmem:[%s9] sm:$0x1]
      %v1179 = vperm.slane %v1177, 0
      %v1182 = vsel %vm618, %v1171, 0
      %v1185 = vsel %vm618, %v1172, 0
      %1187 = vmatpush.msra.mxu0 0.0
      %1188 = vmatpush.msra.mxu0 0.0
      %1189 = vmatpush.msra.mxu0 0.0
      %1190 = vmatpush.msra.mxu0 0.0
      %1191 = vmatpush.msra.mxu0 0.0
      %1192 = vmatpush.msra.mxu0 0.0
      %1193 = vmatpush.msra.mxu0 0.0
      %1194 = vmatpush.msra.mxu0 0.0
      %1195 = vmatpush.msra.mxu0 0.0
      %1196 = vmatpush.msra.mxu0 0.0
      %1197 = vmatpush.msra.mxu0 0.0
      %1198 = vmatpush.msra.mxu0 0.0
      %1199 = vmatpush.msra.mxu0 %v1176
      %1200 = vmatpush.msra.mxu0 %v1175
      %1201 = vmatpush.msra.mxu0 %v1174
      %1202 = vmatpush.msra.mxu0 %v1173
      %1203 = vmatmul.f32.gmra.mxu0 %v1182
      %v1204 = vpop.f32.mrf.mxu0
      %v1205 = vadd.f32 %v1179, %v1204
      %1206 = vmatmul.f32.gmra.mxu0 %v1185
      %v1207 = vpop.f32.mrf.mxu0
      %v1208 = vadd.f32 %v1179, %v1207
      %1209 = vdwg.mxu0
      %v1210 = vmax.f32 %v1205, 0.0
      %v1211 = vmax.f32 %v1208, 0.0
      %v1212 = vld [vmem:[%s10] sm:$0xff]
      %v1213 = vld [vmem:[%s10 + $0x8] sm:$0xff]
      %v1214 = vld [vmem:[%s10 + $0x10] sm:$0xff]
      %v1215 = vld [vmem:[%s10 + $0x18] sm:$0xff]
      %v1216 = vld [vmem:[%s10 + $0x20] sm:$0xff]
      %v1217 = vld [vmem:[%s10 + $0x28] sm:$0xff]
      %v1218 = vld [vmem:[%s10 + $0x30] sm:$0xff]
      %v1219 = vld [vmem:[%s10 + $0x38] sm:$0xff]
      %v1220 = vld [vmem:[%s11] sm:$0x1]
      %v1222 = vperm.slane %v1220, 0
      %vm1224 = vcmask 523264
      %v1226 = vsel %vm1224, %v1210, 0
      %v1229 = vsel %vm1224, %v1211, 0
      %1231 = vmatpush.msra.mxu0 0.0
      %1232 = vmatpush.msra.mxu0 0.0
      %1233 = vmatpush.msra.mxu0 0.0
      %1234 = vmatpush.msra.mxu0 0.0
      %1235 = vmatpush.msra.mxu0 0.0
      %1236 = vmatpush.msra.mxu0 0.0
      %1237 = vmatpush.msra.mxu0 0.0
      %1238 = vmatpush.msra.mxu0 0.0
      %1239 = vmatpush.msra.mxu0 %v1219
      %1240 = vmatpush.msra.mxu0 %v1218
      %1241 = vmatpush.msra.mxu0 %v1217
      %1242 = vmatpush.msra.mxu0 %v1216
      %1243 = vmatpush.msra.mxu0 %v1215
      %1244 = vmatpush.msra.mxu0 %v1214
      %1245 = vmatpush.msra.mxu0 %v1213
      %1246 = vmatpush.msra.mxu0 %v1212
      %1247 = vmatmul.f32.gmra.mxu0 %v1226
      %v1248 = vpop.f32.mrf.mxu0
      %v1249 = vadd.f32 %v1222, %v1248
      %1250 = vmatmul.f32.gmra.mxu0 %v1229
      %v1251 = vpop.f32.mrf.mxu0
      %v1252 = vadd.f32 %v1222, %v1251
      %1253 = vdwg.mxu0
      %v1254 = vadd.f32 %v1115, %v1249
      %v1255 = vadd.f32 %v1116, %v1252
      %s1256 = scalar_lea.vmem %s4, 1
      %v1257 = vld [vmem:[%s1256] sm:$0x1]
      %s1258 = scalar_lea.vmem %s5, 1
      %v1259 = vld [vmem:[%s1258] sm:$0x1]
      %v1260 = vsel %vm618, %v1254, 0.0
      %1261 = vadd.xlane.f32.xlu0 %v1260
      %v1262 = vpop.xlane.xlu0 %1261
      %v1263 = vsel %vm618, %v1255, 0.0
      %1264 = vadd.xlane.f32.xlu0 %v1263
      %v1265 = vpop.xlane.xlu0 %1264
      %v1266 = vmul.f32 %v1262, %v631
      %v1267 = vmul.f32 %v1265, %v631
      %v1268 = vsub.f32 %v1254, %v1266
      %v1269 = vsub.f32 %v1255, %v1267
      %v1270 = vmul.f32 %v1268, %v1268
      %v1271 = vmul.f32 %v1269, %v1269
      %v1272 = vsel %vm618, %v1270, 0.0
      %1273 = vadd.xlane.f32.xlu0 %v1272
      %v1274 = vpop.xlane.xlu0 %1273
      %v1275 = vsel %vm618, %v1271, 0.0
      %1276 = vadd.xlane.f32.xlu0 %v1275
      %v1277 = vpop.xlane.xlu0 %1276
      %v1278 = vmul.f32 %v1274, %v631
      %v1279 = vmul.f32 %v1277, %v631
      %v1280 = vadd.f32 %v1278, 1e-05
      %v1281 = vadd.f32 %v1279, 1e-05
      %v1282 = vrsqrt.pop %v1280
      %v1283 = vmul.f32 %v1282, %v1280
      %v1284 = vmul.f32 %v1283, %v1282
      %v1285 = vmul.f32 0.5, %v1284
      %v1286 = vsub.f32 1.5, %v1285
      %v1287 = vmul.f32 %v1282, %v1286
      %vm1288 = vweird.f32 %v1280
      %vm1289 = vweird.f32 %v1282
      %vm1290 = vmor %vm1288, %vm1289
      %v1291 = vsel %vm1290, %v1282, %v1287
      %v1292 = vrsqrt.pop %v1281
      %v1293 = vmul.f32 %v1292, %v1281
      %v1294 = vmul.f32 %v1293, %v1292
      %v1295 = vmul.f32 0.5, %v1294
      %v1296 = vsub.f32 1.5, %v1295
      %v1297 = vmul.f32 %v1292, %v1296
      %vm1298 = vweird.f32 %v1281
      %vm1299 = vweird.f32 %v1292
      %vm1300 = vmor %vm1298, %vm1299
      %v1301 = vsel %vm1300, %v1292, %v1297
      %v1302 = vmul.f32 %v1268, %v1291
      %v1303 = vmul.f32 %v1269, %v1301
      %v1305 = vperm.slane %v1257, 0
      %v1307 = vmul.f32 %v1302, %v1305
      %v1308 = vmul.f32 %v1303, %v1305
      %v1310 = vperm.slane %v1259, 0
      %v1312 = vadd.f32 %v1307, %v1310
      %v1313 = vadd.f32 %v1308, %v1310
      %s1314 = scalar_lea.vmem %s1, 32
      %v1315 = vld [vmem:[%s1314] sm:$0xff]
      %v1316 = vld [vmem:[%s1314 + $0x8] sm:$0xff]
      %v1317 = vld [vmem:[%s1314 + $0x10] sm:$0xff]
      %v1318 = vld [vmem:[%s1314 + $0x18] sm:$0xff]
      %s1319 = scalar_lea.vmem %s2, 1
      %v1320 = vld [vmem:[%s1319] sm:$0x1]
      %v1322 = vperm.slane %v1320, 0
      %v1325 = vsel %vm618, %v1312, 0
      %v1328 = vsel %vm618, %v1313, 0
      %1330 = vmatpush.msra.mxu0 0.0
      %1331 = vmatpush.msra.mxu0 0.0
      %1332 = vmatpush.msra.mxu0 0.0
      %1333 = vmatpush.msra.mxu0 0.0
      %1334 = vmatpush.msra.mxu0 0.0
      %1335 = vmatpush.msra.mxu0 0.0
      %1336 = vmatpush.msra.mxu0 0.0
      %1337 = vmatpush.msra.mxu0 0.0
      %1338 = vmatpush.msra.mxu0 0.0
      %1339 = vmatpush.msra.mxu0 0.0
      %1340 = vmatpush.msra.mxu0 0.0
      %1341 = vmatpush.msra.mxu0 0.0
      %1342 = vmatpush.msra.mxu0 %v1318
      %1343 = vmatpush.msra.mxu0 %v1317
      %1344 = vmatpush.msra.mxu0 %v1316
      %1345 = vmatpush.msra.mxu0 %v1315
      %1346 = vmatmul.f32.gmra.mxu0 %v1325
      %v1347 = vpop.f32.mrf.mxu0
      %v1348 = vadd.f32 %v1322, %v1347
      %1349 = vmatmul.f32.gmra.mxu0 %v1328
      %v1350 = vpop.f32.mrf.mxu0
      %v1351 = vadd.f32 %v1322, %v1350
      %1352 = vdwg.mxu0
      %s1353 = scalar_lea.vmem %s16, 80
      %v1354 = vld [vmem:[%s1353] sm:$0xff]
      %v1355 = vld [vmem:[%s1353 + $0x8] sm:$0xff]
      %s1356 = scalar_lea.vmem %s16, 96
      %v1357 = vld [vmem:[%s1356] sm:$0xff]
      %v1358 = vld [vmem:[%s1356 + $0x8] sm:$0xff]
      %s1359 = scalar_lea.vmem %s16, 112
      %v1360 = vld [vmem:[%s1359] sm:$0xff]
      %v1361 = vld [vmem:[%s1359 + $0x8] sm:$0xff]
      %s1362 = scalar_lea.vmem %s16, 128
      %v1363 = vld [vmem:[%s1362] sm:$0xff]
      %v1364 = vld [vmem:[%s1362 + $0x8] sm:$0xff]
      %s1365 = scalar_lea.vmem %s16, 144
      %v1366 = vld [vmem:[%s1365] sm:$0xff]
      %v1367 = vld [vmem:[%s1365 + $0x8] sm:$0xff]
      %s1368 = scalar_lea.vmem %s17, 16
      %v1369 = vld [vmem:[%s1368] sm:$0xff]
      %v1370 = vld [vmem:[%s1368 + $0x8] sm:$0xff]
      %s1371 = scalar_lea.vmem %s3, 32
      %v1372 = vld [vmem:[%s1371] sm:$0xff]
      %v1373 = vld [vmem:[%s1371 + $0x8] sm:$0xff]
      %v1375 = vsel %vm735, %v1348, 0
      %v1378 = vsel %vm735, %v1351, 0
      %1380 = vmatpush.msra.mxu0 0.0
      %1381 = vmatpush.msra.mxu0 0.0
      %1382 = vmatpush.msra.mxu0 0.0
      %1383 = vmatpush.msra.mxu0 0.0
      %1384 = vmatpush.msra.mxu0 0.0
      %1385 = vmatpush.msra.mxu0 0.0
      %1386 = vmatpush.msra.mxu0 0.0
      %1387 = vmatpush.msra.mxu0 0.0
      %1388 = vmatpush.msra.mxu0 0.0
      %1389 = vmatpush.msra.mxu0 0.0
      %1390 = vmatpush.msra.mxu0 0.0
      %1391 = vmatpush.msra.mxu0 0.0
      %1392 = vmatpush.msra.mxu0 0.0
      %1393 = vmatpush.msra.mxu0 0.0
      %1394 = vmatpush.msra.mxu0 %v1373
      %1395 = vmatpush.msra.mxu0 %v1372
      %1396 = vmatmul.f32.gmra.mxu0 %v1375
      %v1397 = vpop.f32.mrf.mxu0
      %v1398 = vadd.f32 0.0, %v1397
      %1399 = vmatmul.f32.gmra.mxu0 %v1378
      %v1400 = vpop.f32.mrf.mxu0
      %v1401 = vadd.f32 0.0, %v1400
      %1402 = vdwg.mxu0
      %1404 = vset.pattern.permute.xlu0 0
      %1405 = vperm.xlu0 %1404, %v1398
      %v1406 = vpop.permute.xlu0 %1405
      %1409 = vset.pattern.permute.xlu0 0
      %1410 = vperm.xlu0 %1409, %v1401
      %v1411 = vpop.permute.xlu0 %1410
      %v1413 = vmul.f32 %v1406, %v1354
      %v1414 = vmul.f32 %v1411, %v1355
      %1415 = vset.pattern.permute.xlu0 1
      %1416 = vperm.xlu0 %1415, %v1398
      %v1417 = vpop.permute.xlu0 %1416
      %1419 = vset.pattern.permute.xlu0 1
      %1420 = vperm.xlu0 %1419, %v1401
      %v1421 = vpop.permute.xlu0 %1420
      %v1423 = vmul.f32 %v1417, %v1357
      %v1424 = vmul.f32 %v1421, %v1358
      %v1425 = vadd.f32 %v1413, %v1423
      %v1426 = vadd.f32 %v1414, %v1424
      %1427 = vset.pattern.permute.xlu0 2
      %1428 = vperm.xlu0 %1427, %v1398
      %v1429 = vpop.permute.xlu0 %1428
      %1431 = vset.pattern.permute.xlu0 2
      %1432 = vperm.xlu0 %1431, %v1401
      %v1433 = vpop.permute.xlu0 %1432
      %v1435 = vmul.f32 %v1429, %v1360
      %v1436 = vmul.f32 %v1433, %v1361
      %v1437 = vadd.f32 %v1425, %v1435
      %v1438 = vadd.f32 %v1426, %v1436
      %1439 = vset.pattern.permute.xlu0 3
      %1440 = vperm.xlu0 %1439, %v1398
      %v1441 = vpop.permute.xlu0 %1440
      %1443 = vset.pattern.permute.xlu0 3
      %1444 = vperm.xlu0 %1443, %v1401
      %v1445 = vpop.permute.xlu0 %1444
      %v1447 = vmul.f32 %v1441, %v1363
      %v1448 = vmul.f32 %v1445, %v1364
      %v1449 = vadd.f32 %v1437, %v1447
      %v1450 = vadd.f32 %v1438, %v1448
      %1451 = vset.pattern.permute.xlu0 4
      %1452 = vperm.xlu0 %1451, %v1398
      %v1453 = vpop.permute.xlu0 %1452
      %1455 = vset.pattern.permute.xlu0 4
      %1456 = vperm.xlu0 %1455, %v1401
      %v1457 = vpop.permute.xlu0 %1456
      %v1459 = vmul.f32 %v1453, %v1366
      %v1460 = vmul.f32 %v1457, %v1367
      %v1461 = vadd.f32 %v1449, %v1459
      %v1462 = vadd.f32 %v1450, %v1460
      %1463 = vrot.lane.b32.xlu0 %v1348, 96
      %v1464 = vpop.permute.xlu0 %1463
      %1465 = vrot.lane.b32.xlu0 %v1351, 96
      %v1466 = vpop.permute.xlu0 %1465
      %v1467 = vsel %vm735, %v1464, 0
      %v1469 = vsel %vm735, %v1466, 0
      %1471 = vmatpush.xpose.msra.mxu0 0.0
      %1472 = vmatpush.xpose.msra.mxu0 0.0
      %1473 = vmatpush.xpose.msra.mxu0 0.0
      %1474 = vmatpush.xpose.msra.mxu0 0.0
      %1475 = vmatpush.xpose.msra.mxu0 0.0
      %1476 = vmatpush.xpose.msra.mxu0 0.0
      %1477 = vmatpush.xpose.msra.mxu0 0.0
      %1478 = vmatpush.xpose.msra.mxu0 0.0
      %1479 = vmatpush.xpose.msra.mxu0 0.0
      %1480 = vmatpush.xpose.msra.mxu0 0.0
      %1481 = vmatpush.xpose.msra.mxu0 0.0
      %1482 = vmatpush.xpose.msra.mxu0 0.0
      %1483 = vmatpush.xpose.msra.mxu0 0.0
      %1484 = vmatpush.xpose.msra.mxu0 0.0
      %1485 = vmatpush.xpose.msra.mxu0 %v1469
      %1486 = vmatpush.xpose.msra.mxu0 %v1467
      %1487 = vmatmul.f32.gmra.mxu0 %v1375
      %v1488 = vpop.f32.mrf.mxu0
      %v1489 = vadd.f32 %v1461, %v1488
      %1490 = vmatmul.f32.gmra.mxu0 %v1378
      %v1491 = vpop.f32.mrf.mxu0
      %v1492 = vadd.f32 %v1462, %v1491
      %1493 = vdwg.mxu0
      %v1494 = vmul.f32 %v1489, 0.25
      %v1495 = vmul.f32 %v1492, 0.25
      %v1496 = vadd.f32 %v1494, %v1369
      %v1497 = vadd.f32 %v1495, %v1370
      %v1498 = vsel %vm735, %v1496, -inf
      %1499 = vmax.xlane.f32.xlu0 %v1498
      %v1500 = vpop.xlane.xlu0 %1499
      %v1501 = vsel %vm735, %v1497, -inf
      %1502 = vmax.xlane.f32.xlu0 %v1501
      %v1503 = vpop.xlane.xlu0 %1502
      %v1504 = vsub.f32 %v1496, %v1500
      %v1505 = vsub.f32 %v1497, %v1503
      %v1506 = vmul.f32 %v1504, 1.442695
      %v1507 = vpow.pop %v1506
      %v1508 = vmul.f32 %v1505, 1.442695
      %v1509 = vpow.pop %v1508
      %v1510 = vsel %vm735, %v1507, 0.0
      %1511 = vadd.xlane.f32.xlu0 %v1510
      %v1512 = vpop.xlane.xlu0 %1511
      %v1513 = vsel %vm735, %v1509, 0.0
      %1514 = vadd.xlane.f32.xlu0 %v1513
      %v1515 = vpop.xlane.xlu0 %1514
      %v1516 = vrcp.pop %v1512
      %v1517 = vrcp.pop %v1515
      %v1518 = vmul.f32 %v1507, %v1516
      %v1519 = vmul.f32 %v1509, %v1517
      %1520 = vrot.lane.b32.xlu0 %v1348, 64
      %v1521 = vpop.permute.xlu0 %1520
      %1522 = vrot.lane.b32.xlu0 %v1351, 64
      %v1523 = vpop.permute.xlu0 %1522
      %v1527 = vsel %vm735, %v1518, 0
      %v1530 = vsel %vm735, %v1519, 0
      %1532 = vmatpush.msra.mxu0 0.0
      %1533 = vmatpush.msra.mxu0 0.0
      %1534 = vmatpush.msra.mxu0 0.0
      %1535 = vmatpush.msra.mxu0 0.0
      %1536 = vmatpush.msra.mxu0 0.0
      %1537 = vmatpush.msra.mxu0 0.0
      %1538 = vmatpush.msra.mxu0 0.0
      %1539 = vmatpush.msra.mxu0 0.0
      %1540 = vmatpush.msra.mxu0 0.0
      %1541 = vmatpush.msra.mxu0 0.0
      %1542 = vmatpush.msra.mxu0 0.0
      %1543 = vmatpush.msra.mxu0 0.0
      %1544 = vmatpush.msra.mxu0 0.0
      %1545 = vmatpush.msra.mxu0 0.0
      %1546 = vmatpush.msra.mxu0 %v1523
      %1547 = vmatpush.msra.mxu0 %v1521
      %1548 = vmatmul.f32.gmra.mxu0 %v1527
      %v1549 = vpop.f32.mrf.mxu0
      %v1550 = vadd.f32 0.0, %v1549
      %1551 = vmatmul.f32.gmra.mxu0 %v1530
      %v1552 = vpop.f32.mrf.mxu0
      %v1553 = vadd.f32 0.0, %v1552
      %1554 = vdwg.mxu0
      %s1555 = scalar_lea.vmem %s3, 48
      %v1556 = vld [vmem:[%s1555] sm:$0xff]
      %v1557 = vld [vmem:[%s1555 + $0x8] sm:$0xff]
      %1558 = vrot.lane.b32.xlu0 %v1348, 112
      %v1559 = vpop.permute.xlu0 %1558
      %1560 = vrot.lane.b32.xlu0 %v1351, 112
      %v1561 = vpop.permute.xlu0 %1560
      %v1562 = vsel %vm735, %v1559, 0
      %v1564 = vsel %vm735, %v1561, 0
      %1566 = vmatpush.msra.mxu0 0.0
      %1567 = vmatpush.msra.mxu0 0.0
      %1568 = vmatpush.msra.mxu0 0.0
      %1569 = vmatpush.msra.mxu0 0.0
      %1570 = vmatpush.msra.mxu0 0.0
      %1571 = vmatpush.msra.mxu0 0.0
      %1572 = vmatpush.msra.mxu0 0.0
      %1573 = vmatpush.msra.mxu0 0.0
      %1574 = vmatpush.msra.mxu0 0.0
      %1575 = vmatpush.msra.mxu0 0.0
      %1576 = vmatpush.msra.mxu0 0.0
      %1577 = vmatpush.msra.mxu0 0.0
      %1578 = vmatpush.msra.mxu0 0.0
      %1579 = vmatpush.msra.mxu0 0.0
      %1580 = vmatpush.msra.mxu0 %v1557
      %1581 = vmatpush.msra.mxu0 %v1556
      %1582 = vmatmul.f32.gmra.mxu0 %v1562
      %v1583 = vpop.f32.mrf.mxu0
      %v1584 = vadd.f32 0.0, %v1583
      %1585 = vmatmul.f32.gmra.mxu0 %v1564
      %v1586 = vpop.f32.mrf.mxu0
      %v1587 = vadd.f32 0.0, %v1586
      %1588 = vdwg.mxu0
      %1590 = vset.pattern.permute.xlu0 0
      %1591 = vperm.xlu0 %1590, %v1584
      %v1592 = vpop.permute.xlu0 %1591
      %1595 = vset.pattern.permute.xlu0 0
      %1596 = vperm.xlu0 %1595, %v1587
      %v1597 = vpop.permute.xlu0 %1596
      %v1599 = vmul.f32 %v1592, %v1354
      %v1600 = vmul.f32 %v1597, %v1355
      %1601 = vset.pattern.permute.xlu0 1
      %1602 = vperm.xlu0 %1601, %v1584
      %v1603 = vpop.permute.xlu0 %1602
      %1605 = vset.pattern.permute.xlu0 1
      %1606 = vperm.xlu0 %1605, %v1587
      %v1607 = vpop.permute.xlu0 %1606
      %v1609 = vmul.f32 %v1603, %v1357
      %v1610 = vmul.f32 %v1607, %v1358
      %v1611 = vadd.f32 %v1599, %v1609
      %v1612 = vadd.f32 %v1600, %v1610
      %1613 = vset.pattern.permute.xlu0 2
      %1614 = vperm.xlu0 %1613, %v1584
      %v1615 = vpop.permute.xlu0 %1614
      %1617 = vset.pattern.permute.xlu0 2
      %1618 = vperm.xlu0 %1617, %v1587
      %v1619 = vpop.permute.xlu0 %1618
      %v1621 = vmul.f32 %v1615, %v1360
      %v1622 = vmul.f32 %v1619, %v1361
      %v1623 = vadd.f32 %v1611, %v1621
      %v1624 = vadd.f32 %v1612, %v1622
      %1625 = vset.pattern.permute.xlu0 3
      %1626 = vperm.xlu0 %1625, %v1584
      %v1627 = vpop.permute.xlu0 %1626
      %1629 = vset.pattern.permute.xlu0 3
      %1630 = vperm.xlu0 %1629, %v1587
      %v1631 = vpop.permute.xlu0 %1630
      %v1633 = vmul.f32 %v1627, %v1363
      %v1634 = vmul.f32 %v1631, %v1364
      %v1635 = vadd.f32 %v1623, %v1633
      %v1636 = vadd.f32 %v1624, %v1634
      %1637 = vset.pattern.permute.xlu0 4
      %1638 = vperm.xlu0 %1637, %v1584
      %v1639 = vpop.permute.xlu0 %1638
      %1641 = vset.pattern.permute.xlu0 4
      %1642 = vperm.xlu0 %1641, %v1587
      %v1643 = vpop.permute.xlu0 %1642
      %v1645 = vmul.f32 %v1639, %v1366
      %v1646 = vmul.f32 %v1643, %v1367
      %v1647 = vadd.f32 %v1635, %v1645
      %v1648 = vadd.f32 %v1636, %v1646
      %1649 = vrot.lane.b32.xlu0 %v1348, 80
      %v1650 = vpop.permute.xlu0 %1649
      %1651 = vrot.lane.b32.xlu0 %v1351, 80
      %v1652 = vpop.permute.xlu0 %1651
      %v1653 = vsel %vm735, %v1650, 0
      %v1655 = vsel %vm735, %v1652, 0
      %1657 = vmatpush.xpose.msra.mxu0 0.0
      %1658 = vmatpush.xpose.msra.mxu0 0.0
      %1659 = vmatpush.xpose.msra.mxu0 0.0
      %1660 = vmatpush.xpose.msra.mxu0 0.0
      %1661 = vmatpush.xpose.msra.mxu0 0.0
      %1662 = vmatpush.xpose.msra.mxu0 0.0
      %1663 = vmatpush.xpose.msra.mxu0 0.0
      %1664 = vmatpush.xpose.msra.mxu0 0.0
      %1665 = vmatpush.xpose.msra.mxu0 0.0
      %1666 = vmatpush.xpose.msra.mxu0 0.0
      %1667 = vmatpush.xpose.msra.mxu0 0.0
      %1668 = vmatpush.xpose.msra.mxu0 0.0
      %1669 = vmatpush.xpose.msra.mxu0 0.0
      %1670 = vmatpush.xpose.msra.mxu0 0.0
      %1671 = vmatpush.xpose.msra.mxu0 %v1655
      %1672 = vmatpush.xpose.msra.mxu0 %v1653
      %1673 = vmatmul.f32.gmra.mxu0 %v1562
      %v1674 = vpop.f32.mrf.mxu0
      %v1675 = vadd.f32 %v1647, %v1674
      %1676 = vmatmul.f32.gmra.mxu0 %v1564
      %v1677 = vpop.f32.mrf.mxu0
      %v1678 = vadd.f32 %v1648, %v1677
      %1679 = vdwg.mxu0
      %v1680 = vmul.f32 %v1675, 0.25
      %v1681 = vmul.f32 %v1678, 0.25
      %v1682 = vadd.f32 %v1680, %v1369
      %v1683 = vadd.f32 %v1681, %v1370
      %v1684 = vsel %vm735, %v1682, -inf
      %1685 = vmax.xlane.f32.xlu0 %v1684
      %v1686 = vpop.xlane.xlu0 %1685
      %v1687 = vsel %vm735, %v1683, -inf
      %1688 = vmax.xlane.f32.xlu0 %v1687
      %v1689 = vpop.xlane.xlu0 %1688
      %v1690 = vsub.f32 %v1682, %v1686
      %v1691 = vsub.f32 %v1683, %v1689
      %v1692 = vmul.f32 %v1690, 1.442695
      %v1693 = vpow.pop %v1692
      %v1694 = vmul.f32 %v1691, 1.442695
      %v1695 = vpow.pop %v1694
      %v1696 = vsel %vm735, %v1693, 0.0
      %1697 = vadd.xlane.f32.xlu0 %v1696
      %v1698 = vpop.xlane.xlu0 %1697
      %v1699 = vsel %vm735, %v1695, 0.0
      %1700 = vadd.xlane.f32.xlu0 %v1699
      %v1701 = vpop.xlane.xlu0 %1700
      %v1702 = vrcp.pop %v1698
      %v1703 = vrcp.pop %v1701
      %v1704 = vmul.f32 %v1693, %v1702
      %v1705 = vmul.f32 %v1695, %v1703
      %1706 = vrot.lane.b32.xlu0 %v1348, 48
      %v1707 = vpop.permute.xlu0 %1706
      %1708 = vrot.lane.b32.xlu0 %v1351, 48
      %v1709 = vpop.permute.xlu0 %1708
      %v1713 = vsel %vm735, %v1704, 0
      %v1716 = vsel %vm735, %v1705, 0
      %1718 = vmatpush.msra.mxu0 0.0
      %1719 = vmatpush.msra.mxu0 0.0
      %1720 = vmatpush.msra.mxu0 0.0
      %1721 = vmatpush.msra.mxu0 0.0
      %1722 = vmatpush.msra.mxu0 0.0
      %1723 = vmatpush.msra.mxu0 0.0
      %1724 = vmatpush.msra.mxu0 0.0
      %1725 = vmatpush.msra.mxu0 0.0
      %1726 = vmatpush.msra.mxu0 0.0
      %1727 = vmatpush.msra.mxu0 0.0
      %1728 = vmatpush.msra.mxu0 0.0
      %1729 = vmatpush.msra.mxu0 0.0
      %1730 = vmatpush.msra.mxu0 0.0
      %1731 = vmatpush.msra.mxu0 0.0
      %1732 = vmatpush.msra.mxu0 %v1709
      %1733 = vmatpush.msra.mxu0 %v1707
      %1734 = vmatmul.f32.gmra.mxu0 %v1713
      %v1735 = vpop.f32.mrf.mxu0
      %v1736 = vadd.f32 0.0, %v1735
      %1737 = vmatmul.f32.gmra.mxu0 %v1716
      %v1738 = vpop.f32.mrf.mxu0
      %v1739 = vadd.f32 0.0, %v1738
      %1740 = vdwg.mxu0
      %1743 = vrot.lane.b32.xlu0 %v1736, 16
      %v1744 = vpop.permute.xlu0 %1743
      %1745 = vrot.lane.b32.xlu0 %v1739, 16
      %v1746 = vpop.permute.xlu0 %1745
      %v1749 = vsel %vm735, %v1550, %v1744
      %v1750 = vsel %vm735, %v1553, %v1746
      %v1751 = vadd.f32 %v1113, %v1749
      %v1752 = vadd.f32 %v1114, %v1750
      %v1753 = vadd.f32 %v1254, %v1749
      %v1754 = vadd.f32 %v1255, %v1750
      %s1755 = scalar_lea.vmem %s6, 1
      %v1756 = vld [vmem:[%s1755] sm:$0x1]
      %s1757 = scalar_lea.vmem %s7, 1
      %v1758 = vld [vmem:[%s1757] sm:$0x1]
      %v1759 = vsel %vm618, %v1753, 0.0
      %1760 = vadd.xlane.f32.xlu0 %v1759
      %v1761 = vpop.xlane.xlu0 %1760
      %v1762 = vsel %vm618, %v1754, 0.0
      %1763 = vadd.xlane.f32.xlu0 %v1762
      %v1764 = vpop.xlane.xlu0 %1763
      %v1765 = vmul.f32 %v1761, %v631
      %v1766 = vmul.f32 %v1764, %v631
      %v1767 = vsub.f32 %v1753, %v1765
      %v1768 = vsub.f32 %v1754, %v1766
      %v1769 = vmul.f32 %v1767, %v1767
      %v1770 = vmul.f32 %v1768, %v1768
      %v1771 = vsel %vm618, %v1769, 0.0
      %1772 = vadd.xlane.f32.xlu0 %v1771
      %v1773 = vpop.xlane.xlu0 %1772
      %v1774 = vsel %vm618, %v1770, 0.0
      %1775 = vadd.xlane.f32.xlu0 %v1774
      %v1776 = vpop.xlane.xlu0 %1775
      %v1777 = vmul.f32 %v1773, %v631
      %v1778 = vmul.f32 %v1776, %v631
      %v1779 = vadd.f32 %v1777, 1e-05
      %v1780 = vadd.f32 %v1778, 1e-05
      %v1781 = vrsqrt.pop %v1779
      %v1782 = vmul.f32 %v1781, %v1779
      %v1783 = vmul.f32 %v1782, %v1781
      %v1784 = vmul.f32 0.5, %v1783
      %v1785 = vsub.f32 1.5, %v1784
      %v1786 = vmul.f32 %v1781, %v1785
      %vm1787 = vweird.f32 %v1779
      %vm1788 = vweird.f32 %v1781
      %vm1789 = vmor %vm1787, %vm1788
      %v1790 = vsel %vm1789, %v1781, %v1786
      %v1791 = vrsqrt.pop %v1780
      %v1792 = vmul.f32 %v1791, %v1780
      %v1793 = vmul.f32 %v1792, %v1791
      %v1794 = vmul.f32 0.5, %v1793
      %v1795 = vsub.f32 1.5, %v1794
      %v1796 = vmul.f32 %v1791, %v1795
      %vm1797 = vweird.f32 %v1780
      %vm1798 = vweird.f32 %v1791
      %vm1799 = vmor %vm1797, %vm1798
      %v1800 = vsel %vm1799, %v1791, %v1796
      %v1801 = vmul.f32 %v1767, %v1790
      %v1802 = vmul.f32 %v1768, %v1800
      %v1804 = vperm.slane %v1756, 0
      %v1806 = vmul.f32 %v1801, %v1804
      %v1807 = vmul.f32 %v1802, %v1804
      %v1809 = vperm.slane %v1758, 0
      %v1811 = vadd.f32 %v1806, %v1809
      %v1812 = vadd.f32 %v1807, %v1809
      %s1813 = scalar_lea.vmem %s8, 32
      %v1814 = vld [vmem:[%s1813] sm:$0xff]
      %v1815 = vld [vmem:[%s1813 + $0x8] sm:$0xff]
      %v1816 = vld [vmem:[%s1813 + $0x10] sm:$0xff]
      %v1817 = vld [vmem:[%s1813 + $0x18] sm:$0xff]
      %s1818 = scalar_lea.vmem %s9, 1
      %v1819 = vld [vmem:[%s1818] sm:$0x1]
      %v1821 = vperm.slane %v1819, 0
      %v1824 = vsel %vm618, %v1811, 0
      %v1827 = vsel %vm618, %v1812, 0
      %1829 = vmatpush.msra.mxu0 0.0
      %1830 = vmatpush.msra.mxu0 0.0
      %1831 = vmatpush.msra.mxu0 0.0
      %1832 = vmatpush.msra.mxu0 0.0
      %1833 = vmatpush.msra.mxu0 0.0
      %1834 = vmatpush.msra.mxu0 0.0
      %1835 = vmatpush.msra.mxu0 0.0
      %1836 = vmatpush.msra.mxu0 0.0
      %1837 = vmatpush.msra.mxu0 0.0
      %1838 = vmatpush.msra.mxu0 0.0
      %1839 = vmatpush.msra.mxu0 0.0
      %1840 = vmatpush.msra.mxu0 0.0
      %1841 = vmatpush.msra.mxu0 %v1817
      %1842 = vmatpush.msra.mxu0 %v1816
      %1843 = vmatpush.msra.mxu0 %v1815
      %1844 = vmatpush.msra.mxu0 %v1814
      %1845 = vmatmul.f32.gmra.mxu0 %v1824
      %v1846 = vpop.f32.mrf.mxu0
      %v1847 = vadd.f32 %v1821, %v1846
      %1848 = vmatmul.f32.gmra.mxu0 %v1827
      %v1849 = vpop.f32.mrf.mxu0
      %v1850 = vadd.f32 %v1821, %v1849
      %1851 = vdwg.mxu0
      %v1852 = vmax.f32 %v1847, 0.0
      %v1853 = vmax.f32 %v1850, 0.0
      %s1854 = scalar_lea.vmem %s10, 64
      %v1855 = vld [vmem:[%s1854] sm:$0xff]
      %v1856 = vld [vmem:[%s1854 + $0x8] sm:$0xff]
      %v1857 = vld [vmem:[%s1854 + $0x10] sm:$0xff]
      %v1858 = vld [vmem:[%s1854 + $0x18] sm:$0xff]
      %v1859 = vld [vmem:[%s1854 + $0x20] sm:$0xff]
      %v1860 = vld [vmem:[%s1854 + $0x28] sm:$0xff]
      %v1861 = vld [vmem:[%s1854 + $0x30] sm:$0xff]
      %v1862 = vld [vmem:[%s1854 + $0x38] sm:$0xff]
      %s1863 = scalar_lea.vmem %s11, 1
      %v1864 = vld [vmem:[%s1863] sm:$0x1]
      %v1866 = vperm.slane %v1864, 0
      %v1869 = vsel %vm1224, %v1852, 0
      %v1872 = vsel %vm1224, %v1853, 0
      %1874 = vmatpush.msra.mxu0 0.0
      %1875 = vmatpush.msra.mxu0 0.0
      %1876 = vmatpush.msra.mxu0 0.0
      %1877 = vmatpush.msra.mxu0 0.0
      %1878 = vmatpush.msra.mxu0 0.0
      %1879 = vmatpush.msra.mxu0 0.0
      %1880 = vmatpush.msra.mxu0 0.0
      %1881 = vmatpush.msra.mxu0 0.0
      %1882 = vmatpush.msra.mxu0 %v1862
      %1883 = vmatpush.msra.mxu0 %v1861
      %1884 = vmatpush.msra.mxu0 %v1860
      %1885 = vmatpush.msra.mxu0 %v1859
      %1886 = vmatpush.msra.mxu0 %v1858
      %1887 = vmatpush.msra.mxu0 %v1857
      %1888 = vmatpush.msra.mxu0 %v1856
      %1889 = vmatpush.msra.mxu0 %v1855
      %1890 = vmatmul.f32.gmra.mxu0 %v1869
      %v1891 = vpop.f32.mrf.mxu0
      %v1892 = vadd.f32 %v1866, %v1891
      %1893 = vmatmul.f32.gmra.mxu0 %v1872
      %v1894 = vpop.f32.mrf.mxu0
      %v1895 = vadd.f32 %v1866, %v1894
      %1896 = vdwg.mxu0
      %v1897 = vadd.f32 %v1753, %v1892
      %v1898 = vadd.f32 %v1754, %v1895
      %s1899 = scalar_lea.vmem %s4, 2
      %v1900 = vld [vmem:[%s1899] sm:$0x1]
      %s1901 = scalar_lea.vmem %s5, 2
      %v1902 = vld [vmem:[%s1901] sm:$0x1]
      %v1903 = vsel %vm618, %v1897, 0.0
      %1904 = vadd.xlane.f32.xlu0 %v1903
      %v1905 = vpop.xlane.xlu0 %1904
      %v1906 = vsel %vm618, %v1898, 0.0
      %1907 = vadd.xlane.f32.xlu0 %v1906
      %v1908 = vpop.xlane.xlu0 %1907
      %v1909 = vmul.f32 %v1905, %v631
      %v1910 = vmul.f32 %v1908, %v631
      %v1911 = vsub.f32 %v1897, %v1909
      %v1912 = vsub.f32 %v1898, %v1910
      %v1913 = vmul.f32 %v1911, %v1911
      %v1914 = vmul.f32 %v1912, %v1912
      %v1915 = vsel %vm618, %v1913, 0.0
      %1916 = vadd.xlane.f32.xlu0 %v1915
      %v1917 = vpop.xlane.xlu0 %1916
      %v1918 = vsel %vm618, %v1914, 0.0
      %1919 = vadd.xlane.f32.xlu0 %v1918
      %v1920 = vpop.xlane.xlu0 %1919
      %v1921 = vmul.f32 %v1917, %v631
      %v1922 = vmul.f32 %v1920, %v631
      %v1923 = vadd.f32 %v1921, 1e-05
      %v1924 = vadd.f32 %v1922, 1e-05
      %v1925 = vrsqrt.pop %v1923
      %v1926 = vmul.f32 %v1925, %v1923
      %v1927 = vmul.f32 %v1926, %v1925
      %v1928 = vmul.f32 0.5, %v1927
      %v1929 = vsub.f32 1.5, %v1928
      %v1930 = vmul.f32 %v1925, %v1929
      %vm1931 = vweird.f32 %v1923
      %vm1932 = vweird.f32 %v1925
      %vm1933 = vmor %vm1931, %vm1932
      %v1934 = vsel %vm1933, %v1925, %v1930
      %v1935 = vrsqrt.pop %v1924
      %v1936 = vmul.f32 %v1935, %v1924
      %v1937 = vmul.f32 %v1936, %v1935
      %v1938 = vmul.f32 0.5, %v1937
      %v1939 = vsub.f32 1.5, %v1938
      %v1940 = vmul.f32 %v1935, %v1939
      %vm1941 = vweird.f32 %v1924
      %vm1942 = vweird.f32 %v1935
      %vm1943 = vmor %vm1941, %vm1942
      %v1944 = vsel %vm1943, %v1935, %v1940
      %v1945 = vmul.f32 %v1911, %v1934
      %v1946 = vmul.f32 %v1912, %v1944
      %v1948 = vperm.slane %v1900, 0
      %v1950 = vmul.f32 %v1945, %v1948
      %v1951 = vmul.f32 %v1946, %v1948
      %v1953 = vperm.slane %v1902, 0
      %v1955 = vadd.f32 %v1950, %v1953
      %v1956 = vadd.f32 %v1951, %v1953
      %s1957 = scalar_lea.vmem %s1, 64
      %v1958 = vld [vmem:[%s1957] sm:$0xff]
      %v1959 = vld [vmem:[%s1957 + $0x8] sm:$0xff]
      %v1960 = vld [vmem:[%s1957 + $0x10] sm:$0xff]
      %v1961 = vld [vmem:[%s1957 + $0x18] sm:$0xff]
      %s1962 = scalar_lea.vmem %s2, 2
      %v1963 = vld [vmem:[%s1962] sm:$0x1]
      %v1965 = vperm.slane %v1963, 0
      %v1968 = vsel %vm618, %v1955, 0
      %v1971 = vsel %vm618, %v1956, 0
      %1973 = vmatpush.msra.mxu0 0.0
      %1974 = vmatpush.msra.mxu0 0.0
      %1975 = vmatpush.msra.mxu0 0.0
      %1976 = vmatpush.msra.mxu0 0.0
      %1977 = vmatpush.msra.mxu0 0.0
      %1978 = vmatpush.msra.mxu0 0.0
      %1979 = vmatpush.msra.mxu0 0.0
      %1980 = vmatpush.msra.mxu0 0.0
      %1981 = vmatpush.msra.mxu0 0.0
      %1982 = vmatpush.msra.mxu0 0.0
      %1983 = vmatpush.msra.mxu0 0.0
      %1984 = vmatpush.msra.mxu0 0.0
      %1985 = vmatpush.msra.mxu0 %v1961
      %1986 = vmatpush.msra.mxu0 %v1960
      %1987 = vmatpush.msra.mxu0 %v1959
      %1988 = vmatpush.msra.mxu0 %v1958
      %1989 = vmatmul.f32.gmra.mxu0 %v1968
      %v1990 = vpop.f32.mrf.mxu0
      %v1991 = vadd.f32 %v1965, %v1990
      %1992 = vmatmul.f32.gmra.mxu0 %v1971
      %v1993 = vpop.f32.mrf.mxu0
      %v1994 = vadd.f32 %v1965, %v1993
      %1995 = vdwg.mxu0
      %s1996 = scalar_lea.vmem %s16, 160
      %v1997 = vld [vmem:[%s1996] sm:$0xff]
      %v1998 = vld [vmem:[%s1996 + $0x8] sm:$0xff]
      %s1999 = scalar_lea.vmem %s16, 176
      %v2000 = vld [vmem:[%s1999] sm:$0xff]
      %v2001 = vld [vmem:[%s1999 + $0x8] sm:$0xff]
      %s2002 = scalar_lea.vmem %s16, 192
      %v2003 = vld [vmem:[%s2002] sm:$0xff]
      %v2004 = vld [vmem:[%s2002 + $0x8] sm:$0xff]
      %s2005 = scalar_lea.vmem %s16, 208
      %v2006 = vld [vmem:[%s2005] sm:$0xff]
      %v2007 = vld [vmem:[%s2005 + $0x8] sm:$0xff]
      %s2008 = scalar_lea.vmem %s16, 224
      %v2009 = vld [vmem:[%s2008] sm:$0xff]
      %v2010 = vld [vmem:[%s2008 + $0x8] sm:$0xff]
      %s2011 = scalar_lea.vmem %s17, 32
      %v2012 = vld [vmem:[%s2011] sm:$0xff]
      %v2013 = vld [vmem:[%s2011 + $0x8] sm:$0xff]
      %s2014 = scalar_lea.vmem %s3, 64
      %v2015 = vld [vmem:[%s2014] sm:$0xff]
      %v2016 = vld [vmem:[%s2014 + $0x8] sm:$0xff]
      %v2018 = vsel %vm735, %v1991, 0
      %v2021 = vsel %vm735, %v1994, 0
      %2023 = vmatpush.msra.mxu0 0.0
      %2024 = vmatpush.msra.mxu0 0.0
      %2025 = vmatpush.msra.mxu0 0.0
      %2026 = vmatpush.msra.mxu0 0.0
      %2027 = vmatpush.msra.mxu0 0.0
      %2028 = vmatpush.msra.mxu0 0.0
      %2029 = vmatpush.msra.mxu0 0.0
      %2030 = vmatpush.msra.mxu0 0.0
      %2031 = vmatpush.msra.mxu0 0.0
      %2032 = vmatpush.msra.mxu0 0.0
      %2033 = vmatpush.msra.mxu0 0.0
      %2034 = vmatpush.msra.mxu0 0.0
      %2035 = vmatpush.msra.mxu0 0.0
      %2036 = vmatpush.msra.mxu0 0.0
      %2037 = vmatpush.msra.mxu0 %v2016
      %2038 = vmatpush.msra.mxu0 %v2015
      %2039 = vmatmul.f32.gmra.mxu0 %v2018
      %v2040 = vpop.f32.mrf.mxu0
      %v2041 = vadd.f32 0.0, %v2040
      %2042 = vmatmul.f32.gmra.mxu0 %v2021
      %v2043 = vpop.f32.mrf.mxu0
      %v2044 = vadd.f32 0.0, %v2043
      %2045 = vdwg.mxu0
      %2047 = vset.pattern.permute.xlu0 0
      %2048 = vperm.xlu0 %2047, %v2041
      %v2049 = vpop.permute.xlu0 %2048
      %2052 = vset.pattern.permute.xlu0 0
      %2053 = vperm.xlu0 %2052, %v2044
      %v2054 = vpop.permute.xlu0 %2053
      %v2056 = vmul.f32 %v2049, %v1997
      %v2057 = vmul.f32 %v2054, %v1998
      %2058 = vset.pattern.permute.xlu0 1
      %2059 = vperm.xlu0 %2058, %v2041
      %v2060 = vpop.permute.xlu0 %2059
      %2062 = vset.pattern.permute.xlu0 1
      %2063 = vperm.xlu0 %2062, %v2044
      %v2064 = vpop.permute.xlu0 %2063
      %v2066 = vmul.f32 %v2060, %v2000
      %v2067 = vmul.f32 %v2064, %v2001
      %v2068 = vadd.f32 %v2056, %v2066
      %v2069 = vadd.f32 %v2057, %v2067
      %2070 = vset.pattern.permute.xlu0 2
      %2071 = vperm.xlu0 %2070, %v2041
      %v2072 = vpop.permute.xlu0 %2071
      %2074 = vset.pattern.permute.xlu0 2
      %2075 = vperm.xlu0 %2074, %v2044
      %v2076 = vpop.permute.xlu0 %2075
      %v2078 = vmul.f32 %v2072, %v2003
      %v2079 = vmul.f32 %v2076, %v2004
      %v2080 = vadd.f32 %v2068, %v2078
      %v2081 = vadd.f32 %v2069, %v2079
      %2082 = vset.pattern.permute.xlu0 3
      %2083 = vperm.xlu0 %2082, %v2041
      %v2084 = vpop.permute.xlu0 %2083
      %2086 = vset.pattern.permute.xlu0 3
      %2087 = vperm.xlu0 %2086, %v2044
      %v2088 = vpop.permute.xlu0 %2087
      %v2090 = vmul.f32 %v2084, %v2006
      %v2091 = vmul.f32 %v2088, %v2007
      %v2092 = vadd.f32 %v2080, %v2090
      %v2093 = vadd.f32 %v2081, %v2091
      %2094 = vset.pattern.permute.xlu0 4
      %2095 = vperm.xlu0 %2094, %v2041
      %v2096 = vpop.permute.xlu0 %2095
      %2098 = vset.pattern.permute.xlu0 4
      %2099 = vperm.xlu0 %2098, %v2044
      %v2100 = vpop.permute.xlu0 %2099
      %v2102 = vmul.f32 %v2096, %v2009
      %v2103 = vmul.f32 %v2100, %v2010
      %v2104 = vadd.f32 %v2092, %v2102
      %v2105 = vadd.f32 %v2093, %v2103
      %2106 = vrot.lane.b32.xlu0 %v1991, 96
      %v2107 = vpop.permute.xlu0 %2106
      %2108 = vrot.lane.b32.xlu0 %v1994, 96
      %v2109 = vpop.permute.xlu0 %2108
      %v2110 = vsel %vm735, %v2107, 0
      %v2112 = vsel %vm735, %v2109, 0
      %2114 = vmatpush.xpose.msra.mxu0 0.0
      %2115 = vmatpush.xpose.msra.mxu0 0.0
      %2116 = vmatpush.xpose.msra.mxu0 0.0
      %2117 = vmatpush.xpose.msra.mxu0 0.0
      %2118 = vmatpush.xpose.msra.mxu0 0.0
      %2119 = vmatpush.xpose.msra.mxu0 0.0
      %2120 = vmatpush.xpose.msra.mxu0 0.0
      %2121 = vmatpush.xpose.msra.mxu0 0.0
      %2122 = vmatpush.xpose.msra.mxu0 0.0
      %2123 = vmatpush.xpose.msra.mxu0 0.0
      %2124 = vmatpush.xpose.msra.mxu0 0.0
      %2125 = vmatpush.xpose.msra.mxu0 0.0
      %2126 = vmatpush.xpose.msra.mxu0 0.0
      %2127 = vmatpush.xpose.msra.mxu0 0.0
      %2128 = vmatpush.xpose.msra.mxu0 %v2112
      %2129 = vmatpush.xpose.msra.mxu0 %v2110
      %2130 = vmatmul.f32.gmra.mxu0 %v2018
      %v2131 = vpop.f32.mrf.mxu0
      %v2132 = vadd.f32 %v2104, %v2131
      %2133 = vmatmul.f32.gmra.mxu0 %v2021
      %v2134 = vpop.f32.mrf.mxu0
      %v2135 = vadd.f32 %v2105, %v2134
      %2136 = vdwg.mxu0
      %v2137 = vmul.f32 %v2132, 0.25
      %v2138 = vmul.f32 %v2135, 0.25
      %v2139 = vadd.f32 %v2137, %v2012
      %v2140 = vadd.f32 %v2138, %v2013
      %v2141 = vsel %vm735, %v2139, -inf
      %2142 = vmax.xlane.f32.xlu0 %v2141
      %v2143 = vpop.xlane.xlu0 %2142
      %v2144 = vsel %vm735, %v2140, -inf
      %2145 = vmax.xlane.f32.xlu0 %v2144
      %v2146 = vpop.xlane.xlu0 %2145
      %v2147 = vsub.f32 %v2139, %v2143
      %v2148 = vsub.f32 %v2140, %v2146
      %v2149 = vmul.f32 %v2147, 1.442695
      %v2150 = vpow.pop %v2149
      %v2151 = vmul.f32 %v2148, 1.442695
      %v2152 = vpow.pop %v2151
      %v2153 = vsel %vm735, %v2150, 0.0
      %2154 = vadd.xlane.f32.xlu0 %v2153
      %v2155 = vpop.xlane.xlu0 %2154
      %v2156 = vsel %vm735, %v2152, 0.0
      %2157 = vadd.xlane.f32.xlu0 %v2156
      %v2158 = vpop.xlane.xlu0 %2157
      %v2159 = vrcp.pop %v2155
      %v2160 = vrcp.pop %v2158
      %v2161 = vmul.f32 %v2150, %v2159
      %v2162 = vmul.f32 %v2152, %v2160
      %2163 = vrot.lane.b32.xlu0 %v1991, 64
      %v2164 = vpop.permute.xlu0 %2163
      %2165 = vrot.lane.b32.xlu0 %v1994, 64
      %v2166 = vpop.permute.xlu0 %2165
      %v2170 = vsel %vm735, %v2161, 0
      %v2173 = vsel %vm735, %v2162, 0
      %2175 = vmatpush.msra.mxu0 0.0
      %2176 = vmatpush.msra.mxu0 0.0
      %2177 = vmatpush.msra.mxu0 0.0
      %2178 = vmatpush.msra.mxu0 0.0
      %2179 = vmatpush.msra.mxu0 0.0
      %2180 = vmatpush.msra.mxu0 0.0
      %2181 = vmatpush.msra.mxu0 0.0
      %2182 = vmatpush.msra.mxu0 0.0
      %2183 = vmatpush.msra.mxu0 0.0
      %2184 = vmatpush.msra.mxu0 0.0
      %2185 = vmatpush.msra.mxu0 0.0
      %2186 = vmatpush.msra.mxu0 0.0
      %2187 = vmatpush.msra.mxu0 0.0
      %2188 = vmatpush.msra.mxu0 0.0
      %2189 = vmatpush.msra.mxu0 %v2166
      %2190 = vmatpush.msra.mxu0 %v2164
      %2191 = vmatmul.f32.gmra.mxu0 %v2170
      %v2192 = vpop.f32.mrf.mxu0
      %v2193 = vadd.f32 0.0, %v2192
      %2194 = vmatmul.f32.gmra.mxu0 %v2173
      %v2195 = vpop.f32.mrf.mxu0
      %v2196 = vadd.f32 0.0, %v2195
      %2197 = vdwg.mxu0
      %s2198 = scalar_lea.vmem %s3, 80
      %v2199 = vld [vmem:[%s2198] sm:$0xff]
      %v2200 = vld [vmem:[%s2198 + $0x8] sm:$0xff]
      %2201 = vrot.lane.b32.xlu0 %v1991, 112
      %v2202 = vpop.permute.xlu0 %2201
      %2203 = vrot.lane.b32.xlu0 %v1994, 112
      %v2204 = vpop.permute.xlu0 %2203
      %v2205 = vsel %vm735, %v2202, 0
      %v2207 = vsel %vm735, %v2204, 0
      %2209 = vmatpush.msra.mxu0 0.0
      %2210 = vmatpush.msra.mxu0 0.0
      %2211 = vmatpush.msra.mxu0 0.0
      %2212 = vmatpush.msra.mxu0 0.0
      %2213 = vmatpush.msra.mxu0 0.0
      %2214 = vmatpush.msra.mxu0 0.0
      %2215 = vmatpush.msra.mxu0 0.0
      %2216 = vmatpush.msra.mxu0 0.0
      %2217 = vmatpush.msra.mxu0 0.0
      %2218 = vmatpush.msra.mxu0 0.0
      %2219 = vmatpush.msra.mxu0 0.0
      %2220 = vmatpush.msra.mxu0 0.0
      %2221 = vmatpush.msra.mxu0 0.0
      %2222 = vmatpush.msra.mxu0 0.0
      %2223 = vmatpush.msra.mxu0 %v2200
      %2224 = vmatpush.msra.mxu0 %v2199
      %2225 = vmatmul.f32.gmra.mxu0 %v2205
      %v2226 = vpop.f32.mrf.mxu0
      %v2227 = vadd.f32 0.0, %v2226
      %2228 = vmatmul.f32.gmra.mxu0 %v2207
      %v2229 = vpop.f32.mrf.mxu0
      %v2230 = vadd.f32 0.0, %v2229
      %2231 = vdwg.mxu0
      %2233 = vset.pattern.permute.xlu0 0
      %2234 = vperm.xlu0 %2233, %v2227
      %v2235 = vpop.permute.xlu0 %2234
      %2238 = vset.pattern.permute.xlu0 0
      %2239 = vperm.xlu0 %2238, %v2230
      %v2240 = vpop.permute.xlu0 %2239
      %v2242 = vmul.f32 %v2235, %v1997
      %v2243 = vmul.f32 %v2240, %v1998
      %2244 = vset.pattern.permute.xlu0 1
      %2245 = vperm.xlu0 %2244, %v2227
      %v2246 = vpop.permute.xlu0 %2245
      %2248 = vset.pattern.permute.xlu0 1
      %2249 = vperm.xlu0 %2248, %v2230
      %v2250 = vpop.permute.xlu0 %2249
      %v2252 = vmul.f32 %v2246, %v2000
      %v2253 = vmul.f32 %v2250, %v2001
      %v2254 = vadd.f32 %v2242, %v2252
      %v2255 = vadd.f32 %v2243, %v2253
      %2256 = vset.pattern.permute.xlu0 2
      %2257 = vperm.xlu0 %2256, %v2227
      %v2258 = vpop.permute.xlu0 %2257
      %2260 = vset.pattern.permute.xlu0 2
      %2261 = vperm.xlu0 %2260, %v2230
      %v2262 = vpop.permute.xlu0 %2261
      %v2264 = vmul.f32 %v2258, %v2003
      %v2265 = vmul.f32 %v2262, %v2004
      %v2266 = vadd.f32 %v2254, %v2264
      %v2267 = vadd.f32 %v2255, %v2265
      %2268 = vset.pattern.permute.xlu0 3
      %2269 = vperm.xlu0 %2268, %v2227
      %v2270 = vpop.permute.xlu0 %2269
      %2272 = vset.pattern.permute.xlu0 3
      %2273 = vperm.xlu0 %2272, %v2230
      %v2274 = vpop.permute.xlu0 %2273
      %v2276 = vmul.f32 %v2270, %v2006
      %v2277 = vmul.f32 %v2274, %v2007
      %v2278 = vadd.f32 %v2266, %v2276
      %v2279 = vadd.f32 %v2267, %v2277
      %2280 = vset.pattern.permute.xlu0 4
      %2281 = vperm.xlu0 %2280, %v2227
      %v2282 = vpop.permute.xlu0 %2281
      %2284 = vset.pattern.permute.xlu0 4
      %2285 = vperm.xlu0 %2284, %v2230
      %v2286 = vpop.permute.xlu0 %2285
      %v2288 = vmul.f32 %v2282, %v2009
      %v2289 = vmul.f32 %v2286, %v2010
      %v2290 = vadd.f32 %v2278, %v2288
      %v2291 = vadd.f32 %v2279, %v2289
      %2292 = vrot.lane.b32.xlu0 %v1991, 80
      %v2293 = vpop.permute.xlu0 %2292
      %2294 = vrot.lane.b32.xlu0 %v1994, 80
      %v2295 = vpop.permute.xlu0 %2294
      %v2296 = vsel %vm735, %v2293, 0
      %v2298 = vsel %vm735, %v2295, 0
      %2300 = vmatpush.xpose.msra.mxu0 0.0
      %2301 = vmatpush.xpose.msra.mxu0 0.0
      %2302 = vmatpush.xpose.msra.mxu0 0.0
      %2303 = vmatpush.xpose.msra.mxu0 0.0
      %2304 = vmatpush.xpose.msra.mxu0 0.0
      %2305 = vmatpush.xpose.msra.mxu0 0.0
      %2306 = vmatpush.xpose.msra.mxu0 0.0
      %2307 = vmatpush.xpose.msra.mxu0 0.0
      %2308 = vmatpush.xpose.msra.mxu0 0.0
      %2309 = vmatpush.xpose.msra.mxu0 0.0
      %2310 = vmatpush.xpose.msra.mxu0 0.0
      %2311 = vmatpush.xpose.msra.mxu0 0.0
      %2312 = vmatpush.xpose.msra.mxu0 0.0
      %2313 = vmatpush.xpose.msra.mxu0 0.0
      %2314 = vmatpush.xpose.msra.mxu0 %v2298
      %2315 = vmatpush.xpose.msra.mxu0 %v2296
      %2316 = vmatmul.f32.gmra.mxu0 %v2205
      %v2317 = vpop.f32.mrf.mxu0
      %v2318 = vadd.f32 %v2290, %v2317
      %2319 = vmatmul.f32.gmra.mxu0 %v2207
      %v2320 = vpop.f32.mrf.mxu0
      %v2321 = vadd.f32 %v2291, %v2320
      %2322 = vdwg.mxu0
      %v2323 = vmul.f32 %v2318, 0.25
      %v2324 = vmul.f32 %v2321, 0.25
      %v2325 = vadd.f32 %v2323, %v2012
      %v2326 = vadd.f32 %v2324, %v2013
      %v2327 = vsel %vm735, %v2325, -inf
      %2328 = vmax.xlane.f32.xlu0 %v2327
      %v2329 = vpop.xlane.xlu0 %2328
      %v2330 = vsel %vm735, %v2326, -inf
      %2331 = vmax.xlane.f32.xlu0 %v2330
      %v2332 = vpop.xlane.xlu0 %2331
      %v2333 = vsub.f32 %v2325, %v2329
      %v2334 = vsub.f32 %v2326, %v2332
      %v2335 = vmul.f32 %v2333, 1.442695
      %v2336 = vpow.pop %v2335
      %v2337 = vmul.f32 %v2334, 1.442695
      %v2338 = vpow.pop %v2337
      %v2339 = vsel %vm735, %v2336, 0.0
      %2340 = vadd.xlane.f32.xlu0 %v2339
      %v2341 = vpop.xlane.xlu0 %2340
      %v2342 = vsel %vm735, %v2338, 0.0
      %2343 = vadd.xlane.f32.xlu0 %v2342
      %v2344 = vpop.xlane.xlu0 %2343
      %v2345 = vrcp.pop %v2341
      %v2346 = vrcp.pop %v2344
      %v2347 = vmul.f32 %v2336, %v2345
      %v2348 = vmul.f32 %v2338, %v2346
      %2349 = vrot.lane.b32.xlu0 %v1991, 48
      %v2350 = vpop.permute.xlu0 %2349
      %2351 = vrot.lane.b32.xlu0 %v1994, 48
      %v2352 = vpop.permute.xlu0 %2351
      %v2356 = vsel %vm735, %v2347, 0
      %v2359 = vsel %vm735, %v2348, 0
      %2361 = vmatpush.msra.mxu0 0.0
      %2362 = vmatpush.msra.mxu0 0.0
      %2363 = vmatpush.msra.mxu0 0.0
      %2364 = vmatpush.msra.mxu0 0.0
      %2365 = vmatpush.msra.mxu0 0.0
      %2366 = vmatpush.msra.mxu0 0.0
      %2367 = vmatpush.msra.mxu0 0.0
      %2368 = vmatpush.msra.mxu0 0.0
      %2369 = vmatpush.msra.mxu0 0.0
      %2370 = vmatpush.msra.mxu0 0.0
      %2371 = vmatpush.msra.mxu0 0.0
      %2372 = vmatpush.msra.mxu0 0.0
      %2373 = vmatpush.msra.mxu0 0.0
      %2374 = vmatpush.msra.mxu0 0.0
      %2375 = vmatpush.msra.mxu0 %v2352
      %2376 = vmatpush.msra.mxu0 %v2350
      %2377 = vmatmul.f32.gmra.mxu0 %v2356
      %v2378 = vpop.f32.mrf.mxu0
      %v2379 = vadd.f32 0.0, %v2378
      %2380 = vmatmul.f32.gmra.mxu0 %v2359
      %v2381 = vpop.f32.mrf.mxu0
      %v2382 = vadd.f32 0.0, %v2381
      %2383 = vdwg.mxu0
      %2386 = vrot.lane.b32.xlu0 %v2379, 16
      %v2387 = vpop.permute.xlu0 %2386
      %2388 = vrot.lane.b32.xlu0 %v2382, 16
      %v2389 = vpop.permute.xlu0 %2388
      %v2392 = vsel %vm735, %v2193, %v2387
      %v2393 = vsel %vm735, %v2196, %v2389
      %v2394 = vadd.f32 %v1751, %v2392
      %v2395 = vadd.f32 %v1752, %v2393
      %v2396 = vadd.f32 %v1897, %v2392
      %v2397 = vadd.f32 %v1898, %v2393
      %s2398 = scalar_lea.vmem %s6, 2
      %v2399 = vld [vmem:[%s2398] sm:$0x1]
      %s2400 = scalar_lea.vmem %s7, 2
      %v2401 = vld [vmem:[%s2400] sm:$0x1]
      %v2402 = vsel %vm618, %v2396, 0.0
      %2403 = vadd.xlane.f32.xlu0 %v2402
      %v2404 = vpop.xlane.xlu0 %2403
      %v2405 = vsel %vm618, %v2397, 0.0
      %2406 = vadd.xlane.f32.xlu0 %v2405
      %v2407 = vpop.xlane.xlu0 %2406
      %v2408 = vmul.f32 %v2404, %v631
      %v2409 = vmul.f32 %v2407, %v631
      %v2410 = vsub.f32 %v2396, %v2408
      %v2411 = vsub.f32 %v2397, %v2409
      %v2412 = vmul.f32 %v2410, %v2410
      %v2413 = vmul.f32 %v2411, %v2411
      %v2414 = vsel %vm618, %v2412, 0.0
      %2415 = vadd.xlane.f32.xlu0 %v2414
      %v2416 = vpop.xlane.xlu0 %2415
      %v2417 = vsel %vm618, %v2413, 0.0
      %2418 = vadd.xlane.f32.xlu0 %v2417
      %v2419 = vpop.xlane.xlu0 %2418
      %v2420 = vmul.f32 %v2416, %v631
      %v2421 = vmul.f32 %v2419, %v631
      %v2422 = vadd.f32 %v2420, 1e-05
      %v2423 = vadd.f32 %v2421, 1e-05
      %v2424 = vrsqrt.pop %v2422
      %v2425 = vmul.f32 %v2424, %v2422
      %v2426 = vmul.f32 %v2425, %v2424
      %v2427 = vmul.f32 0.5, %v2426
      %v2428 = vsub.f32 1.5, %v2427
      %v2429 = vmul.f32 %v2424, %v2428
      %vm2430 = vweird.f32 %v2422
      %vm2431 = vweird.f32 %v2424
      %vm2432 = vmor %vm2430, %vm2431
      %v2433 = vsel %vm2432, %v2424, %v2429
      %v2434 = vrsqrt.pop %v2423
      %v2435 = vmul.f32 %v2434, %v2423
      %v2436 = vmul.f32 %v2435, %v2434
      %v2437 = vmul.f32 0.5, %v2436
      %v2438 = vsub.f32 1.5, %v2437
      %v2439 = vmul.f32 %v2434, %v2438
      %vm2440 = vweird.f32 %v2423
      %vm2441 = vweird.f32 %v2434
      %vm2442 = vmor %vm2440, %vm2441
      %v2443 = vsel %vm2442, %v2434, %v2439
      %v2444 = vmul.f32 %v2410, %v2433
      %v2445 = vmul.f32 %v2411, %v2443
      %v2447 = vperm.slane %v2399, 0
      %v2449 = vmul.f32 %v2444, %v2447
      %v2450 = vmul.f32 %v2445, %v2447
      %v2452 = vperm.slane %v2401, 0
      %v2454 = vadd.f32 %v2449, %v2452
      %v2455 = vadd.f32 %v2450, %v2452
      %s2456 = scalar_lea.vmem %s8, 64
      %v2457 = vld [vmem:[%s2456] sm:$0xff]
      %v2458 = vld [vmem:[%s2456 + $0x8] sm:$0xff]
      %v2459 = vld [vmem:[%s2456 + $0x10] sm:$0xff]
      %v2460 = vld [vmem:[%s2456 + $0x18] sm:$0xff]
      %s2461 = scalar_lea.vmem %s9, 2
      %v2462 = vld [vmem:[%s2461] sm:$0x1]
      %v2464 = vperm.slane %v2462, 0
      %v2467 = vsel %vm618, %v2454, 0
      %v2470 = vsel %vm618, %v2455, 0
      %2472 = vmatpush.msra.mxu0 0.0
      %2473 = vmatpush.msra.mxu0 0.0
      %2474 = vmatpush.msra.mxu0 0.0
      %2475 = vmatpush.msra.mxu0 0.0
      %2476 = vmatpush.msra.mxu0 0.0
      %2477 = vmatpush.msra.mxu0 0.0
      %2478 = vmatpush.msra.mxu0 0.0
      %2479 = vmatpush.msra.mxu0 0.0
      %2480 = vmatpush.msra.mxu0 0.0
      %2481 = vmatpush.msra.mxu0 0.0
      %2482 = vmatpush.msra.mxu0 0.0
      %2483 = vmatpush.msra.mxu0 0.0
      %2484 = vmatpush.msra.mxu0 %v2460
      %2485 = vmatpush.msra.mxu0 %v2459
      %2486 = vmatpush.msra.mxu0 %v2458
      %2487 = vmatpush.msra.mxu0 %v2457
      %2488 = vmatmul.f32.gmra.mxu0 %v2467
      %v2489 = vpop.f32.mrf.mxu0
      %v2490 = vadd.f32 %v2464, %v2489
      %2491 = vmatmul.f32.gmra.mxu0 %v2470
      %v2492 = vpop.f32.mrf.mxu0
      %v2493 = vadd.f32 %v2464, %v2492
      %2494 = vdwg.mxu0
      %v2495 = vmax.f32 %v2490, 0.0
      %v2496 = vmax.f32 %v2493, 0.0
      %s2497 = scalar_lea.vmem %s10, 128
      %v2498 = vld [vmem:[%s2497] sm:$0xff]
      %v2499 = vld [vmem:[%s2497 + $0x8] sm:$0xff]
      %v2500 = vld [vmem:[%s2497 + $0x10] sm:$0xff]
      %v2501 = vld [vmem:[%s2497 + $0x18] sm:$0xff]
      %v2502 = vld [vmem:[%s2497 + $0x20] sm:$0xff]
      %v2503 = vld [vmem:[%s2497 + $0x28] sm:$0xff]
      %v2504 = vld [vmem:[%s2497 + $0x30] sm:$0xff]
      %v2505 = vld [vmem:[%s2497 + $0x38] sm:$0xff]
      %s2506 = scalar_lea.vmem %s11, 2
      %v2507 = vld [vmem:[%s2506] sm:$0x1]
      %v2509 = vperm.slane %v2507, 0
      %v2512 = vsel %vm1224, %v2495, 0
      %v2515 = vsel %vm1224, %v2496, 0
      %2517 = vmatpush.msra.mxu0 0.0
      %2518 = vmatpush.msra.mxu0 0.0
      %2519 = vmatpush.msra.mxu0 0.0
      %2520 = vmatpush.msra.mxu0 0.0
      %2521 = vmatpush.msra.mxu0 0.0
      %2522 = vmatpush.msra.mxu0 0.0
      %2523 = vmatpush.msra.mxu0 0.0
      %2524 = vmatpush.msra.mxu0 0.0
      %2525 = vmatpush.msra.mxu0 %v2505
      %2526 = vmatpush.msra.mxu0 %v2504
      %2527 = vmatpush.msra.mxu0 %v2503
      %2528 = vmatpush.msra.mxu0 %v2502
      %2529 = vmatpush.msra.mxu0 %v2501
      %2530 = vmatpush.msra.mxu0 %v2500
      %2531 = vmatpush.msra.mxu0 %v2499
      %2532 = vmatpush.msra.mxu0 %v2498
      %2533 = vmatmul.f32.gmra.mxu0 %v2512
      %v2534 = vpop.f32.mrf.mxu0
      %v2535 = vadd.f32 %v2509, %v2534
      %2536 = vmatmul.f32.gmra.mxu0 %v2515
      %v2537 = vpop.f32.mrf.mxu0
      %v2538 = vadd.f32 %v2509, %v2537
      %2539 = vdwg.mxu0
      %v2540 = vadd.f32 %v2396, %v2535
      %v2541 = vadd.f32 %v2397, %v2538
      %v2542 = vmax.f32 %v2540, 0.0
      %v2543 = vmax.f32 %v2541, 0.0
      %v2544 = vld [vmem:[%s12] sm:$0xff]
      %v2545 = vld [vmem:[%s12 + $0x8] sm:$0xff]
      %v2546 = vld [vmem:[%s12 + $0x10] sm:$0xff]
      %v2547 = vld [vmem:[%s12 + $0x18] sm:$0xff]
      %v2548 = vld [vmem:[%s13] sm:$0x1]
      %v2550 = vperm.slane %v2548, 0
      %v2553 = vsel %vm618, %v2542, 0
      %v2556 = vsel %vm618, %v2543, 0
      %2558 = vmatpush.msra.mxu0 0.0
      %2559 = vmatpush.msra.mxu0 0.0
      %2560 = vmatpush.msra.mxu0 0.0
      %2561 = vmatpush.msra.mxu0 0.0
      %2562 = vmatpush.msra.mxu0 0.0
      %2563 = vmatpush.msra.mxu0 0.0
      %2564 = vmatpush.msra.mxu0 0.0
      %2565 = vmatpush.msra.mxu0 0.0
      %2566 = vmatpush.msra.mxu0 0.0
      %2567 = vmatpush.msra.mxu0 0.0
      %2568 = vmatpush.msra.mxu0 0.0
      %2569 = vmatpush.msra.mxu0 0.0
      %2570 = vmatpush.msra.mxu0 %v2547
      %2571 = vmatpush.msra.mxu0 %v2546
      %2572 = vmatpush.msra.mxu0 %v2545
      %2573 = vmatpush.msra.mxu0 %v2544
      %2574 = vmatmul.f32.gmra.mxu0 %v2553
      %v2575 = vpop.f32.mrf.mxu0
      %v2576 = vadd.f32 %v2550, %v2575
      %2577 = vmatmul.f32.gmra.mxu0 %v2556
      %v2578 = vpop.f32.mrf.mxu0
      %v2579 = vadd.f32 %v2550, %v2578
      %2580 = vdwg.mxu0
      %vm2581 = vcmask 15360
      %2582 = vst.msk [vmem:[%s609] sm:$0xff] %vm2581, %v2576
      %2583 = vst.msk [vmem:[%s609 + $0x8] sm:$0xff] %vm2581, %v2579
      %v2584 = vmax.f32 %v2394, 0.0
      %v2585 = vmax.f32 %v2395, 0.0
      %v2586 = vsel %vm618, %v2584, 0.0
      %v2587 = vsel %vm618, %v2585, 0.0
      %v2588 = vadd.f32 %v2586, %v2587
      %v2589 = vrot.slane %v2588, 4
      %v2590 = vadd.f32 %v2588, %v2589
      %v2591 = vrot.slane %v2590, 2
      %v2592 = vadd.f32 %v2590, %v2591
      %v2593 = vrot.slane %v2592, 1
      %v2594 = vadd.f32 %v2592, %v2593
      %v2595 = vrcp.pop 16.0
      %v2596 = vmul.f32 16.0, %v2595
      %v2597 = vsub.f32 1.0, %v2596
      %v2598 = vmul.f32 %v2595, %v2597
      %v2599 = vadd.f32 %v2595, %v2598
      %vm2600 = vweird.f32 %v2595
      %v2601 = vsel %vm2600, %v2595, %v2599
      %v2602 = vmul.f32 %v2594, %v2601
      %v2603 = vld [vmem:[%s14] sm:$0xff]
      %v2604 = vld [vmem:[%s14 + $0x8] sm:$0xff]
      %v2605 = vld [vmem:[%s14 + $0x10] sm:$0xff]
      %v2606 = vld [vmem:[%s14 + $0x18] sm:$0xff]
      %v2607 = vld [vmem:[%s14 + $0x20] sm:$0xff]
      %v2608 = vld [vmem:[%s14 + $0x28] sm:$0xff]
      %v2609 = vld [vmem:[%s14 + $0x30] sm:$0xff]
      %v2610 = vld [vmem:[%s14 + $0x38] sm:$0xff]
      %v2611 = vld [vmem:[%s14 + $0x40] sm:$0xff]
      %v2612 = vld [vmem:[%s14 + $0x48] sm:$0xff]
      %v2613 = vld [vmem:[%s14 + $0x50] sm:$0xff]
      %v2614 = vld [vmem:[%s14 + $0x58] sm:$0xff]
      %v2615 = vld [vmem:[%s15] sm:$0x7]
      %v2617 = vperm.slane %v2615, 0
      %v2618 = vperm.slane %v2615, 1
      %v2619 = vperm.slane %v2615, 2
      %v2624 = vsel %vm618, %v2602, 0
      %2626 = vmatpush.msra.mxu0 0.0
      %2627 = vmatpush.msra.mxu0 0.0
      %2628 = vmatpush.msra.mxu0 0.0
      %2629 = vmatpush.msra.mxu0 0.0
      %2630 = vmatpush.msra.mxu0 0.0
      %2631 = vmatpush.msra.mxu0 0.0
      %2632 = vmatpush.msra.mxu0 0.0
      %2633 = vmatpush.msra.mxu0 0.0
      %2634 = vmatpush.msra.mxu0 0.0
      %2635 = vmatpush.msra.mxu0 0.0
      %2636 = vmatpush.msra.mxu0 0.0
      %2637 = vmatpush.msra.mxu0 0.0
      %2638 = vmatpush.msra.mxu0 %v2612
      %2639 = vmatpush.msra.mxu0 %v2609
      %2640 = vmatpush.msra.mxu0 %v2606
      %2641 = vmatpush.msra.mxu0 %v2603
      %2642 = vmatmul.f32.gmra.mxu0 %v2624
      %v2643 = vpop.f32.mrf.mxu0
      %v2644 = vadd.f32 %v2617, %v2643
      %2645 = vdwg.mxu0
      %2646 = vmatpush.msra.mxu0 0.0
      %2647 = vmatpush.msra.mxu0 0.0
      %2648 = vmatpush.msra.mxu0 0.0
      %2649 = vmatpush.msra.mxu0 0.0
      %2650 = vmatpush.msra.mxu0 0.0
      %2651 = vmatpush.msra.mxu0 0.0
      %2652 = vmatpush.msra.mxu0 0.0
      %2653 = vmatpush.msra.mxu0 0.0
      %2654 = vmatpush.msra.mxu0 0.0
      %2655 = vmatpush.msra.mxu0 0.0
      %2656 = vmatpush.msra.mxu0 0.0
      %2657 = vmatpush.msra.mxu0 0.0
      %2658 = vmatpush.msra.mxu0 %v2613
      %2659 = vmatpush.msra.mxu0 %v2610
      %2660 = vmatpush.msra.mxu0 %v2607
      %2661 = vmatpush.msra.mxu0 %v2604
      %2662 = vmatmul.f32.gmra.mxu0 %v2624
      %v2663 = vpop.f32.mrf.mxu0
      %v2664 = vadd.f32 %v2618, %v2663
      %2665 = vdwg.mxu0
      %2666 = vmatpush.msra.mxu0 0.0
      %2667 = vmatpush.msra.mxu0 0.0
      %2668 = vmatpush.msra.mxu0 0.0
      %2669 = vmatpush.msra.mxu0 0.0
      %2670 = vmatpush.msra.mxu0 0.0
      %2671 = vmatpush.msra.mxu0 0.0
      %2672 = vmatpush.msra.mxu0 0.0
      %2673 = vmatpush.msra.mxu0 0.0
      %2674 = vmatpush.msra.mxu0 0.0
      %2675 = vmatpush.msra.mxu0 0.0
      %2676 = vmatpush.msra.mxu0 0.0
      %2677 = vmatpush.msra.mxu0 0.0
      %2678 = vmatpush.msra.mxu0 %v2614
      %2679 = vmatpush.msra.mxu0 %v2611
      %2680 = vmatpush.msra.mxu0 %v2608
      %2681 = vmatpush.msra.mxu0 %v2605
      %2682 = vmatmul.f32.gmra.mxu0 %v2624
      %v2683 = vpop.f32.mrf.mxu0
      %v2684 = vadd.f32 %v2619, %v2683
      %2685 = vdwg.mxu0
      %v2689 = vrot.slane %v2664, 7
      %v2690 = vrot.slane %v2684, 6
      %vm2691 = vcmask 1040384
      %v2692 = vsel %vm2691, %v2644, %v2689
      %vm2693 = vcmask 1041408
      %v2694 = vsel %vm2693, %v2692, %v2690
      %v2696 = vlaneseq
      %vm2697 = vcmp.ge.s32.totalorder %v2696, 0
      %vm2698 = vcmp.lt.s32.totalorder %v2696, 300
      %vm2699 = vmand %vm2697, %vm2698
      %2700 = vst.msk [vmem:[%s613] sm:$0x7] %vm2699, %v2694
      %p2701 = scmp.lt.s32.totalorder %s31, 1
      %s2702 = scalar_select %p2701, %s31, 1
      %s2703 = smul.addr %s2702, 2
      %s2704 = smul.addr %s2703, 8
      %s2705 = scalar_lea.vmem %s18, %s2704
      %p2706 = scmp.lt.s32.totalorder %s31, 1
      %s2707 = scalar_select %p2706, %s31, 1
      %s2708 = smul.addr %s2707, 3
      %s2709 = scalar_lea.vmem %s19, %s2708
      // Predicated region
      $region93: #{model_forward.7} parent=91 // pred_check
        %p2710 = pneg %p432
      $region94: #{model_forward.7} parent=91 // pred_check_branch
        %2712 = sbr.rel (%p2710) target = $region96
      $region95: #{model_forward.7} parent=91 // pred_region
        _
      $region96: #{model_forward.7} parent=91 // pred_fallthru
        _
      // Predicated region
      $region97: #{model_forward.7} parent=91 // pred_check
        %p2713 = pneg %p458
      $region98: #{model_forward.7} parent=91 // pred_check_branch
        %2715 = sbr.rel (%p2713) target = $region100
      $region99: #{model_forward.7} parent=91 // pred_region
        _
      $region100: #{model_forward.7} parent=91 // pred_fallthru
        _
    $region92: #{model_forward.7} parent=5 // pred_fallthru
      _
    %p2716 = scmp.le.s32.totalorder 2, %s26
    // Predicated region
    $region101: #{model_forward.7} parent=5 // pred_check
      %p2717 = pneg %p2716
    $region102: #{model_forward.7} parent=5 // pred_check_branch
      %2719 = sbr.rel (%p2717) target = $region104
    $region103: #{model_forward.7} parent=5 // pred_region
      %s2720 = ssub.s32 %s26, 2
      // Predicated region
      $region105: #{model_forward.7} parent=103 // pred_check
        %p2721 = pneg %p438
      $region106: #{model_forward.7} parent=103 // pred_check_branch
        %2723 = sbr.rel (%p2721) target = $region108
      $region107: #{model_forward.7} parent=103 // pred_region
        %p2724 = scmp.lt.s32.totalorder %s32, 1
        %s2725 = scalar_select %p2724, %s32, 1
        %s2726 = smul.addr %s2725, 2
        %s2727 = smul.addr %s2726, 8
        %s2728 = scalar_lea.vmem %s18, %s2727
      $region108: #{model_forward.7} parent=103 // pred_fallthru
        _
      // Predicated region
      $region109: #{model_forward.7} parent=103 // pred_check
        %p2729 = pneg %p464
      $region110: #{model_forward.7} parent=103 // pred_check_branch
        %2731 = sbr.rel (%p2729) target = $region112
      $region111: #{model_forward.7} parent=103 // pred_region
        %p2732 = scmp.lt.s32.totalorder %s32, 1
        %s2733 = scalar_select %p2732, %s32, 1
        %s2734 = smul.addr %s2733, 3
        %s2735 = scalar_lea.vmem %s19, %s2734
      $region112: #{model_forward.7} parent=103 // pred_fallthru
        _
    $region104: #{model_forward.7} parent=5 // pred_fallthru
      _
  $region6: #{model_forward.7} parent=0 // loop_footer
    %s30 = sadd.s32 1, %s26
  $region7: #{model_forward.7} parent=0 // loop_footer_branch
    %25 = sbr.rel target = $region3
  $region8: #{model_forward.7} parent=0 // loop_exit
    _

</llo_original>
